<compile_context>
chip_gen: v6e
topology: v6e:2x2x1
jax: 0.10.0
libtpu: 0.0.40
codegen_flags: <defaults>
</compile_context>

<pallas_src>
import functools

import numpy as np
import jax
import jax.numpy as jnp
from jax.experimental import pallas as pl
from jax.experimental.pallas import tpu as pltpu

EPS = 1e-5


def resblock_kernel(Rows, HALO, Lp, TM, count, offsets,
                    x_ref, rm_ref,
                    B1_ref, bias1_ref, g1_ref, be1_ref,
                    B2_ref, bias2_ref, g2_ref, be2_ref,
                    ffold_ref, fbc_ref,
                    y_ref, h_ref):
    """Whole residual block in one kernel.

    x_ref    : (Rows+2*HALO, Lp) zero-padded input slab (rows=N*Dp*Hp, lanes=Wp*C)
    rm_ref   : (Rows, 1)         1.0 on interior (d,h) rows, 0.0 on padding rows
    B*_ref   : (9, Lp, Lp)       block-Toeplitz conv weights, one per (kd,kh) tap
    bias*_ref: (1, Lp)           conv bias broadcast over W, zero at padded-W lanes
    g*, be*  : (1, C)            BN gamma / beta
    ffold_ref: (Lp, C)           folds (W,C) lanes -> per-channel sums
    fbc_ref  : (C, Lp)           broadcasts per-channel values back to (W,C) lanes
    y_ref    : (Rows, Lp)        output slab (padding rows/lanes hold junk, sliced off)
    h_ref    : (Rows+2*HALO, Lp) VMEM scratch: halo'd intermediate for conv2
    """
    n_tiles = Rows // TM
    inv_cnt = 1.0 / count

    def conv_tiles(src_ref, B_ref, bias_ref, dst_ref, dst_base):
        """conv+bias per TM-row tile; park masked tiles in dst; fused (sum, sumsq)."""
        bias = bias_ref[...]
        s = jnp.zeros((1, Lp), jnp.float32)
        ss = jnp.zeros((1, Lp), jnp.float32)
        for i in range(n_tiles):
            r0 = i * TM
            acc = jnp.zeros((TM, Lp), jnp.float32)
            for t, off in enumerate(offsets):
                acc = acc + jnp.dot(
                    src_ref[HALO + off + r0:HALO + off + r0 + TM, :], B_ref[t],
                    preferred_element_type=jnp.float32)
            z = (acc + bias) * rm_ref[r0:r0 + TM, :]   # zero padded (d,h) rows
            s = s + jnp.sum(z, axis=0, keepdims=True)
            ss = ss + jnp.sum(z * z, axis=0, keepdims=True)
            dst_ref[dst_base + r0:dst_base + r0 + TM, :] = z
        return s, ss

    def bn_scale_shift(s, ss, g_ref, be_ref):
        """Per-channel affine (scale, shift) from fused sums, broadcast back to lanes."""
        mean_c = jnp.dot(s, ffold_ref[...], preferred_element_type=jnp.float32) * inv_cnt
        ex2_c = jnp.dot(ss, ffold_ref[...], preferred_element_type=jnp.float32) * inv_cnt
        var_c = ex2_c - mean_c * mean_c
        scale_c = g_ref[...] * jax.lax.rsqrt(var_c + EPS)
        shift_c = be_ref[...] - mean_c * scale_c
        scale_l = jnp.dot(scale_c, fbc_ref[...], preferred_element_type=jnp.float32)
        shift_l = jnp.dot(shift_c, fbc_ref[...], preferred_element_type=jnp.float32)
        return scale_l, shift_l            # (1, Lp), zero at padded-W lanes

    # Zero ONLY the halo rows of the scratch (the interior is fully overwritten below).
    h_ref[0:HALO, :] = jnp.zeros((HALO, Lp), jnp.float32)
    h_ref[HALO + Rows:HALO + Rows + HALO, :] = jnp.zeros((HALO, Lp), jnp.float32)

    # ---- conv1 (+ fused BN1 stats); raw masked output parked in h_ref interior ----
    s1, ss1 = conv_tiles(x_ref, B1_ref, bias1_ref, h_ref, HALO)
    sc1, sh1 = bn_scale_shift(s1, ss1, g1_ref, be1_ref)

    # ---- BN1 apply + ReLU in place (re-masked so padded rows stay exactly zero) ----
    for i in range(n_tiles):
        r0 = i * TM
        z = h_ref[HALO + r0:HALO + r0 + TM, :]
        h_ref[HALO + r0:HALO + r0 + TM, :] = (
            jnp.maximum(z * sc1 + sh1, 0.0) * rm_ref[r0:r0 + TM, :])

    # ---- conv2 (+ fused BN2 stats); raw masked output parked in y_ref ----
    s2, ss2 = conv_tiles(h_ref, B2_ref, bias2_ref, y_ref, 0)
    sc2, sh2 = bn_scale_shift(s2, ss2, g2_ref, be2_ref)

    # ---- BN2 apply + residual ----
    for i in range(n_tiles):
        r0 = i * TM
        z = y_ref[r0:r0 + TM, :]
        y_ref[r0:r0 + TM, :] = x_ref[HALO + r0:HALO + r0 + TM, :] + (z * sc2 + sh2)


def _toeplitz_weights(w, W, C):
    """(3,3,3,Cin,Cout) conv weight -> (9, Wp*C, Wp*C) block-Toeplitz matrices.

    B[t][wi*C+ci, wo*C+co] = w[kd, kh, kw, ci, co] for wi = wo + kw - 1 and interior
    wo in [1, W]; zero otherwise (padded-W output columns are all zero). t = kd*3+kh.
    """
    Wp = W + 2
    shift = np.zeros((3, Wp, Wp), np.float32)
    for kw in range(3):
        for wo in range(1, W + 1):
            shift[kw, wo + kw - 1, wo] = 1.0
    shift = jnp.asarray(shift)
    w = w.astype(jnp.float32)
    mats = []
    for kd in range(3):
        for kh in range(3):
            mats.append(sum(jnp.kron(shift[kw], w[kd, kh, kw]) for kw in range(3)))
    return jnp.stack(mats)                 # (9, Wp*C, Wp*C)


def resnet_block(x_ncdhw, params):
    """params = (w1, b1, g1, be1, w2, b2, g2, be2); w* shaped (3,3,3,Cin,Cout)."""
    w1, b1, g1, be1, w2, b2, g2, be2 = params
    N, C, D, H, W = x_ncdhw.shape
    Dp, Hp, Wp = D + 2, H + 2, W + 2
    Lp = Wp * C                            # lane dim: folded (W, C)
    Rows = N * Dp * Hp                     # sublane dim: (n, d, h) planes
    HALO = -(-(Hp + 1) // 8) * 8           # max |row shift| rounded to a sublane multiple
    TM = next((c for c in (64, 32, 16, 8) if Rows % c == 0), Rows)
    count = float(N * D * H * W)

    # glue: NCDHW -> NDHWC, zero spatial pad, fold (W,C) into lanes, add zero row halo
    x = jnp.transpose(x_ncdhw, (0, 2, 3, 4, 1)).astype(jnp.float32)
    xp = jnp.pad(x, ((0, 0), (1, 1), (1, 1), (1, 1), (0, 0)))
    slab = jnp.pad(xp.reshape(Rows, Lp), ((HALO, HALO), (0, 0)))

    # constants: interior row mask, channel fold/broadcast matrices, masked bias rows
    rmask = np.zeros((N, Dp, Hp), np.float32)
    rmask[:, 1:D + 1, 1:H + 1] = 1.0
    rmask = jnp.asarray(rmask.reshape(Rows, 1))
    w_int = np.zeros((Wp,), np.float32)
    w_int[1:W + 1] = 1.0
    ffold = jnp.asarray(np.kron(w_int[:, None], np.eye(C, dtype=np.float32)))  # (Lp, C)
    fbc = ffold.T                                                              # (C, Lp)
    w_int_j = jnp.asarray(w_int)

    B1 = _toeplitz_weights(w1, W, C)
    B2 = _toeplitz_weights(w2, W, C)
    bias1 = jnp.kron(w_int_j, b1.astype(jnp.float32)).reshape(1, Lp)
    bias2 = jnp.kron(w_int_j, b2.astype(jnp.float32)).reshape(1, Lp)
    g1r = g1.reshape(1, C).astype(jnp.float32)
    be1r = be1.reshape(1, C).astype(jnp.float32)
    g2r = g2.reshape(1, C).astype(jnp.float32)
    be2r = be2.reshape(1, C).astype(jnp.float32)

    offsets = tuple((kd - 1) * Hp + (kh - 1) for kd in range(3) for kh in range(3))

    vspec = pl.BlockSpec(memory_space=pltpu.MemorySpace.VMEM)
    kernel = functools.partial(resblock_kernel, Rows, HALO, Lp, TM, count, offsets)

    y2d = pl.pallas_call(
        kernel,
        out_shape=jax.ShapeDtypeStruct((Rows, Lp), jnp.float32),
        in_specs=[vspec] * 12,
        out_specs=vspec,
        scratch_shapes=[pltpu.VMEM((Rows + 2 * HALO, Lp), jnp.float32)],
        compiler_params=pltpu.CompilerParams(vmem_limit_bytes=32 * 1024 * 1024),
    )(slab, rmask, B1, bias1, g1r, be1r, B2, bias2, g2r, be2r, ffold, fbc)

    # slice off the spatial padding and go back to NCDHW
    y = y2d.reshape(N, Dp, Hp, Wp, C)[:, 1:D + 1, 1:H + 1, 1:W + 1, :]
    return jnp.transpose(y, (0, 4, 1, 2, 3))


def resnet_block_reference(x_ncdhw, params):
    """Pure-JAX reference (lax conv) for correctness check."""
    w1, b1, g1, be1, w2, b2, g2, be2 = params
    x = jnp.transpose(x_ncdhw, (0, 2, 3, 4, 1)).astype(jnp.float32)

    def conv(h, w, b):
        out = jax.lax.conv_general_dilated(
            h, w.astype(jnp.float32), (1, 1, 1), [(1, 1)] * 3,
            dimension_numbers=('NDHWC', 'DHWIO', 'NDHWC'))
        return out + b.reshape(1, 1, 1, 1, -1)

    def bn(h, g, be):
        mean = jnp.mean(h, axis=(0, 1, 2, 3), keepdims=True)
        var = jnp.mean((h - mean) ** 2, axis=(0, 1, 2, 3), keepdims=True)
        return (h - mean) * jax.lax.rsqrt(var + EPS) * g.reshape(1, 1, 1, 1, -1) \
            + be.reshape(1, 1, 1, 1, -1)

    z = jnp.maximum(bn(conv(x, w1, b1), g1, be1), 0.0)
    z = bn(conv(z, w2, b2), g2, be2)
    return jnp.transpose(x + z, (0, 4, 1, 2, 3))


if __name__ == "__main__":
    key = jax.random.PRNGKey(0)
    N, C, D, H, W = 2, 32, 6, 6, 6       # in_channels=32 is the module default

    ks = jax.random.split(key, 5)
    x = jax.random.normal(ks[0], (N, C, D, H, W), jnp.float32)

    bound = (1.0 / (C * 27)) ** 0.5      # PyTorch-style uniform bound for conv params
    w1 = jax.random.uniform(ks[1], (3, 3, 3, C, C), jnp.float32, -bound, bound)
    b1 = jax.random.uniform(ks[2], (C,), jnp.float32, -bound, bound)
    w2 = jax.random.uniform(ks[3], (3, 3, 3, C, C), jnp.float32, -bound, bound)
    b2 = jax.random.uniform(ks[4], (C,), jnp.float32, -bound, bound)
    g1 = jnp.ones((C,), jnp.float32)     # BatchNorm default init: weight=1
    be1 = jnp.zeros((C,), jnp.float32)   # BatchNorm default init: bias=0
    g2 = jnp.ones((C,), jnp.float32)
    be2 = jnp.zeros((C,), jnp.float32)
    params = (w1, b1, g1, be1, w2, b2, g2, be2)

    # jit the whole forward so the layout glue (transpose/pad/Toeplitz construction)
    # fuses with the pallas_call and repeated calls are a single dispatch.
    resnet_block_jit = jax.jit(resnet_block)

    y = resnet_block_jit(x, params)
    jax.block_until_ready(y)

    y_ref = resnet_block_reference(x, params)
    assert y.shape == (N, C, D, H, W)
    assert jnp.allclose(y, y_ref, atol=1e-3, rtol=1e-3), "kernel/reference mismatch"

    # TODO(synk): BatchNorm running_mean/running_var buffer updates (a training-time
    # side effect that does not affect the returned tensor) are not modeled.
    print("KERNEL_OK")
</pallas_src>

<mosaic_0001>
module attributes {stable_mosaic.version = 11 : i64} {
  func.func @resblock_kernel(%arg0: memref<160x256xf32, #tpu.memory_space<vmem>>, %arg1: memref<128x1xf32, #tpu.memory_space<vmem>>, %arg2: memref<9x256x256xf32, #tpu.memory_space<vmem>>, %arg3: memref<1x256xf32, #tpu.memory_space<vmem>>, %arg4: memref<1x32xf32, #tpu.memory_space<vmem>>, %arg5: memref<1x32xf32, #tpu.memory_space<vmem>>, %arg6: memref<9x256x256xf32, #tpu.memory_space<vmem>>, %arg7: memref<1x256xf32, #tpu.memory_space<vmem>>, %arg8: memref<1x32xf32, #tpu.memory_space<vmem>>, %arg9: memref<1x32xf32, #tpu.memory_space<vmem>>, %arg10: memref<256x32xf32, #tpu.memory_space<vmem>>, %arg11: memref<32x256xf32, #tpu.memory_space<vmem>>, %arg12: memref<128x256xf32, #tpu.memory_space<vmem>>, %arg13: memref<160x256xf32, #tpu.memory_space<vmem>>) attributes {dimension_semantics = [], scalar_prefetch = 0 : i64, scratch_operands = 1 : i64, tpu.core_type = #tpu.core_type<tc>} {
    %cst = arith.constant 0.000000e+00 : f32
    %0 = vector.broadcast %cst : f32 to vector<16x256xf32>
    %c0 = arith.constant 0 : index
    %c0_0 = arith.constant 0 : index
    %1 = vector.load %arg13[%c0, %c0_0] : memref<160x256xf32, #tpu.memory_space<vmem>>, vector<16x256xf32>
    tpu.vector_store %arg13[%c0, %c0_0], %0 {strides = array<i32>} : memref<160x256xf32, #tpu.memory_space<vmem>>, vector<16x256xf32>,
    %cst_1 = arith.constant 0.000000e+00 : f32
    %2 = vector.broadcast %cst_1 : f32 to vector<16x256xf32>
    %c144 = arith.constant 144 : index
    %c0_2 = arith.constant 0 : index
    %3 = vector.load %arg13[%c144, %c0_2] : memref<160x256xf32, #tpu.memory_space<vmem>>, vector<16x256xf32>
    tpu.vector_store %arg13[%c144, %c0_2], %2 {strides = array<i32>} : memref<160x256xf32, #tpu.memory_space<vmem>>, vector<16x256xf32>,
    %c0_3 = arith.constant 0 : index
    %c0_4 = arith.constant 0 : index
    %4 = vector.load %arg3[%c0_3, %c0_4] : memref<1x256xf32, #tpu.memory_space<vmem>>, vector<1x256xf32>
    %cst_5 = arith.constant 0.000000e+00 : f32
    %5 = vector.broadcast %cst_5 : f32 to vector<1x256xf32>
    %cst_6 = arith.constant 0.000000e+00 : f32
    %6 = vector.broadcast %cst_6 : f32 to vector<1x256xf32>
    %cst_7 = arith.constant 0.000000e+00 : f32
    %7 = vector.broadcast %cst_7 : f32 to vector<64x256xf32>
    %c7 = arith.constant 7 : index
    %c0_8 = arith.constant 0 : index
    %8 = vector.load %arg0[%c7, %c0_8] : memref<160x256xf32, #tpu.memory_space<vmem>>, vector<64x256xf32>
    %c0_9 = arith.constant 0 : index
    %c0_10 = arith.constant 0 : index
    %c0_11 = arith.constant 0 : index
    %9 = vector.load %arg2[%c0_9, %c0_10, %c0_11] : memref<9x256x256xf32, #tpu.memory_space<vmem>>, vector<1x256x256xf32>
    %10 = vector.shape_cast %9 : vector<1x256x256xf32> to vector<256x256xf32>
    %cst_12 = arith.constant dense<0.000000e+00> : vector<64x256xf32>
    %11 = tpu.matmul %8, %10, %cst_12 {dimension_numbers = #tpu.dot_dimension_numbers<[1], [0], [0], [1], [0, 0, 1, 1], [], []>} : vector<64x256xf32>, vector<256x256xf32>, vector<64x256xf32> -> vector<64x256xf32>
    %12 = arith.addf %7, %11 : vector<64x256xf32>
    %c8 = arith.constant 8 : index
    %c0_13 = arith.constant 0 : index
    %13 = vector.load %arg0[%c8, %c0_13] : memref<160x256xf32, #tpu.memory_space<vmem>>, vector<64x256xf32>
    %c1 = arith.constant 1 : index
    %c0_14 = arith.constant 0 : index
    %c0_15 = arith.constant 0 : index
    %14 = vector.load %arg2[%c1, %c0_14, %c0_15] : memref<9x256x256xf32, #tpu.memory_space<vmem>>, vector<1x256x256xf32>
    %15 = vector.shape_cast %14 : vector<1x256x256xf32> to vector<256x256xf32>
    %cst_16 = arith.constant dense<0.000000e+00> : vector<64x256xf32>
    %16 = tpu.matmul %13, %15, %cst_16 {dimension_numbers = #tpu.dot_dimension_numbers<[1], [0], [0], [1], [0, 0, 1, 1], [], []>} : vector<64x256xf32>, vector<256x256xf32>, vector<64x256xf32> -> vector<64x256xf32>
    %17 = arith.addf %12, %16 : vector<64x256xf32>
    %c9 = arith.constant 9 : index
    %c0_17 = arith.constant 0 : index
    %18 = vector.load %arg0[%c9, %c0_17] : memref<160x256xf32, #tpu.memory_space<vmem>>, vector<64x256xf32>
    %c2 = arith.constant 2 : index
    %c0_18 = arith.constant 0 : index
    %c0_19 = arith.constant 0 : index
    %19 = vector.load %arg2[%c2, %c0_18, %c0_19] : memref<9x256x256xf32, #tpu.memory_space<vmem>>, vector<1x256x256xf32>
    %20 = vector.shape_cast %19 : vector<1x256x256xf32> to vector<256x256xf32>
    %cst_20 = arith.constant dense<0.000000e+00> : vector<64x256xf32>
    %21 = tpu.matmul %18, %20, %cst_20 {dimension_numbers = #tpu.dot_dimension_numbers<[1], [0], [0], [1], [0, 0, 1, 1], [], []>} : vector<64x256xf32>, vector<256x256xf32>, vector<64x256xf32> -> vector<64x256xf32>
    %22 = arith.addf %17, %21 : vector<64x256xf32>
    %c15 = arith.constant 15 : index
    %c0_21 = arith.constant 0 : index
    %23 = vector.load %arg0[%c15, %c0_21] : memref<160x256xf32, #tpu.memory_space<vmem>>, vector<64x256xf32>
    %c3 = arith.constant 3 : index
    %c0_22 = arith.constant 0 : index
    %c0_23 = arith.constant 0 : index
    %24 = vector.load %arg2[%c3, %c0_22, %c0_23] : memref<9x256x256xf32, #tpu.memory_space<vmem>>, vector<1x256x256xf32>
    %25 = vector.shape_cast %24 : vector<1x256x256xf32> to vector<256x256xf32>
    %cst_24 = arith.constant dense<0.000000e+00> : vector<64x256xf32>
    %26 = tpu.matmul %23, %25, %cst_24 {dimension_numbers = #tpu.dot_dimension_numbers<[1], [0], [0], [1], [0, 0, 1, 1], [], []>} : vector<64x256xf32>, vector<256x256xf32>, vector<64x256xf32> -> vector<64x256xf32>
    %27 = arith.addf %22, %26 : vector<64x256xf32>
    %c16 = arith.constant 16 : index
    %c0_25 = arith.constant 0 : index
    %28 = vector.load %arg0[%c16, %c0_25] : memref<160x256xf32, #tpu.memory_space<vmem>>, vector<64x256xf32>
    %c4 = arith.constant 4 : index
    %c0_26 = arith.constant 0 : index
    %c0_27 = arith.constant 0 : index
    %29 = vector.load %arg2[%c4, %c0_26, %c0_27] : memref<9x256x256xf32, #tpu.memory_space<vmem>>, vector<1x256x256xf32>
    %30 = vector.shape_cast %29 : vector<1x256x256xf32> to vector<256x256xf32>
    %cst_28 = arith.constant dense<0.000000e+00> : vector<64x256xf32>
    %31 = tpu.matmul %28, %30, %cst_28 {dimension_numbers = #tpu.dot_dimension_numbers<[1], [0], [0], [1], [0, 0, 1, 1], [], []>} : vector<64x256xf32>, vector<256x256xf32>, vector<64x256xf32> -> vector<64x256xf32>
    %32 = arith.addf %27, %31 : vector<64x256xf32>
    %c17 = arith.constant 17 : index
    %c0_29 = arith.constant 0 : index
    %33 = vector.load %arg0[%c17, %c0_29] : memref<160x256xf32, #tpu.memory_space<vmem>>, vector<64x256xf32>
    %c5 = arith.constant 5 : index
    %c0_30 = arith.constant 0 : index
    %c0_31 = arith.constant 0 : index
    %34 = vector.load %arg2[%c5, %c0_30, %c0_31] : memref<9x256x256xf32, #tpu.memory_space<vmem>>, vector<1x256x256xf32>
    %35 = vector.shape_cast %34 : vector<1x256x256xf32> to vector<256x256xf32>
    %cst_32 = arith.constant dense<0.000000e+00> : vector<64x256xf32>
    %36 = tpu.matmul %33, %35, %cst_32 {dimension_numbers = #tpu.dot_dimension_numbers<[1], [0], [0], [1], [0, 0, 1, 1], [], []>} : vector<64x256xf32>, vector<256x256xf32>, vector<64x256xf32> -> vector<64x256xf32>
    %37 = arith.addf %32, %36 : vector<64x256xf32>
    %c23 = arith.constant 23 : index
    %c0_33 = arith.constant 0 : index
    %38 = vector.load %arg0[%c23, %c0_33] : memref<160x256xf32, #tpu.memory_space<vmem>>, vector<64x256xf32>
    %c6 = arith.constant 6 : index
    %c0_34 = arith.constant 0 : index
    %c0_35 = arith.constant 0 : index
    %39 = vector.load %arg2[%c6, %c0_34, %c0_35] : memref<9x256x256xf32, #tpu.memory_space<vmem>>, vector<1x256x256xf32>
    %40 = vector.shape_cast %39 : vector<1x256x256xf32> to vector<256x256xf32>
    %cst_36 = arith.constant dense<0.000000e+00> : vector<64x256xf32>
    %41 = tpu.matmul %38, %40, %cst_36 {dimension_numbers = #tpu.dot_dimension_numbers<[1], [0], [0], [1], [0, 0, 1, 1], [], []>} : vector<64x256xf32>, vector<256x256xf32>, vector<64x256xf32> -> vector<64x256xf32>
    %42 = arith.addf %37, %41 : vector<64x256xf32>
    %c24 = arith.constant 24 : index
    %c0_37 = arith.constant 0 : index
    %43 = vector.load %arg0[%c24, %c0_37] : memref<160x256xf32, #tpu.memory_space<vmem>>, vector<64x256xf32>
    %c7_38 = arith.constant 7 : index
    %c0_39 = arith.constant 0 : index
    %c0_40 = arith.constant 0 : index
    %44 = vector.load %arg2[%c7_38, %c0_39, %c0_40] : memref<9x256x256xf32, #tpu.memory_space<vmem>>, vector<1x256x256xf32>
    %45 = vector.shape_cast %44 : vector<1x256x256xf32> to vector<256x256xf32>
    %cst_41 = arith.constant dense<0.000000e+00> : vector<64x256xf32>
    %46 = tpu.matmul %43, %45, %cst_41 {dimension_numbers = #tpu.dot_dimension_numbers<[1], [0], [0], [1], [0, 0, 1, 1], [], []>} : vector<64x256xf32>, vector<256x256xf32>, vector<64x256xf32> -> vector<64x256xf32>
    %47 = arith.addf %42, %46 : vector<64x256xf32>
    %c25 = arith.constant 25 : index
    %c0_42 = arith.constant 0 : index
    %48 = vector.load %arg0[%c25, %c0_42] : memref<160x256xf32, #tpu.memory_space<vmem>>, vector<64x256xf32>
    %c8_43 = arith.constant 8 : index
    %c0_44 = arith.constant 0 : index
    %c0_45 = arith.constant 0 : index
    %49 = vector.load %arg2[%c8_43, %c0_44, %c0_45] : memref<9x256x256xf32, #tpu.memory_space<vmem>>, vector<1x256x256xf32>
    %50 = vector.shape_cast %49 : vector<1x256x256xf32> to vector<256x256xf32>
    %cst_46 = arith.constant dense<0.000000e+00> : vector<64x256xf32>
    %51 = tpu.matmul %48, %50, %cst_46 {dimension_numbers = #tpu.dot_dimension_numbers<[1], [0], [0], [1], [0, 0, 1, 1], [], []>} : vector<64x256xf32>, vector<256x256xf32>, vector<64x256xf32> -> vector<64x256xf32>
    %52 = arith.addf %47, %51 : vector<64x256xf32>
    %53 = vector.broadcast %4 : vector<1x256xf32> to vector<64x256xf32>
    %54 = arith.addf %52, %53 : vector<64x256xf32>
    %c0_47 = arith.constant 0 : index
    %c0_48 = arith.constant 0 : index
    %55 = vector.load %arg1[%c0_47, %c0_48] : memref<128x1xf32, #tpu.memory_space<vmem>>, vector<64x1xf32>
    %56 = vector.broadcast %55 : vector<64x1xf32> to vector<64x256xf32>
    %57 = arith.mulf %54, %56 : vector<64x256xf32>
    %cst_49 = arith.constant dense<0.000000e+00> : vector<256xf32>
    %58 = vector.multi_reduction <add>, %57, %cst_49 [0] : vector<64x256xf32> to vector<256xf32>
    %59 = vector.shape_cast %58 : vector<256xf32> to vector<1x256xf32>
    %60 = arith.addf %5, %59 : vector<1x256xf32>
    %61 = arith.mulf %57, %57 : vector<64x256xf32>
    %cst_50 = arith.constant dense<0.000000e+00> : vector<256xf32>
    %62 = vector.multi_reduction <add>, %61, %cst_50 [0] : vector<64x256xf32> to vector<256xf32>
    %63 = vector.shape_cast %62 : vector<256xf32> to vector<1x256xf32>
    %64 = arith.addf %6, %63 : vector<1x256xf32>
    %c16_51 = arith.constant 16 : index
    %c0_52 = arith.constant 0 : index
    %65 = vector.load %arg13[%c16_51, %c0_52] : memref<160x256xf32, #tpu.memory_space<vmem>>, vector<64x256xf32>
    tpu.vector_store %arg13[%c16_51, %c0_52], %57 {strides = array<i32>} : memref<160x256xf32, #tpu.memory_space<vmem>>, vector<64x256xf32>,
    %cst_53 = arith.constant 0.000000e+00 : f32
    %66 = vector.broadcast %cst_53 : f32 to vector<64x256xf32>
    %c71 = arith.constant 71 : index
    %c0_54 = arith.constant 0 : index
    %67 = vector.load %arg0[%c71, %c0_54] : memref<160x256xf32, #tpu.memory_space<vmem>>, vector<64x256xf32>
    %c0_55 = arith.constant 0 : index
    %c0_56 = arith.constant 0 : index
    %c0_57 = arith.constant 0 : index
    %68 = vector.load %arg2[%c0_55, %c0_56, %c0_57] : memref<9x256x256xf32, #tpu.memory_space<vmem>>, vector<1x256x256xf32>
    %69 = vector.shape_cast %68 : vector<1x256x256xf32> to vector<256x256xf32>
    %cst_58 = arith.constant dense<0.000000e+00> : vector<64x256xf32>
    %70 = tpu.matmul %67, %69, %cst_58 {dimension_numbers = #tpu.dot_dimension_numbers<[1], [0], [0], [1], [0, 0, 1, 1], [], []>} : vector<64x256xf32>, vector<256x256xf32>, vector<64x256xf32> -> vector<64x256xf32>
    %71 = arith.addf %66, %70 : vector<64x256xf32>
    %c72 = arith.constant 72 : index
    %c0_59 = arith.constant 0 : index
    %72 = vector.load %arg0[%c72, %c0_59] : memref<160x256xf32, #tpu.memory_space<vmem>>, vector<64x256xf32>
    %c1_60 = arith.constant 1 : index
    %c0_61 = arith.constant 0 : index
    %c0_62 = arith.constant 0 : index
    %73 = vector.load %arg2[%c1_60, %c0_61, %c0_62] : memref<9x256x256xf32, #tpu.memory_space<vmem>>, vector<1x256x256xf32>
    %74 = vector.shape_cast %73 : vector<1x256x256xf32> to vector<256x256xf32>
    %cst_63 = arith.constant dense<0.000000e+00> : vector<64x256xf32>
    %75 = tpu.matmul %72, %74, %cst_63 {dimension_numbers = #tpu.dot_dimension_numbers<[1], [0], [0], [1], [0, 0, 1, 1], [], []>} : vector<64x256xf32>, vector<256x256xf32>, vector<64x256xf32> -> vector<64x256xf32>
    %76 = arith.addf %71, %75 : vector<64x256xf32>
    %c73 = arith.constant 73 : index
    %c0_64 = arith.constant 0 : index
    %77 = vector.load %arg0[%c73, %c0_64] : memref<160x256xf32, #tpu.memory_space<vmem>>, vector<64x256xf32>
    %c2_65 = arith.constant 2 : index
    %c0_66 = arith.constant 0 : index
    %c0_67 = arith.constant 0 : index
    %78 = vector.load %arg2[%c2_65, %c0_66, %c0_67] : memref<9x256x256xf32, #tpu.memory_space<vmem>>, vector<1x256x256xf32>
    %79 = vector.shape_cast %78 : vector<1x256x256xf32> to vector<256x256xf32>
    %cst_68 = arith.constant dense<0.000000e+00> : vector<64x256xf32>
    %80 = tpu.matmul %77, %79, %cst_68 {dimension_numbers = #tpu.dot_dimension_numbers<[1], [0], [0], [1], [0, 0, 1, 1], [], []>} : vector<64x256xf32>, vector<256x256xf32>, vector<64x256xf32> -> vector<64x256xf32>
    %81 = arith.addf %76, %80 : vector<64x256xf32>
    %c79 = arith.constant 79 : index
    %c0_69 = arith.constant 0 : index
    %82 = vector.load %arg0[%c79, %c0_69] : memref<160x256xf32, #tpu.memory_space<vmem>>, vector<64x256xf32>
    %c3_70 = arith.constant 3 : index
    %c0_71 = arith.constant 0 : index
    %c0_72 = arith.constant 0 : index
    %83 = vector.load %arg2[%c3_70, %c0_71, %c0_72] : memref<9x256x256xf32, #tpu.memory_space<vmem>>, vector<1x256x256xf32>
    %84 = vector.shape_cast %83 : vector<1x256x256xf32> to vector<256x256xf32>
    %cst_73 = arith.constant dense<0.000000e+00> : vector<64x256xf32>
    %85 = tpu.matmul %82, %84, %cst_73 {dimension_numbers = #tpu.dot_dimension_numbers<[1], [0], [0], [1], [0, 0, 1, 1], [], []>} : vector<64x256xf32>, vector<256x256xf32>, vector<64x256xf32> -> vector<64x256xf32>
    %86 = arith.addf %81, %85 : vector<64x256xf32>
    %c80 = arith.constant 80 : index
    %c0_74 = arith.constant 0 : index
    %87 = vector.load %arg0[%c80, %c0_74] : memref<160x256xf32, #tpu.memory_space<vmem>>, vector<64x256xf32>
    %c4_75 = arith.constant 4 : index
    %c0_76 = arith.constant 0 : index
    %c0_77 = arith.constant 0 : index
    %88 = vector.load %arg2[%c4_75, %c0_76, %c0_77] : memref<9x256x256xf32, #tpu.memory_space<vmem>>, vector<1x256x256xf32>
    %89 = vector.shape_cast %88 : vector<1x256x256xf32> to vector<256x256xf32>
    %cst_78 = arith.constant dense<0.000000e+00> : vector<64x256xf32>
    %90 = tpu.matmul %87, %89, %cst_78 {dimension_numbers = #tpu.dot_dimension_numbers<[1], [0], [0], [1], [0, 0, 1, 1], [], []>} : vector<64x256xf32>, vector<256x256xf32>, vector<64x256xf32> -> vector<64x256xf32>
    %91 = arith.addf %86, %90 : vector<64x256xf32>
    %c81 = arith.constant 81 : index
    %c0_79 = arith.constant 0 : index
    %92 = vector.load %arg0[%c81, %c0_79] : memref<160x256xf32, #tpu.memory_space<vmem>>, vector<64x256xf32>
    %c5_80 = arith.constant 5 : index
    %c0_81 = arith.constant 0 : index
    %c0_82 = arith.constant 0 : index
    %93 = vector.load %arg2[%c5_80, %c0_81, %c0_82] : memref<9x256x256xf32, #tpu.memory_space<vmem>>, vector<1x256x256xf32>
    %94 = vector.shape_cast %93 : vector<1x256x256xf32> to vector<256x256xf32>
    %cst_83 = arith.constant dense<0.000000e+00> : vector<64x256xf32>
    %95 = tpu.matmul %92, %94, %cst_83 {dimension_numbers = #tpu.dot_dimension_numbers<[1], [0], [0], [1], [0, 0, 1, 1], [], []>} : vector<64x256xf32>, vector<256x256xf32>, vector<64x256xf32> -> vector<64x256xf32>
    %96 = arith.addf %91, %95 : vector<64x256xf32>
    %c87 = arith.constant 87 : index
    %c0_84 = arith.constant 0 : index
    %97 = vector.load %arg0[%c87, %c0_84] : memref<160x256xf32, #tpu.memory_space<vmem>>, vector<64x256xf32>
    %c6_85 = arith.constant 6 : index
    %c0_86 = arith.constant 0 : index
    %c0_87 = arith.constant 0 : index
    %98 = vector.load %arg2[%c6_85, %c0_86, %c0_87] : memref<9x256x256xf32, #tpu.memory_space<vmem>>, vector<1x256x256xf32>
    %99 = vector.shape_cast %98 : vector<1x256x256xf32> to vector<256x256xf32>
    %cst_88 = arith.constant dense<0.000000e+00> : vector<64x256xf32>
    %100 = tpu.matmul %97, %99, %cst_88 {dimension_numbers = #tpu.dot_dimension_numbers<[1], [0], [0], [1], [0, 0, 1, 1], [], []>} : vector<64x256xf32>, vector<256x256xf32>, vector<64x256xf32> -> vector<64x256xf32>
    %101 = arith.addf %96, %100 : vector<64x256xf32>
    %c88 = arith.constant 88 : index
    %c0_89 = arith.constant 0 : index
    %102 = vector.load %arg0[%c88, %c0_89] : memref<160x256xf32, #tpu.memory_space<vmem>>, vector<64x256xf32>
    %c7_90 = arith.constant 7 : index
    %c0_91 = arith.constant 0 : index
    %c0_92 = arith.constant 0 : index
    %103 = vector.load %arg2[%c7_90, %c0_91, %c0_92] : memref<9x256x256xf32, #tpu.memory_space<vmem>>, vector<1x256x256xf32>
    %104 = vector.shape_cast %103 : vector<1x256x256xf32> to vector<256x256xf32>
    %cst_93 = arith.constant dense<0.000000e+00> : vector<64x256xf32>
    %105 = tpu.matmul %102, %104, %cst_93 {dimension_numbers = #tpu.dot_dimension_numbers<[1], [0], [0], [1], [0, 0, 1, 1], [], []>} : vector<64x256xf32>, vector<256x256xf32>, vector<64x256xf32> -> vector<64x256xf32>
    %106 = arith.addf %101, %105 : vector<64x256xf32>
    %c89 = arith.constant 89 : index
    %c0_94 = arith.constant 0 : index
    %107 = vector.load %arg0[%c89, %c0_94] : memref<160x256xf32, #tpu.memory_space<vmem>>, vector<64x256xf32>
    %c8_95 = arith.constant 8 : index
    %c0_96 = arith.constant 0 : index
    %c0_97 = arith.constant 0 : index
    %108 = vector.load %arg2[%c8_95, %c0_96, %c0_97] : memref<9x256x256xf32, #tpu.memory_space<vmem>>, vector<1x256x256xf32>
    %109 = vector.shape_cast %108 : vector<1x256x256xf32> to vector<256x256xf32>
    %cst_98 = arith.constant dense<0.000000e+00> : vector<64x256xf32>
    %110 = tpu.matmul %107, %109, %cst_98 {dimension_numbers = #tpu.dot_dimension_numbers<[1], [0], [0], [1], [0, 0, 1, 1], [], []>} : vector<64x256xf32>, vector<256x256xf32>, vector<64x256xf32> -> vector<64x256xf32>
    %111 = arith.addf %106, %110 : vector<64x256xf32>
    %112 = vector.broadcast %4 : vector<1x256xf32> to vector<64x256xf32>
    %113 = arith.addf %111, %112 : vector<64x256xf32>
    %c64 = arith.constant 64 : index
    %c0_99 = arith.constant 0 : index
    %114 = vector.load %arg1[%c64, %c0_99] : memref<128x1xf32, #tpu.memory_space<vmem>>, vector<64x1xf32>
    %115 = vector.broadcast %114 : vector<64x1xf32> to vector<64x256xf32>
    %116 = arith.mulf %113, %115 : vector<64x256xf32>
    %cst_100 = arith.constant dense<0.000000e+00> : vector<256xf32>
    %117 = vector.multi_reduction <add>, %116, %cst_100 [0] : vector<64x256xf32> to vector<256xf32>
    %118 = vector.shape_cast %117 : vector<256xf32> to vector<1x256xf32>
    %119 = arith.addf %60, %118 : vector<1x256xf32>
    %120 = arith.mulf %116, %116 : vector<64x256xf32>
    %cst_101 = arith.constant dense<0.000000e+00> : vector<256xf32>
    %121 = vector.multi_reduction <add>, %120, %cst_101 [0] : vector<64x256xf32> to vector<256xf32>
    %122 = vector.shape_cast %121 : vector<256xf32> to vector<1x256xf32>
    %123 = arith.addf %64, %122 : vector<1x256xf32>
    %c80_102 = arith.constant 80 : index
    %c0_103 = arith.constant 0 : index
    %124 = vector.load %arg13[%c80_102, %c0_103] : memref<160x256xf32, #tpu.memory_space<vmem>>, vector<64x256xf32>
    tpu.vector_store %arg13[%c80_102, %c0_103], %116 {strides = array<i32>} : memref<160x256xf32, #tpu.memory_space<vmem>>, vector<64x256xf32>,
    %c0_104 = arith.constant 0 : index
    %c0_105 = arith.constant 0 : index
    %125 = vector.load %arg10[%c0_104, %c0_105] : memref<256x32xf32, #tpu.memory_space<vmem>>, vector<256x32xf32>
    %cst_106 = arith.constant dense<0.000000e+00> : vector<1x32xf32>
    %126 = tpu.matmul %119, %125, %cst_106 {dimension_numbers = #tpu.dot_dimension_numbers<[1], [0], [0], [1], [0, 0, 1, 1], [], []>} : vector<1x256xf32>, vector<256x32xf32>, vector<1x32xf32> -> vector<1x32xf32>
    %cst_107 = arith.constant 0.00231481483 : f32
    %127 = vector.broadcast %cst_107 : f32 to vector<1x32xf32>
    %128 = arith.mulf %126, %127 : vector<1x32xf32>
    %c0_108 = arith.constant 0 : index
    %c0_109 = arith.constant 0 : index
    %129 = vector.load %arg10[%c0_108, %c0_109] : memref<256x32xf32, #tpu.memory_space<vmem>>, vector<256x32xf32>
    %cst_110 = arith.constant dense<0.000000e+00> : vector<1x32xf32>
    %130 = tpu.matmul %123, %129, %cst_110 {dimension_numbers = #tpu.dot_dimension_numbers<[1], [0], [0], [1], [0, 0, 1, 1], [], []>} : vector<1x256xf32>, vector<256x32xf32>, vector<1x32xf32> -> vector<1x32xf32>
    %cst_111 = arith.constant 0.00231481483 : f32
    %131 = vector.broadcast %cst_111 : f32 to vector<1x32xf32>
    %132 = arith.mulf %130, %131 : vector<1x32xf32>
    %133 = arith.mulf %128, %128 : vector<1x32xf32>
    %134 = arith.subf %132, %133 : vector<1x32xf32>
    %c0_112 = arith.constant 0 : index
    %c0_113 = arith.constant 0 : index
    %135 = vector.load %arg4[%c0_112, %c0_113] : memref<1x32xf32, #tpu.memory_space<vmem>>, vector<1x32xf32>
    %cst_114 = arith.constant 9.99999974E-6 : f32
    %136 = vector.broadcast %cst_114 : f32 to vector<1x32xf32>
    %137 = arith.addf %134, %136 : vector<1x32xf32>
    %138 = math.rsqrt %137 : vector<1x32xf32>
    %139 = arith.mulf %135, %138 : vector<1x32xf32>
    %c0_115 = arith.constant 0 : index
    %c0_116 = arith.constant 0 : index
    %140 = vector.load %arg5[%c0_115, %c0_116] : memref<1x32xf32, #tpu.memory_space<vmem>>, vector<1x32xf32>
    %141 = arith.mulf %128, %139 : vector<1x32xf32>
    %142 = arith.subf %140, %141 : vector<1x32xf32>
    %c0_117 = arith.constant 0 : index
    %c0_118 = arith.constant 0 : index
    %143 = vector.load %arg11[%c0_117, %c0_118] : memref<32x256xf32, #tpu.memory_space<vmem>>, vector<32x256xf32>
    %cst_119 = arith.constant dense<0.000000e+00> : vector<1x256xf32>
    %144 = tpu.matmul %139, %143, %cst_119 {dimension_numbers = #tpu.dot_dimension_numbers<[1], [0], [0], [1], [0, 0, 1, 1], [], []>} : vector<1x32xf32>, vector<32x256xf32>, vector<1x256xf32> -> vector<1x256xf32>
    %c0_120 = arith.constant 0 : index
    %c0_121 = arith.constant 0 : index
    %145 = vector.load %arg11[%c0_120, %c0_121] : memref<32x256xf32, #tpu.memory_space<vmem>>, vector<32x256xf32>
    %cst_122 = arith.constant dense<0.000000e+00> : vector<1x256xf32>
    %146 = tpu.matmul %142, %145, %cst_122 {dimension_numbers = #tpu.dot_dimension_numbers<[1], [0], [0], [1], [0, 0, 1, 1], [], []>} : vector<1x32xf32>, vector<32x256xf32>, vector<1x256xf32> -> vector<1x256xf32>
    %c16_123 = arith.constant 16 : index
    %c0_124 = arith.constant 0 : index
    %147 = vector.load %arg13[%c16_123, %c0_124] : memref<160x256xf32, #tpu.memory_space<vmem>>, vector<64x256xf32>
    %148 = vector.broadcast %144 : vector<1x256xf32> to vector<64x256xf32>
    %149 = arith.mulf %147, %148 : vector<64x256xf32>
    %150 = vector.broadcast %146 : vector<1x256xf32> to vector<64x256xf32>
    %151 = arith.addf %149, %150 : vector<64x256xf32>
    %cst_125 = arith.constant 0.000000e+00 : f32
    %152 = vector.broadcast %cst_125 : f32 to vector<64x256xf32>
    %153 = arith.maximumf %151, %152 : vector<64x256xf32>
    %c0_126 = arith.constant 0 : index
    %c0_127 = arith.constant 0 : index
    %154 = vector.load %arg1[%c0_126, %c0_127] : memref<128x1xf32, #tpu.memory_space<vmem>>, vector<64x1xf32>
    %155 = vector.broadcast %154 : vector<64x1xf32> to vector<64x256xf32>
    %156 = arith.mulf %153, %155 : vector<64x256xf32>
    %c16_128 = arith.constant 16 : index
    %c0_129 = arith.constant 0 : index
    %157 = vector.load %arg13[%c16_128, %c0_129] : memref<160x256xf32, #tpu.memory_space<vmem>>, vector<64x256xf32>
    tpu.vector_store %arg13[%c16_128, %c0_129], %156 {strides = array<i32>} : memref<160x256xf32, #tpu.memory_space<vmem>>, vector<64x256xf32>,
    %c80_130 = arith.constant 80 : index
    %c0_131 = arith.constant 0 : index
    %158 = vector.load %arg13[%c80_130, %c0_131] : memref<160x256xf32, #tpu.memory_space<vmem>>, vector<64x256xf32>
    %159 = vector.broadcast %144 : vector<1x256xf32> to vector<64x256xf32>
    %160 = arith.mulf %158, %159 : vector<64x256xf32>
    %161 = vector.broadcast %146 : vector<1x256xf32> to vector<64x256xf32>
    %162 = arith.addf %160, %161 : vector<64x256xf32>
    %cst_132 = arith.constant 0.000000e+00 : f32
    %163 = vector.broadcast %cst_132 : f32 to vector<64x256xf32>
    %164 = arith.maximumf %162, %163 : vector<64x256xf32>
    %c64_133 = arith.constant 64 : index
    %c0_134 = arith.constant 0 : index
    %165 = vector.load %arg1[%c64_133, %c0_134] : memref<128x1xf32, #tpu.memory_space<vmem>>, vector<64x1xf32>
    %166 = vector.broadcast %165 : vector<64x1xf32> to vector<64x256xf32>
    %167 = arith.mulf %164, %166 : vector<64x256xf32>
    %c80_135 = arith.constant 80 : index
    %c0_136 = arith.constant 0 : index
    %168 = vector.load %arg13[%c80_135, %c0_136] : memref<160x256xf32, #tpu.memory_space<vmem>>, vector<64x256xf32>
    tpu.vector_store %arg13[%c80_135, %c0_136], %167 {strides = array<i32>} : memref<160x256xf32, #tpu.memory_space<vmem>>, vector<64x256xf32>,
    %c0_137 = arith.constant 0 : index
    %c0_138 = arith.constant 0 : index
    %169 = vector.load %arg7[%c0_137, %c0_138] : memref<1x256xf32, #tpu.memory_space<vmem>>, vector<1x256xf32>
    %cst_139 = arith.constant 0.000000e+00 : f32
    %170 = vector.broadcast %cst_139 : f32 to vector<1x256xf32>
    %cst_140 = arith.constant 0.000000e+00 : f32
    %171 = vector.broadcast %cst_140 : f32 to vector<1x256xf32>
    %cst_141 = arith.constant 0.000000e+00 : f32
    %172 = vector.broadcast %cst_141 : f32 to vector<64x256xf32>
    %c7_142 = arith.constant 7 : index
    %c0_143 = arith.constant 0 : index
    %173 = vector.load %arg13[%c7_142, %c0_143] : memref<160x256xf32, #tpu.memory_space<vmem>>, vector<64x256xf32>
    %c0_144 = arith.constant 0 : index
    %c0_145 = arith.constant 0 : index
    %c0_146 = arith.constant 0 : index
    %174 = vector.load %arg6[%c0_144, %c0_145, %c0_146] : memref<9x256x256xf32, #tpu.memory_space<vmem>>, vector<1x256x256xf32>
    %175 = vector.shape_cast %174 : vector<1x256x256xf32> to vector<256x256xf32>
    %cst_147 = arith.constant dense<0.000000e+00> : vector<64x256xf32>
    %176 = tpu.matmul %173, %175, %cst_147 {dimension_numbers = #tpu.dot_dimension_numbers<[1], [0], [0], [1], [0, 0, 1, 1], [], []>} : vector<64x256xf32>, vector<256x256xf32>, vector<64x256xf32> -> vector<64x256xf32>
    %177 = arith.addf %172, %176 : vector<64x256xf32>
    %c8_148 = arith.constant 8 : index
    %c0_149 = arith.constant 0 : index
    %178 = vector.load %arg13[%c8_148, %c0_149] : memref<160x256xf32, #tpu.memory_space<vmem>>, vector<64x256xf32>
    %c1_150 = arith.constant 1 : index
    %c0_151 = arith.constant 0 : index
    %c0_152 = arith.constant 0 : index
    %179 = vector.load %arg6[%c1_150, %c0_151, %c0_152] : memref<9x256x256xf32, #tpu.memory_space<vmem>>, vector<1x256x256xf32>
    %180 = vector.shape_cast %179 : vector<1x256x256xf32> to vector<256x256xf32>
    %cst_153 = arith.constant dense<0.000000e+00> : vector<64x256xf32>
    %181 = tpu.matmul %178, %180, %cst_153 {dimension_numbers = #tpu.dot_dimension_numbers<[1], [0], [0], [1], [0, 0, 1, 1], [], []>} : vector<64x256xf32>, vector<256x256xf32>, vector<64x256xf32> -> vector<64x256xf32>
    %182 = arith.addf %177, %181 : vector<64x256xf32>
    %c9_154 = arith.constant 9 : index
    %c0_155 = arith.constant 0 : index
    %183 = vector.load %arg13[%c9_154, %c0_155] : memref<160x256xf32, #tpu.memory_space<vmem>>, vector<64x256xf32>
    %c2_156 = arith.constant 2 : index
    %c0_157 = arith.constant 0 : index
    %c0_158 = arith.constant 0 : index
    %184 = vector.load %arg6[%c2_156, %c0_157, %c0_158] : memref<9x256x256xf32, #tpu.memory_space<vmem>>, vector<1x256x256xf32>
    %185 = vector.shape_cast %184 : vector<1x256x256xf32> to vector<256x256xf32>
    %cst_159 = arith.constant dense<0.000000e+00> : vector<64x256xf32>
    %186 = tpu.matmul %183, %185, %cst_159 {dimension_numbers = #tpu.dot_dimension_numbers<[1], [0], [0], [1], [0, 0, 1, 1], [], []>} : vector<64x256xf32>, vector<256x256xf32>, vector<64x256xf32> -> vector<64x256xf32>
    %187 = arith.addf %182, %186 : vector<64x256xf32>
    %c15_160 = arith.constant 15 : index
    %c0_161 = arith.constant 0 : index
    %188 = vector.load %arg13[%c15_160, %c0_161] : memref<160x256xf32, #tpu.memory_space<vmem>>, vector<64x256xf32>
    %c3_162 = arith.constant 3 : index
    %c0_163 = arith.constant 0 : index
    %c0_164 = arith.constant 0 : index
    %189 = vector.load %arg6[%c3_162, %c0_163, %c0_164] : memref<9x256x256xf32, #tpu.memory_space<vmem>>, vector<1x256x256xf32>
    %190 = vector.shape_cast %189 : vector<1x256x256xf32> to vector<256x256xf32>
    %cst_165 = arith.constant dense<0.000000e+00> : vector<64x256xf32>
    %191 = tpu.matmul %188, %190, %cst_165 {dimension_numbers = #tpu.dot_dimension_numbers<[1], [0], [0], [1], [0, 0, 1, 1], [], []>} : vector<64x256xf32>, vector<256x256xf32>, vector<64x256xf32> -> vector<64x256xf32>
    %192 = arith.addf %187, %191 : vector<64x256xf32>
    %c16_166 = arith.constant 16 : index
    %c0_167 = arith.constant 0 : index
    %193 = vector.load %arg13[%c16_166, %c0_167] : memref<160x256xf32, #tpu.memory_space<vmem>>, vector<64x256xf32>
    %c4_168 = arith.constant 4 : index
    %c0_169 = arith.constant 0 : index
    %c0_170 = arith.constant 0 : index
    %194 = vector.load %arg6[%c4_168, %c0_169, %c0_170] : memref<9x256x256xf32, #tpu.memory_space<vmem>>, vector<1x256x256xf32>
    %195 = vector.shape_cast %194 : vector<1x256x256xf32> to vector<256x256xf32>
    %cst_171 = arith.constant dense<0.000000e+00> : vector<64x256xf32>
    %196 = tpu.matmul %193, %195, %cst_171 {dimension_numbers = #tpu.dot_dimension_numbers<[1], [0], [0], [1], [0, 0, 1, 1], [], []>} : vector<64x256xf32>, vector<256x256xf32>, vector<64x256xf32> -> vector<64x256xf32>
    %197 = arith.addf %192, %196 : vector<64x256xf32>
    %c17_172 = arith.constant 17 : index
    %c0_173 = arith.constant 0 : index
    %198 = vector.load %arg13[%c17_172, %c0_173] : memref<160x256xf32, #tpu.memory_space<vmem>>, vector<64x256xf32>
    %c5_174 = arith.constant 5 : index
    %c0_175 = arith.constant 0 : index
    %c0_176 = arith.constant 0 : index
    %199 = vector.load %arg6[%c5_174, %c0_175, %c0_176] : memref<9x256x256xf32, #tpu.memory_space<vmem>>, vector<1x256x256xf32>
    %200 = vector.shape_cast %199 : vector<1x256x256xf32> to vector<256x256xf32>
    %cst_177 = arith.constant dense<0.000000e+00> : vector<64x256xf32>
    %201 = tpu.matmul %198, %200, %cst_177 {dimension_numbers = #tpu.dot_dimension_numbers<[1], [0], [0], [1], [0, 0, 1, 1], [], []>} : vector<64x256xf32>, vector<256x256xf32>, vector<64x256xf32> -> vector<64x256xf32>
    %202 = arith.addf %197, %201 : vector<64x256xf32>
    %c23_178 = arith.constant 23 : index
    %c0_179 = arith.constant 0 : index
    %203 = vector.load %arg13[%c23_178, %c0_179] : memref<160x256xf32, #tpu.memory_space<vmem>>, vector<64x256xf32>
    %c6_180 = arith.constant 6 : index
    %c0_181 = arith.constant 0 : index
    %c0_182 = arith.constant 0 : index
    %204 = vector.load %arg6[%c6_180, %c0_181, %c0_182] : memref<9x256x256xf32, #tpu.memory_space<vmem>>, vector<1x256x256xf32>
    %205 = vector.shape_cast %204 : vector<1x256x256xf32> to vector<256x256xf32>
    %cst_183 = arith.constant dense<0.000000e+00> : vector<64x256xf32>
    %206 = tpu.matmul %203, %205, %cst_183 {dimension_numbers = #tpu.dot_dimension_numbers<[1], [0], [0], [1], [0, 0, 1, 1], [], []>} : vector<64x256xf32>, vector<256x256xf32>, vector<64x256xf32> -> vector<64x256xf32>
    %207 = arith.addf %202, %206 : vector<64x256xf32>
    %c24_184 = arith.constant 24 : index
    %c0_185 = arith.constant 0 : index
    %208 = vector.load %arg13[%c24_184, %c0_185] : memref<160x256xf32, #tpu.memory_space<vmem>>, vector<64x256xf32>
    %c7_186 = arith.constant 7 : index
    %c0_187 = arith.constant 0 : index
    %c0_188 = arith.constant 0 : index
    %209 = vector.load %arg6[%c7_186, %c0_187, %c0_188] : memref<9x256x256xf32, #tpu.memory_space<vmem>>, vector<1x256x256xf32>
    %210 = vector.shape_cast %209 : vector<1x256x256xf32> to vector<256x256xf32>
    %cst_189 = arith.constant dense<0.000000e+00> : vector<64x256xf32>
    %211 = tpu.matmul %208, %210, %cst_189 {dimension_numbers = #tpu.dot_dimension_numbers<[1], [0], [0], [1], [0, 0, 1, 1], [], []>} : vector<64x256xf32>, vector<256x256xf32>, vector<64x256xf32> -> vector<64x256xf32>
    %212 = arith.addf %207, %211 : vector<64x256xf32>
    %c25_190 = arith.constant 25 : index
    %c0_191 = arith.constant 0 : index
    %213 = vector.load %arg13[%c25_190, %c0_191] : memref<160x256xf32, #tpu.memory_space<vmem>>, vector<64x256xf32>
    %c8_192 = arith.constant 8 : index
    %c0_193 = arith.constant 0 : index
    %c0_194 = arith.constant 0 : index
    %214 = vector.load %arg6[%c8_192, %c0_193, %c0_194] : memref<9x256x256xf32, #tpu.memory_space<vmem>>, vector<1x256x256xf32>
    %215 = vector.shape_cast %214 : vector<1x256x256xf32> to vector<256x256xf32>
    %cst_195 = arith.constant dense<0.000000e+00> : vector<64x256xf32>
    %216 = tpu.matmul %213, %215, %cst_195 {dimension_numbers = #tpu.dot_dimension_numbers<[1], [0], [0], [1], [0, 0, 1, 1], [], []>} : vector<64x256xf32>, vector<256x256xf32>, vector<64x256xf32> -> vector<64x256xf32>
    %217 = arith.addf %212, %216 : vector<64x256xf32>
    %218 = vector.broadcast %169 : vector<1x256xf32> to vector<64x256xf32>
    %219 = arith.addf %217, %218 : vector<64x256xf32>
    %c0_196 = arith.constant 0 : index
    %c0_197 = arith.constant 0 : index
    %220 = vector.load %arg1[%c0_196, %c0_197] : memref<128x1xf32, #tpu.memory_space<vmem>>, vector<64x1xf32>
    %221 = vector.broadcast %220 : vector<64x1xf32> to vector<64x256xf32>
    %222 = arith.mulf %219, %221 : vector<64x256xf32>
    %cst_198 = arith.constant dense<0.000000e+00> : vector<256xf32>
    %223 = vector.multi_reduction <add>, %222, %cst_198 [0] : vector<64x256xf32> to vector<256xf32>
    %224 = vector.shape_cast %223 : vector<256xf32> to vector<1x256xf32>
    %225 = arith.addf %170, %224 : vector<1x256xf32>
    %226 = arith.mulf %222, %222 : vector<64x256xf32>
    %cst_199 = arith.constant dense<0.000000e+00> : vector<256xf32>
    %227 = vector.multi_reduction <add>, %226, %cst_199 [0] : vector<64x256xf32> to vector<256xf32>
    %228 = vector.shape_cast %227 : vector<256xf32> to vector<1x256xf32>
    %229 = arith.addf %171, %228 : vector<1x256xf32>
    %c0_200 = arith.constant 0 : index
    %c0_201 = arith.constant 0 : index
    %230 = vector.load %arg12[%c0_200, %c0_201] : memref<128x256xf32, #tpu.memory_space<vmem>>, vector<64x256xf32>
    tpu.vector_store %arg12[%c0_200, %c0_201], %222 {strides = array<i32>} : memref<128x256xf32, #tpu.memory_space<vmem>>, vector<64x256xf32>,
    %cst_202 = arith.constant 0.000000e+00 : f32
    %231 = vector.broadcast %cst_202 : f32 to vector<64x256xf32>
    %c71_203 = arith.constant 71 : index
    %c0_204 = arith.constant 0 : index
    %232 = vector.load %arg13[%c71_203, %c0_204] : memref<160x256xf32, #tpu.memory_space<vmem>>, vector<64x256xf32>
    %c0_205 = arith.constant 0 : index
    %c0_206 = arith.constant 0 : index
    %c0_207 = arith.constant 0 : index
    %233 = vector.load %arg6[%c0_205, %c0_206, %c0_207] : memref<9x256x256xf32, #tpu.memory_space<vmem>>, vector<1x256x256xf32>
    %234 = vector.shape_cast %233 : vector<1x256x256xf32> to vector<256x256xf32>
    %cst_208 = arith.constant dense<0.000000e+00> : vector<64x256xf32>
    %235 = tpu.matmul %232, %234, %cst_208 {dimension_numbers = #tpu.dot_dimension_numbers<[1], [0], [0], [1], [0, 0, 1, 1], [], []>} : vector<64x256xf32>, vector<256x256xf32>, vector<64x256xf32> -> vector<64x256xf32>
    %236 = arith.addf %231, %235 : vector<64x256xf32>
    %c72_209 = arith.constant 72 : index
    %c0_210 = arith.constant 0 : index
    %237 = vector.load %arg13[%c72_209, %c0_210] : memref<160x256xf32, #tpu.memory_space<vmem>>, vector<64x256xf32>
    %c1_211 = arith.constant 1 : index
    %c0_212 = arith.constant 0 : index
    %c0_213 = arith.constant 0 : index
    %238 = vector.load %arg6[%c1_211, %c0_212, %c0_213] : memref<9x256x256xf32, #tpu.memory_space<vmem>>, vector<1x256x256xf32>
    %239 = vector.shape_cast %238 : vector<1x256x256xf32> to vector<256x256xf32>
    %cst_214 = arith.constant dense<0.000000e+00> : vector<64x256xf32>
    %240 = tpu.matmul %237, %239, %cst_214 {dimension_numbers = #tpu.dot_dimension_numbers<[1], [0], [0], [1], [0, 0, 1, 1], [], []>} : vector<64x256xf32>, vector<256x256xf32>, vector<64x256xf32> -> vector<64x256xf32>
    %241 = arith.addf %236, %240 : vector<64x256xf32>
    %c73_215 = arith.constant 73 : index
    %c0_216 = arith.constant 0 : index
    %242 = vector.load %arg13[%c73_215, %c0_216] : memref<160x256xf32, #tpu.memory_space<vmem>>, vector<64x256xf32>
    %c2_217 = arith.constant 2 : index
    %c0_218 = arith.constant 0 : index
    %c0_219 = arith.constant 0 : index
    %243 = vector.load %arg6[%c2_217, %c0_218, %c0_219] : memref<9x256x256xf32, #tpu.memory_space<vmem>>, vector<1x256x256xf32>
    %244 = vector.shape_cast %243 : vector<1x256x256xf32> to vector<256x256xf32>
    %cst_220 = arith.constant dense<0.000000e+00> : vector<64x256xf32>
    %245 = tpu.matmul %242, %244, %cst_220 {dimension_numbers = #tpu.dot_dimension_numbers<[1], [0], [0], [1], [0, 0, 1, 1], [], []>} : vector<64x256xf32>, vector<256x256xf32>, vector<64x256xf32> -> vector<64x256xf32>
    %246 = arith.addf %241, %245 : vector<64x256xf32>
    %c79_221 = arith.constant 79 : index
    %c0_222 = arith.constant 0 : index
    %247 = vector.load %arg13[%c79_221, %c0_222] : memref<160x256xf32, #tpu.memory_space<vmem>>, vector<64x256xf32>
    %c3_223 = arith.constant 3 : index
    %c0_224 = arith.constant 0 : index
    %c0_225 = arith.constant 0 : index
    %248 = vector.load %arg6[%c3_223, %c0_224, %c0_225] : memref<9x256x256xf32, #tpu.memory_space<vmem>>, vector<1x256x256xf32>
    %249 = vector.shape_cast %248 : vector<1x256x256xf32> to vector<256x256xf32>
    %cst_226 = arith.constant dense<0.000000e+00> : vector<64x256xf32>
    %250 = tpu.matmul %247, %249, %cst_226 {dimension_numbers = #tpu.dot_dimension_numbers<[1], [0], [0], [1], [0, 0, 1, 1], [], []>} : vector<64x256xf32>, vector<256x256xf32>, vector<64x256xf32> -> vector<64x256xf32>
    %251 = arith.addf %246, %250 : vector<64x256xf32>
    %c80_227 = arith.constant 80 : index
    %c0_228 = arith.constant 0 : index
    %252 = vector.load %arg13[%c80_227, %c0_228] : memref<160x256xf32, #tpu.memory_space<vmem>>, vector<64x256xf32>
    %c4_229 = arith.constant 4 : index
    %c0_230 = arith.constant 0 : index
    %c0_231 = arith.constant 0 : index
    %253 = vector.load %arg6[%c4_229, %c0_230, %c0_231] : memref<9x256x256xf32, #tpu.memory_space<vmem>>, vector<1x256x256xf32>
    %254 = vector.shape_cast %253 : vector<1x256x256xf32> to vector<256x256xf32>
    %cst_232 = arith.constant dense<0.000000e+00> : vector<64x256xf32>
    %255 = tpu.matmul %252, %254, %cst_232 {dimension_numbers = #tpu.dot_dimension_numbers<[1], [0], [0], [1], [0, 0, 1, 1], [], []>} : vector<64x256xf32>, vector<256x256xf32>, vector<64x256xf32> -> vector<64x256xf32>
    %256 = arith.addf %251, %255 : vector<64x256xf32>
    %c81_233 = arith.constant 81 : index
    %c0_234 = arith.constant 0 : index
    %257 = vector.load %arg13[%c81_233, %c0_234] : memref<160x256xf32, #tpu.memory_space<vmem>>, vector<64x256xf32>
    %c5_235 = arith.constant 5 : index
    %c0_236 = arith.constant 0 : index
    %c0_237 = arith.constant 0 : index
    %258 = vector.load %arg6[%c5_235, %c0_236, %c0_237] : memref<9x256x256xf32, #tpu.memory_space<vmem>>, vector<1x256x256xf32>
    %259 = vector.shape_cast %258 : vector<1x256x256xf32> to vector<256x256xf32>
    %cst_238 = arith.constant dense<0.000000e+00> : vector<64x256xf32>
    %260 = tpu.matmul %257, %259, %cst_238 {dimension_numbers = #tpu.dot_dimension_numbers<[1], [0], [0], [1], [0, 0, 1, 1], [], []>} : vector<64x256xf32>, vector<256x256xf32>, vector<64x256xf32> -> vector<64x256xf32>
    %261 = arith.addf %256, %260 : vector<64x256xf32>
    %c87_239 = arith.constant 87 : index
    %c0_240 = arith.constant 0 : index
    %262 = vector.load %arg13[%c87_239, %c0_240] : memref<160x256xf32, #tpu.memory_space<vmem>>, vector<64x256xf32>
    %c6_241 = arith.constant 6 : index
    %c0_242 = arith.constant 0 : index
    %c0_243 = arith.constant 0 : index
    %263 = vector.load %arg6[%c6_241, %c0_242, %c0_243] : memref<9x256x256xf32, #tpu.memory_space<vmem>>, vector<1x256x256xf32>
    %264 = vector.shape_cast %263 : vector<1x256x256xf32> to vector<256x256xf32>
    %cst_244 = arith.constant dense<0.000000e+00> : vector<64x256xf32>
    %265 = tpu.matmul %262, %264, %cst_244 {dimension_numbers = #tpu.dot_dimension_numbers<[1], [0], [0], [1], [0, 0, 1, 1], [], []>} : vector<64x256xf32>, vector<256x256xf32>, vector<64x256xf32> -> vector<64x256xf32>
    %266 = arith.addf %261, %265 : vector<64x256xf32>
    %c88_245 = arith.constant 88 : index
    %c0_246 = arith.constant 0 : index
    %267 = vector.load %arg13[%c88_245, %c0_246] : memref<160x256xf32, #tpu.memory_space<vmem>>, vector<64x256xf32>
    %c7_247 = arith.constant 7 : index
    %c0_248 = arith.constant 0 : index
    %c0_249 = arith.constant 0 : index
    %268 = vector.load %arg6[%c7_247, %c0_248, %c0_249] : memref<9x256x256xf32, #tpu.memory_space<vmem>>, vector<1x256x256xf32>
    %269 = vector.shape_cast %268 : vector<1x256x256xf32> to vector<256x256xf32>
    %cst_250 = arith.constant dense<0.000000e+00> : vector<64x256xf32>
    %270 = tpu.matmul %267, %269, %cst_250 {dimension_numbers = #tpu.dot_dimension_numbers<[1], [0], [0], [1], [0, 0, 1, 1], [], []>} : vector<64x256xf32>, vector<256x256xf32>, vector<64x256xf32> -> vector<64x256xf32>
    %271 = arith.addf %266, %270 : vector<64x256xf32>
    %c89_251 = arith.constant 89 : index
    %c0_252 = arith.constant 0 : index
    %272 = vector.load %arg13[%c89_251, %c0_252] : memref<160x256xf32, #tpu.memory_space<vmem>>, vector<64x256xf32>
    %c8_253 = arith.constant 8 : index
    %c0_254 = arith.constant 0 : index
    %c0_255 = arith.constant 0 : index
    %273 = vector.load %arg6[%c8_253, %c0_254, %c0_255] : memref<9x256x256xf32, #tpu.memory_space<vmem>>, vector<1x256x256xf32>
    %274 = vector.shape_cast %273 : vector<1x256x256xf32> to vector<256x256xf32>
    %cst_256 = arith.constant dense<0.000000e+00> : vector<64x256xf32>
    %275 = tpu.matmul %272, %274, %cst_256 {dimension_numbers = #tpu.dot_dimension_numbers<[1], [0], [0], [1], [0, 0, 1, 1], [], []>} : vector<64x256xf32>, vector<256x256xf32>, vector<64x256xf32> -> vector<64x256xf32>
    %276 = arith.addf %271, %275 : vector<64x256xf32>
    %277 = vector.broadcast %169 : vector<1x256xf32> to vector<64x256xf32>
    %278 = arith.addf %276, %277 : vector<64x256xf32>
    %c64_257 = arith.constant 64 : index
    %c0_258 = arith.constant 0 : index
    %279 = vector.load %arg1[%c64_257, %c0_258] : memref<128x1xf32, #tpu.memory_space<vmem>>, vector<64x1xf32>
    %280 = vector.broadcast %279 : vector<64x1xf32> to vector<64x256xf32>
    %281 = arith.mulf %278, %280 : vector<64x256xf32>
    %cst_259 = arith.constant dense<0.000000e+00> : vector<256xf32>
    %282 = vector.multi_reduction <add>, %281, %cst_259 [0] : vector<64x256xf32> to vector<256xf32>
    %283 = vector.shape_cast %282 : vector<256xf32> to vector<1x256xf32>
    %284 = arith.addf %225, %283 : vector<1x256xf32>
    %285 = arith.mulf %281, %281 : vector<64x256xf32>
    %cst_260 = arith.constant dense<0.000000e+00> : vector<256xf32>
    %286 = vector.multi_reduction <add>, %285, %cst_260 [0] : vector<64x256xf32> to vector<256xf32>
    %287 = vector.shape_cast %286 : vector<256xf32> to vector<1x256xf32>
    %288 = arith.addf %229, %287 : vector<1x256xf32>
    %c64_261 = arith.constant 64 : index
    %c0_262 = arith.constant 0 : index
    %289 = vector.load %arg12[%c64_261, %c0_262] : memref<128x256xf32, #tpu.memory_space<vmem>>, vector<64x256xf32>
    tpu.vector_store %arg12[%c64_261, %c0_262], %281 {strides = array<i32>} : memref<128x256xf32, #tpu.memory_space<vmem>>, vector<64x256xf32>,
    %c0_263 = arith.constant 0 : index
    %c0_264 = arith.constant 0 : index
    %290 = vector.load %arg10[%c0_263, %c0_264] : memref<256x32xf32, #tpu.memory_space<vmem>>, vector<256x32xf32>
    %cst_265 = arith.constant dense<0.000000e+00> : vector<1x32xf32>
    %291 = tpu.matmul %284, %290, %cst_265 {dimension_numbers = #tpu.dot_dimension_numbers<[1], [0], [0], [1], [0, 0, 1, 1], [], []>} : vector<1x256xf32>, vector<256x32xf32>, vector<1x32xf32> -> vector<1x32xf32>
    %cst_266 = arith.constant 0.00231481483 : f32
    %292 = vector.broadcast %cst_266 : f32 to vector<1x32xf32>
    %293 = arith.mulf %291, %292 : vector<1x32xf32>
    %c0_267 = arith.constant 0 : index
    %c0_268 = arith.constant 0 : index
    %294 = vector.load %arg10[%c0_267, %c0_268] : memref<256x32xf32, #tpu.memory_space<vmem>>, vector<256x32xf32>
    %cst_269 = arith.constant dense<0.000000e+00> : vector<1x32xf32>
    %295 = tpu.matmul %288, %294, %cst_269 {dimension_numbers = #tpu.dot_dimension_numbers<[1], [0], [0], [1], [0, 0, 1, 1], [], []>} : vector<1x256xf32>, vector<256x32xf32>, vector<1x32xf32> -> vector<1x32xf32>
    %cst_270 = arith.constant 0.00231481483 : f32
    %296 = vector.broadcast %cst_270 : f32 to vector<1x32xf32>
    %297 = arith.mulf %295, %296 : vector<1x32xf32>
    %298 = arith.mulf %293, %293 : vector<1x32xf32>
    %299 = arith.subf %297, %298 : vector<1x32xf32>
    %c0_271 = arith.constant 0 : index
    %c0_272 = arith.constant 0 : index
    %300 = vector.load %arg8[%c0_271, %c0_272] : memref<1x32xf32, #tpu.memory_space<vmem>>, vector<1x32xf32>
    %cst_273 = arith.constant 9.99999974E-6 : f32
    %301 = vector.broadcast %cst_273 : f32 to vector<1x32xf32>
    %302 = arith.addf %299, %301 : vector<1x32xf32>
    %303 = math.rsqrt %302 : vector<1x32xf32>
    %304 = arith.mulf %300, %303 : vector<1x32xf32>
    %c0_274 = arith.constant 0 : index
    %c0_275 = arith.constant 0 : index
    %305 = vector.load %arg9[%c0_274, %c0_275] : memref<1x32xf32, #tpu.memory_space<vmem>>, vector<1x32xf32>
    %306 = arith.mulf %293, %304 : vector<1x32xf32>
    %307 = arith.subf %305, %306 : vector<1x32xf32>
    %c0_276 = arith.constant 0 : index
    %c0_277 = arith.constant 0 : index
    %308 = vector.load %arg11[%c0_276, %c0_277] : memref<32x256xf32, #tpu.memory_space<vmem>>, vector<32x256xf32>
    %cst_278 = arith.constant dense<0.000000e+00> : vector<1x256xf32>
    %309 = tpu.matmul %304, %308, %cst_278 {dimension_numbers = #tpu.dot_dimension_numbers<[1], [0], [0], [1], [0, 0, 1, 1], [], []>} : vector<1x32xf32>, vector<32x256xf32>, vector<1x256xf32> -> vector<1x256xf32>
    %c0_279 = arith.constant 0 : index
    %c0_280 = arith.constant 0 : index
    %310 = vector.load %arg11[%c0_279, %c0_280] : memref<32x256xf32, #tpu.memory_space<vmem>>, vector<32x256xf32>
    %cst_281 = arith.constant dense<0.000000e+00> : vector<1x256xf32>
    %311 = tpu.matmul %307, %310, %cst_281 {dimension_numbers = #tpu.dot_dimension_numbers<[1], [0], [0], [1], [0, 0, 1, 1], [], []>} : vector<1x32xf32>, vector<32x256xf32>, vector<1x256xf32> -> vector<1x256xf32>
    %c0_282 = arith.constant 0 : index
    %c0_283 = arith.constant 0 : index
    %312 = vector.load %arg12[%c0_282, %c0_283] : memref<128x256xf32, #tpu.memory_space<vmem>>, vector<64x256xf32>
    %c16_284 = arith.constant 16 : index
    %c0_285 = arith.constant 0 : index
    %313 = vector.load %arg0[%c16_284, %c0_285] : memref<160x256xf32, #tpu.memory_space<vmem>>, vector<64x256xf32>
    %314 = vector.broadcast %309 : vector<1x256xf32> to vector<64x256xf32>
    %315 = arith.mulf %312, %314 : vector<64x256xf32>
    %316 = vector.broadcast %311 : vector<1x256xf32> to vector<64x256xf32>
    %317 = arith.addf %315, %316 : vector<64x256xf32>
    %318 = arith.addf %313, %317 : vector<64x256xf32>
    %c0_286 = arith.constant 0 : index
    %c0_287 = arith.constant 0 : index
    %319 = vector.load %arg12[%c0_286, %c0_287] : memref<128x256xf32, #tpu.memory_space<vmem>>, vector<64x256xf32>
    tpu.vector_store %arg12[%c0_286, %c0_287], %318 {strides = array<i32>} : memref<128x256xf32, #tpu.memory_space<vmem>>, vector<64x256xf32>,
    %c64_288 = arith.constant 64 : index
    %c0_289 = arith.constant 0 : index
    %320 = vector.load %arg12[%c64_288, %c0_289] : memref<128x256xf32, #tpu.memory_space<vmem>>, vector<64x256xf32>
    %c80_290 = arith.constant 80 : index
    %c0_291 = arith.constant 0 : index
    %321 = vector.load %arg0[%c80_290, %c0_291] : memref<160x256xf32, #tpu.memory_space<vmem>>, vector<64x256xf32>
    %322 = vector.broadcast %309 : vector<1x256xf32> to vector<64x256xf32>
    %323 = arith.mulf %320, %322 : vector<64x256xf32>
    %324 = vector.broadcast %311 : vector<1x256xf32> to vector<64x256xf32>
    %325 = arith.addf %323, %324 : vector<64x256xf32>
    %326 = arith.addf %321, %325 : vector<64x256xf32>
    %c64_292 = arith.constant 64 : index
    %c0_293 = arith.constant 0 : index
    %327 = vector.load %arg12[%c64_292, %c0_293] : memref<128x256xf32, #tpu.memory_space<vmem>>, vector<64x256xf32>
    tpu.vector_store %arg12[%c64_292, %c0_293], %326 {strides = array<i32>} : memref<128x256xf32, #tpu.memory_space<vmem>>, vector<64x256xf32>,
    return
  }
}

</mosaic_0001>

<llo_original>
// kernel: resnet_block.1
$region0: #{resnet_block.1}
  #allocation0 [shape = 'u32[]', space=smem, size = 0x4, offset = 0x4, fixed_abs, tag = 'smem constant byte address 0x4 - core index']
  #allocation1 [shape = 'u32[144,128]{1,0:T(1,128)}', space=vmem, size = 0x12000, scoped, tag = 'internal scratch']
  #allocation2 [shape = 'f32[160,256]{1,0:T(8,128)}', space=vmem, size = 0x28000, scoped, tag = 'scratch operand']
  %s0 = inlined_call_operand.vmem [shape: f32[160,256], index: 0, kind: input, shape index: {}]
  %s1 = inlined_call_operand.vmem [shape: f32[128,1], index: 1, kind: input, shape index: {}]
  %s2 = inlined_call_operand.vmem [shape: f32[9,256,256], index: 2, kind: input, shape index: {}]
  %s3 = inlined_call_operand.vmem [shape: f32[1,256], index: 3, kind: input, shape index: {}]
  %s4 = inlined_call_operand.vmem [shape: f32[1,32], index: 4, kind: input, shape index: {}]
  %s5 = inlined_call_operand.vmem [shape: f32[1,32], index: 5, kind: input, shape index: {}]
  %s6 = inlined_call_operand.vmem [shape: f32[9,256,256], index: 6, kind: input, shape index: {}]
  %s7 = inlined_call_operand.vmem [shape: f32[1,256], index: 7, kind: input, shape index: {}]
  %s8 = inlined_call_operand.vmem [shape: f32[1,32], index: 8, kind: input, shape index: {}]
  %s9 = inlined_call_operand.vmem [shape: f32[1,32], index: 9, kind: input, shape index: {}]
  %s10 = inlined_call_operand.vmem [shape: f32[256,32], index: 10, kind: input, shape index: {}]
  %s11 = inlined_call_operand.vmem [shape: f32[32,256], index: 11, kind: input, shape index: {}]
  %s12 = inlined_call_operand.vmem [shape: f32[128,256], index: 12, kind: output, shape index: {}]
  %s13 = sld [smem:[#allocation0]]
  $region58: #{resnet_block.1} parent=0
    _
  %s15 = ssub.s32 1, %s13
  %s16 = scalar_select 0, %s15, %s13
  // Predicated region
  $region2: #{resnet_block.1} parent=0 // pred_check
    _
  $region3: #{resnet_block.1} parent=0 // pred_check_branch
    %18 = sbr.rel (0) target = $region5
  $region4: #{resnet_block.1} parent=0 // pred_region
    _
  $region5: #{resnet_block.1} parent=0 // pred_fallthru
    _
  // Predicated region
  $region6: #{resnet_block.1} parent=0 // pred_check
    _
  $region7: #{resnet_block.1} parent=0 // pred_check_branch
    %20 = sbr.rel (0) target = $region9
  $region8: #{resnet_block.1} parent=0 // pred_region
    _
  $region9: #{resnet_block.1} parent=0 // pred_fallthru
    _
  // Predicated region
  $region10: #{resnet_block.1} parent=0 // pred_check
    _
  $region11: #{resnet_block.1} parent=0 // pred_check_branch
    %22 = sbr.rel (0) target = $region13
  $region12: #{resnet_block.1} parent=0 // pred_region
    _
  $region13: #{resnet_block.1} parent=0 // pred_fallthru
    _
  // Predicated region
  $region14: #{resnet_block.1} parent=0 // pred_check
    _
  $region15: #{resnet_block.1} parent=0 // pred_check_branch
    %24 = sbr.rel (0) target = $region17
  $region16: #{resnet_block.1} parent=0 // pred_region
    _
  $region17: #{resnet_block.1} parent=0 // pred_fallthru
    _
  // Predicated region
  $region18: #{resnet_block.1} parent=0 // pred_check
    _
  $region19: #{resnet_block.1} parent=0 // pred_check_branch
    %26 = sbr.rel (0) target = $region21
  $region20: #{resnet_block.1} parent=0 // pred_region
    _
  $region21: #{resnet_block.1} parent=0 // pred_fallthru
    _
  // Predicated region
  $region22: #{resnet_block.1} parent=0 // pred_check
    _
  $region23: #{resnet_block.1} parent=0 // pred_check_branch
    %28 = sbr.rel (0) target = $region25
  $region24: #{resnet_block.1} parent=0 // pred_region
    _
  $region25: #{resnet_block.1} parent=0 // pred_fallthru
    _
  // Predicated region
  $region26: #{resnet_block.1} parent=0 // pred_check
    _
  $region27: #{resnet_block.1} parent=0 // pred_check_branch
    %30 = sbr.rel (0) target = $region29
  $region28: #{resnet_block.1} parent=0 // pred_region
    _
  $region29: #{resnet_block.1} parent=0 // pred_fallthru
    _
  // Predicated region
  $region30: #{resnet_block.1} parent=0 // pred_check
    _
  $region31: #{resnet_block.1} parent=0 // pred_check_branch
    %32 = sbr.rel (0) target = $region33
  $region32: #{resnet_block.1} parent=0 // pred_region
    _
  $region33: #{resnet_block.1} parent=0 // pred_fallthru
    _
  // Predicated region
  $region34: #{resnet_block.1} parent=0 // pred_check
    _
  $region35: #{resnet_block.1} parent=0 // pred_check_branch
    %34 = sbr.rel (0) target = $region37
  $region36: #{resnet_block.1} parent=0 // pred_region
    _
  $region37: #{resnet_block.1} parent=0 // pred_fallthru
    _
  // Predicated region
  $region38: #{resnet_block.1} parent=0 // pred_check
    _
  $region39: #{resnet_block.1} parent=0 // pred_check_branch
    %36 = sbr.rel (0) target = $region41
  $region40: #{resnet_block.1} parent=0 // pred_region
    _
  $region41: #{resnet_block.1} parent=0 // pred_fallthru
    _
  // Predicated region
  $region42: #{resnet_block.1} parent=0 // pred_check
    _
  $region43: #{resnet_block.1} parent=0 // pred_check_branch
    %38 = sbr.rel (0) target = $region45
  $region44: #{resnet_block.1} parent=0 // pred_region
    _
  $region45: #{resnet_block.1} parent=0 // pred_fallthru
    _
  // Predicated region
  $region46: #{resnet_block.1} parent=0 // pred_check
    _
  $region47: #{resnet_block.1} parent=0 // pred_check_branch
    %40 = sbr.rel (0) target = $region49
  $region48: #{resnet_block.1} parent=0 // pred_region
    _
  $region49: #{resnet_block.1} parent=0 // pred_fallthru
    _
  %41 = vst [vmem:[#allocation2] sm:$0xff] 0.0
  %42 = vst [vmem:[#allocation2 + $0x8] sm:$0xff] 0.0
  %43 = vst [vmem:[#allocation2 + $0x10] sm:$0xff] 0.0
  %44 = vst [vmem:[#allocation2 + $0x18] sm:$0xff] 0.0
  %45 = vst [vmem:[#allocation2 + $0x120] sm:$0xff] 0.0
  %46 = vst [vmem:[#allocation2 + $0x128] sm:$0xff] 0.0
  %47 = vst [vmem:[#allocation2 + $0x130] sm:$0xff] 0.0
  %48 = vst [vmem:[#allocation2 + $0x138] sm:$0xff] 0.0
  %v49 = vld [vmem:[%s3] sm:$0x3]
  %v50 = vld [vmem:[%s0] sm:$0x80]
  %v51 = vld [vmem:[%s0 + $0x8] sm:$0x80]
  %v52 = vld [vmem:[%s0 + $0x10] sm:$0xff]
  %v53 = vld [vmem:[%s0 + $0x18] sm:$0xff]
  %v54 = vld [vmem:[%s0 + $0x20] sm:$0xff]
  %v55 = vld [vmem:[%s0 + $0x28] sm:$0xff]
  %v56 = vld [vmem:[%s0 + $0x30] sm:$0xff]
  %v57 = vld [vmem:[%s0 + $0x38] sm:$0xff]
  %v58 = vld [vmem:[%s0 + $0x40] sm:$0xff]
  %v59 = vld [vmem:[%s0 + $0x48] sm:$0xff]
  %v60 = vld [vmem:[%s0 + $0x50] sm:$0xff]
  %v61 = vld [vmem:[%s0 + $0x58] sm:$0xff]
  %v62 = vld [vmem:[%s0 + $0x60] sm:$0xff]
  %v63 = vld [vmem:[%s0 + $0x68] sm:$0xff]
  %v64 = vld [vmem:[%s0 + $0x70] sm:$0xff]
  %v65 = vld [vmem:[%s0 + $0x78] sm:$0xff]
  %v66 = vld [vmem:[%s0 + $0x80] sm:$0x7f]
  %v67 = vld [vmem:[%s0 + $0x88] sm:$0x7f]
  %v68 = vld [vmem:[%s2] sm:$0xff]
  %v69 = vld [vmem:[%s2 + $0x8] sm:$0xff]
  %v70 = vld [vmem:[%s2 + $0x10] sm:$0xff]
  %v71 = vld [vmem:[%s2 + $0x18] sm:$0xff]
  %v72 = vld [vmem:[%s2 + $0x20] sm:$0xff]
  %v73 = vld [vmem:[%s2 + $0x28] sm:$0xff]
  %v74 = vld [vmem:[%s2 + $0x30] sm:$0xff]
  %v75 = vld [vmem:[%s2 + $0x38] sm:$0xff]
  %v76 = vld [vmem:[%s2 + $0x40] sm:$0xff]
  %v77 = vld [vmem:[%s2 + $0x48] sm:$0xff]
  %v78 = vld [vmem:[%s2 + $0x50] sm:$0xff]
  %v79 = vld [vmem:[%s2 + $0x58] sm:$0xff]
  %v80 = vld [vmem:[%s2 + $0x60] sm:$0xff]
  %v81 = vld [vmem:[%s2 + $0x68] sm:$0xff]
  %v82 = vld [vmem:[%s2 + $0x70] sm:$0xff]
  %v83 = vld [vmem:[%s2 + $0x78] sm:$0xff]
  %v84 = vld [vmem:[%s2 + $0x80] sm:$0xff]
  %v85 = vld [vmem:[%s2 + $0x88] sm:$0xff]
  %v86 = vld [vmem:[%s2 + $0x90] sm:$0xff]
  %v87 = vld [vmem:[%s2 + $0x98] sm:$0xff]
  %v88 = vld [vmem:[%s2 + $0xa0] sm:$0xff]
  %v89 = vld [vmem:[%s2 + $0xa8] sm:$0xff]
  %v90 = vld [vmem:[%s2 + $0xb0] sm:$0xff]
  %v91 = vld [vmem:[%s2 + $0xb8] sm:$0xff]
  %v92 = vld [vmem:[%s2 + $0xc0] sm:$0xff]
  %v93 = vld [vmem:[%s2 + $0xc8] sm:$0xff]
  %v94 = vld [vmem:[%s2 + $0xd0] sm:$0xff]
  %v95 = vld [vmem:[%s2 + $0xd8] sm:$0xff]
  %v96 = vld [vmem:[%s2 + $0xe0] sm:$0xff]
  %v97 = vld [vmem:[%s2 + $0xe8] sm:$0xff]
  %v98 = vld [vmem:[%s2 + $0xf0] sm:$0xff]
  %v99 = vld [vmem:[%s2 + $0xf8] sm:$0xff]
  %v100 = vld [vmem:[%s2 + $0x100] sm:$0xff]
  %v101 = vld [vmem:[%s2 + $0x108] sm:$0xff]
  %v102 = vld [vmem:[%s2 + $0x110] sm:$0xff]
  %v103 = vld [vmem:[%s2 + $0x118] sm:$0xff]
  %v104 = vld [vmem:[%s2 + $0x120] sm:$0xff]
  %v105 = vld [vmem:[%s2 + $0x128] sm:$0xff]
  %v106 = vld [vmem:[%s2 + $0x130] sm:$0xff]
  %v107 = vld [vmem:[%s2 + $0x138] sm:$0xff]
  %v108 = vld [vmem:[%s2 + $0x140] sm:$0xff]
  %v109 = vld [vmem:[%s2 + $0x148] sm:$0xff]
  %v110 = vld [vmem:[%s2 + $0x150] sm:$0xff]
  %v111 = vld [vmem:[%s2 + $0x158] sm:$0xff]
  %v112 = vld [vmem:[%s2 + $0x160] sm:$0xff]
  %v113 = vld [vmem:[%s2 + $0x168] sm:$0xff]
  %v114 = vld [vmem:[%s2 + $0x170] sm:$0xff]
  %v115 = vld [vmem:[%s2 + $0x178] sm:$0xff]
  %v116 = vld [vmem:[%s2 + $0x180] sm:$0xff]
  %v117 = vld [vmem:[%s2 + $0x188] sm:$0xff]
  %v118 = vld [vmem:[%s2 + $0x190] sm:$0xff]
  %v119 = vld [vmem:[%s2 + $0x198] sm:$0xff]
  %v120 = vld [vmem:[%s2 + $0x1a0] sm:$0xff]
  %v121 = vld [vmem:[%s2 + $0x1a8] sm:$0xff]
  %v122 = vld [vmem:[%s2 + $0x1b0] sm:$0xff]
  %v123 = vld [vmem:[%s2 + $0x1b8] sm:$0xff]
  %v124 = vld [vmem:[%s2 + $0x1c0] sm:$0xff]
  %v125 = vld [vmem:[%s2 + $0x1c8] sm:$0xff]
  %v126 = vld [vmem:[%s2 + $0x1d0] sm:$0xff]
  %v127 = vld [vmem:[%s2 + $0x1d8] sm:$0xff]
  %v128 = vld [vmem:[%s2 + $0x1e0] sm:$0xff]
  %v129 = vld [vmem:[%s2 + $0x1e8] sm:$0xff]
  %v130 = vld [vmem:[%s2 + $0x1f0] sm:$0xff]
  %v131 = vld [vmem:[%s2 + $0x1f8] sm:$0xff]
  %v132 = vld [vmem:[%s0 + $0x80] sm:$0xff]
  %v133 = vld [vmem:[%s0 + $0x88] sm:$0xff]
  %s134 = scalar_lea.vmem %s2, 512
  %v135 = vld [vmem:[%s134] sm:$0xff]
  %v136 = vld [vmem:[%s134 + $0x8] sm:$0xff]
  %v137 = vld [vmem:[%s134 + $0x10] sm:$0xff]
  %v138 = vld [vmem:[%s134 + $0x18] sm:$0xff]
  %v139 = vld [vmem:[%s134 + $0x20] sm:$0xff]
  %v140 = vld [vmem:[%s134 + $0x28] sm:$0xff]
  %v141 = vld [vmem:[%s134 + $0x30] sm:$0xff]
  %v142 = vld [vmem:[%s134 + $0x38] sm:$0xff]
  %v143 = vld [vmem:[%s134 + $0x40] sm:$0xff]
  %v144 = vld [vmem:[%s134 + $0x48] sm:$0xff]
  %v145 = vld [vmem:[%s134 + $0x50] sm:$0xff]
  %v146 = vld [vmem:[%s134 + $0x58] sm:$0xff]
  %v147 = vld [vmem:[%s134 + $0x60] sm:$0xff]
  %v148 = vld [vmem:[%s134 + $0x68] sm:$0xff]
  %v149 = vld [vmem:[%s134 + $0x70] sm:$0xff]
  %v150 = vld [vmem:[%s134 + $0x78] sm:$0xff]
  %v151 = vld [vmem:[%s134 + $0x80] sm:$0xff]
  %v152 = vld [vmem:[%s134 + $0x88] sm:$0xff]
  %v153 = vld [vmem:[%s134 + $0x90] sm:$0xff]
  %v154 = vld [vmem:[%s134 + $0x98] sm:$0xff]
  %v155 = vld [vmem:[%s134 + $0xa0] sm:$0xff]
  %v156 = vld [vmem:[%s134 + $0xa8] sm:$0xff]
  %v157 = vld [vmem:[%s134 + $0xb0] sm:$0xff]
  %v158 = vld [vmem:[%s134 + $0xb8] sm:$0xff]
  %v159 = vld [vmem:[%s134 + $0xc0] sm:$0xff]
  %v160 = vld [vmem:[%s134 + $0xc8] sm:$0xff]
  %v161 = vld [vmem:[%s134 + $0xd0] sm:$0xff]
  %v162 = vld [vmem:[%s134 + $0xd8] sm:$0xff]
  %v163 = vld [vmem:[%s134 + $0xe0] sm:$0xff]
  %v164 = vld [vmem:[%s134 + $0xe8] sm:$0xff]
  %v165 = vld [vmem:[%s134 + $0xf0] sm:$0xff]
  %v166 = vld [vmem:[%s134 + $0xf8] sm:$0xff]
  %v167 = vld [vmem:[%s134 + $0x100] sm:$0xff]
  %v168 = vld [vmem:[%s134 + $0x108] sm:$0xff]
  %v169 = vld [vmem:[%s134 + $0x110] sm:$0xff]
  %v170 = vld [vmem:[%s134 + $0x118] sm:$0xff]
  %v171 = vld [vmem:[%s134 + $0x120] sm:$0xff]
  %v172 = vld [vmem:[%s134 + $0x128] sm:$0xff]
  %v173 = vld [vmem:[%s134 + $0x130] sm:$0xff]
  %v174 = vld [vmem:[%s134 + $0x138] sm:$0xff]
  %v175 = vld [vmem:[%s134 + $0x140] sm:$0xff]
  %v176 = vld [vmem:[%s134 + $0x148] sm:$0xff]
  %v177 = vld [vmem:[%s134 + $0x150] sm:$0xff]
  %v178 = vld [vmem:[%s134 + $0x158] sm:$0xff]
  %v179 = vld [vmem:[%s134 + $0x160] sm:$0xff]
  %v180 = vld [vmem:[%s134 + $0x168] sm:$0xff]
  %v181 = vld [vmem:[%s134 + $0x170] sm:$0xff]
  %v182 = vld [vmem:[%s134 + $0x178] sm:$0xff]
  %v183 = vld [vmem:[%s134 + $0x180] sm:$0xff]
  %v184 = vld [vmem:[%s134 + $0x188] sm:$0xff]
  %v185 = vld [vmem:[%s134 + $0x190] sm:$0xff]
  %v186 = vld [vmem:[%s134 + $0x198] sm:$0xff]
  %v187 = vld [vmem:[%s134 + $0x1a0] sm:$0xff]
  %v188 = vld [vmem:[%s134 + $0x1a8] sm:$0xff]
  %v189 = vld [vmem:[%s134 + $0x1b0] sm:$0xff]
  %v190 = vld [vmem:[%s134 + $0x1b8] sm:$0xff]
  %v191 = vld [vmem:[%s134 + $0x1c0] sm:$0xff]
  %v192 = vld [vmem:[%s134 + $0x1c8] sm:$0xff]
  %v193 = vld [vmem:[%s134 + $0x1d0] sm:$0xff]
  %v194 = vld [vmem:[%s134 + $0x1d8] sm:$0xff]
  %v195 = vld [vmem:[%s134 + $0x1e0] sm:$0xff]
  %v196 = vld [vmem:[%s134 + $0x1e8] sm:$0xff]
  %v197 = vld [vmem:[%s134 + $0x1f0] sm:$0xff]
  %v198 = vld [vmem:[%s134 + $0x1f8] sm:$0xff]
  %199 = vmatprep.subr.mxu0 %v166
  %200 = vmatpush1.msra.mxu0 %v165
  %201 = vmatprep.subr.mxu0 %v164
  %202 = vmatpush1.msra.mxu0 %v163
  %203 = vmatprep.subr.mxu0 %v162
  %204 = vmatpush1.msra.mxu0 %v161
  %205 = vmatprep.subr.mxu0 %v160
  %206 = vmatpush1.msra.mxu0 %v159
  %207 = vmatprep.subr.mxu0 %v158
  %208 = vmatpush1.msra.mxu0 %v157
  %209 = vmatprep.subr.mxu0 %v156
  %210 = vmatpush1.msra.mxu0 %v155
  %211 = vmatprep.subr.mxu0 %v154
  %212 = vmatpush1.msra.mxu0 %v153
  %213 = vmatprep.subr.mxu0 %v152
  %214 = vmatpush1.msra.mxu0 %v151
  %215 = vmatprep.subr.mxu0 %v150
  %216 = vmatpush1.msra.mxu0 %v149
  %217 = vmatprep.subr.mxu0 %v148
  %218 = vmatpush1.msra.mxu0 %v147
  %219 = vmatprep.subr.mxu0 %v146
  %220 = vmatpush1.msra.mxu0 %v145
  %221 = vmatprep.subr.mxu0 %v144
  %222 = vmatpush1.msra.mxu0 %v143
  %223 = vmatprep.subr.mxu0 %v142
  %224 = vmatpush1.msra.mxu0 %v141
  %225 = vmatprep.subr.mxu0 %v140
  %226 = vmatpush1.msra.mxu0 %v139
  %227 = vmatprep.subr.mxu0 %v138
  %228 = vmatpush1.msra.mxu0 %v137
  %229 = vmatprep.subr.mxu0 %v136
  %230 = vmatpush1.msra.mxu0 %v135
  %231 = vmatprep.subr.mxu0 %v198
  %232 = vmatpush2.msra.mxu0 %v197
  %233 = vmatprep.subr.mxu0 %v196
  %234 = vmatpush2.msra.mxu0 %v195
  %235 = vmatprep.subr.mxu0 %v194
  %236 = vmatpush2.msra.mxu0 %v193
  %237 = vmatprep.subr.mxu0 %v192
  %238 = vmatpush2.msra.mxu0 %v191
  %239 = vmatprep.subr.mxu0 %v190
  %240 = vmatpush2.msra.mxu0 %v189
  %241 = vmatprep.subr.mxu0 %v188
  %242 = vmatpush2.msra.mxu0 %v187
  %243 = vmatprep.subr.mxu0 %v186
  %244 = vmatpush2.msra.mxu0 %v185
  %245 = vmatprep.subr.mxu0 %v184
  %246 = vmatpush2.msra.mxu0 %v183
  %247 = vmatprep.subr.mxu0 %v182
  %248 = vmatpush2.msra.mxu0 %v181
  %249 = vmatprep.subr.mxu0 %v180
  %250 = vmatpush2.msra.mxu0 %v179
  %251 = vmatprep.subr.mxu0 %v178
  %252 = vmatpush2.msra.mxu0 %v177
  %253 = vmatprep.subr.mxu0 %v176
  %254 = vmatpush2.msra.mxu0 %v175
  %255 = vmatprep.subr.mxu0 %v174
  %256 = vmatpush2.msra.mxu0 %v173
  %257 = vmatprep.subr.mxu0 %v172
  %258 = vmatpush2.msra.mxu0 %v171
  %259 = vmatprep.subr.mxu0 %v170
  %260 = vmatpush2.msra.mxu0 %v169
  %261 = vmatprep.subr.mxu0 %v168
  %262 = vmatpush2.msra.mxu0 %v167
  %263 = vmatprep.mubr.f32.mxu0 %v53
  %264 = vmatmul.mubr.f32.gmra.mxu0 %v52
  %v265 = vpop.f32.mrf.mxu0
  %v266 = vadd.f32 0.0, %v265
  %v267 = vpop.f32.mrf.mxu0
  %v268 = vadd.f32 0.0, %v267
  %269 = vmatprep.mubr.f32.mxu0 %v55
  %270 = vmatmul.mubr.f32.gmra.mxu0 %v54
  %v271 = vpop.f32.mrf.mxu0
  %v272 = vadd.f32 0.0, %v271
  %v273 = vpop.f32.mrf.mxu0
  %v274 = vadd.f32 0.0, %v273
  %275 = vmatprep.mubr.f32.mxu0 %v57
  %276 = vmatmul.mubr.f32.gmra.mxu0 %v56
  %v277 = vpop.f32.mrf.mxu0
  %v278 = vadd.f32 0.0, %v277
  %v279 = vpop.f32.mrf.mxu0
  %v280 = vadd.f32 0.0, %v279
  %281 = vmatprep.mubr.f32.mxu0 %v59
  %282 = vmatmul.mubr.f32.gmra.mxu0 %v58
  %v283 = vpop.f32.mrf.mxu0
  %v284 = vadd.f32 0.0, %v283
  %v285 = vpop.f32.mrf.mxu0
  %v286 = vadd.f32 0.0, %v285
  %287 = vmatprep.mubr.f32.mxu0 %v61
  %288 = vmatmul.mubr.f32.gmra.mxu0 %v60
  %v289 = vpop.f32.mrf.mxu0
  %v290 = vadd.f32 0.0, %v289
  %v291 = vpop.f32.mrf.mxu0
  %v292 = vadd.f32 0.0, %v291
  %293 = vmatprep.mubr.f32.mxu0 %v63
  %294 = vmatmul.mubr.f32.gmra.mxu0 %v62
  %v295 = vpop.f32.mrf.mxu0
  %v296 = vadd.f32 0.0, %v295
  %v297 = vpop.f32.mrf.mxu0
  %v298 = vadd.f32 0.0, %v297
  %299 = vmatprep.mubr.f32.mxu0 %v65
  %300 = vmatmul.mubr.f32.gmra.mxu0 %v64
  %v301 = vpop.f32.mrf.mxu0
  %v302 = vadd.f32 0.0, %v301
  %v303 = vpop.f32.mrf.mxu0
  %v304 = vadd.f32 0.0, %v303
  %305 = vmatprep.mubr.f32.mxu0 %v133
  %306 = vmatmul.mubr.f32.gmra.mxu0 %v132
  %v307 = vpop.f32.mrf.mxu0
  %v308 = vadd.f32 0.0, %v307
  %v309 = vpop.f32.mrf.mxu0
  %v310 = vadd.f32 0.0, %v309
  %311 = vdwg.mxu0
  %vm330 = vcmask 1040384
  %v331 = vrot.slane %v50, 7
  %v332 = vrot.slane %v52, 7
  %v333 = vsel %vm330, %v331, %v332
  %v334 = vrot.slane %v51, 7
  %v335 = vrot.slane %v53, 7
  %v336 = vsel %vm330, %v334, %v335
  %v337 = vrot.slane %v54, 7
  %v338 = vsel %vm330, %v332, %v337
  %v339 = vrot.slane %v55, 7
  %v340 = vsel %vm330, %v335, %v339
  %v341 = vrot.slane %v56, 7
  %v342 = vsel %vm330, %v337, %v341
  %v343 = vrot.slane %v57, 7
  %v344 = vsel %vm330, %v339, %v343
  %v345 = vrot.slane %v58, 7
  %v346 = vsel %vm330, %v341, %v345
  %v347 = vrot.slane %v59, 7
  %v348 = vsel %vm330, %v343, %v347
  %v349 = vrot.slane %v60, 7
  %v350 = vsel %vm330, %v345, %v349
  %v351 = vrot.slane %v61, 7
  %v352 = vsel %vm330, %v347, %v351
  %v353 = vrot.slane %v62, 7
  %v354 = vsel %vm330, %v349, %v353
  %v355 = vrot.slane %v63, 7
  %v356 = vsel %vm330, %v351, %v355
  %v357 = vrot.slane %v64, 7
  %v358 = vsel %vm330, %v353, %v357
  %v359 = vrot.slane %v65, 7
  %v360 = vsel %vm330, %v355, %v359
  %v361 = vrot.slane %v66, 7
  %v362 = vsel %vm330, %v357, %v361
  %v363 = vrot.slane %v67, 7
  %v364 = vsel %vm330, %v359, %v363
  %381 = vmatprep.subr.mxu0 %v99
  %382 = vmatpush1.msra.mxu0 %v98
  %383 = vmatprep.subr.mxu0 %v97
  %384 = vmatpush1.msra.mxu0 %v96
  %385 = vmatprep.subr.mxu0 %v95
  %386 = vmatpush1.msra.mxu0 %v94
  %387 = vmatprep.subr.mxu0 %v93
  %388 = vmatpush1.msra.mxu0 %v92
  %389 = vmatprep.subr.mxu0 %v91
  %390 = vmatpush1.msra.mxu0 %v90
  %391 = vmatprep.subr.mxu0 %v89
  %392 = vmatpush1.msra.mxu0 %v88
  %393 = vmatprep.subr.mxu0 %v87
  %394 = vmatpush1.msra.mxu0 %v86
  %395 = vmatprep.subr.mxu0 %v85
  %396 = vmatpush1.msra.mxu0 %v84
  %397 = vmatprep.subr.mxu0 %v83
  %398 = vmatpush1.msra.mxu0 %v82
  %399 = vmatprep.subr.mxu0 %v81
  %400 = vmatpush1.msra.mxu0 %v80
  %401 = vmatprep.subr.mxu0 %v79
  %402 = vmatpush1.msra.mxu0 %v78
  %403 = vmatprep.subr.mxu0 %v77
  %404 = vmatpush1.msra.mxu0 %v76
  %405 = vmatprep.subr.mxu0 %v75
  %406 = vmatpush1.msra.mxu0 %v74
  %407 = vmatprep.subr.mxu0 %v73
  %408 = vmatpush1.msra.mxu0 %v72
  %409 = vmatprep.subr.mxu0 %v71
  %410 = vmatpush1.msra.mxu0 %v70
  %411 = vmatprep.subr.mxu0 %v69
  %412 = vmatpush1.msra.mxu0 %v68
  %413 = vmatprep.subr.mxu0 %v131
  %414 = vmatpush2.msra.mxu0 %v130
  %415 = vmatprep.subr.mxu0 %v129
  %416 = vmatpush2.msra.mxu0 %v128
  %417 = vmatprep.subr.mxu0 %v127
  %418 = vmatpush2.msra.mxu0 %v126
  %419 = vmatprep.subr.mxu0 %v125
  %420 = vmatpush2.msra.mxu0 %v124
  %421 = vmatprep.subr.mxu0 %v123
  %422 = vmatpush2.msra.mxu0 %v122
  %423 = vmatprep.subr.mxu0 %v121
  %424 = vmatpush2.msra.mxu0 %v120
  %425 = vmatprep.subr.mxu0 %v119
  %426 = vmatpush2.msra.mxu0 %v118
  %427 = vmatprep.subr.mxu0 %v117
  %428 = vmatpush2.msra.mxu0 %v116
  %429 = vmatprep.subr.mxu0 %v115
  %430 = vmatpush2.msra.mxu0 %v114
  %431 = vmatprep.subr.mxu0 %v113
  %432 = vmatpush2.msra.mxu0 %v112
  %433 = vmatprep.subr.mxu0 %v111
  %434 = vmatpush2.msra.mxu0 %v110
  %435 = vmatprep.subr.mxu0 %v109
  %436 = vmatpush2.msra.mxu0 %v108
  %437 = vmatprep.subr.mxu0 %v107
  %438 = vmatpush2.msra.mxu0 %v106
  %439 = vmatprep.subr.mxu0 %v105
  %440 = vmatpush2.msra.mxu0 %v104
  %441 = vmatprep.subr.mxu0 %v103
  %442 = vmatpush2.msra.mxu0 %v102
  %443 = vmatprep.subr.mxu0 %v101
  %444 = vmatpush2.msra.mxu0 %v100
  %445 = vmatprep.mubr.f32.mxu0 %v336
  %446 = vmatmul.mubr.f32.gmra.mxu0 %v333
  %v447 = vpop.f32.mrf.mxu0
  %v448 = vadd.f32 %v266, %v447
  %v449 = vpop.f32.mrf.mxu0
  %v450 = vadd.f32 %v268, %v449
  %451 = vmatprep.mubr.f32.mxu0 %v340
  %452 = vmatmul.mubr.f32.gmra.mxu0 %v338
  %v453 = vpop.f32.mrf.mxu0
  %v454 = vadd.f32 %v272, %v453
  %v455 = vpop.f32.mrf.mxu0
  %v456 = vadd.f32 %v274, %v455
  %457 = vmatprep.mubr.f32.mxu0 %v344
  %458 = vmatmul.mubr.f32.gmra.mxu0 %v342
  %v459 = vpop.f32.mrf.mxu0
  %v460 = vadd.f32 %v278, %v459
  %v461 = vpop.f32.mrf.mxu0
  %v462 = vadd.f32 %v280, %v461
  %463 = vmatprep.mubr.f32.mxu0 %v348
  %464 = vmatmul.mubr.f32.gmra.mxu0 %v346
  %v465 = vpop.f32.mrf.mxu0
  %v466 = vadd.f32 %v284, %v465
  %v467 = vpop.f32.mrf.mxu0
  %v468 = vadd.f32 %v286, %v467
  %469 = vmatprep.mubr.f32.mxu0 %v352
  %470 = vmatmul.mubr.f32.gmra.mxu0 %v350
  %v471 = vpop.f32.mrf.mxu0
  %v472 = vadd.f32 %v290, %v471
  %v473 = vpop.f32.mrf.mxu0
  %v474 = vadd.f32 %v292, %v473
  %475 = vmatprep.mubr.f32.mxu0 %v356
  %476 = vmatmul.mubr.f32.gmra.mxu0 %v354
  %v477 = vpop.f32.mrf.mxu0
  %v478 = vadd.f32 %v296, %v477
  %v479 = vpop.f32.mrf.mxu0
  %v480 = vadd.f32 %v298, %v479
  %481 = vmatprep.mubr.f32.mxu0 %v360
  %482 = vmatmul.mubr.f32.gmra.mxu0 %v358
  %v483 = vpop.f32.mrf.mxu0
  %v484 = vadd.f32 %v302, %v483
  %v485 = vpop.f32.mrf.mxu0
  %v486 = vadd.f32 %v304, %v485
  %487 = vmatprep.mubr.f32.mxu0 %v364
  %488 = vmatmul.mubr.f32.gmra.mxu0 %v362
  %v489 = vpop.f32.mrf.mxu0
  %v490 = vadd.f32 %v308, %v489
  %v491 = vpop.f32.mrf.mxu0
  %v492 = vadd.f32 %v310, %v491
  %493 = vdwg.mxu0
  %v494 = vld [vmem:[%s0 + $0x10] sm:$0xfe]
  %v495 = vld [vmem:[%s0 + $0x18] sm:$0xfe]
  %v496 = vld [vmem:[%s0 + $0x20] sm:$0xff]
  %v497 = vld [vmem:[%s0 + $0x28] sm:$0xff]
  %v498 = vld [vmem:[%s0 + $0x30] sm:$0xff]
  %v499 = vld [vmem:[%s0 + $0x38] sm:$0xff]
  %v500 = vld [vmem:[%s0 + $0x40] sm:$0xff]
  %v501 = vld [vmem:[%s0 + $0x48] sm:$0xff]
  %v502 = vld [vmem:[%s0 + $0x50] sm:$0xff]
  %v503 = vld [vmem:[%s0 + $0x58] sm:$0xff]
  %v504 = vld [vmem:[%s0 + $0x60] sm:$0xff]
  %v505 = vld [vmem:[%s0 + $0x68] sm:$0xff]
  %v506 = vld [vmem:[%s0 + $0x70] sm:$0xff]
  %v507 = vld [vmem:[%s0 + $0x78] sm:$0xff]
  %v508 = vld [vmem:[%s0 + $0x80] sm:$0xff]
  %v509 = vld [vmem:[%s0 + $0x88] sm:$0xff]
  %v510 = vld [vmem:[%s0 + $0x90] sm:$0x1]
  %v511 = vld [vmem:[%s0 + $0x98] sm:$0x1]
  %s512 = scalar_lea.vmem %s2, 1024
  %v513 = vld [vmem:[%s512] sm:$0xff]
  %v514 = vld [vmem:[%s512 + $0x8] sm:$0xff]
  %v515 = vld [vmem:[%s512 + $0x10] sm:$0xff]
  %v516 = vld [vmem:[%s512 + $0x18] sm:$0xff]
  %v517 = vld [vmem:[%s512 + $0x20] sm:$0xff]
  %v518 = vld [vmem:[%s512 + $0x28] sm:$0xff]
  %v519 = vld [vmem:[%s512 + $0x30] sm:$0xff]
  %v520 = vld [vmem:[%s512 + $0x38] sm:$0xff]
  %v521 = vld [vmem:[%s512 + $0x40] sm:$0xff]
  %v522 = vld [vmem:[%s512 + $0x48] sm:$0xff]
  %v523 = vld [vmem:[%s512 + $0x50] sm:$0xff]
  %v524 = vld [vmem:[%s512 + $0x58] sm:$0xff]
  %v525 = vld [vmem:[%s512 + $0x60] sm:$0xff]
  %v526 = vld [vmem:[%s512 + $0x68] sm:$0xff]
  %v527 = vld [vmem:[%s512 + $0x70] sm:$0xff]
  %v528 = vld [vmem:[%s512 + $0x78] sm:$0xff]
  %v529 = vld [vmem:[%s512 + $0x80] sm:$0xff]
  %v530 = vld [vmem:[%s512 + $0x88] sm:$0xff]
  %v531 = vld [vmem:[%s512 + $0x90] sm:$0xff]
  %v532 = vld [vmem:[%s512 + $0x98] sm:$0xff]
  %v533 = vld [vmem:[%s512 + $0xa0] sm:$0xff]
  %v534 = vld [vmem:[%s512 + $0xa8] sm:$0xff]
  %v535 = vld [vmem:[%s512 + $0xb0] sm:$0xff]
  %v536 = vld [vmem:[%s512 + $0xb8] sm:$0xff]
  %v537 = vld [vmem:[%s512 + $0xc0] sm:$0xff]
  %v538 = vld [vmem:[%s512 + $0xc8] sm:$0xff]
  %v539 = vld [vmem:[%s512 + $0xd0] sm:$0xff]
  %v540 = vld [vmem:[%s512 + $0xd8] sm:$0xff]
  %v541 = vld [vmem:[%s512 + $0xe0] sm:$0xff]
  %v542 = vld [vmem:[%s512 + $0xe8] sm:$0xff]
  %v543 = vld [vmem:[%s512 + $0xf0] sm:$0xff]
  %v544 = vld [vmem:[%s512 + $0xf8] sm:$0xff]
  %v545 = vld [vmem:[%s512 + $0x100] sm:$0xff]
  %v546 = vld [vmem:[%s512 + $0x108] sm:$0xff]
  %v547 = vld [vmem:[%s512 + $0x110] sm:$0xff]
  %v548 = vld [vmem:[%s512 + $0x118] sm:$0xff]
  %v549 = vld [vmem:[%s512 + $0x120] sm:$0xff]
  %v550 = vld [vmem:[%s512 + $0x128] sm:$0xff]
  %v551 = vld [vmem:[%s512 + $0x130] sm:$0xff]
  %v552 = vld [vmem:[%s512 + $0x138] sm:$0xff]
  %v553 = vld [vmem:[%s512 + $0x140] sm:$0xff]
  %v554 = vld [vmem:[%s512 + $0x148] sm:$0xff]
  %v555 = vld [vmem:[%s512 + $0x150] sm:$0xff]
  %v556 = vld [vmem:[%s512 + $0x158] sm:$0xff]
  %v557 = vld [vmem:[%s512 + $0x160] sm:$0xff]
  %v558 = vld [vmem:[%s512 + $0x168] sm:$0xff]
  %v559 = vld [vmem:[%s512 + $0x170] sm:$0xff]
  %v560 = vld [vmem:[%s512 + $0x178] sm:$0xff]
  %v561 = vld [vmem:[%s512 + $0x180] sm:$0xff]
  %v562 = vld [vmem:[%s512 + $0x188] sm:$0xff]
  %v563 = vld [vmem:[%s512 + $0x190] sm:$0xff]
  %v564 = vld [vmem:[%s512 + $0x198] sm:$0xff]
  %v565 = vld [vmem:[%s512 + $0x1a0] sm:$0xff]
  %v566 = vld [vmem:[%s512 + $0x1a8] sm:$0xff]
  %v567 = vld [vmem:[%s512 + $0x1b0] sm:$0xff]
  %v568 = vld [vmem:[%s512 + $0x1b8] sm:$0xff]
  %v569 = vld [vmem:[%s512 + $0x1c0] sm:$0xff]
  %v570 = vld [vmem:[%s512 + $0x1c8] sm:$0xff]
  %v571 = vld [vmem:[%s512 + $0x1d0] sm:$0xff]
  %v572 = vld [vmem:[%s512 + $0x1d8] sm:$0xff]
  %v573 = vld [vmem:[%s512 + $0x1e0] sm:$0xff]
  %v574 = vld [vmem:[%s512 + $0x1e8] sm:$0xff]
  %v575 = vld [vmem:[%s512 + $0x1f0] sm:$0xff]
  %v576 = vld [vmem:[%s512 + $0x1f8] sm:$0xff]
  %vm595 = vcmask 1046528
  %v596 = vrot.slane %v494, 1
  %v597 = vrot.slane %v496, 1
  %v598 = vsel %vm595, %v596, %v597
  %v599 = vrot.slane %v495, 1
  %v600 = vrot.slane %v497, 1
  %v601 = vsel %vm595, %v599, %v600
  %v602 = vrot.slane %v498, 1
  %v603 = vsel %vm595, %v597, %v602
  %v604 = vrot.slane %v499, 1
  %v605 = vsel %vm595, %v600, %v604
  %v606 = vrot.slane %v500, 1
  %v607 = vsel %vm595, %v602, %v606
  %v608 = vrot.slane %v501, 1
  %v609 = vsel %vm595, %v604, %v608
  %v610 = vrot.slane %v502, 1
  %v611 = vsel %vm595, %v606, %v610
  %v612 = vrot.slane %v503, 1
  %v613 = vsel %vm595, %v608, %v612
  %v614 = vrot.slane %v504, 1
  %v615 = vsel %vm595, %v610, %v614
  %v616 = vrot.slane %v505, 1
  %v617 = vsel %vm595, %v612, %v616
  %v618 = vrot.slane %v506, 1
  %v619 = vsel %vm595, %v614, %v618
  %v620 = vrot.slane %v507, 1
  %v621 = vsel %vm595, %v616, %v620
  %v622 = vrot.slane %v508, 1
  %v623 = vsel %vm595, %v618, %v622
  %v624 = vrot.slane %v509, 1
  %v625 = vsel %vm595, %v620, %v624
  %v626 = vrot.slane %v510, 1
  %v627 = vsel %vm595, %v622, %v626
  %v628 = vrot.slane %v511, 1
  %v629 = vsel %vm595, %v624, %v628
  %646 = vmatprep.subr.mxu0 %v544
  %647 = vmatpush1.msra.mxu0 %v543
  %648 = vmatprep.subr.mxu0 %v542
  %649 = vmatpush1.msra.mxu0 %v541
  %650 = vmatprep.subr.mxu0 %v540
  %651 = vmatpush1.msra.mxu0 %v539
  %652 = vmatprep.subr.mxu0 %v538
  %653 = vmatpush1.msra.mxu0 %v537
  %654 = vmatprep.subr.mxu0 %v536
  %655 = vmatpush1.msra.mxu0 %v535
  %656 = vmatprep.subr.mxu0 %v534
  %657 = vmatpush1.msra.mxu0 %v533
  %658 = vmatprep.subr.mxu0 %v532
  %659 = vmatpush1.msra.mxu0 %v531
  %660 = vmatprep.subr.mxu0 %v530
  %661 = vmatpush1.msra.mxu0 %v529
  %662 = vmatprep.subr.mxu0 %v528
  %663 = vmatpush1.msra.mxu0 %v527
  %664 = vmatprep.subr.mxu0 %v526
  %665 = vmatpush1.msra.mxu0 %v525
  %666 = vmatprep.subr.mxu0 %v524
  %667 = vmatpush1.msra.mxu0 %v523
  %668 = vmatprep.subr.mxu0 %v522
  %669 = vmatpush1.msra.mxu0 %v521
  %670 = vmatprep.subr.mxu0 %v520
  %671 = vmatpush1.msra.mxu0 %v519
  %672 = vmatprep.subr.mxu0 %v518
  %673 = vmatpush1.msra.mxu0 %v517
  %674 = vmatprep.subr.mxu0 %v516
  %675 = vmatpush1.msra.mxu0 %v515
  %676 = vmatprep.subr.mxu0 %v514
  %677 = vmatpush1.msra.mxu0 %v513
  %678 = vmatprep.subr.mxu0 %v576
  %679 = vmatpush2.msra.mxu0 %v575
  %680 = vmatprep.subr.mxu0 %v574
  %681 = vmatpush2.msra.mxu0 %v573
  %682 = vmatprep.subr.mxu0 %v572
  %683 = vmatpush2.msra.mxu0 %v571
  %684 = vmatprep.subr.mxu0 %v570
  %685 = vmatpush2.msra.mxu0 %v569
  %686 = vmatprep.subr.mxu0 %v568
  %687 = vmatpush2.msra.mxu0 %v567
  %688 = vmatprep.subr.mxu0 %v566
  %689 = vmatpush2.msra.mxu0 %v565
  %690 = vmatprep.subr.mxu0 %v564
  %691 = vmatpush2.msra.mxu0 %v563
  %692 = vmatprep.subr.mxu0 %v562
  %693 = vmatpush2.msra.mxu0 %v561
  %694 = vmatprep.subr.mxu0 %v560
  %695 = vmatpush2.msra.mxu0 %v559
  %696 = vmatprep.subr.mxu0 %v558
  %697 = vmatpush2.msra.mxu0 %v557
  %698 = vmatprep.subr.mxu0 %v556
  %699 = vmatpush2.msra.mxu0 %v555
  %700 = vmatprep.subr.mxu0 %v554
  %701 = vmatpush2.msra.mxu0 %v553
  %702 = vmatprep.subr.mxu0 %v552
  %703 = vmatpush2.msra.mxu0 %v551
  %704 = vmatprep.subr.mxu0 %v550
  %705 = vmatpush2.msra.mxu0 %v549
  %706 = vmatprep.subr.mxu0 %v548
  %707 = vmatpush2.msra.mxu0 %v547
  %708 = vmatprep.subr.mxu0 %v546
  %709 = vmatpush2.msra.mxu0 %v545
  %710 = vmatprep.mubr.f32.mxu0 %v601
  %711 = vmatmul.mubr.f32.gmra.mxu0 %v598
  %v712 = vpop.f32.mrf.mxu0
  %v713 = vadd.f32 0.0, %v712
  %v714 = vpop.f32.mrf.mxu0
  %v715 = vadd.f32 0.0, %v714
  %716 = vmatprep.mubr.f32.mxu0 %v605
  %717 = vmatmul.mubr.f32.gmra.mxu0 %v603
  %v718 = vpop.f32.mrf.mxu0
  %v719 = vadd.f32 0.0, %v718
  %v720 = vpop.f32.mrf.mxu0
  %v721 = vadd.f32 0.0, %v720
  %722 = vmatprep.mubr.f32.mxu0 %v609
  %723 = vmatmul.mubr.f32.gmra.mxu0 %v607
  %v724 = vpop.f32.mrf.mxu0
  %v725 = vadd.f32 0.0, %v724
  %v726 = vpop.f32.mrf.mxu0
  %v727 = vadd.f32 0.0, %v726
  %728 = vmatprep.mubr.f32.mxu0 %v613
  %729 = vmatmul.mubr.f32.gmra.mxu0 %v611
  %v730 = vpop.f32.mrf.mxu0
  %v731 = vadd.f32 0.0, %v730
  %v732 = vpop.f32.mrf.mxu0
  %v733 = vadd.f32 0.0, %v732
  %734 = vmatprep.mubr.f32.mxu0 %v617
  %735 = vmatmul.mubr.f32.gmra.mxu0 %v615
  %v736 = vpop.f32.mrf.mxu0
  %v737 = vadd.f32 0.0, %v736
  %v738 = vpop.f32.mrf.mxu0
  %v739 = vadd.f32 0.0, %v738
  %740 = vmatprep.mubr.f32.mxu0 %v621
  %741 = vmatmul.mubr.f32.gmra.mxu0 %v619
  %v742 = vpop.f32.mrf.mxu0
  %v743 = vadd.f32 0.0, %v742
  %v744 = vpop.f32.mrf.mxu0
  %v745 = vadd.f32 0.0, %v744
  %746 = vmatprep.mubr.f32.mxu0 %v625
  %747 = vmatmul.mubr.f32.gmra.mxu0 %v623
  %v748 = vpop.f32.mrf.mxu0
  %v749 = vadd.f32 0.0, %v748
  %v750 = vpop.f32.mrf.mxu0
  %v751 = vadd.f32 0.0, %v750
  %752 = vmatprep.mubr.f32.mxu0 %v629
  %753 = vmatmul.mubr.f32.gmra.mxu0 %v627
  %v754 = vpop.f32.mrf.mxu0
  %v755 = vadd.f32 0.0, %v754
  %v756 = vpop.f32.mrf.mxu0
  %v757 = vadd.f32 0.0, %v756
  %758 = vdwg.mxu0
  %v759 = vadd.f32 %v448, %v713
  %v760 = vadd.f32 %v450, %v715
  %v761 = vadd.f32 %v454, %v719
  %v762 = vadd.f32 %v456, %v721
  %v763 = vadd.f32 %v460, %v725
  %v764 = vadd.f32 %v462, %v727
  %v765 = vadd.f32 %v466, %v731
  %v766 = vadd.f32 %v468, %v733
  %v767 = vadd.f32 %v472, %v737
  %v768 = vadd.f32 %v474, %v739
  %v769 = vadd.f32 %v478, %v743
  %v770 = vadd.f32 %v480, %v745
  %v771 = vadd.f32 %v484, %v749
  %v772 = vadd.f32 %v486, %v751
  %v773 = vadd.f32 %v490, %v755
  %v774 = vadd.f32 %v492, %v757
  %v775 = vld [vmem:[%s0 + $0x10] sm:$0x80]
  %v776 = vld [vmem:[%s0 + $0x18] sm:$0x80]
  %v777 = vld [vmem:[%s0 + $0x90] sm:$0x7f]
  %v778 = vld [vmem:[%s0 + $0x98] sm:$0x7f]
  %s779 = scalar_lea.vmem %s2, 1536
  %v780 = vld [vmem:[%s779] sm:$0xff]
  %v781 = vld [vmem:[%s779 + $0x8] sm:$0xff]
  %v782 = vld [vmem:[%s779 + $0x10] sm:$0xff]
  %v783 = vld [vmem:[%s779 + $0x18] sm:$0xff]
  %v784 = vld [vmem:[%s779 + $0x20] sm:$0xff]
  %v785 = vld [vmem:[%s779 + $0x28] sm:$0xff]
  %v786 = vld [vmem:[%s779 + $0x30] sm:$0xff]
  %v787 = vld [vmem:[%s779 + $0x38] sm:$0xff]
  %v788 = vld [vmem:[%s779 + $0x40] sm:$0xff]
  %v789 = vld [vmem:[%s779 + $0x48] sm:$0xff]
  %v790 = vld [vmem:[%s779 + $0x50] sm:$0xff]
  %v791 = vld [vmem:[%s779 + $0x58] sm:$0xff]
  %v792 = vld [vmem:[%s779 + $0x60] sm:$0xff]
  %v793 = vld [vmem:[%s779 + $0x68] sm:$0xff]
  %v794 = vld [vmem:[%s779 + $0x70] sm:$0xff]
  %v795 = vld [vmem:[%s779 + $0x78] sm:$0xff]
  %v796 = vld [vmem:[%s779 + $0x80] sm:$0xff]
  %v797 = vld [vmem:[%s779 + $0x88] sm:$0xff]
  %v798 = vld [vmem:[%s779 + $0x90] sm:$0xff]
  %v799 = vld [vmem:[%s779 + $0x98] sm:$0xff]
  %v800 = vld [vmem:[%s779 + $0xa0] sm:$0xff]
  %v801 = vld [vmem:[%s779 + $0xa8] sm:$0xff]
  %v802 = vld [vmem:[%s779 + $0xb0] sm:$0xff]
  %v803 = vld [vmem:[%s779 + $0xb8] sm:$0xff]
  %v804 = vld [vmem:[%s779 + $0xc0] sm:$0xff]
  %v805 = vld [vmem:[%s779 + $0xc8] sm:$0xff]
  %v806 = vld [vmem:[%s779 + $0xd0] sm:$0xff]
  %v807 = vld [vmem:[%s779 + $0xd8] sm:$0xff]
  %v808 = vld [vmem:[%s779 + $0xe0] sm:$0xff]
  %v809 = vld [vmem:[%s779 + $0xe8] sm:$0xff]
  %v810 = vld [vmem:[%s779 + $0xf0] sm:$0xff]
  %v811 = vld [vmem:[%s779 + $0xf8] sm:$0xff]
  %v812 = vld [vmem:[%s779 + $0x100] sm:$0xff]
  %v813 = vld [vmem:[%s779 + $0x108] sm:$0xff]
  %v814 = vld [vmem:[%s779 + $0x110] sm:$0xff]
  %v815 = vld [vmem:[%s779 + $0x118] sm:$0xff]
  %v816 = vld [vmem:[%s779 + $0x120] sm:$0xff]
  %v817 = vld [vmem:[%s779 + $0x128] sm:$0xff]
  %v818 = vld [vmem:[%s779 + $0x130] sm:$0xff]
  %v819 = vld [vmem:[%s779 + $0x138] sm:$0xff]
  %v820 = vld [vmem:[%s779 + $0x140] sm:$0xff]
  %v821 = vld [vmem:[%s779 + $0x148] sm:$0xff]
  %v822 = vld [vmem:[%s779 + $0x150] sm:$0xff]
  %v823 = vld [vmem:[%s779 + $0x158] sm:$0xff]
  %v824 = vld [vmem:[%s779 + $0x160] sm:$0xff]
  %v825 = vld [vmem:[%s779 + $0x168] sm:$0xff]
  %v826 = vld [vmem:[%s779 + $0x170] sm:$0xff]
  %v827 = vld [vmem:[%s779 + $0x178] sm:$0xff]
  %v828 = vld [vmem:[%s779 + $0x180] sm:$0xff]
  %v829 = vld [vmem:[%s779 + $0x188] sm:$0xff]
  %v830 = vld [vmem:[%s779 + $0x190] sm:$0xff]
  %v831 = vld [vmem:[%s779 + $0x198] sm:$0xff]
  %v832 = vld [vmem:[%s779 + $0x1a0] sm:$0xff]
  %v833 = vld [vmem:[%s779 + $0x1a8] sm:$0xff]
  %v834 = vld [vmem:[%s779 + $0x1b0] sm:$0xff]
  %v835 = vld [vmem:[%s779 + $0x1b8] sm:$0xff]
  %v836 = vld [vmem:[%s779 + $0x1c0] sm:$0xff]
  %v837 = vld [vmem:[%s779 + $0x1c8] sm:$0xff]
  %v838 = vld [vmem:[%s779 + $0x1d0] sm:$0xff]
  %v839 = vld [vmem:[%s779 + $0x1d8] sm:$0xff]
  %v840 = vld [vmem:[%s779 + $0x1e0] sm:$0xff]
  %v841 = vld [vmem:[%s779 + $0x1e8] sm:$0xff]
  %v842 = vld [vmem:[%s779 + $0x1f0] sm:$0xff]
  %v843 = vld [vmem:[%s779 + $0x1f8] sm:$0xff]
  %v848 = vrot.slane %v775, 7
  %v849 = vrot.slane %v496, 7
  %v850 = vsel %vm330, %v848, %v849
  %v851 = vrot.slane %v776, 7
  %v852 = vrot.slane %v497, 7
  %v853 = vsel %vm330, %v851, %v852
  %v854 = vrot.slane %v498, 7
  %v855 = vsel %vm330, %v849, %v854
  %v856 = vrot.slane %v499, 7
  %v857 = vsel %vm330, %v852, %v856
  %v858 = vrot.slane %v500, 7
  %v859 = vsel %vm330, %v854, %v858
  %v860 = vrot.slane %v501, 7
  %v861 = vsel %vm330, %v856, %v860
  %v862 = vrot.slane %v502, 7
  %v863 = vsel %vm330, %v858, %v862
  %v864 = vrot.slane %v503, 7
  %v865 = vsel %vm330, %v860, %v864
  %v866 = vrot.slane %v504, 7
  %v867 = vsel %vm330, %v862, %v866
  %v868 = vrot.slane %v505, 7
  %v869 = vsel %vm330, %v864, %v868
  %v870 = vrot.slane %v506, 7
  %v871 = vsel %vm330, %v866, %v870
  %v872 = vrot.slane %v507, 7
  %v873 = vsel %vm330, %v868, %v872
  %v874 = vrot.slane %v508, 7
  %v875 = vsel %vm330, %v870, %v874
  %v876 = vrot.slane %v509, 7
  %v877 = vsel %vm330, %v872, %v876
  %v878 = vrot.slane %v777, 7
  %v879 = vsel %vm330, %v874, %v878
  %v880 = vrot.slane %v778, 7
  %v881 = vsel %vm330, %v876, %v880
  %898 = vmatprep.subr.mxu0 %v811
  %899 = vmatpush1.msra.mxu0 %v810
  %900 = vmatprep.subr.mxu0 %v809
  %901 = vmatpush1.msra.mxu0 %v808
  %902 = vmatprep.subr.mxu0 %v807
  %903 = vmatpush1.msra.mxu0 %v806
  %904 = vmatprep.subr.mxu0 %v805
  %905 = vmatpush1.msra.mxu0 %v804
  %906 = vmatprep.subr.mxu0 %v803
  %907 = vmatpush1.msra.mxu0 %v802
  %908 = vmatprep.subr.mxu0 %v801
  %909 = vmatpush1.msra.mxu0 %v800
  %910 = vmatprep.subr.mxu0 %v799
  %911 = vmatpush1.msra.mxu0 %v798
  %912 = vmatprep.subr.mxu0 %v797
  %913 = vmatpush1.msra.mxu0 %v796
  %914 = vmatprep.subr.mxu0 %v795
  %915 = vmatpush1.msra.mxu0 %v794
  %916 = vmatprep.subr.mxu0 %v793
  %917 = vmatpush1.msra.mxu0 %v792
  %918 = vmatprep.subr.mxu0 %v791
  %919 = vmatpush1.msra.mxu0 %v790
  %920 = vmatprep.subr.mxu0 %v789
  %921 = vmatpush1.msra.mxu0 %v788
  %922 = vmatprep.subr.mxu0 %v787
  %923 = vmatpush1.msra.mxu0 %v786
  %924 = vmatprep.subr.mxu0 %v785
  %925 = vmatpush1.msra.mxu0 %v784
  %926 = vmatprep.subr.mxu0 %v783
  %927 = vmatpush1.msra.mxu0 %v782
  %928 = vmatprep.subr.mxu0 %v781
  %929 = vmatpush1.msra.mxu0 %v780
  %930 = vmatprep.subr.mxu0 %v843
  %931 = vmatpush2.msra.mxu0 %v842
  %932 = vmatprep.subr.mxu0 %v841
  %933 = vmatpush2.msra.mxu0 %v840
  %934 = vmatprep.subr.mxu0 %v839
  %935 = vmatpush2.msra.mxu0 %v838
  %936 = vmatprep.subr.mxu0 %v837
  %937 = vmatpush2.msra.mxu0 %v836
  %938 = vmatprep.subr.mxu0 %v835
  %939 = vmatpush2.msra.mxu0 %v834
  %940 = vmatprep.subr.mxu0 %v833
  %941 = vmatpush2.msra.mxu0 %v832
  %942 = vmatprep.subr.mxu0 %v831
  %943 = vmatpush2.msra.mxu0 %v830
  %944 = vmatprep.subr.mxu0 %v829
  %945 = vmatpush2.msra.mxu0 %v828
  %946 = vmatprep.subr.mxu0 %v827
  %947 = vmatpush2.msra.mxu0 %v826
  %948 = vmatprep.subr.mxu0 %v825
  %949 = vmatpush2.msra.mxu0 %v824
  %950 = vmatprep.subr.mxu0 %v823
  %951 = vmatpush2.msra.mxu0 %v822
  %952 = vmatprep.subr.mxu0 %v821
  %953 = vmatpush2.msra.mxu0 %v820
  %954 = vmatprep.subr.mxu0 %v819
  %955 = vmatpush2.msra.mxu0 %v818
  %956 = vmatprep.subr.mxu0 %v817
  %957 = vmatpush2.msra.mxu0 %v816
  %958 = vmatprep.subr.mxu0 %v815
  %959 = vmatpush2.msra.mxu0 %v814
  %960 = vmatprep.subr.mxu0 %v813
  %961 = vmatpush2.msra.mxu0 %v812
  %962 = vmatprep.mubr.f32.mxu0 %v853
  %963 = vmatmul.mubr.f32.gmra.mxu0 %v850
  %v964 = vpop.f32.mrf.mxu0
  %v965 = vadd.f32 0.0, %v964
  %v966 = vpop.f32.mrf.mxu0
  %v967 = vadd.f32 0.0, %v966
  %968 = vmatprep.mubr.f32.mxu0 %v857
  %969 = vmatmul.mubr.f32.gmra.mxu0 %v855
  %v970 = vpop.f32.mrf.mxu0
  %v971 = vadd.f32 0.0, %v970
  %v972 = vpop.f32.mrf.mxu0
  %v973 = vadd.f32 0.0, %v972
  %974 = vmatprep.mubr.f32.mxu0 %v861
  %975 = vmatmul.mubr.f32.gmra.mxu0 %v859
  %v976 = vpop.f32.mrf.mxu0
  %v977 = vadd.f32 0.0, %v976
  %v978 = vpop.f32.mrf.mxu0
  %v979 = vadd.f32 0.0, %v978
  %980 = vmatprep.mubr.f32.mxu0 %v865
  %981 = vmatmul.mubr.f32.gmra.mxu0 %v863
  %v982 = vpop.f32.mrf.mxu0
  %v983 = vadd.f32 0.0, %v982
  %v984 = vpop.f32.mrf.mxu0
  %v985 = vadd.f32 0.0, %v984
  %986 = vmatprep.mubr.f32.mxu0 %v869
  %987 = vmatmul.mubr.f32.gmra.mxu0 %v867
  %v988 = vpop.f32.mrf.mxu0
  %v989 = vadd.f32 0.0, %v988
  %v990 = vpop.f32.mrf.mxu0
  %v991 = vadd.f32 0.0, %v990
  %992 = vmatprep.mubr.f32.mxu0 %v873
  %993 = vmatmul.mubr.f32.gmra.mxu0 %v871
  %v994 = vpop.f32.mrf.mxu0
  %v995 = vadd.f32 0.0, %v994
  %v996 = vpop.f32.mrf.mxu0
  %v997 = vadd.f32 0.0, %v996
  %998 = vmatprep.mubr.f32.mxu0 %v877
  %999 = vmatmul.mubr.f32.gmra.mxu0 %v875
  %v1000 = vpop.f32.mrf.mxu0
  %v1001 = vadd.f32 0.0, %v1000
  %v1002 = vpop.f32.mrf.mxu0
  %v1003 = vadd.f32 0.0, %v1002
  %1004 = vmatprep.mubr.f32.mxu0 %v881
  %1005 = vmatmul.mubr.f32.gmra.mxu0 %v879
  %v1006 = vpop.f32.mrf.mxu0
  %v1007 = vadd.f32 0.0, %v1006
  %v1008 = vpop.f32.mrf.mxu0
  %v1009 = vadd.f32 0.0, %v1008
  %1010 = vdwg.mxu0
  %v1011 = vadd.f32 %v759, %v965
  %v1012 = vadd.f32 %v760, %v967
  %v1013 = vadd.f32 %v761, %v971
  %v1014 = vadd.f32 %v762, %v973
  %v1015 = vadd.f32 %v763, %v977
  %v1016 = vadd.f32 %v764, %v979
  %v1017 = vadd.f32 %v765, %v983
  %v1018 = vadd.f32 %v766, %v985
  %v1019 = vadd.f32 %v767, %v989
  %v1020 = vadd.f32 %v768, %v991
  %v1021 = vadd.f32 %v769, %v995
  %v1022 = vadd.f32 %v770, %v997
  %v1023 = vadd.f32 %v771, %v1001
  %v1024 = vadd.f32 %v772, %v1003
  %v1025 = vadd.f32 %v773, %v1007
  %v1026 = vadd.f32 %v774, %v1009
  %v1027 = vld [vmem:[%s0 + $0x90] sm:$0xff]
  %v1028 = vld [vmem:[%s0 + $0x98] sm:$0xff]
  %s1029 = scalar_lea.vmem %s2, 2048
  %v1030 = vld [vmem:[%s1029] sm:$0xff]
  %v1031 = vld [vmem:[%s1029 + $0x8] sm:$0xff]
  %v1032 = vld [vmem:[%s1029 + $0x10] sm:$0xff]
  %v1033 = vld [vmem:[%s1029 + $0x18] sm:$0xff]
  %v1034 = vld [vmem:[%s1029 + $0x20] sm:$0xff]
  %v1035 = vld [vmem:[%s1029 + $0x28] sm:$0xff]
  %v1036 = vld [vmem:[%s1029 + $0x30] sm:$0xff]
  %v1037 = vld [vmem:[%s1029 + $0x38] sm:$0xff]
  %v1038 = vld [vmem:[%s1029 + $0x40] sm:$0xff]
  %v1039 = vld [vmem:[%s1029 + $0x48] sm:$0xff]
  %v1040 = vld [vmem:[%s1029 + $0x50] sm:$0xff]
  %v1041 = vld [vmem:[%s1029 + $0x58] sm:$0xff]
  %v1042 = vld [vmem:[%s1029 + $0x60] sm:$0xff]
  %v1043 = vld [vmem:[%s1029 + $0x68] sm:$0xff]
  %v1044 = vld [vmem:[%s1029 + $0x70] sm:$0xff]
  %v1045 = vld [vmem:[%s1029 + $0x78] sm:$0xff]
  %v1046 = vld [vmem:[%s1029 + $0x80] sm:$0xff]
  %v1047 = vld [vmem:[%s1029 + $0x88] sm:$0xff]
  %v1048 = vld [vmem:[%s1029 + $0x90] sm:$0xff]
  %v1049 = vld [vmem:[%s1029 + $0x98] sm:$0xff]
  %v1050 = vld [vmem:[%s1029 + $0xa0] sm:$0xff]
  %v1051 = vld [vmem:[%s1029 + $0xa8] sm:$0xff]
  %v1052 = vld [vmem:[%s1029 + $0xb0] sm:$0xff]
  %v1053 = vld [vmem:[%s1029 + $0xb8] sm:$0xff]
  %v1054 = vld [vmem:[%s1029 + $0xc0] sm:$0xff]
  %v1055 = vld [vmem:[%s1029 + $0xc8] sm:$0xff]
  %v1056 = vld [vmem:[%s1029 + $0xd0] sm:$0xff]
  %v1057 = vld [vmem:[%s1029 + $0xd8] sm:$0xff]
  %v1058 = vld [vmem:[%s1029 + $0xe0] sm:$0xff]
  %v1059 = vld [vmem:[%s1029 + $0xe8] sm:$0xff]
  %v1060 = vld [vmem:[%s1029 + $0xf0] sm:$0xff]
  %v1061 = vld [vmem:[%s1029 + $0xf8] sm:$0xff]
  %v1062 = vld [vmem:[%s1029 + $0x100] sm:$0xff]
  %v1063 = vld [vmem:[%s1029 + $0x108] sm:$0xff]
  %v1064 = vld [vmem:[%s1029 + $0x110] sm:$0xff]
  %v1065 = vld [vmem:[%s1029 + $0x118] sm:$0xff]
  %v1066 = vld [vmem:[%s1029 + $0x120] sm:$0xff]
  %v1067 = vld [vmem:[%s1029 + $0x128] sm:$0xff]
  %v1068 = vld [vmem:[%s1029 + $0x130] sm:$0xff]
  %v1069 = vld [vmem:[%s1029 + $0x138] sm:$0xff]
  %v1070 = vld [vmem:[%s1029 + $0x140] sm:$0xff]
  %v1071 = vld [vmem:[%s1029 + $0x148] sm:$0xff]
  %v1072 = vld [vmem:[%s1029 + $0x150] sm:$0xff]
  %v1073 = vld [vmem:[%s1029 + $0x158] sm:$0xff]
  %v1074 = vld [vmem:[%s1029 + $0x160] sm:$0xff]
  %v1075 = vld [vmem:[%s1029 + $0x168] sm:$0xff]
  %v1076 = vld [vmem:[%s1029 + $0x170] sm:$0xff]
  %v1077 = vld [vmem:[%s1029 + $0x178] sm:$0xff]
  %v1078 = vld [vmem:[%s1029 + $0x180] sm:$0xff]
  %v1079 = vld [vmem:[%s1029 + $0x188] sm:$0xff]
  %v1080 = vld [vmem:[%s1029 + $0x190] sm:$0xff]
  %v1081 = vld [vmem:[%s1029 + $0x198] sm:$0xff]
  %v1082 = vld [vmem:[%s1029 + $0x1a0] sm:$0xff]
  %v1083 = vld [vmem:[%s1029 + $0x1a8] sm:$0xff]
  %v1084 = vld [vmem:[%s1029 + $0x1b0] sm:$0xff]
  %v1085 = vld [vmem:[%s1029 + $0x1b8] sm:$0xff]
  %v1086 = vld [vmem:[%s1029 + $0x1c0] sm:$0xff]
  %v1087 = vld [vmem:[%s1029 + $0x1c8] sm:$0xff]
  %v1088 = vld [vmem:[%s1029 + $0x1d0] sm:$0xff]
  %v1089 = vld [vmem:[%s1029 + $0x1d8] sm:$0xff]
  %v1090 = vld [vmem:[%s1029 + $0x1e0] sm:$0xff]
  %v1091 = vld [vmem:[%s1029 + $0x1e8] sm:$0xff]
  %v1092 = vld [vmem:[%s1029 + $0x1f0] sm:$0xff]
  %v1093 = vld [vmem:[%s1029 + $0x1f8] sm:$0xff]
  %1094 = vmatprep.subr.mxu0 %v1061
  %1095 = vmatpush1.msra.mxu0 %v1060
  %1096 = vmatprep.subr.mxu0 %v1059
  %1097 = vmatpush1.msra.mxu0 %v1058
  %1098 = vmatprep.subr.mxu0 %v1057
  %1099 = vmatpush1.msra.mxu0 %v1056
  %1100 = vmatprep.subr.mxu0 %v1055
  %1101 = vmatpush1.msra.mxu0 %v1054
  %1102 = vmatprep.subr.mxu0 %v1053
  %1103 = vmatpush1.msra.mxu0 %v1052
  %1104 = vmatprep.subr.mxu0 %v1051
  %1105 = vmatpush1.msra.mxu0 %v1050
  %1106 = vmatprep.subr.mxu0 %v1049
  %1107 = vmatpush1.msra.mxu0 %v1048
  %1108 = vmatprep.subr.mxu0 %v1047
  %1109 = vmatpush1.msra.mxu0 %v1046
  %1110 = vmatprep.subr.mxu0 %v1045
  %1111 = vmatpush1.msra.mxu0 %v1044
  %1112 = vmatprep.subr.mxu0 %v1043
  %1113 = vmatpush1.msra.mxu0 %v1042
  %1114 = vmatprep.subr.mxu0 %v1041
  %1115 = vmatpush1.msra.mxu0 %v1040
  %1116 = vmatprep.subr.mxu0 %v1039
  %1117 = vmatpush1.msra.mxu0 %v1038
  %1118 = vmatprep.subr.mxu0 %v1037
  %1119 = vmatpush1.msra.mxu0 %v1036
  %1120 = vmatprep.subr.mxu0 %v1035
  %1121 = vmatpush1.msra.mxu0 %v1034
  %1122 = vmatprep.subr.mxu0 %v1033
  %1123 = vmatpush1.msra.mxu0 %v1032
  %1124 = vmatprep.subr.mxu0 %v1031
  %1125 = vmatpush1.msra.mxu0 %v1030
  %1126 = vmatprep.subr.mxu0 %v1093
  %1127 = vmatpush2.msra.mxu0 %v1092
  %1128 = vmatprep.subr.mxu0 %v1091
  %1129 = vmatpush2.msra.mxu0 %v1090
  %1130 = vmatprep.subr.mxu0 %v1089
  %1131 = vmatpush2.msra.mxu0 %v1088
  %1132 = vmatprep.subr.mxu0 %v1087
  %1133 = vmatpush2.msra.mxu0 %v1086
  %1134 = vmatprep.subr.mxu0 %v1085
  %1135 = vmatpush2.msra.mxu0 %v1084
  %1136 = vmatprep.subr.mxu0 %v1083
  %1137 = vmatpush2.msra.mxu0 %v1082
  %1138 = vmatprep.subr.mxu0 %v1081
  %1139 = vmatpush2.msra.mxu0 %v1080
  %1140 = vmatprep.subr.mxu0 %v1079
  %1141 = vmatpush2.msra.mxu0 %v1078
  %1142 = vmatprep.subr.mxu0 %v1077
  %1143 = vmatpush2.msra.mxu0 %v1076
  %1144 = vmatprep.subr.mxu0 %v1075
  %1145 = vmatpush2.msra.mxu0 %v1074
  %1146 = vmatprep.subr.mxu0 %v1073
  %1147 = vmatpush2.msra.mxu0 %v1072
  %1148 = vmatprep.subr.mxu0 %v1071
  %1149 = vmatpush2.msra.mxu0 %v1070
  %1150 = vmatprep.subr.mxu0 %v1069
  %1151 = vmatpush2.msra.mxu0 %v1068
  %1152 = vmatprep.subr.mxu0 %v1067
  %1153 = vmatpush2.msra.mxu0 %v1066
  %1154 = vmatprep.subr.mxu0 %v1065
  %1155 = vmatpush2.msra.mxu0 %v1064
  %1156 = vmatprep.subr.mxu0 %v1063
  %1157 = vmatpush2.msra.mxu0 %v1062
  %1158 = vmatprep.mubr.f32.mxu0 %v497
  %1159 = vmatmul.mubr.f32.gmra.mxu0 %v496
  %v1160 = vpop.f32.mrf.mxu0
  %v1161 = vadd.f32 0.0, %v1160
  %v1162 = vpop.f32.mrf.mxu0
  %v1163 = vadd.f32 0.0, %v1162
  %1164 = vmatprep.mubr.f32.mxu0 %v499
  %1165 = vmatmul.mubr.f32.gmra.mxu0 %v498
  %v1166 = vpop.f32.mrf.mxu0
  %v1167 = vadd.f32 0.0, %v1166
  %v1168 = vpop.f32.mrf.mxu0
  %v1169 = vadd.f32 0.0, %v1168
  %1170 = vmatprep.mubr.f32.mxu0 %v501
  %1171 = vmatmul.mubr.f32.gmra.mxu0 %v500
  %v1172 = vpop.f32.mrf.mxu0
  %v1173 = vadd.f32 0.0, %v1172
  %v1174 = vpop.f32.mrf.mxu0
  %v1175 = vadd.f32 0.0, %v1174
  %1176 = vmatprep.mubr.f32.mxu0 %v503
  %1177 = vmatmul.mubr.f32.gmra.mxu0 %v502
  %v1178 = vpop.f32.mrf.mxu0
  %v1179 = vadd.f32 0.0, %v1178
  %v1180 = vpop.f32.mrf.mxu0
  %v1181 = vadd.f32 0.0, %v1180
  %1182 = vmatprep.mubr.f32.mxu0 %v505
  %1183 = vmatmul.mubr.f32.gmra.mxu0 %v504
  %v1184 = vpop.f32.mrf.mxu0
  %v1185 = vadd.f32 0.0, %v1184
  %v1186 = vpop.f32.mrf.mxu0
  %v1187 = vadd.f32 0.0, %v1186
  %1188 = vmatprep.mubr.f32.mxu0 %v507
  %1189 = vmatmul.mubr.f32.gmra.mxu0 %v506
  %v1190 = vpop.f32.mrf.mxu0
  %v1191 = vadd.f32 0.0, %v1190
  %v1192 = vpop.f32.mrf.mxu0
  %v1193 = vadd.f32 0.0, %v1192
  %1194 = vmatprep.mubr.f32.mxu0 %v509
  %1195 = vmatmul.mubr.f32.gmra.mxu0 %v508
  %v1196 = vpop.f32.mrf.mxu0
  %v1197 = vadd.f32 0.0, %v1196
  %v1198 = vpop.f32.mrf.mxu0
  %v1199 = vadd.f32 0.0, %v1198
  %1200 = vmatprep.mubr.f32.mxu0 %v1028
  %1201 = vmatmul.mubr.f32.gmra.mxu0 %v1027
  %v1202 = vpop.f32.mrf.mxu0
  %v1203 = vadd.f32 0.0, %v1202
  %v1204 = vpop.f32.mrf.mxu0
  %v1205 = vadd.f32 0.0, %v1204
  %1206 = vdwg.mxu0
  %v1207 = vadd.f32 %v1011, %v1161
  %v1208 = vadd.f32 %v1012, %v1163
  %v1209 = vadd.f32 %v1013, %v1167
  %v1210 = vadd.f32 %v1014, %v1169
  %v1211 = vadd.f32 %v1015, %v1173
  %v1212 = vadd.f32 %v1016, %v1175
  %v1213 = vadd.f32 %v1017, %v1179
  %v1214 = vadd.f32 %v1018, %v1181
  %v1215 = vadd.f32 %v1019, %v1185
  %v1216 = vadd.f32 %v1020, %v1187
  %v1217 = vadd.f32 %v1021, %v1191
  %v1218 = vadd.f32 %v1022, %v1193
  %v1219 = vadd.f32 %v1023, %v1197
  %v1220 = vadd.f32 %v1024, %v1199
  %v1221 = vadd.f32 %v1025, %v1203
  %v1222 = vadd.f32 %v1026, %v1205
  %v1223 = vld [vmem:[%s0 + $0x20] sm:$0xfe]
  %v1224 = vld [vmem:[%s0 + $0x28] sm:$0xfe]
  %v1225 = vld [vmem:[%s0 + $0x30] sm:$0xff]
  %v1226 = vld [vmem:[%s0 + $0x38] sm:$0xff]
  %v1227 = vld [vmem:[%s0 + $0x40] sm:$0xff]
  %v1228 = vld [vmem:[%s0 + $0x48] sm:$0xff]
  %v1229 = vld [vmem:[%s0 + $0x50] sm:$0xff]
  %v1230 = vld [vmem:[%s0 + $0x58] sm:$0xff]
  %v1231 = vld [vmem:[%s0 + $0x60] sm:$0xff]
  %v1232 = vld [vmem:[%s0 + $0x68] sm:$0xff]
  %v1233 = vld [vmem:[%s0 + $0x70] sm:$0xff]
  %v1234 = vld [vmem:[%s0 + $0x78] sm:$0xff]
  %v1235 = vld [vmem:[%s0 + $0x80] sm:$0xff]
  %v1236 = vld [vmem:[%s0 + $0x88] sm:$0xff]
  %v1237 = vld [vmem:[%s0 + $0x90] sm:$0xff]
  %v1238 = vld [vmem:[%s0 + $0x98] sm:$0xff]
  %v1239 = vld [vmem:[%s0 + $0xa0] sm:$0x1]
  %v1240 = vld [vmem:[%s0 + $0xa8] sm:$0x1]
  %s1241 = scalar_lea.vmem %s2, 2560
  %v1242 = vld [vmem:[%s1241] sm:$0xff]
  %v1243 = vld [vmem:[%s1241 + $0x8] sm:$0xff]
  %v1244 = vld [vmem:[%s1241 + $0x10] sm:$0xff]
  %v1245 = vld [vmem:[%s1241 + $0x18] sm:$0xff]
  %v1246 = vld [vmem:[%s1241 + $0x20] sm:$0xff]
  %v1247 = vld [vmem:[%s1241 + $0x28] sm:$0xff]
  %v1248 = vld [vmem:[%s1241 + $0x30] sm:$0xff]
  %v1249 = vld [vmem:[%s1241 + $0x38] sm:$0xff]
  %v1250 = vld [vmem:[%s1241 + $0x40] sm:$0xff]
  %v1251 = vld [vmem:[%s1241 + $0x48] sm:$0xff]
  %v1252 = vld [vmem:[%s1241 + $0x50] sm:$0xff]
  %v1253 = vld [vmem:[%s1241 + $0x58] sm:$0xff]
  %v1254 = vld [vmem:[%s1241 + $0x60] sm:$0xff]
  %v1255 = vld [vmem:[%s1241 + $0x68] sm:$0xff]
  %v1256 = vld [vmem:[%s1241 + $0x70] sm:$0xff]
  %v1257 = vld [vmem:[%s1241 + $0x78] sm:$0xff]
  %v1258 = vld [vmem:[%s1241 + $0x80] sm:$0xff]
  %v1259 = vld [vmem:[%s1241 + $0x88] sm:$0xff]
  %v1260 = vld [vmem:[%s1241 + $0x90] sm:$0xff]
  %v1261 = vld [vmem:[%s1241 + $0x98] sm:$0xff]
  %v1262 = vld [vmem:[%s1241 + $0xa0] sm:$0xff]
  %v1263 = vld [vmem:[%s1241 + $0xa8] sm:$0xff]
  %v1264 = vld [vmem:[%s1241 + $0xb0] sm:$0xff]
  %v1265 = vld [vmem:[%s1241 + $0xb8] sm:$0xff]
  %v1266 = vld [vmem:[%s1241 + $0xc0] sm:$0xff]
  %v1267 = vld [vmem:[%s1241 + $0xc8] sm:$0xff]
  %v1268 = vld [vmem:[%s1241 + $0xd0] sm:$0xff]
  %v1269 = vld [vmem:[%s1241 + $0xd8] sm:$0xff]
  %v1270 = vld [vmem:[%s1241 + $0xe0] sm:$0xff]
  %v1271 = vld [vmem:[%s1241 + $0xe8] sm:$0xff]
  %v1272 = vld [vmem:[%s1241 + $0xf0] sm:$0xff]
  %v1273 = vld [vmem:[%s1241 + $0xf8] sm:$0xff]
  %v1274 = vld [vmem:[%s1241 + $0x100] sm:$0xff]
  %v1275 = vld [vmem:[%s1241 + $0x108] sm:$0xff]
  %v1276 = vld [vmem:[%s1241 + $0x110] sm:$0xff]
  %v1277 = vld [vmem:[%s1241 + $0x118] sm:$0xff]
  %v1278 = vld [vmem:[%s1241 + $0x120] sm:$0xff]
  %v1279 = vld [vmem:[%s1241 + $0x128] sm:$0xff]
  %v1280 = vld [vmem:[%s1241 + $0x130] sm:$0xff]
  %v1281 = vld [vmem:[%s1241 + $0x138] sm:$0xff]
  %v1282 = vld [vmem:[%s1241 + $0x140] sm:$0xff]
  %v1283 = vld [vmem:[%s1241 + $0x148] sm:$0xff]
  %v1284 = vld [vmem:[%s1241 + $0x150] sm:$0xff]
  %v1285 = vld [vmem:[%s1241 + $0x158] sm:$0xff]
  %v1286 = vld [vmem:[%s1241 + $0x160] sm:$0xff]
  %v1287 = vld [vmem:[%s1241 + $0x168] sm:$0xff]
  %v1288 = vld [vmem:[%s1241 + $0x170] sm:$0xff]
  %v1289 = vld [vmem:[%s1241 + $0x178] sm:$0xff]
  %v1290 = vld [vmem:[%s1241 + $0x180] sm:$0xff]
  %v1291 = vld [vmem:[%s1241 + $0x188] sm:$0xff]
  %v1292 = vld [vmem:[%s1241 + $0x190] sm:$0xff]
  %v1293 = vld [vmem:[%s1241 + $0x198] sm:$0xff]
  %v1294 = vld [vmem:[%s1241 + $0x1a0] sm:$0xff]
  %v1295 = vld [vmem:[%s1241 + $0x1a8] sm:$0xff]
  %v1296 = vld [vmem:[%s1241 + $0x1b0] sm:$0xff]
  %v1297 = vld [vmem:[%s1241 + $0x1b8] sm:$0xff]
  %v1298 = vld [vmem:[%s1241 + $0x1c0] sm:$0xff]
  %v1299 = vld [vmem:[%s1241 + $0x1c8] sm:$0xff]
  %v1300 = vld [vmem:[%s1241 + $0x1d0] sm:$0xff]
  %v1301 = vld [vmem:[%s1241 + $0x1d8] sm:$0xff]
  %v1302 = vld [vmem:[%s1241 + $0x1e0] sm:$0xff]
  %v1303 = vld [vmem:[%s1241 + $0x1e8] sm:$0xff]
  %v1304 = vld [vmem:[%s1241 + $0x1f0] sm:$0xff]
  %v1305 = vld [vmem:[%s1241 + $0x1f8] sm:$0xff]
  %v1324 = vrot.slane %v1223, 1
  %v1325 = vrot.slane %v1225, 1
  %v1326 = vsel %vm595, %v1324, %v1325
  %v1327 = vrot.slane %v1224, 1
  %v1328 = vrot.slane %v1226, 1
  %v1329 = vsel %vm595, %v1327, %v1328
  %v1330 = vrot.slane %v1227, 1
  %v1331 = vsel %vm595, %v1325, %v1330
  %v1332 = vrot.slane %v1228, 1
  %v1333 = vsel %vm595, %v1328, %v1332
  %v1334 = vrot.slane %v1229, 1
  %v1335 = vsel %vm595, %v1330, %v1334
  %v1336 = vrot.slane %v1230, 1
  %v1337 = vsel %vm595, %v1332, %v1336
  %v1338 = vrot.slane %v1231, 1
  %v1339 = vsel %vm595, %v1334, %v1338
  %v1340 = vrot.slane %v1232, 1
  %v1341 = vsel %vm595, %v1336, %v1340
  %v1342 = vrot.slane %v1233, 1
  %v1343 = vsel %vm595, %v1338, %v1342
  %v1344 = vrot.slane %v1234, 1
  %v1345 = vsel %vm595, %v1340, %v1344
  %v1346 = vrot.slane %v1235, 1
  %v1347 = vsel %vm595, %v1342, %v1346
  %v1348 = vrot.slane %v1236, 1
  %v1349 = vsel %vm595, %v1344, %v1348
  %v1350 = vrot.slane %v1237, 1
  %v1351 = vsel %vm595, %v1346, %v1350
  %v1352 = vrot.slane %v1238, 1
  %v1353 = vsel %vm595, %v1348, %v1352
  %v1354 = vrot.slane %v1239, 1
  %v1355 = vsel %vm595, %v1350, %v1354
  %v1356 = vrot.slane %v1240, 1
  %v1357 = vsel %vm595, %v1352, %v1356
  %1374 = vmatprep.subr.mxu0 %v1273
  %1375 = vmatpush1.msra.mxu0 %v1272
  %1376 = vmatprep.subr.mxu0 %v1271
  %1377 = vmatpush1.msra.mxu0 %v1270
  %1378 = vmatprep.subr.mxu0 %v1269
  %1379 = vmatpush1.msra.mxu0 %v1268
  %1380 = vmatprep.subr.mxu0 %v1267
  %1381 = vmatpush1.msra.mxu0 %v1266
  %1382 = vmatprep.subr.mxu0 %v1265
  %1383 = vmatpush1.msra.mxu0 %v1264
  %1384 = vmatprep.subr.mxu0 %v1263
  %1385 = vmatpush1.msra.mxu0 %v1262
  %1386 = vmatprep.subr.mxu0 %v1261
  %1387 = vmatpush1.msra.mxu0 %v1260
  %1388 = vmatprep.subr.mxu0 %v1259
  %1389 = vmatpush1.msra.mxu0 %v1258
  %1390 = vmatprep.subr.mxu0 %v1257
  %1391 = vmatpush1.msra.mxu0 %v1256
  %1392 = vmatprep.subr.mxu0 %v1255
  %1393 = vmatpush1.msra.mxu0 %v1254
  %1394 = vmatprep.subr.mxu0 %v1253
  %1395 = vmatpush1.msra.mxu0 %v1252
  %1396 = vmatprep.subr.mxu0 %v1251
  %1397 = vmatpush1.msra.mxu0 %v1250
  %1398 = vmatprep.subr.mxu0 %v1249
  %1399 = vmatpush1.msra.mxu0 %v1248
  %1400 = vmatprep.subr.mxu0 %v1247
  %1401 = vmatpush1.msra.mxu0 %v1246
  %1402 = vmatprep.subr.mxu0 %v1245
  %1403 = vmatpush1.msra.mxu0 %v1244
  %1404 = vmatprep.subr.mxu0 %v1243
  %1405 = vmatpush1.msra.mxu0 %v1242
  %1406 = vmatprep.subr.mxu0 %v1305
  %1407 = vmatpush2.msra.mxu0 %v1304
  %1408 = vmatprep.subr.mxu0 %v1303
  %1409 = vmatpush2.msra.mxu0 %v1302
  %1410 = vmatprep.subr.mxu0 %v1301
  %1411 = vmatpush2.msra.mxu0 %v1300
  %1412 = vmatprep.subr.mxu0 %v1299
  %1413 = vmatpush2.msra.mxu0 %v1298
  %1414 = vmatprep.subr.mxu0 %v1297
  %1415 = vmatpush2.msra.mxu0 %v1296
  %1416 = vmatprep.subr.mxu0 %v1295
  %1417 = vmatpush2.msra.mxu0 %v1294
  %1418 = vmatprep.subr.mxu0 %v1293
  %1419 = vmatpush2.msra.mxu0 %v1292
  %1420 = vmatprep.subr.mxu0 %v1291
  %1421 = vmatpush2.msra.mxu0 %v1290
  %1422 = vmatprep.subr.mxu0 %v1289
  %1423 = vmatpush2.msra.mxu0 %v1288
  %1424 = vmatprep.subr.mxu0 %v1287
  %1425 = vmatpush2.msra.mxu0 %v1286
  %1426 = vmatprep.subr.mxu0 %v1285
  %1427 = vmatpush2.msra.mxu0 %v1284
  %1428 = vmatprep.subr.mxu0 %v1283
  %1429 = vmatpush2.msra.mxu0 %v1282
  %1430 = vmatprep.subr.mxu0 %v1281
  %1431 = vmatpush2.msra.mxu0 %v1280
  %1432 = vmatprep.subr.mxu0 %v1279
  %1433 = vmatpush2.msra.mxu0 %v1278
  %1434 = vmatprep.subr.mxu0 %v1277
  %1435 = vmatpush2.msra.mxu0 %v1276
  %1436 = vmatprep.subr.mxu0 %v1275
  %1437 = vmatpush2.msra.mxu0 %v1274
  %1438 = vmatprep.mubr.f32.mxu0 %v1329
  %1439 = vmatmul.mubr.f32.gmra.mxu0 %v1326
  %v1440 = vpop.f32.mrf.mxu0
  %v1441 = vadd.f32 0.0, %v1440
  %v1442 = vpop.f32.mrf.mxu0
  %v1443 = vadd.f32 0.0, %v1442
  %1444 = vmatprep.mubr.f32.mxu0 %v1333
  %1445 = vmatmul.mubr.f32.gmra.mxu0 %v1331
  %v1446 = vpop.f32.mrf.mxu0
  %v1447 = vadd.f32 0.0, %v1446
  %v1448 = vpop.f32.mrf.mxu0
  %v1449 = vadd.f32 0.0, %v1448
  %1450 = vmatprep.mubr.f32.mxu0 %v1337
  %1451 = vmatmul.mubr.f32.gmra.mxu0 %v1335
  %v1452 = vpop.f32.mrf.mxu0
  %v1453 = vadd.f32 0.0, %v1452
  %v1454 = vpop.f32.mrf.mxu0
  %v1455 = vadd.f32 0.0, %v1454
  %1456 = vmatprep.mubr.f32.mxu0 %v1341
  %1457 = vmatmul.mubr.f32.gmra.mxu0 %v1339
  %v1458 = vpop.f32.mrf.mxu0
  %v1459 = vadd.f32 0.0, %v1458
  %v1460 = vpop.f32.mrf.mxu0
  %v1461 = vadd.f32 0.0, %v1460
  %1462 = vmatprep.mubr.f32.mxu0 %v1345
  %1463 = vmatmul.mubr.f32.gmra.mxu0 %v1343
  %v1464 = vpop.f32.mrf.mxu0
  %v1465 = vadd.f32 0.0, %v1464
  %v1466 = vpop.f32.mrf.mxu0
  %v1467 = vadd.f32 0.0, %v1466
  %1468 = vmatprep.mubr.f32.mxu0 %v1349
  %1469 = vmatmul.mubr.f32.gmra.mxu0 %v1347
  %v1470 = vpop.f32.mrf.mxu0
  %v1471 = vadd.f32 0.0, %v1470
  %v1472 = vpop.f32.mrf.mxu0
  %v1473 = vadd.f32 0.0, %v1472
  %1474 = vmatprep.mubr.f32.mxu0 %v1353
  %1475 = vmatmul.mubr.f32.gmra.mxu0 %v1351
  %v1476 = vpop.f32.mrf.mxu0
  %v1477 = vadd.f32 0.0, %v1476
  %v1478 = vpop.f32.mrf.mxu0
  %v1479 = vadd.f32 0.0, %v1478
  %1480 = vmatprep.mubr.f32.mxu0 %v1357
  %1481 = vmatmul.mubr.f32.gmra.mxu0 %v1355
  %v1482 = vpop.f32.mrf.mxu0
  %v1483 = vadd.f32 0.0, %v1482
  %v1484 = vpop.f32.mrf.mxu0
  %v1485 = vadd.f32 0.0, %v1484
  %1486 = vdwg.mxu0
  %v1487 = vadd.f32 %v1207, %v1441
  %v1488 = vadd.f32 %v1208, %v1443
  %v1489 = vadd.f32 %v1209, %v1447
  %v1490 = vadd.f32 %v1210, %v1449
  %v1491 = vadd.f32 %v1211, %v1453
  %v1492 = vadd.f32 %v1212, %v1455
  %v1493 = vadd.f32 %v1213, %v1459
  %v1494 = vadd.f32 %v1214, %v1461
  %v1495 = vadd.f32 %v1215, %v1465
  %v1496 = vadd.f32 %v1216, %v1467
  %v1497 = vadd.f32 %v1217, %v1471
  %v1498 = vadd.f32 %v1218, %v1473
  %v1499 = vadd.f32 %v1219, %v1477
  %v1500 = vadd.f32 %v1220, %v1479
  %v1501 = vadd.f32 %v1221, %v1483
  %v1502 = vadd.f32 %v1222, %v1485
  %v1503 = vld [vmem:[%s0 + $0x20] sm:$0x80]
  %v1504 = vld [vmem:[%s0 + $0x28] sm:$0x80]
  %v1505 = vld [vmem:[%s0 + $0xa0] sm:$0x7f]
  %v1506 = vld [vmem:[%s0 + $0xa8] sm:$0x7f]
  %s1507 = scalar_lea.vmem %s2, 3072
  %v1508 = vld [vmem:[%s1507] sm:$0xff]
  %v1509 = vld [vmem:[%s1507 + $0x8] sm:$0xff]
  %v1510 = vld [vmem:[%s1507 + $0x10] sm:$0xff]
  %v1511 = vld [vmem:[%s1507 + $0x18] sm:$0xff]
  %v1512 = vld [vmem:[%s1507 + $0x20] sm:$0xff]
  %v1513 = vld [vmem:[%s1507 + $0x28] sm:$0xff]
  %v1514 = vld [vmem:[%s1507 + $0x30] sm:$0xff]
  %v1515 = vld [vmem:[%s1507 + $0x38] sm:$0xff]
  %v1516 = vld [vmem:[%s1507 + $0x40] sm:$0xff]
  %v1517 = vld [vmem:[%s1507 + $0x48] sm:$0xff]
  %v1518 = vld [vmem:[%s1507 + $0x50] sm:$0xff]
  %v1519 = vld [vmem:[%s1507 + $0x58] sm:$0xff]
  %v1520 = vld [vmem:[%s1507 + $0x60] sm:$0xff]
  %v1521 = vld [vmem:[%s1507 + $0x68] sm:$0xff]
  %v1522 = vld [vmem:[%s1507 + $0x70] sm:$0xff]
  %v1523 = vld [vmem:[%s1507 + $0x78] sm:$0xff]
  %v1524 = vld [vmem:[%s1507 + $0x80] sm:$0xff]
  %v1525 = vld [vmem:[%s1507 + $0x88] sm:$0xff]
  %v1526 = vld [vmem:[%s1507 + $0x90] sm:$0xff]
  %v1527 = vld [vmem:[%s1507 + $0x98] sm:$0xff]
  %v1528 = vld [vmem:[%s1507 + $0xa0] sm:$0xff]
  %v1529 = vld [vmem:[%s1507 + $0xa8] sm:$0xff]
  %v1530 = vld [vmem:[%s1507 + $0xb0] sm:$0xff]
  %v1531 = vld [vmem:[%s1507 + $0xb8] sm:$0xff]
  %v1532 = vld [vmem:[%s1507 + $0xc0] sm:$0xff]
  %v1533 = vld [vmem:[%s1507 + $0xc8] sm:$0xff]
  %v1534 = vld [vmem:[%s1507 + $0xd0] sm:$0xff]
  %v1535 = vld [vmem:[%s1507 + $0xd8] sm:$0xff]
  %v1536 = vld [vmem:[%s1507 + $0xe0] sm:$0xff]
  %v1537 = vld [vmem:[%s1507 + $0xe8] sm:$0xff]
  %v1538 = vld [vmem:[%s1507 + $0xf0] sm:$0xff]
  %v1539 = vld [vmem:[%s1507 + $0xf8] sm:$0xff]
  %v1540 = vld [vmem:[%s1507 + $0x100] sm:$0xff]
  %v1541 = vld [vmem:[%s1507 + $0x108] sm:$0xff]
  %v1542 = vld [vmem:[%s1507 + $0x110] sm:$0xff]
  %v1543 = vld [vmem:[%s1507 + $0x118] sm:$0xff]
  %v1544 = vld [vmem:[%s1507 + $0x120] sm:$0xff]
  %v1545 = vld [vmem:[%s1507 + $0x128] sm:$0xff]
  %v1546 = vld [vmem:[%s1507 + $0x130] sm:$0xff]
  %v1547 = vld [vmem:[%s1507 + $0x138] sm:$0xff]
  %v1548 = vld [vmem:[%s1507 + $0x140] sm:$0xff]
  %v1549 = vld [vmem:[%s1507 + $0x148] sm:$0xff]
  %v1550 = vld [vmem:[%s1507 + $0x150] sm:$0xff]
  %v1551 = vld [vmem:[%s1507 + $0x158] sm:$0xff]
  %v1552 = vld [vmem:[%s1507 + $0x160] sm:$0xff]
  %v1553 = vld [vmem:[%s1507 + $0x168] sm:$0xff]
  %v1554 = vld [vmem:[%s1507 + $0x170] sm:$0xff]
  %v1555 = vld [vmem:[%s1507 + $0x178] sm:$0xff]
  %v1556 = vld [vmem:[%s1507 + $0x180] sm:$0xff]
  %v1557 = vld [vmem:[%s1507 + $0x188] sm:$0xff]
  %v1558 = vld [vmem:[%s1507 + $0x190] sm:$0xff]
  %v1559 = vld [vmem:[%s1507 + $0x198] sm:$0xff]
  %v1560 = vld [vmem:[%s1507 + $0x1a0] sm:$0xff]
  %v1561 = vld [vmem:[%s1507 + $0x1a8] sm:$0xff]
  %v1562 = vld [vmem:[%s1507 + $0x1b0] sm:$0xff]
  %v1563 = vld [vmem:[%s1507 + $0x1b8] sm:$0xff]
  %v1564 = vld [vmem:[%s1507 + $0x1c0] sm:$0xff]
  %v1565 = vld [vmem:[%s1507 + $0x1c8] sm:$0xff]
  %v1566 = vld [vmem:[%s1507 + $0x1d0] sm:$0xff]
  %v1567 = vld [vmem:[%s1507 + $0x1d8] sm:$0xff]
  %v1568 = vld [vmem:[%s1507 + $0x1e0] sm:$0xff]
  %v1569 = vld [vmem:[%s1507 + $0x1e8] sm:$0xff]
  %v1570 = vld [vmem:[%s1507 + $0x1f0] sm:$0xff]
  %v1571 = vld [vmem:[%s1507 + $0x1f8] sm:$0xff]
  %v1576 = vrot.slane %v1503, 7
  %v1577 = vrot.slane %v1225, 7
  %v1578 = vsel %vm330, %v1576, %v1577
  %v1579 = vrot.slane %v1504, 7
  %v1580 = vrot.slane %v1226, 7
  %v1581 = vsel %vm330, %v1579, %v1580
  %v1582 = vrot.slane %v1227, 7
  %v1583 = vsel %vm330, %v1577, %v1582
  %v1584 = vrot.slane %v1228, 7
  %v1585 = vsel %vm330, %v1580, %v1584
  %v1586 = vrot.slane %v1229, 7
  %v1587 = vsel %vm330, %v1582, %v1586
  %v1588 = vrot.slane %v1230, 7
  %v1589 = vsel %vm330, %v1584, %v1588
  %v1590 = vrot.slane %v1231, 7
  %v1591 = vsel %vm330, %v1586, %v1590
  %v1592 = vrot.slane %v1232, 7
  %v1593 = vsel %vm330, %v1588, %v1592
  %v1594 = vrot.slane %v1233, 7
  %v1595 = vsel %vm330, %v1590, %v1594
  %v1596 = vrot.slane %v1234, 7
  %v1597 = vsel %vm330, %v1592, %v1596
  %v1598 = vrot.slane %v1235, 7
  %v1599 = vsel %vm330, %v1594, %v1598
  %v1600 = vrot.slane %v1236, 7
  %v1601 = vsel %vm330, %v1596, %v1600
  %v1602 = vrot.slane %v1237, 7
  %v1603 = vsel %vm330, %v1598, %v1602
  %v1604 = vrot.slane %v1238, 7
  %v1605 = vsel %vm330, %v1600, %v1604
  %v1606 = vrot.slane %v1505, 7
  %v1607 = vsel %vm330, %v1602, %v1606
  %v1608 = vrot.slane %v1506, 7
  %v1609 = vsel %vm330, %v1604, %v1608
  %1626 = vmatprep.subr.mxu0 %v1539
  %1627 = vmatpush1.msra.mxu0 %v1538
  %1628 = vmatprep.subr.mxu0 %v1537
  %1629 = vmatpush1.msra.mxu0 %v1536
  %1630 = vmatprep.subr.mxu0 %v1535
  %1631 = vmatpush1.msra.mxu0 %v1534
  %1632 = vmatprep.subr.mxu0 %v1533
  %1633 = vmatpush1.msra.mxu0 %v1532
  %1634 = vmatprep.subr.mxu0 %v1531
  %1635 = vmatpush1.msra.mxu0 %v1530
  %1636 = vmatprep.subr.mxu0 %v1529
  %1637 = vmatpush1.msra.mxu0 %v1528
  %1638 = vmatprep.subr.mxu0 %v1527
  %1639 = vmatpush1.msra.mxu0 %v1526
  %1640 = vmatprep.subr.mxu0 %v1525
  %1641 = vmatpush1.msra.mxu0 %v1524
  %1642 = vmatprep.subr.mxu0 %v1523
  %1643 = vmatpush1.msra.mxu0 %v1522
  %1644 = vmatprep.subr.mxu0 %v1521
  %1645 = vmatpush1.msra.mxu0 %v1520
  %1646 = vmatprep.subr.mxu0 %v1519
  %1647 = vmatpush1.msra.mxu0 %v1518
  %1648 = vmatprep.subr.mxu0 %v1517
  %1649 = vmatpush1.msra.mxu0 %v1516
  %1650 = vmatprep.subr.mxu0 %v1515
  %1651 = vmatpush1.msra.mxu0 %v1514
  %1652 = vmatprep.subr.mxu0 %v1513
  %1653 = vmatpush1.msra.mxu0 %v1512
  %1654 = vmatprep.subr.mxu0 %v1511
  %1655 = vmatpush1.msra.mxu0 %v1510
  %1656 = vmatprep.subr.mxu0 %v1509
  %1657 = vmatpush1.msra.mxu0 %v1508
  %1658 = vmatprep.subr.mxu0 %v1571
  %1659 = vmatpush2.msra.mxu0 %v1570
  %1660 = vmatprep.subr.mxu0 %v1569
  %1661 = vmatpush2.msra.mxu0 %v1568
  %1662 = vmatprep.subr.mxu0 %v1567
  %1663 = vmatpush2.msra.mxu0 %v1566
  %1664 = vmatprep.subr.mxu0 %v1565
  %1665 = vmatpush2.msra.mxu0 %v1564
  %1666 = vmatprep.subr.mxu0 %v1563
  %1667 = vmatpush2.msra.mxu0 %v1562
  %1668 = vmatprep.subr.mxu0 %v1561
  %1669 = vmatpush2.msra.mxu0 %v1560
  %1670 = vmatprep.subr.mxu0 %v1559
  %1671 = vmatpush2.msra.mxu0 %v1558
  %1672 = vmatprep.subr.mxu0 %v1557
  %1673 = vmatpush2.msra.mxu0 %v1556
  %1674 = vmatprep.subr.mxu0 %v1555
  %1675 = vmatpush2.msra.mxu0 %v1554
  %1676 = vmatprep.subr.mxu0 %v1553
  %1677 = vmatpush2.msra.mxu0 %v1552
  %1678 = vmatprep.subr.mxu0 %v1551
  %1679 = vmatpush2.msra.mxu0 %v1550
  %1680 = vmatprep.subr.mxu0 %v1549
  %1681 = vmatpush2.msra.mxu0 %v1548
  %1682 = vmatprep.subr.mxu0 %v1547
  %1683 = vmatpush2.msra.mxu0 %v1546
  %1684 = vmatprep.subr.mxu0 %v1545
  %1685 = vmatpush2.msra.mxu0 %v1544
  %1686 = vmatprep.subr.mxu0 %v1543
  %1687 = vmatpush2.msra.mxu0 %v1542
  %1688 = vmatprep.subr.mxu0 %v1541
  %1689 = vmatpush2.msra.mxu0 %v1540
  %1690 = vmatprep.mubr.f32.mxu0 %v1581
  %1691 = vmatmul.mubr.f32.gmra.mxu0 %v1578
  %v1692 = vpop.f32.mrf.mxu0
  %v1693 = vadd.f32 0.0, %v1692
  %v1694 = vpop.f32.mrf.mxu0
  %v1695 = vadd.f32 0.0, %v1694
  %1696 = vmatprep.mubr.f32.mxu0 %v1585
  %1697 = vmatmul.mubr.f32.gmra.mxu0 %v1583
  %v1698 = vpop.f32.mrf.mxu0
  %v1699 = vadd.f32 0.0, %v1698
  %v1700 = vpop.f32.mrf.mxu0
  %v1701 = vadd.f32 0.0, %v1700
  %1702 = vmatprep.mubr.f32.mxu0 %v1589
  %1703 = vmatmul.mubr.f32.gmra.mxu0 %v1587
  %v1704 = vpop.f32.mrf.mxu0
  %v1705 = vadd.f32 0.0, %v1704
  %v1706 = vpop.f32.mrf.mxu0
  %v1707 = vadd.f32 0.0, %v1706
  %1708 = vmatprep.mubr.f32.mxu0 %v1593
  %1709 = vmatmul.mubr.f32.gmra.mxu0 %v1591
  %v1710 = vpop.f32.mrf.mxu0
  %v1711 = vadd.f32 0.0, %v1710
  %v1712 = vpop.f32.mrf.mxu0
  %v1713 = vadd.f32 0.0, %v1712
  %1714 = vmatprep.mubr.f32.mxu0 %v1597
  %1715 = vmatmul.mubr.f32.gmra.mxu0 %v1595
  %v1716 = vpop.f32.mrf.mxu0
  %v1717 = vadd.f32 0.0, %v1716
  %v1718 = vpop.f32.mrf.mxu0
  %v1719 = vadd.f32 0.0, %v1718
  %1720 = vmatprep.mubr.f32.mxu0 %v1601
  %1721 = vmatmul.mubr.f32.gmra.mxu0 %v1599
  %v1722 = vpop.f32.mrf.mxu0
  %v1723 = vadd.f32 0.0, %v1722
  %v1724 = vpop.f32.mrf.mxu0
  %v1725 = vadd.f32 0.0, %v1724
  %1726 = vmatprep.mubr.f32.mxu0 %v1605
  %1727 = vmatmul.mubr.f32.gmra.mxu0 %v1603
  %v1728 = vpop.f32.mrf.mxu0
  %v1729 = vadd.f32 0.0, %v1728
  %v1730 = vpop.f32.mrf.mxu0
  %v1731 = vadd.f32 0.0, %v1730
  %1732 = vmatprep.mubr.f32.mxu0 %v1609
  %1733 = vmatmul.mubr.f32.gmra.mxu0 %v1607
  %v1734 = vpop.f32.mrf.mxu0
  %v1735 = vadd.f32 0.0, %v1734
  %v1736 = vpop.f32.mrf.mxu0
  %v1737 = vadd.f32 0.0, %v1736
  %1738 = vdwg.mxu0
  %v1739 = vadd.f32 %v1487, %v1693
  %v1740 = vadd.f32 %v1488, %v1695
  %v1741 = vadd.f32 %v1489, %v1699
  %v1742 = vadd.f32 %v1490, %v1701
  %v1743 = vadd.f32 %v1491, %v1705
  %v1744 = vadd.f32 %v1492, %v1707
  %v1745 = vadd.f32 %v1493, %v1711
  %v1746 = vadd.f32 %v1494, %v1713
  %v1747 = vadd.f32 %v1495, %v1717
  %v1748 = vadd.f32 %v1496, %v1719
  %v1749 = vadd.f32 %v1497, %v1723
  %v1750 = vadd.f32 %v1498, %v1725
  %v1751 = vadd.f32 %v1499, %v1729
  %v1752 = vadd.f32 %v1500, %v1731
  %v1753 = vadd.f32 %v1501, %v1735
  %v1754 = vadd.f32 %v1502, %v1737
  %v1755 = vld [vmem:[%s0 + $0xa0] sm:$0xff]
  %v1756 = vld [vmem:[%s0 + $0xa8] sm:$0xff]
  %s1757 = scalar_lea.vmem %s2, 3584
  %v1758 = vld [vmem:[%s1757] sm:$0xff]
  %v1759 = vld [vmem:[%s1757 + $0x8] sm:$0xff]
  %v1760 = vld [vmem:[%s1757 + $0x10] sm:$0xff]
  %v1761 = vld [vmem:[%s1757 + $0x18] sm:$0xff]
  %v1762 = vld [vmem:[%s1757 + $0x20] sm:$0xff]
  %v1763 = vld [vmem:[%s1757 + $0x28] sm:$0xff]
  %v1764 = vld [vmem:[%s1757 + $0x30] sm:$0xff]
  %v1765 = vld [vmem:[%s1757 + $0x38] sm:$0xff]
  %v1766 = vld [vmem:[%s1757 + $0x40] sm:$0xff]
  %v1767 = vld [vmem:[%s1757 + $0x48] sm:$0xff]
  %v1768 = vld [vmem:[%s1757 + $0x50] sm:$0xff]
  %v1769 = vld [vmem:[%s1757 + $0x58] sm:$0xff]
  %v1770 = vld [vmem:[%s1757 + $0x60] sm:$0xff]
  %v1771 = vld [vmem:[%s1757 + $0x68] sm:$0xff]
  %v1772 = vld [vmem:[%s1757 + $0x70] sm:$0xff]
  %v1773 = vld [vmem:[%s1757 + $0x78] sm:$0xff]
  %v1774 = vld [vmem:[%s1757 + $0x80] sm:$0xff]
  %v1775 = vld [vmem:[%s1757 + $0x88] sm:$0xff]
  %v1776 = vld [vmem:[%s1757 + $0x90] sm:$0xff]
  %v1777 = vld [vmem:[%s1757 + $0x98] sm:$0xff]
  %v1778 = vld [vmem:[%s1757 + $0xa0] sm:$0xff]
  %v1779 = vld [vmem:[%s1757 + $0xa8] sm:$0xff]
  %v1780 = vld [vmem:[%s1757 + $0xb0] sm:$0xff]
  %v1781 = vld [vmem:[%s1757 + $0xb8] sm:$0xff]
  %v1782 = vld [vmem:[%s1757 + $0xc0] sm:$0xff]
  %v1783 = vld [vmem:[%s1757 + $0xc8] sm:$0xff]
  %v1784 = vld [vmem:[%s1757 + $0xd0] sm:$0xff]
  %v1785 = vld [vmem:[%s1757 + $0xd8] sm:$0xff]
  %v1786 = vld [vmem:[%s1757 + $0xe0] sm:$0xff]
  %v1787 = vld [vmem:[%s1757 + $0xe8] sm:$0xff]
  %v1788 = vld [vmem:[%s1757 + $0xf0] sm:$0xff]
  %v1789 = vld [vmem:[%s1757 + $0xf8] sm:$0xff]
  %v1790 = vld [vmem:[%s1757 + $0x100] sm:$0xff]
  %v1791 = vld [vmem:[%s1757 + $0x108] sm:$0xff]
  %v1792 = vld [vmem:[%s1757 + $0x110] sm:$0xff]
  %v1793 = vld [vmem:[%s1757 + $0x118] sm:$0xff]
  %v1794 = vld [vmem:[%s1757 + $0x120] sm:$0xff]
  %v1795 = vld [vmem:[%s1757 + $0x128] sm:$0xff]
  %v1796 = vld [vmem:[%s1757 + $0x130] sm:$0xff]
  %v1797 = vld [vmem:[%s1757 + $0x138] sm:$0xff]
  %v1798 = vld [vmem:[%s1757 + $0x140] sm:$0xff]
  %v1799 = vld [vmem:[%s1757 + $0x148] sm:$0xff]
  %v1800 = vld [vmem:[%s1757 + $0x150] sm:$0xff]
  %v1801 = vld [vmem:[%s1757 + $0x158] sm:$0xff]
  %v1802 = vld [vmem:[%s1757 + $0x160] sm:$0xff]
  %v1803 = vld [vmem:[%s1757 + $0x168] sm:$0xff]
  %v1804 = vld [vmem:[%s1757 + $0x170] sm:$0xff]
  %v1805 = vld [vmem:[%s1757 + $0x178] sm:$0xff]
  %v1806 = vld [vmem:[%s1757 + $0x180] sm:$0xff]
  %v1807 = vld [vmem:[%s1757 + $0x188] sm:$0xff]
  %v1808 = vld [vmem:[%s1757 + $0x190] sm:$0xff]
  %v1809 = vld [vmem:[%s1757 + $0x198] sm:$0xff]
  %v1810 = vld [vmem:[%s1757 + $0x1a0] sm:$0xff]
  %v1811 = vld [vmem:[%s1757 + $0x1a8] sm:$0xff]
  %v1812 = vld [vmem:[%s1757 + $0x1b0] sm:$0xff]
  %v1813 = vld [vmem:[%s1757 + $0x1b8] sm:$0xff]
  %v1814 = vld [vmem:[%s1757 + $0x1c0] sm:$0xff]
  %v1815 = vld [vmem:[%s1757 + $0x1c8] sm:$0xff]
  %v1816 = vld [vmem:[%s1757 + $0x1d0] sm:$0xff]
  %v1817 = vld [vmem:[%s1757 + $0x1d8] sm:$0xff]
  %v1818 = vld [vmem:[%s1757 + $0x1e0] sm:$0xff]
  %v1819 = vld [vmem:[%s1757 + $0x1e8] sm:$0xff]
  %v1820 = vld [vmem:[%s1757 + $0x1f0] sm:$0xff]
  %v1821 = vld [vmem:[%s1757 + $0x1f8] sm:$0xff]
  %1822 = vmatprep.subr.mxu0 %v1789
  %1823 = vmatpush1.msra.mxu0 %v1788
  %1824 = vmatprep.subr.mxu0 %v1787
  %1825 = vmatpush1.msra.mxu0 %v1786
  %1826 = vmatprep.subr.mxu0 %v1785
  %1827 = vmatpush1.msra.mxu0 %v1784
  %1828 = vmatprep.subr.mxu0 %v1783
  %1829 = vmatpush1.msra.mxu0 %v1782
  %1830 = vmatprep.subr.mxu0 %v1781
  %1831 = vmatpush1.msra.mxu0 %v1780
  %1832 = vmatprep.subr.mxu0 %v1779
  %1833 = vmatpush1.msra.mxu0 %v1778
  %1834 = vmatprep.subr.mxu0 %v1777
  %1835 = vmatpush1.msra.mxu0 %v1776
  %1836 = vmatprep.subr.mxu0 %v1775
  %1837 = vmatpush1.msra.mxu0 %v1774
  %1838 = vmatprep.subr.mxu0 %v1773
  %1839 = vmatpush1.msra.mxu0 %v1772
  %1840 = vmatprep.subr.mxu0 %v1771
  %1841 = vmatpush1.msra.mxu0 %v1770
  %1842 = vmatprep.subr.mxu0 %v1769
  %1843 = vmatpush1.msra.mxu0 %v1768
  %1844 = vmatprep.subr.mxu0 %v1767
  %1845 = vmatpush1.msra.mxu0 %v1766
  %1846 = vmatprep.subr.mxu0 %v1765
  %1847 = vmatpush1.msra.mxu0 %v1764
  %1848 = vmatprep.subr.mxu0 %v1763
  %1849 = vmatpush1.msra.mxu0 %v1762
  %1850 = vmatprep.subr.mxu0 %v1761
  %1851 = vmatpush1.msra.mxu0 %v1760
  %1852 = vmatprep.subr.mxu0 %v1759
  %1853 = vmatpush1.msra.mxu0 %v1758
  %1854 = vmatprep.subr.mxu0 %v1821
  %1855 = vmatpush2.msra.mxu0 %v1820
  %1856 = vmatprep.subr.mxu0 %v1819
  %1857 = vmatpush2.msra.mxu0 %v1818
  %1858 = vmatprep.subr.mxu0 %v1817
  %1859 = vmatpush2.msra.mxu0 %v1816
  %1860 = vmatprep.subr.mxu0 %v1815
  %1861 = vmatpush2.msra.mxu0 %v1814
  %1862 = vmatprep.subr.mxu0 %v1813
  %1863 = vmatpush2.msra.mxu0 %v1812
  %1864 = vmatprep.subr.mxu0 %v1811
  %1865 = vmatpush2.msra.mxu0 %v1810
  %1866 = vmatprep.subr.mxu0 %v1809
  %1867 = vmatpush2.msra.mxu0 %v1808
  %1868 = vmatprep.subr.mxu0 %v1807
  %1869 = vmatpush2.msra.mxu0 %v1806
  %1870 = vmatprep.subr.mxu0 %v1805
  %1871 = vmatpush2.msra.mxu0 %v1804
  %1872 = vmatprep.subr.mxu0 %v1803
  %1873 = vmatpush2.msra.mxu0 %v1802
  %1874 = vmatprep.subr.mxu0 %v1801
  %1875 = vmatpush2.msra.mxu0 %v1800
  %1876 = vmatprep.subr.mxu0 %v1799
  %1877 = vmatpush2.msra.mxu0 %v1798
  %1878 = vmatprep.subr.mxu0 %v1797
  %1879 = vmatpush2.msra.mxu0 %v1796
  %1880 = vmatprep.subr.mxu0 %v1795
  %1881 = vmatpush2.msra.mxu0 %v1794
  %1882 = vmatprep.subr.mxu0 %v1793
  %1883 = vmatpush2.msra.mxu0 %v1792
  %1884 = vmatprep.subr.mxu0 %v1791
  %1885 = vmatpush2.msra.mxu0 %v1790
  %1886 = vmatprep.mubr.f32.mxu0 %v1226
  %1887 = vmatmul.mubr.f32.gmra.mxu0 %v1225
  %v1888 = vpop.f32.mrf.mxu0
  %v1889 = vadd.f32 0.0, %v1888
  %v1890 = vpop.f32.mrf.mxu0
  %v1891 = vadd.f32 0.0, %v1890
  %1892 = vmatprep.mubr.f32.mxu0 %v1228
  %1893 = vmatmul.mubr.f32.gmra.mxu0 %v1227
  %v1894 = vpop.f32.mrf.mxu0
  %v1895 = vadd.f32 0.0, %v1894
  %v1896 = vpop.f32.mrf.mxu0
  %v1897 = vadd.f32 0.0, %v1896
  %1898 = vmatprep.mubr.f32.mxu0 %v1230
  %1899 = vmatmul.mubr.f32.gmra.mxu0 %v1229
  %v1900 = vpop.f32.mrf.mxu0
  %v1901 = vadd.f32 0.0, %v1900
  %v1902 = vpop.f32.mrf.mxu0
  %v1903 = vadd.f32 0.0, %v1902
  %1904 = vmatprep.mubr.f32.mxu0 %v1232
  %1905 = vmatmul.mubr.f32.gmra.mxu0 %v1231
  %v1906 = vpop.f32.mrf.mxu0
  %v1907 = vadd.f32 0.0, %v1906
  %v1908 = vpop.f32.mrf.mxu0
  %v1909 = vadd.f32 0.0, %v1908
  %1910 = vmatprep.mubr.f32.mxu0 %v1234
  %1911 = vmatmul.mubr.f32.gmra.mxu0 %v1233
  %v1912 = vpop.f32.mrf.mxu0
  %v1913 = vadd.f32 0.0, %v1912
  %v1914 = vpop.f32.mrf.mxu0
  %v1915 = vadd.f32 0.0, %v1914
  %1916 = vmatprep.mubr.f32.mxu0 %v1236
  %1917 = vmatmul.mubr.f32.gmra.mxu0 %v1235
  %v1918 = vpop.f32.mrf.mxu0
  %v1919 = vadd.f32 0.0, %v1918
  %v1920 = vpop.f32.mrf.mxu0
  %v1921 = vadd.f32 0.0, %v1920
  %1922 = vmatprep.mubr.f32.mxu0 %v1238
  %1923 = vmatmul.mubr.f32.gmra.mxu0 %v1237
  %v1924 = vpop.f32.mrf.mxu0
  %v1925 = vadd.f32 0.0, %v1924
  %v1926 = vpop.f32.mrf.mxu0
  %v1927 = vadd.f32 0.0, %v1926
  %1928 = vmatprep.mubr.f32.mxu0 %v1756
  %1929 = vmatmul.mubr.f32.gmra.mxu0 %v1755
  %v1930 = vpop.f32.mrf.mxu0
  %v1931 = vadd.f32 0.0, %v1930
  %v1932 = vpop.f32.mrf.mxu0
  %v1933 = vadd.f32 0.0, %v1932
  %1934 = vdwg.mxu0
  %v1935 = vadd.f32 %v1739, %v1889
  %v1936 = vadd.f32 %v1740, %v1891
  %v1937 = vadd.f32 %v1741, %v1895
  %v1938 = vadd.f32 %v1742, %v1897
  %v1939 = vadd.f32 %v1743, %v1901
  %v1940 = vadd.f32 %v1744, %v1903
  %v1941 = vadd.f32 %v1745, %v1907
  %v1942 = vadd.f32 %v1746, %v1909
  %v1943 = vadd.f32 %v1747, %v1913
  %v1944 = vadd.f32 %v1748, %v1915
  %v1945 = vadd.f32 %v1749, %v1919
  %v1946 = vadd.f32 %v1750, %v1921
  %v1947 = vadd.f32 %v1751, %v1925
  %v1948 = vadd.f32 %v1752, %v1927
  %v1949 = vadd.f32 %v1753, %v1931
  %v1950 = vadd.f32 %v1754, %v1933
  %v1951 = vld [vmem:[%s0 + $0x30] sm:$0xfe]
  %v1952 = vld [vmem:[%s0 + $0x38] sm:$0xfe]
  %v1953 = vld [vmem:[%s0 + $0x40] sm:$0xff]
  %v1954 = vld [vmem:[%s0 + $0x48] sm:$0xff]
  %v1955 = vld [vmem:[%s0 + $0x50] sm:$0xff]
  %v1956 = vld [vmem:[%s0 + $0x58] sm:$0xff]
  %v1957 = vld [vmem:[%s0 + $0x60] sm:$0xff]
  %v1958 = vld [vmem:[%s0 + $0x68] sm:$0xff]
  %v1959 = vld [vmem:[%s0 + $0x70] sm:$0xff]
  %v1960 = vld [vmem:[%s0 + $0x78] sm:$0xff]
  %v1961 = vld [vmem:[%s0 + $0x80] sm:$0xff]
  %v1962 = vld [vmem:[%s0 + $0x88] sm:$0xff]
  %v1963 = vld [vmem:[%s0 + $0x90] sm:$0xff]
  %v1964 = vld [vmem:[%s0 + $0x98] sm:$0xff]
  %v1965 = vld [vmem:[%s0 + $0xa0] sm:$0xff]
  %v1966 = vld [vmem:[%s0 + $0xa8] sm:$0xff]
  %v1967 = vld [vmem:[%s0 + $0xb0] sm:$0x1]
  %v1968 = vld [vmem:[%s0 + $0xb8] sm:$0x1]
  %s1969 = scalar_lea.vmem %s2, 4096
  %v1970 = vld [vmem:[%s1969] sm:$0xff]
  %v1971 = vld [vmem:[%s1969 + $0x8] sm:$0xff]
  %v1972 = vld [vmem:[%s1969 + $0x10] sm:$0xff]
  %v1973 = vld [vmem:[%s1969 + $0x18] sm:$0xff]
  %v1974 = vld [vmem:[%s1969 + $0x20] sm:$0xff]
  %v1975 = vld [vmem:[%s1969 + $0x28] sm:$0xff]
  %v1976 = vld [vmem:[%s1969 + $0x30] sm:$0xff]
  %v1977 = vld [vmem:[%s1969 + $0x38] sm:$0xff]
  %v1978 = vld [vmem:[%s1969 + $0x40] sm:$0xff]
  %v1979 = vld [vmem:[%s1969 + $0x48] sm:$0xff]
  %v1980 = vld [vmem:[%s1969 + $0x50] sm:$0xff]
  %v1981 = vld [vmem:[%s1969 + $0x58] sm:$0xff]
  %v1982 = vld [vmem:[%s1969 + $0x60] sm:$0xff]
  %v1983 = vld [vmem:[%s1969 + $0x68] sm:$0xff]
  %v1984 = vld [vmem:[%s1969 + $0x70] sm:$0xff]
  %v1985 = vld [vmem:[%s1969 + $0x78] sm:$0xff]
  %v1986 = vld [vmem:[%s1969 + $0x80] sm:$0xff]
  %v1987 = vld [vmem:[%s1969 + $0x88] sm:$0xff]
  %v1988 = vld [vmem:[%s1969 + $0x90] sm:$0xff]
  %v1989 = vld [vmem:[%s1969 + $0x98] sm:$0xff]
  %v1990 = vld [vmem:[%s1969 + $0xa0] sm:$0xff]
  %v1991 = vld [vmem:[%s1969 + $0xa8] sm:$0xff]
  %v1992 = vld [vmem:[%s1969 + $0xb0] sm:$0xff]
  %v1993 = vld [vmem:[%s1969 + $0xb8] sm:$0xff]
  %v1994 = vld [vmem:[%s1969 + $0xc0] sm:$0xff]
  %v1995 = vld [vmem:[%s1969 + $0xc8] sm:$0xff]
  %v1996 = vld [vmem:[%s1969 + $0xd0] sm:$0xff]
  %v1997 = vld [vmem:[%s1969 + $0xd8] sm:$0xff]
  %v1998 = vld [vmem:[%s1969 + $0xe0] sm:$0xff]
  %v1999 = vld [vmem:[%s1969 + $0xe8] sm:$0xff]
  %v2000 = vld [vmem:[%s1969 + $0xf0] sm:$0xff]
  %v2001 = vld [vmem:[%s1969 + $0xf8] sm:$0xff]
  %v2002 = vld [vmem:[%s1969 + $0x100] sm:$0xff]
  %v2003 = vld [vmem:[%s1969 + $0x108] sm:$0xff]
  %v2004 = vld [vmem:[%s1969 + $0x110] sm:$0xff]
  %v2005 = vld [vmem:[%s1969 + $0x118] sm:$0xff]
  %v2006 = vld [vmem:[%s1969 + $0x120] sm:$0xff]
  %v2007 = vld [vmem:[%s1969 + $0x128] sm:$0xff]
  %v2008 = vld [vmem:[%s1969 + $0x130] sm:$0xff]
  %v2009 = vld [vmem:[%s1969 + $0x138] sm:$0xff]
  %v2010 = vld [vmem:[%s1969 + $0x140] sm:$0xff]
  %v2011 = vld [vmem:[%s1969 + $0x148] sm:$0xff]
  %v2012 = vld [vmem:[%s1969 + $0x150] sm:$0xff]
  %v2013 = vld [vmem:[%s1969 + $0x158] sm:$0xff]
  %v2014 = vld [vmem:[%s1969 + $0x160] sm:$0xff]
  %v2015 = vld [vmem:[%s1969 + $0x168] sm:$0xff]
  %v2016 = vld [vmem:[%s1969 + $0x170] sm:$0xff]
  %v2017 = vld [vmem:[%s1969 + $0x178] sm:$0xff]
  %v2018 = vld [vmem:[%s1969 + $0x180] sm:$0xff]
  %v2019 = vld [vmem:[%s1969 + $0x188] sm:$0xff]
  %v2020 = vld [vmem:[%s1969 + $0x190] sm:$0xff]
  %v2021 = vld [vmem:[%s1969 + $0x198] sm:$0xff]
  %v2022 = vld [vmem:[%s1969 + $0x1a0] sm:$0xff]
  %v2023 = vld [vmem:[%s1969 + $0x1a8] sm:$0xff]
  %v2024 = vld [vmem:[%s1969 + $0x1b0] sm:$0xff]
  %v2025 = vld [vmem:[%s1969 + $0x1b8] sm:$0xff]
  %v2026 = vld [vmem:[%s1969 + $0x1c0] sm:$0xff]
  %v2027 = vld [vmem:[%s1969 + $0x1c8] sm:$0xff]
  %v2028 = vld [vmem:[%s1969 + $0x1d0] sm:$0xff]
  %v2029 = vld [vmem:[%s1969 + $0x1d8] sm:$0xff]
  %v2030 = vld [vmem:[%s1969 + $0x1e0] sm:$0xff]
  %v2031 = vld [vmem:[%s1969 + $0x1e8] sm:$0xff]
  %v2032 = vld [vmem:[%s1969 + $0x1f0] sm:$0xff]
  %v2033 = vld [vmem:[%s1969 + $0x1f8] sm:$0xff]
  %v2052 = vrot.slane %v1951, 1
  %v2053 = vrot.slane %v1953, 1
  %v2054 = vsel %vm595, %v2052, %v2053
  %v2055 = vrot.slane %v1952, 1
  %v2056 = vrot.slane %v1954, 1
  %v2057 = vsel %vm595, %v2055, %v2056
  %v2058 = vrot.slane %v1955, 1
  %v2059 = vsel %vm595, %v2053, %v2058
  %v2060 = vrot.slane %v1956, 1
  %v2061 = vsel %vm595, %v2056, %v2060
  %v2062 = vrot.slane %v1957, 1
  %v2063 = vsel %vm595, %v2058, %v2062
  %v2064 = vrot.slane %v1958, 1
  %v2065 = vsel %vm595, %v2060, %v2064
  %v2066 = vrot.slane %v1959, 1
  %v2067 = vsel %vm595, %v2062, %v2066
  %v2068 = vrot.slane %v1960, 1
  %v2069 = vsel %vm595, %v2064, %v2068
  %v2070 = vrot.slane %v1961, 1
  %v2071 = vsel %vm595, %v2066, %v2070
  %v2072 = vrot.slane %v1962, 1
  %v2073 = vsel %vm595, %v2068, %v2072
  %v2074 = vrot.slane %v1963, 1
  %v2075 = vsel %vm595, %v2070, %v2074
  %v2076 = vrot.slane %v1964, 1
  %v2077 = vsel %vm595, %v2072, %v2076
  %v2078 = vrot.slane %v1965, 1
  %v2079 = vsel %vm595, %v2074, %v2078
  %v2080 = vrot.slane %v1966, 1
  %v2081 = vsel %vm595, %v2076, %v2080
  %v2082 = vrot.slane %v1967, 1
  %v2083 = vsel %vm595, %v2078, %v2082
  %v2084 = vrot.slane %v1968, 1
  %v2085 = vsel %vm595, %v2080, %v2084
  %2102 = vmatprep.subr.mxu0 %v2001
  %2103 = vmatpush1.msra.mxu0 %v2000
  %2104 = vmatprep.subr.mxu0 %v1999
  %2105 = vmatpush1.msra.mxu0 %v1998
  %2106 = vmatprep.subr.mxu0 %v1997
  %2107 = vmatpush1.msra.mxu0 %v1996
  %2108 = vmatprep.subr.mxu0 %v1995
  %2109 = vmatpush1.msra.mxu0 %v1994
  %2110 = vmatprep.subr.mxu0 %v1993
  %2111 = vmatpush1.msra.mxu0 %v1992
  %2112 = vmatprep.subr.mxu0 %v1991
  %2113 = vmatpush1.msra.mxu0 %v1990
  %2114 = vmatprep.subr.mxu0 %v1989
  %2115 = vmatpush1.msra.mxu0 %v1988
  %2116 = vmatprep.subr.mxu0 %v1987
  %2117 = vmatpush1.msra.mxu0 %v1986
  %2118 = vmatprep.subr.mxu0 %v1985
  %2119 = vmatpush1.msra.mxu0 %v1984
  %2120 = vmatprep.subr.mxu0 %v1983
  %2121 = vmatpush1.msra.mxu0 %v1982
  %2122 = vmatprep.subr.mxu0 %v1981
  %2123 = vmatpush1.msra.mxu0 %v1980
  %2124 = vmatprep.subr.mxu0 %v1979
  %2125 = vmatpush1.msra.mxu0 %v1978
  %2126 = vmatprep.subr.mxu0 %v1977
  %2127 = vmatpush1.msra.mxu0 %v1976
  %2128 = vmatprep.subr.mxu0 %v1975
  %2129 = vmatpush1.msra.mxu0 %v1974
  %2130 = vmatprep.subr.mxu0 %v1973
  %2131 = vmatpush1.msra.mxu0 %v1972
  %2132 = vmatprep.subr.mxu0 %v1971
  %2133 = vmatpush1.msra.mxu0 %v1970
  %2134 = vmatprep.subr.mxu0 %v2033
  %2135 = vmatpush2.msra.mxu0 %v2032
  %2136 = vmatprep.subr.mxu0 %v2031
  %2137 = vmatpush2.msra.mxu0 %v2030
  %2138 = vmatprep.subr.mxu0 %v2029
  %2139 = vmatpush2.msra.mxu0 %v2028
  %2140 = vmatprep.subr.mxu0 %v2027
  %2141 = vmatpush2.msra.mxu0 %v2026
  %2142 = vmatprep.subr.mxu0 %v2025
  %2143 = vmatpush2.msra.mxu0 %v2024
  %2144 = vmatprep.subr.mxu0 %v2023
  %2145 = vmatpush2.msra.mxu0 %v2022
  %2146 = vmatprep.subr.mxu0 %v2021
  %2147 = vmatpush2.msra.mxu0 %v2020
  %2148 = vmatprep.subr.mxu0 %v2019
  %2149 = vmatpush2.msra.mxu0 %v2018
  %2150 = vmatprep.subr.mxu0 %v2017
  %2151 = vmatpush2.msra.mxu0 %v2016
  %2152 = vmatprep.subr.mxu0 %v2015
  %2153 = vmatpush2.msra.mxu0 %v2014
  %2154 = vmatprep.subr.mxu0 %v2013
  %2155 = vmatpush2.msra.mxu0 %v2012
  %2156 = vmatprep.subr.mxu0 %v2011
  %2157 = vmatpush2.msra.mxu0 %v2010
  %2158 = vmatprep.subr.mxu0 %v2009
  %2159 = vmatpush2.msra.mxu0 %v2008
  %2160 = vmatprep.subr.mxu0 %v2007
  %2161 = vmatpush2.msra.mxu0 %v2006
  %2162 = vmatprep.subr.mxu0 %v2005
  %2163 = vmatpush2.msra.mxu0 %v2004
  %2164 = vmatprep.subr.mxu0 %v2003
  %2165 = vmatpush2.msra.mxu0 %v2002
  %2166 = vmatprep.mubr.f32.mxu0 %v2057
  %2167 = vmatmul.mubr.f32.gmra.mxu0 %v2054
  %v2168 = vpop.f32.mrf.mxu0
  %v2169 = vadd.f32 0.0, %v2168
  %v2170 = vpop.f32.mrf.mxu0
  %v2171 = vadd.f32 0.0, %v2170
  %2172 = vmatprep.mubr.f32.mxu0 %v2061
  %2173 = vmatmul.mubr.f32.gmra.mxu0 %v2059
  %v2174 = vpop.f32.mrf.mxu0
  %v2175 = vadd.f32 0.0, %v2174
  %v2176 = vpop.f32.mrf.mxu0
  %v2177 = vadd.f32 0.0, %v2176
  %2178 = vmatprep.mubr.f32.mxu0 %v2065
  %2179 = vmatmul.mubr.f32.gmra.mxu0 %v2063
  %v2180 = vpop.f32.mrf.mxu0
  %v2181 = vadd.f32 0.0, %v2180
  %v2182 = vpop.f32.mrf.mxu0
  %v2183 = vadd.f32 0.0, %v2182
  %2184 = vmatprep.mubr.f32.mxu0 %v2069
  %2185 = vmatmul.mubr.f32.gmra.mxu0 %v2067
  %v2186 = vpop.f32.mrf.mxu0
  %v2187 = vadd.f32 0.0, %v2186
  %v2188 = vpop.f32.mrf.mxu0
  %v2189 = vadd.f32 0.0, %v2188
  %2190 = vmatprep.mubr.f32.mxu0 %v2073
  %2191 = vmatmul.mubr.f32.gmra.mxu0 %v2071
  %v2192 = vpop.f32.mrf.mxu0
  %v2193 = vadd.f32 0.0, %v2192
  %v2194 = vpop.f32.mrf.mxu0
  %v2195 = vadd.f32 0.0, %v2194
  %2196 = vmatprep.mubr.f32.mxu0 %v2077
  %2197 = vmatmul.mubr.f32.gmra.mxu0 %v2075
  %v2198 = vpop.f32.mrf.mxu0
  %v2199 = vadd.f32 0.0, %v2198
  %v2200 = vpop.f32.mrf.mxu0
  %v2201 = vadd.f32 0.0, %v2200
  %2202 = vmatprep.mubr.f32.mxu0 %v2081
  %2203 = vmatmul.mubr.f32.gmra.mxu0 %v2079
  %v2204 = vpop.f32.mrf.mxu0
  %v2205 = vadd.f32 0.0, %v2204
  %v2206 = vpop.f32.mrf.mxu0
  %v2207 = vadd.f32 0.0, %v2206
  %2208 = vmatprep.mubr.f32.mxu0 %v2085
  %2209 = vmatmul.mubr.f32.gmra.mxu0 %v2083
  %v2210 = vpop.f32.mrf.mxu0
  %v2211 = vadd.f32 0.0, %v2210
  %v2212 = vpop.f32.mrf.mxu0
  %v2213 = vadd.f32 0.0, %v2212
  %2214 = vdwg.mxu0
  %v2215 = vadd.f32 %v1935, %v2169
  %v2216 = vadd.f32 %v1936, %v2171
  %v2217 = vadd.f32 %v1937, %v2175
  %v2218 = vadd.f32 %v1938, %v2177
  %v2219 = vadd.f32 %v1939, %v2181
  %v2220 = vadd.f32 %v1940, %v2183
  %v2221 = vadd.f32 %v1941, %v2187
  %v2222 = vadd.f32 %v1942, %v2189
  %v2223 = vadd.f32 %v1943, %v2193
  %v2224 = vadd.f32 %v1944, %v2195
  %v2225 = vadd.f32 %v1945, %v2199
  %v2226 = vadd.f32 %v1946, %v2201
  %v2227 = vadd.f32 %v1947, %v2205
  %v2228 = vadd.f32 %v1948, %v2207
  %v2229 = vadd.f32 %v1949, %v2211
  %v2230 = vadd.f32 %v1950, %v2213
  %v2232 = vlaneseq
  %v2233 = vshrl.u32 %v2232, 7
  %v2234 = vsub.s32 0, %v2233
  %v2235 = vrot.slane %v49, %v2234
  %v2236 = vlaneseq
  %v2237 = vshrl.u32 %v2236, 7
  %v2238 = vsub.s32 1, %v2237
  %v2239 = vrot.slane %v49, %v2238
  %v2242 = vadd.f32 %v2215, %v2235
  %v2243 = vadd.f32 %v2216, %v2239
  %v2244 = vadd.f32 %v2217, %v2235
  %v2245 = vadd.f32 %v2218, %v2239
  %v2246 = vadd.f32 %v2219, %v2235
  %v2247 = vadd.f32 %v2220, %v2239
  %v2248 = vadd.f32 %v2221, %v2235
  %v2249 = vadd.f32 %v2222, %v2239
  %v2250 = vadd.f32 %v2223, %v2235
  %v2251 = vadd.f32 %v2224, %v2239
  %v2252 = vadd.f32 %v2225, %v2235
  %v2253 = vadd.f32 %v2226, %v2239
  %v2254 = vadd.f32 %v2227, %v2235
  %v2255 = vadd.f32 %v2228, %v2239
  %v2256 = vadd.f32 %v2229, %v2235
  %v2257 = vadd.f32 %v2230, %v2239
  %v2258 = vld [vmem:[%s1] sm:$0xff]
  %v2259 = vld [vmem:[%s1 + $0x8] sm:$0xff]
  %v2260 = vld [vmem:[%s1 + $0x10] sm:$0xff]
  %v2261 = vld [vmem:[%s1 + $0x18] sm:$0xff]
  %v2262 = vld [vmem:[%s1 + $0x20] sm:$0xff]
  %v2263 = vld [vmem:[%s1 + $0x28] sm:$0xff]
  %v2264 = vld [vmem:[%s1 + $0x30] sm:$0xff]
  %v2265 = vld [vmem:[%s1 + $0x38] sm:$0xff]
  %2267 = vset.pattern.permute.xlu0 0
  %2268 = vperm.xlu0 %2267, %v2258
  %v2269 = vpop.permute.xlu0 %2268
  %2272 = vset.pattern.permute.xlu0 0
  %2273 = vperm.xlu0 %2272, %v2259
  %v2274 = vpop.permute.xlu0 %2273
  %2277 = vset.pattern.permute.xlu0 0
  %2278 = vperm.xlu0 %2277, %v2260
  %v2279 = vpop.permute.xlu0 %2278
  %2282 = vset.pattern.permute.xlu0 0
  %2283 = vperm.xlu0 %2282, %v2261
  %v2284 = vpop.permute.xlu0 %2283
  %2287 = vset.pattern.permute.xlu0 0
  %2288 = vperm.xlu0 %2287, %v2262
  %v2289 = vpop.permute.xlu0 %2288
  %2292 = vset.pattern.permute.xlu0 0
  %2293 = vperm.xlu0 %2292, %v2263
  %v2294 = vpop.permute.xlu0 %2293
  %2297 = vset.pattern.permute.xlu0 0
  %2298 = vperm.xlu0 %2297, %v2264
  %v2299 = vpop.permute.xlu0 %2298
  %2302 = vset.pattern.permute.xlu0 0
  %2303 = vperm.xlu0 %2302, %v2265
  %v2304 = vpop.permute.xlu0 %2303
  %v2306 = vmul.f32 %v2242, %v2269
  %v2307 = vmul.f32 %v2243, %v2269
  %v2308 = vmul.f32 %v2244, %v2274
  %v2309 = vmul.f32 %v2245, %v2274
  %v2310 = vmul.f32 %v2246, %v2279
  %v2311 = vmul.f32 %v2247, %v2279
  %v2312 = vmul.f32 %v2248, %v2284
  %v2313 = vmul.f32 %v2249, %v2284
  %v2314 = vmul.f32 %v2250, %v2289
  %v2315 = vmul.f32 %v2251, %v2289
  %v2316 = vmul.f32 %v2252, %v2294
  %v2317 = vmul.f32 %v2253, %v2294
  %v2318 = vmul.f32 %v2254, %v2299
  %v2319 = vmul.f32 %v2255, %v2299
  %v2320 = vmul.f32 %v2256, %v2304
  %v2321 = vmul.f32 %v2257, %v2304
  %v2322 = vadd.f32 %v2306, %v2308
  %v2323 = vadd.f32 %v2322, %v2310
  %v2324 = vadd.f32 %v2323, %v2312
  %v2325 = vadd.f32 %v2324, %v2314
  %v2326 = vadd.f32 %v2325, %v2316
  %v2327 = vadd.f32 %v2326, %v2318
  %v2328 = vadd.f32 %v2327, %v2320
  %v2329 = vrot.slane %v2328, 4
  %v2330 = vadd.f32 %v2328, %v2329
  %v2331 = vrot.slane %v2330, 2
  %v2332 = vadd.f32 %v2330, %v2331
  %v2333 = vrot.slane %v2332, 1
  %v2334 = vadd.f32 %v2332, %v2333
  %v2335 = vadd.f32 %v2307, %v2309
  %v2336 = vadd.f32 %v2335, %v2311
  %v2337 = vadd.f32 %v2336, %v2313
  %v2338 = vadd.f32 %v2337, %v2315
  %v2339 = vadd.f32 %v2338, %v2317
  %v2340 = vadd.f32 %v2339, %v2319
  %v2341 = vadd.f32 %v2340, %v2321
  %v2342 = vrot.slane %v2341, 4
  %v2343 = vadd.f32 %v2341, %v2342
  %v2344 = vrot.slane %v2343, 2
  %v2345 = vadd.f32 %v2343, %v2344
  %v2346 = vrot.slane %v2345, 1
  %v2347 = vadd.f32 %v2345, %v2346
  %v2348 = vadd.f32 %v2334, 0.0
  %v2349 = vadd.f32 %v2347, 0.0
  %v2350 = vmul.f32 %v2306, %v2306
  %v2351 = vmul.f32 %v2307, %v2307
  %v2352 = vmul.f32 %v2308, %v2308
  %v2353 = vmul.f32 %v2309, %v2309
  %v2354 = vmul.f32 %v2310, %v2310
  %v2355 = vmul.f32 %v2311, %v2311
  %v2356 = vmul.f32 %v2312, %v2312
  %v2357 = vmul.f32 %v2313, %v2313
  %v2358 = vmul.f32 %v2314, %v2314
  %v2359 = vmul.f32 %v2315, %v2315
  %v2360 = vmul.f32 %v2316, %v2316
  %v2361 = vmul.f32 %v2317, %v2317
  %v2362 = vmul.f32 %v2318, %v2318
  %v2363 = vmul.f32 %v2319, %v2319
  %v2364 = vmul.f32 %v2320, %v2320
  %v2365 = vmul.f32 %v2321, %v2321
  %v2366 = vadd.f32 %v2350, %v2352
  %v2367 = vadd.f32 %v2366, %v2354
  %v2368 = vadd.f32 %v2367, %v2356
  %v2369 = vadd.f32 %v2368, %v2358
  %v2370 = vadd.f32 %v2369, %v2360
  %v2371 = vadd.f32 %v2370, %v2362
  %v2372 = vadd.f32 %v2371, %v2364
  %v2373 = vrot.slane %v2372, 4
  %v2374 = vadd.f32 %v2372, %v2373
  %v2375 = vrot.slane %v2374, 2
  %v2376 = vadd.f32 %v2374, %v2375
  %v2377 = vrot.slane %v2376, 1
  %v2378 = vadd.f32 %v2376, %v2377
  %v2379 = vadd.f32 %v2351, %v2353
  %v2380 = vadd.f32 %v2379, %v2355
  %v2381 = vadd.f32 %v2380, %v2357
  %v2382 = vadd.f32 %v2381, %v2359
  %v2383 = vadd.f32 %v2382, %v2361
  %v2384 = vadd.f32 %v2383, %v2363
  %v2385 = vadd.f32 %v2384, %v2365
  %v2386 = vrot.slane %v2385, 4
  %v2387 = vadd.f32 %v2385, %v2386
  %v2388 = vrot.slane %v2387, 2
  %v2389 = vadd.f32 %v2387, %v2388
  %v2390 = vrot.slane %v2389, 1
  %v2391 = vadd.f32 %v2389, %v2390
  %v2392 = vadd.f32 %v2378, 0.0
  %v2393 = vadd.f32 %v2391, 0.0
  %2394 = vst [vmem:[#allocation2 + $0x20] sm:$0xff] %v2306
  %2395 = vst [vmem:[#allocation2 + $0x28] sm:$0xff] %v2307
  %2396 = vst [vmem:[#allocation2 + $0x30] sm:$0xff] %v2308
  %2397 = vst [vmem:[#allocation2 + $0x38] sm:$0xff] %v2309
  %2398 = vst [vmem:[#allocation2 + $0x40] sm:$0xff] %v2310
  %2399 = vst [vmem:[#allocation2 + $0x48] sm:$0xff] %v2311
  %2400 = vst [vmem:[#allocation2 + $0x50] sm:$0xff] %v2312
  %2401 = vst [vmem:[#allocation2 + $0x58] sm:$0xff] %v2313
  %2402 = vst [vmem:[#allocation2 + $0x60] sm:$0xff] %v2314
  %2403 = vst [vmem:[#allocation2 + $0x68] sm:$0xff] %v2315
  %2404 = vst [vmem:[#allocation2 + $0x70] sm:$0xff] %v2316
  %2405 = vst [vmem:[#allocation2 + $0x78] sm:$0xff] %v2317
  %2406 = vst [vmem:[#allocation2 + $0x80] sm:$0xff] %v2318
  %2407 = vst [vmem:[#allocation2 + $0x88] sm:$0xff] %v2319
  %2408 = vst [vmem:[#allocation2 + $0x90] sm:$0xff] %v2320
  %2409 = vst [vmem:[#allocation2 + $0x98] sm:$0xff] %v2321
  %v2410 = vld [vmem:[%s0 + $0x80] sm:$0x80]
  %v2411 = vld [vmem:[%s0 + $0x88] sm:$0x80]
  %v2412 = vld [vmem:[%s0 + $0x90] sm:$0xff]
  %v2413 = vld [vmem:[%s0 + $0x98] sm:$0xff]
  %v2414 = vld [vmem:[%s0 + $0xa0] sm:$0xff]
  %v2415 = vld [vmem:[%s0 + $0xa8] sm:$0xff]
  %v2416 = vld [vmem:[%s0 + $0xb0] sm:$0xff]
  %v2417 = vld [vmem:[%s0 + $0xb8] sm:$0xff]
  %v2418 = vld [vmem:[%s0 + $0xc0] sm:$0xff]
  %v2419 = vld [vmem:[%s0 + $0xc8] sm:$0xff]
  %v2420 = vld [vmem:[%s0 + $0xd0] sm:$0xff]
  %v2421 = vld [vmem:[%s0 + $0xd8] sm:$0xff]
  %v2422 = vld [vmem:[%s0 + $0xe0] sm:$0xff]
  %v2423 = vld [vmem:[%s0 + $0xe8] sm:$0xff]
  %v2424 = vld [vmem:[%s0 + $0xf0] sm:$0xff]
  %v2425 = vld [vmem:[%s0 + $0xf8] sm:$0xff]
  %v2426 = vld [vmem:[%s0 + $0x100] sm:$0x7f]
  %v2427 = vld [vmem:[%s0 + $0x108] sm:$0x7f]
  %v2428 = vld [vmem:[%s2] sm:$0xff]
  %v2429 = vld [vmem:[%s2 + $0x8] sm:$0xff]
  %v2430 = vld [vmem:[%s2 + $0x10] sm:$0xff]
  %v2431 = vld [vmem:[%s2 + $0x18] sm:$0xff]
  %v2432 = vld [vmem:[%s2 + $0x20] sm:$0xff]
  %v2433 = vld [vmem:[%s2 + $0x28] sm:$0xff]
  %v2434 = vld [vmem:[%s2 + $0x30] sm:$0xff]
  %v2435 = vld [vmem:[%s2 + $0x38] sm:$0xff]
  %v2436 = vld [vmem:[%s2 + $0x40] sm:$0xff]
  %v2437 = vld [vmem:[%s2 + $0x48] sm:$0xff]
  %v2438 = vld [vmem:[%s2 + $0x50] sm:$0xff]
  %v2439 = vld [vmem:[%s2 + $0x58] sm:$0xff]
  %v2440 = vld [vmem:[%s2 + $0x60] sm:$0xff]
  %v2441 = vld [vmem:[%s2 + $0x68] sm:$0xff]
  %v2442 = vld [vmem:[%s2 + $0x70] sm:$0xff]
  %v2443 = vld [vmem:[%s2 + $0x78] sm:$0xff]
  %v2444 = vld [vmem:[%s2 + $0x80] sm:$0xff]
  %v2445 = vld [vmem:[%s2 + $0x88] sm:$0xff]
  %v2446 = vld [vmem:[%s2 + $0x90] sm:$0xff]
  %v2447 = vld [vmem:[%s2 + $0x98] sm:$0xff]
  %v2448 = vld [vmem:[%s2 + $0xa0] sm:$0xff]
  %v2449 = vld [vmem:[%s2 + $0xa8] sm:$0xff]
  %v2450 = vld [vmem:[%s2 + $0xb0] sm:$0xff]
  %v2451 = vld [vmem:[%s2 + $0xb8] sm:$0xff]
  %v2452 = vld [vmem:[%s2 + $0xc0] sm:$0xff]
  %v2453 = vld [vmem:[%s2 + $0xc8] sm:$0xff]
  %v2454 = vld [vmem:[%s2 + $0xd0] sm:$0xff]
  %v2455 = vld [vmem:[%s2 + $0xd8] sm:$0xff]
  %v2456 = vld [vmem:[%s2 + $0xe0] sm:$0xff]
  %v2457 = vld [vmem:[%s2 + $0xe8] sm:$0xff]
  %v2458 = vld [vmem:[%s2 + $0xf0] sm:$0xff]
  %v2459 = vld [vmem:[%s2 + $0xf8] sm:$0xff]
  %v2460 = vld [vmem:[%s2 + $0x100] sm:$0xff]
  %v2461 = vld [vmem:[%s2 + $0x108] sm:$0xff]
  %v2462 = vld [vmem:[%s2 + $0x110] sm:$0xff]
  %v2463 = vld [vmem:[%s2 + $0x118] sm:$0xff]
  %v2464 = vld [vmem:[%s2 + $0x120] sm:$0xff]
  %v2465 = vld [vmem:[%s2 + $0x128] sm:$0xff]
  %v2466 = vld [vmem:[%s2 + $0x130] sm:$0xff]
  %v2467 = vld [vmem:[%s2 + $0x138] sm:$0xff]
  %v2468 = vld [vmem:[%s2 + $0x140] sm:$0xff]
  %v2469 = vld [vmem:[%s2 + $0x148] sm:$0xff]
  %v2470 = vld [vmem:[%s2 + $0x150] sm:$0xff]
  %v2471 = vld [vmem:[%s2 + $0x158] sm:$0xff]
  %v2472 = vld [vmem:[%s2 + $0x160] sm:$0xff]
  %v2473 = vld [vmem:[%s2 + $0x168] sm:$0xff]
  %v2474 = vld [vmem:[%s2 + $0x170] sm:$0xff]
  %v2475 = vld [vmem:[%s2 + $0x178] sm:$0xff]
  %v2476 = vld [vmem:[%s2 + $0x180] sm:$0xff]
  %v2477 = vld [vmem:[%s2 + $0x188] sm:$0xff]
  %v2478 = vld [vmem:[%s2 + $0x190] sm:$0xff]
  %v2479 = vld [vmem:[%s2 + $0x198] sm:$0xff]
  %v2480 = vld [vmem:[%s2 + $0x1a0] sm:$0xff]
  %v2481 = vld [vmem:[%s2 + $0x1a8] sm:$0xff]
  %v2482 = vld [vmem:[%s2 + $0x1b0] sm:$0xff]
  %v2483 = vld [vmem:[%s2 + $0x1b8] sm:$0xff]
  %v2484 = vld [vmem:[%s2 + $0x1c0] sm:$0xff]
  %v2485 = vld [vmem:[%s2 + $0x1c8] sm:$0xff]
  %v2486 = vld [vmem:[%s2 + $0x1d0] sm:$0xff]
  %v2487 = vld [vmem:[%s2 + $0x1d8] sm:$0xff]
  %v2488 = vld [vmem:[%s2 + $0x1e0] sm:$0xff]
  %v2489 = vld [vmem:[%s2 + $0x1e8] sm:$0xff]
  %v2490 = vld [vmem:[%s2 + $0x1f0] sm:$0xff]
  %v2491 = vld [vmem:[%s2 + $0x1f8] sm:$0xff]
  %v2492 = vld [vmem:[%s0 + $0x100] sm:$0xff]
  %v2493 = vld [vmem:[%s0 + $0x108] sm:$0xff]
  %v2494 = vld [vmem:[%s134] sm:$0xff]
  %v2495 = vld [vmem:[%s134 + $0x8] sm:$0xff]
  %v2496 = vld [vmem:[%s134 + $0x10] sm:$0xff]
  %v2497 = vld [vmem:[%s134 + $0x18] sm:$0xff]
  %v2498 = vld [vmem:[%s134 + $0x20] sm:$0xff]
  %v2499 = vld [vmem:[%s134 + $0x28] sm:$0xff]
  %v2500 = vld [vmem:[%s134 + $0x30] sm:$0xff]
  %v2501 = vld [vmem:[%s134 + $0x38] sm:$0xff]
  %v2502 = vld [vmem:[%s134 + $0x40] sm:$0xff]
  %v2503 = vld [vmem:[%s134 + $0x48] sm:$0xff]
  %v2504 = vld [vmem:[%s134 + $0x50] sm:$0xff]
  %v2505 = vld [vmem:[%s134 + $0x58] sm:$0xff]
  %v2506 = vld [vmem:[%s134 + $0x60] sm:$0xff]
  %v2507 = vld [vmem:[%s134 + $0x68] sm:$0xff]
  %v2508 = vld [vmem:[%s134 + $0x70] sm:$0xff]
  %v2509 = vld [vmem:[%s134 + $0x78] sm:$0xff]
  %v2510 = vld [vmem:[%s134 + $0x80] sm:$0xff]
  %v2511 = vld [vmem:[%s134 + $0x88] sm:$0xff]
  %v2512 = vld [vmem:[%s134 + $0x90] sm:$0xff]
  %v2513 = vld [vmem:[%s134 + $0x98] sm:$0xff]
  %v2514 = vld [vmem:[%s134 + $0xa0] sm:$0xff]
  %v2515 = vld [vmem:[%s134 + $0xa8] sm:$0xff]
  %v2516 = vld [vmem:[%s134 + $0xb0] sm:$0xff]
  %v2517 = vld [vmem:[%s134 + $0xb8] sm:$0xff]
  %v2518 = vld [vmem:[%s134 + $0xc0] sm:$0xff]
  %v2519 = vld [vmem:[%s134 + $0xc8] sm:$0xff]
  %v2520 = vld [vmem:[%s134 + $0xd0] sm:$0xff]
  %v2521 = vld [vmem:[%s134 + $0xd8] sm:$0xff]
  %v2522 = vld [vmem:[%s134 + $0xe0] sm:$0xff]
  %v2523 = vld [vmem:[%s134 + $0xe8] sm:$0xff]
  %v2524 = vld [vmem:[%s134 + $0xf0] sm:$0xff]
  %v2525 = vld [vmem:[%s134 + $0xf8] sm:$0xff]
  %v2526 = vld [vmem:[%s134 + $0x100] sm:$0xff]
  %v2527 = vld [vmem:[%s134 + $0x108] sm:$0xff]
  %v2528 = vld [vmem:[%s134 + $0x110] sm:$0xff]
  %v2529 = vld [vmem:[%s134 + $0x118] sm:$0xff]
  %v2530 = vld [vmem:[%s134 + $0x120] sm:$0xff]
  %v2531 = vld [vmem:[%s134 + $0x128] sm:$0xff]
  %v2532 = vld [vmem:[%s134 + $0x130] sm:$0xff]
  %v2533 = vld [vmem:[%s134 + $0x138] sm:$0xff]
  %v2534 = vld [vmem:[%s134 + $0x140] sm:$0xff]
  %v2535 = vld [vmem:[%s134 + $0x148] sm:$0xff]
  %v2536 = vld [vmem:[%s134 + $0x150] sm:$0xff]
  %v2537 = vld [vmem:[%s134 + $0x158] sm:$0xff]
  %v2538 = vld [vmem:[%s134 + $0x160] sm:$0xff]
  %v2539 = vld [vmem:[%s134 + $0x168] sm:$0xff]
  %v2540 = vld [vmem:[%s134 + $0x170] sm:$0xff]
  %v2541 = vld [vmem:[%s134 + $0x178] sm:$0xff]
  %v2542 = vld [vmem:[%s134 + $0x180] sm:$0xff]
  %v2543 = vld [vmem:[%s134 + $0x188] sm:$0xff]
  %v2544 = vld [vmem:[%s134 + $0x190] sm:$0xff]
  %v2545 = vld [vmem:[%s134 + $0x198] sm:$0xff]
  %v2546 = vld [vmem:[%s134 + $0x1a0] sm:$0xff]
  %v2547 = vld [vmem:[%s134 + $0x1a8] sm:$0xff]
  %v2548 = vld [vmem:[%s134 + $0x1b0] sm:$0xff]
  %v2549 = vld [vmem:[%s134 + $0x1b8] sm:$0xff]
  %v2550 = vld [vmem:[%s134 + $0x1c0] sm:$0xff]
  %v2551 = vld [vmem:[%s134 + $0x1c8] sm:$0xff]
  %v2552 = vld [vmem:[%s134 + $0x1d0] sm:$0xff]
  %v2553 = vld [vmem:[%s134 + $0x1d8] sm:$0xff]
  %v2554 = vld [vmem:[%s134 + $0x1e0] sm:$0xff]
  %v2555 = vld [vmem:[%s134 + $0x1e8] sm:$0xff]
  %v2556 = vld [vmem:[%s134 + $0x1f0] sm:$0xff]
  %v2557 = vld [vmem:[%s134 + $0x1f8] sm:$0xff]
  %2558 = vmatprep.subr.mxu0 %v2525
  %2559 = vmatpush1.msra.mxu0 %v2524
  %2560 = vmatprep.subr.mxu0 %v2523
  %2561 = vmatpush1.msra.mxu0 %v2522
  %2562 = vmatprep.subr.mxu0 %v2521
  %2563 = vmatpush1.msra.mxu0 %v2520
  %2564 = vmatprep.subr.mxu0 %v2519
  %2565 = vmatpush1.msra.mxu0 %v2518
  %2566 = vmatprep.subr.mxu0 %v2517
  %2567 = vmatpush1.msra.mxu0 %v2516
  %2568 = vmatprep.subr.mxu0 %v2515
  %2569 = vmatpush1.msra.mxu0 %v2514
  %2570 = vmatprep.subr.mxu0 %v2513
  %2571 = vmatpush1.msra.mxu0 %v2512
  %2572 = vmatprep.subr.mxu0 %v2511
  %2573 = vmatpush1.msra.mxu0 %v2510
  %2574 = vmatprep.subr.mxu0 %v2509
  %2575 = vmatpush1.msra.mxu0 %v2508
  %2576 = vmatprep.subr.mxu0 %v2507
  %2577 = vmatpush1.msra.mxu0 %v2506
  %2578 = vmatprep.subr.mxu0 %v2505
  %2579 = vmatpush1.msra.mxu0 %v2504
  %2580 = vmatprep.subr.mxu0 %v2503
  %2581 = vmatpush1.msra.mxu0 %v2502
  %2582 = vmatprep.subr.mxu0 %v2501
  %2583 = vmatpush1.msra.mxu0 %v2500
  %2584 = vmatprep.subr.mxu0 %v2499
  %2585 = vmatpush1.msra.mxu0 %v2498
  %2586 = vmatprep.subr.mxu0 %v2497
  %2587 = vmatpush1.msra.mxu0 %v2496
  %2588 = vmatprep.subr.mxu0 %v2495
  %2589 = vmatpush1.msra.mxu0 %v2494
  %2590 = vmatprep.subr.mxu0 %v2557
  %2591 = vmatpush2.msra.mxu0 %v2556
  %2592 = vmatprep.subr.mxu0 %v2555
  %2593 = vmatpush2.msra.mxu0 %v2554
  %2594 = vmatprep.subr.mxu0 %v2553
  %2595 = vmatpush2.msra.mxu0 %v2552
  %2596 = vmatprep.subr.mxu0 %v2551
  %2597 = vmatpush2.msra.mxu0 %v2550
  %2598 = vmatprep.subr.mxu0 %v2549
  %2599 = vmatpush2.msra.mxu0 %v2548
  %2600 = vmatprep.subr.mxu0 %v2547
  %2601 = vmatpush2.msra.mxu0 %v2546
  %2602 = vmatprep.subr.mxu0 %v2545
  %2603 = vmatpush2.msra.mxu0 %v2544
  %2604 = vmatprep.subr.mxu0 %v2543
  %2605 = vmatpush2.msra.mxu0 %v2542
  %2606 = vmatprep.subr.mxu0 %v2541
  %2607 = vmatpush2.msra.mxu0 %v2540
  %2608 = vmatprep.subr.mxu0 %v2539
  %2609 = vmatpush2.msra.mxu0 %v2538
  %2610 = vmatprep.subr.mxu0 %v2537
  %2611 = vmatpush2.msra.mxu0 %v2536
  %2612 = vmatprep.subr.mxu0 %v2535
  %2613 = vmatpush2.msra.mxu0 %v2534
  %2614 = vmatprep.subr.mxu0 %v2533
  %2615 = vmatpush2.msra.mxu0 %v2532
  %2616 = vmatprep.subr.mxu0 %v2531
  %2617 = vmatpush2.msra.mxu0 %v2530
  %2618 = vmatprep.subr.mxu0 %v2529
  %2619 = vmatpush2.msra.mxu0 %v2528
  %2620 = vmatprep.subr.mxu0 %v2527
  %2621 = vmatpush2.msra.mxu0 %v2526
  %2622 = vmatprep.mubr.f32.mxu0 %v2413
  %2623 = vmatmul.mubr.f32.gmra.mxu0 %v2412
  %v2624 = vpop.f32.mrf.mxu0
  %v2625 = vadd.f32 0.0, %v2624
  %v2626 = vpop.f32.mrf.mxu0
  %v2627 = vadd.f32 0.0, %v2626
  %2628 = vmatprep.mubr.f32.mxu0 %v2415
  %2629 = vmatmul.mubr.f32.gmra.mxu0 %v2414
  %v2630 = vpop.f32.mrf.mxu0
  %v2631 = vadd.f32 0.0, %v2630
  %v2632 = vpop.f32.mrf.mxu0
  %v2633 = vadd.f32 0.0, %v2632
  %2634 = vmatprep.mubr.f32.mxu0 %v2417
  %2635 = vmatmul.mubr.f32.gmra.mxu0 %v2416
  %v2636 = vpop.f32.mrf.mxu0
  %v2637 = vadd.f32 0.0, %v2636
  %v2638 = vpop.f32.mrf.mxu0
  %v2639 = vadd.f32 0.0, %v2638
  %2640 = vmatprep.mubr.f32.mxu0 %v2419
  %2641 = vmatmul.mubr.f32.gmra.mxu0 %v2418
  %v2642 = vpop.f32.mrf.mxu0
  %v2643 = vadd.f32 0.0, %v2642
  %v2644 = vpop.f32.mrf.mxu0
  %v2645 = vadd.f32 0.0, %v2644
  %2646 = vmatprep.mubr.f32.mxu0 %v2421
  %2647 = vmatmul.mubr.f32.gmra.mxu0 %v2420
  %v2648 = vpop.f32.mrf.mxu0
  %v2649 = vadd.f32 0.0, %v2648
  %v2650 = vpop.f32.mrf.mxu0
  %v2651 = vadd.f32 0.0, %v2650
  %2652 = vmatprep.mubr.f32.mxu0 %v2423
  %2653 = vmatmul.mubr.f32.gmra.mxu0 %v2422
  %v2654 = vpop.f32.mrf.mxu0
  %v2655 = vadd.f32 0.0, %v2654
  %v2656 = vpop.f32.mrf.mxu0
  %v2657 = vadd.f32 0.0, %v2656
  %2658 = vmatprep.mubr.f32.mxu0 %v2425
  %2659 = vmatmul.mubr.f32.gmra.mxu0 %v2424
  %v2660 = vpop.f32.mrf.mxu0
  %v2661 = vadd.f32 0.0, %v2660
  %v2662 = vpop.f32.mrf.mxu0
  %v2663 = vadd.f32 0.0, %v2662
  %2664 = vmatprep.mubr.f32.mxu0 %v2493
  %2665 = vmatmul.mubr.f32.gmra.mxu0 %v2492
  %v2666 = vpop.f32.mrf.mxu0
  %v2667 = vadd.f32 0.0, %v2666
  %v2668 = vpop.f32.mrf.mxu0
  %v2669 = vadd.f32 0.0, %v2668
  %2670 = vdwg.mxu0
  %v2689 = vrot.slane %v2410, 7
  %v2690 = vrot.slane %v2412, 7
  %v2691 = vsel %vm330, %v2689, %v2690
  %v2692 = vrot.slane %v2411, 7
  %v2693 = vrot.slane %v2413, 7
  %v2694 = vsel %vm330, %v2692, %v2693
  %v2695 = vrot.slane %v2414, 7
  %v2696 = vsel %vm330, %v2690, %v2695
  %v2697 = vrot.slane %v2415, 7
  %v2698 = vsel %vm330, %v2693, %v2697
  %v2699 = vrot.slane %v2416, 7
  %v2700 = vsel %vm330, %v2695, %v2699
  %v2701 = vrot.slane %v2417, 7
  %v2702 = vsel %vm330, %v2697, %v2701
  %v2703 = vrot.slane %v2418, 7
  %v2704 = vsel %vm330, %v2699, %v2703
  %v2705 = vrot.slane %v2419, 7
  %v2706 = vsel %vm330, %v2701, %v2705
  %v2707 = vrot.slane %v2420, 7
  %v2708 = vsel %vm330, %v2703, %v2707
  %v2709 = vrot.slane %v2421, 7
  %v2710 = vsel %vm330, %v2705, %v2709
  %v2711 = vrot.slane %v2422, 7
  %v2712 = vsel %vm330, %v2707, %v2711
  %v2713 = vrot.slane %v2423, 7
  %v2714 = vsel %vm330, %v2709, %v2713
  %v2715 = vrot.slane %v2424, 7
  %v2716 = vsel %vm330, %v2711, %v2715
  %v2717 = vrot.slane %v2425, 7
  %v2718 = vsel %vm330, %v2713, %v2717
  %v2719 = vrot.slane %v2426, 7
  %v2720 = vsel %vm330, %v2715, %v2719
  %v2721 = vrot.slane %v2427, 7
  %v2722 = vsel %vm330, %v2717, %v2721
  %2739 = vmatprep.subr.mxu0 %v2459
  %2740 = vmatpush1.msra.mxu0 %v2458
  %2741 = vmatprep.subr.mxu0 %v2457
  %2742 = vmatpush1.msra.mxu0 %v2456
  %2743 = vmatprep.subr.mxu0 %v2455
  %2744 = vmatpush1.msra.mxu0 %v2454
  %2745 = vmatprep.subr.mxu0 %v2453
  %2746 = vmatpush1.msra.mxu0 %v2452
  %2747 = vmatprep.subr.mxu0 %v2451
  %2748 = vmatpush1.msra.mxu0 %v2450
  %2749 = vmatprep.subr.mxu0 %v2449
  %2750 = vmatpush1.msra.mxu0 %v2448
  %2751 = vmatprep.subr.mxu0 %v2447
  %2752 = vmatpush1.msra.mxu0 %v2446
  %2753 = vmatprep.subr.mxu0 %v2445
  %2754 = vmatpush1.msra.mxu0 %v2444
  %2755 = vmatprep.subr.mxu0 %v2443
  %2756 = vmatpush1.msra.mxu0 %v2442
  %2757 = vmatprep.subr.mxu0 %v2441
  %2758 = vmatpush1.msra.mxu0 %v2440
  %2759 = vmatprep.subr.mxu0 %v2439
  %2760 = vmatpush1.msra.mxu0 %v2438
  %2761 = vmatprep.subr.mxu0 %v2437
  %2762 = vmatpush1.msra.mxu0 %v2436
  %2763 = vmatprep.subr.mxu0 %v2435
  %2764 = vmatpush1.msra.mxu0 %v2434
  %2765 = vmatprep.subr.mxu0 %v2433
  %2766 = vmatpush1.msra.mxu0 %v2432
  %2767 = vmatprep.subr.mxu0 %v2431
  %2768 = vmatpush1.msra.mxu0 %v2430
  %2769 = vmatprep.subr.mxu0 %v2429
  %2770 = vmatpush1.msra.mxu0 %v2428
  %2771 = vmatprep.subr.mxu0 %v2491
  %2772 = vmatpush2.msra.mxu0 %v2490
  %2773 = vmatprep.subr.mxu0 %v2489
  %2774 = vmatpush2.msra.mxu0 %v2488
  %2775 = vmatprep.subr.mxu0 %v2487
  %2776 = vmatpush2.msra.mxu0 %v2486
  %2777 = vmatprep.subr.mxu0 %v2485
  %2778 = vmatpush2.msra.mxu0 %v2484
  %2779 = vmatprep.subr.mxu0 %v2483
  %2780 = vmatpush2.msra.mxu0 %v2482
  %2781 = vmatprep.subr.mxu0 %v2481
  %2782 = vmatpush2.msra.mxu0 %v2480
  %2783 = vmatprep.subr.mxu0 %v2479
  %2784 = vmatpush2.msra.mxu0 %v2478
  %2785 = vmatprep.subr.mxu0 %v2477
  %2786 = vmatpush2.msra.mxu0 %v2476
  %2787 = vmatprep.subr.mxu0 %v2475
  %2788 = vmatpush2.msra.mxu0 %v2474
  %2789 = vmatprep.subr.mxu0 %v2473
  %2790 = vmatpush2.msra.mxu0 %v2472
  %2791 = vmatprep.subr.mxu0 %v2471
  %2792 = vmatpush2.msra.mxu0 %v2470
  %2793 = vmatprep.subr.mxu0 %v2469
  %2794 = vmatpush2.msra.mxu0 %v2468
  %2795 = vmatprep.subr.mxu0 %v2467
  %2796 = vmatpush2.msra.mxu0 %v2466
  %2797 = vmatprep.subr.mxu0 %v2465
  %2798 = vmatpush2.msra.mxu0 %v2464
  %2799 = vmatprep.subr.mxu0 %v2463
  %2800 = vmatpush2.msra.mxu0 %v2462
  %2801 = vmatprep.subr.mxu0 %v2461
  %2802 = vmatpush2.msra.mxu0 %v2460
  %2803 = vmatprep.mubr.f32.mxu0 %v2694
  %2804 = vmatmul.mubr.f32.gmra.mxu0 %v2691
  %v2805 = vpop.f32.mrf.mxu0
  %v2806 = vadd.f32 %v2625, %v2805
  %v2807 = vpop.f32.mrf.mxu0
  %v2808 = vadd.f32 %v2627, %v2807
  %2809 = vmatprep.mubr.f32.mxu0 %v2698
  %2810 = vmatmul.mubr.f32.gmra.mxu0 %v2696
  %v2811 = vpop.f32.mrf.mxu0
  %v2812 = vadd.f32 %v2631, %v2811
  %v2813 = vpop.f32.mrf.mxu0
  %v2814 = vadd.f32 %v2633, %v2813
  %2815 = vmatprep.mubr.f32.mxu0 %v2702
  %2816 = vmatmul.mubr.f32.gmra.mxu0 %v2700
  %v2817 = vpop.f32.mrf.mxu0
  %v2818 = vadd.f32 %v2637, %v2817
  %v2819 = vpop.f32.mrf.mxu0
  %v2820 = vadd.f32 %v2639, %v2819
  %2821 = vmatprep.mubr.f32.mxu0 %v2706
  %2822 = vmatmul.mubr.f32.gmra.mxu0 %v2704
  %v2823 = vpop.f32.mrf.mxu0
  %v2824 = vadd.f32 %v2643, %v2823
  %v2825 = vpop.f32.mrf.mxu0
  %v2826 = vadd.f32 %v2645, %v2825
  %2827 = vmatprep.mubr.f32.mxu0 %v2710
  %2828 = vmatmul.mubr.f32.gmra.mxu0 %v2708
  %v2829 = vpop.f32.mrf.mxu0
  %v2830 = vadd.f32 %v2649, %v2829
  %v2831 = vpop.f32.mrf.mxu0
  %v2832 = vadd.f32 %v2651, %v2831
  %2833 = vmatprep.mubr.f32.mxu0 %v2714
  %2834 = vmatmul.mubr.f32.gmra.mxu0 %v2712
  %v2835 = vpop.f32.mrf.mxu0
  %v2836 = vadd.f32 %v2655, %v2835
  %v2837 = vpop.f32.mrf.mxu0
  %v2838 = vadd.f32 %v2657, %v2837
  %2839 = vmatprep.mubr.f32.mxu0 %v2718
  %2840 = vmatmul.mubr.f32.gmra.mxu0 %v2716
  %v2841 = vpop.f32.mrf.mxu0
  %v2842 = vadd.f32 %v2661, %v2841
  %v2843 = vpop.f32.mrf.mxu0
  %v2844 = vadd.f32 %v2663, %v2843
  %2845 = vmatprep.mubr.f32.mxu0 %v2722
  %2846 = vmatmul.mubr.f32.gmra.mxu0 %v2720
  %v2847 = vpop.f32.mrf.mxu0
  %v2848 = vadd.f32 %v2667, %v2847
  %v2849 = vpop.f32.mrf.mxu0
  %v2850 = vadd.f32 %v2669, %v2849
  %2851 = vdwg.mxu0
  %v2852 = vld [vmem:[%s0 + $0x90] sm:$0xfe]
  %v2853 = vld [vmem:[%s0 + $0x98] sm:$0xfe]
  %v2854 = vld [vmem:[%s0 + $0xa0] sm:$0xff]
  %v2855 = vld [vmem:[%s0 + $0xa8] sm:$0xff]
  %v2856 = vld [vmem:[%s0 + $0xb0] sm:$0xff]
  %v2857 = vld [vmem:[%s0 + $0xb8] sm:$0xff]
  %v2858 = vld [vmem:[%s0 + $0xc0] sm:$0xff]
  %v2859 = vld [vmem:[%s0 + $0xc8] sm:$0xff]
  %v2860 = vld [vmem:[%s0 + $0xd0] sm:$0xff]
  %v2861 = vld [vmem:[%s0 + $0xd8] sm:$0xff]
  %v2862 = vld [vmem:[%s0 + $0xe0] sm:$0xff]
  %v2863 = vld [vmem:[%s0 + $0xe8] sm:$0xff]
  %v2864 = vld [vmem:[%s0 + $0xf0] sm:$0xff]
  %v2865 = vld [vmem:[%s0 + $0xf8] sm:$0xff]
  %v2866 = vld [vmem:[%s0 + $0x100] sm:$0xff]
  %v2867 = vld [vmem:[%s0 + $0x108] sm:$0xff]
  %v2868 = vld [vmem:[%s0 + $0x110] sm:$0x1]
  %v2869 = vld [vmem:[%s0 + $0x118] sm:$0x1]
  %v2870 = vld [vmem:[%s512] sm:$0xff]
  %v2871 = vld [vmem:[%s512 + $0x8] sm:$0xff]
  %v2872 = vld [vmem:[%s512 + $0x10] sm:$0xff]
  %v2873 = vld [vmem:[%s512 + $0x18] sm:$0xff]
  %v2874 = vld [vmem:[%s512 + $0x20] sm:$0xff]
  %v2875 = vld [vmem:[%s512 + $0x28] sm:$0xff]
  %v2876 = vld [vmem:[%s512 + $0x30] sm:$0xff]
  %v2877 = vld [vmem:[%s512 + $0x38] sm:$0xff]
  %v2878 = vld [vmem:[%s512 + $0x40] sm:$0xff]
  %v2879 = vld [vmem:[%s512 + $0x48] sm:$0xff]
  %v2880 = vld [vmem:[%s512 + $0x50] sm:$0xff]
  %v2881 = vld [vmem:[%s512 + $0x58] sm:$0xff]
  %v2882 = vld [vmem:[%s512 + $0x60] sm:$0xff]
  %v2883 = vld [vmem:[%s512 + $0x68] sm:$0xff]
  %v2884 = vld [vmem:[%s512 + $0x70] sm:$0xff]
  %v2885 = vld [vmem:[%s512 + $0x78] sm:$0xff]
  %v2886 = vld [vmem:[%s512 + $0x80] sm:$0xff]
  %v2887 = vld [vmem:[%s512 + $0x88] sm:$0xff]
  %v2888 = vld [vmem:[%s512 + $0x90] sm:$0xff]
  %v2889 = vld [vmem:[%s512 + $0x98] sm:$0xff]
  %v2890 = vld [vmem:[%s512 + $0xa0] sm:$0xff]
  %v2891 = vld [vmem:[%s512 + $0xa8] sm:$0xff]
  %v2892 = vld [vmem:[%s512 + $0xb0] sm:$0xff]
  %v2893 = vld [vmem:[%s512 + $0xb8] sm:$0xff]
  %v2894 = vld [vmem:[%s512 + $0xc0] sm:$0xff]
  %v2895 = vld [vmem:[%s512 + $0xc8] sm:$0xff]
  %v2896 = vld [vmem:[%s512 + $0xd0] sm:$0xff]
  %v2897 = vld [vmem:[%s512 + $0xd8] sm:$0xff]
  %v2898 = vld [vmem:[%s512 + $0xe0] sm:$0xff]
  %v2899 = vld [vmem:[%s512 + $0xe8] sm:$0xff]
  %v2900 = vld [vmem:[%s512 + $0xf0] sm:$0xff]
  %v2901 = vld [vmem:[%s512 + $0xf8] sm:$0xff]
  %v2902 = vld [vmem:[%s512 + $0x100] sm:$0xff]
  %v2903 = vld [vmem:[%s512 + $0x108] sm:$0xff]
  %v2904 = vld [vmem:[%s512 + $0x110] sm:$0xff]
  %v2905 = vld [vmem:[%s512 + $0x118] sm:$0xff]
  %v2906 = vld [vmem:[%s512 + $0x120] sm:$0xff]
  %v2907 = vld [vmem:[%s512 + $0x128] sm:$0xff]
  %v2908 = vld [vmem:[%s512 + $0x130] sm:$0xff]
  %v2909 = vld [vmem:[%s512 + $0x138] sm:$0xff]
  %v2910 = vld [vmem:[%s512 + $0x140] sm:$0xff]
  %v2911 = vld [vmem:[%s512 + $0x148] sm:$0xff]
  %v2912 = vld [vmem:[%s512 + $0x150] sm:$0xff]
  %v2913 = vld [vmem:[%s512 + $0x158] sm:$0xff]
  %v2914 = vld [vmem:[%s512 + $0x160] sm:$0xff]
  %v2915 = vld [vmem:[%s512 + $0x168] sm:$0xff]
  %v2916 = vld [vmem:[%s512 + $0x170] sm:$0xff]
  %v2917 = vld [vmem:[%s512 + $0x178] sm:$0xff]
  %v2918 = vld [vmem:[%s512 + $0x180] sm:$0xff]
  %v2919 = vld [vmem:[%s512 + $0x188] sm:$0xff]
  %v2920 = vld [vmem:[%s512 + $0x190] sm:$0xff]
  %v2921 = vld [vmem:[%s512 + $0x198] sm:$0xff]
  %v2922 = vld [vmem:[%s512 + $0x1a0] sm:$0xff]
  %v2923 = vld [vmem:[%s512 + $0x1a8] sm:$0xff]
  %v2924 = vld [vmem:[%s512 + $0x1b0] sm:$0xff]
  %v2925 = vld [vmem:[%s512 + $0x1b8] sm:$0xff]
  %v2926 = vld [vmem:[%s512 + $0x1c0] sm:$0xff]
  %v2927 = vld [vmem:[%s512 + $0x1c8] sm:$0xff]
  %v2928 = vld [vmem:[%s512 + $0x1d0] sm:$0xff]
  %v2929 = vld [vmem:[%s512 + $0x1d8] sm:$0xff]
  %v2930 = vld [vmem:[%s512 + $0x1e0] sm:$0xff]
  %v2931 = vld [vmem:[%s512 + $0x1e8] sm:$0xff]
  %v2932 = vld [vmem:[%s512 + $0x1f0] sm:$0xff]
  %v2933 = vld [vmem:[%s512 + $0x1f8] sm:$0xff]
  %v2952 = vrot.slane %v2852, 1
  %v2953 = vrot.slane %v2854, 1
  %v2954 = vsel %vm595, %v2952, %v2953
  %v2955 = vrot.slane %v2853, 1
  %v2956 = vrot.slane %v2855, 1
  %v2957 = vsel %vm595, %v2955, %v2956
  %v2958 = vrot.slane %v2856, 1
  %v2959 = vsel %vm595, %v2953, %v2958
  %v2960 = vrot.slane %v2857, 1
  %v2961 = vsel %vm595, %v2956, %v2960
  %v2962 = vrot.slane %v2858, 1
  %v2963 = vsel %vm595, %v2958, %v2962
  %v2964 = vrot.slane %v2859, 1
  %v2965 = vsel %vm595, %v2960, %v2964
  %v2966 = vrot.slane %v2860, 1
  %v2967 = vsel %vm595, %v2962, %v2966
  %v2968 = vrot.slane %v2861, 1
  %v2969 = vsel %vm595, %v2964, %v2968
  %v2970 = vrot.slane %v2862, 1
  %v2971 = vsel %vm595, %v2966, %v2970
  %v2972 = vrot.slane %v2863, 1
  %v2973 = vsel %vm595, %v2968, %v2972
  %v2974 = vrot.slane %v2864, 1
  %v2975 = vsel %vm595, %v2970, %v2974
  %v2976 = vrot.slane %v2865, 1
  %v2977 = vsel %vm595, %v2972, %v2976
  %v2978 = vrot.slane %v2866, 1
  %v2979 = vsel %vm595, %v2974, %v2978
  %v2980 = vrot.slane %v2867, 1
  %v2981 = vsel %vm595, %v2976, %v2980
  %v2982 = vrot.slane %v2868, 1
  %v2983 = vsel %vm595, %v2978, %v2982
  %v2984 = vrot.slane %v2869, 1
  %v2985 = vsel %vm595, %v2980, %v2984
  %3002 = vmatprep.subr.mxu0 %v2901
  %3003 = vmatpush1.msra.mxu0 %v2900
  %3004 = vmatprep.subr.mxu0 %v2899
  %3005 = vmatpush1.msra.mxu0 %v2898
  %3006 = vmatprep.subr.mxu0 %v2897
  %3007 = vmatpush1.msra.mxu0 %v2896
  %3008 = vmatprep.subr.mxu0 %v2895
  %3009 = vmatpush1.msra.mxu0 %v2894
  %3010 = vmatprep.subr.mxu0 %v2893
  %3011 = vmatpush1.msra.mxu0 %v2892
  %3012 = vmatprep.subr.mxu0 %v2891
  %3013 = vmatpush1.msra.mxu0 %v2890
  %3014 = vmatprep.subr.mxu0 %v2889
  %3015 = vmatpush1.msra.mxu0 %v2888
  %3016 = vmatprep.subr.mxu0 %v2887
  %3017 = vmatpush1.msra.mxu0 %v2886
  %3018 = vmatprep.subr.mxu0 %v2885
  %3019 = vmatpush1.msra.mxu0 %v2884
  %3020 = vmatprep.subr.mxu0 %v2883
  %3021 = vmatpush1.msra.mxu0 %v2882
  %3022 = vmatprep.subr.mxu0 %v2881
  %3023 = vmatpush1.msra.mxu0 %v2880
  %3024 = vmatprep.subr.mxu0 %v2879
  %3025 = vmatpush1.msra.mxu0 %v2878
  %3026 = vmatprep.subr.mxu0 %v2877
  %3027 = vmatpush1.msra.mxu0 %v2876
  %3028 = vmatprep.subr.mxu0 %v2875
  %3029 = vmatpush1.msra.mxu0 %v2874
  %3030 = vmatprep.subr.mxu0 %v2873
  %3031 = vmatpush1.msra.mxu0 %v2872
  %3032 = vmatprep.subr.mxu0 %v2871
  %3033 = vmatpush1.msra.mxu0 %v2870
  %3034 = vmatprep.subr.mxu0 %v2933
  %3035 = vmatpush2.msra.mxu0 %v2932
  %3036 = vmatprep.subr.mxu0 %v2931
  %3037 = vmatpush2.msra.mxu0 %v2930
  %3038 = vmatprep.subr.mxu0 %v2929
  %3039 = vmatpush2.msra.mxu0 %v2928
  %3040 = vmatprep.subr.mxu0 %v2927
  %3041 = vmatpush2.msra.mxu0 %v2926
  %3042 = vmatprep.subr.mxu0 %v2925
  %3043 = vmatpush2.msra.mxu0 %v2924
  %3044 = vmatprep.subr.mxu0 %v2923
  %3045 = vmatpush2.msra.mxu0 %v2922
  %3046 = vmatprep.subr.mxu0 %v2921
  %3047 = vmatpush2.msra.mxu0 %v2920
  %3048 = vmatprep.subr.mxu0 %v2919
  %3049 = vmatpush2.msra.mxu0 %v2918
  %3050 = vmatprep.subr.mxu0 %v2917
  %3051 = vmatpush2.msra.mxu0 %v2916
  %3052 = vmatprep.subr.mxu0 %v2915
  %3053 = vmatpush2.msra.mxu0 %v2914
  %3054 = vmatprep.subr.mxu0 %v2913
  %3055 = vmatpush2.msra.mxu0 %v2912
  %3056 = vmatprep.subr.mxu0 %v2911
  %3057 = vmatpush2.msra.mxu0 %v2910
  %3058 = vmatprep.subr.mxu0 %v2909
  %3059 = vmatpush2.msra.mxu0 %v2908
  %3060 = vmatprep.subr.mxu0 %v2907
  %3061 = vmatpush2.msra.mxu0 %v2906
  %3062 = vmatprep.subr.mxu0 %v2905
  %3063 = vmatpush2.msra.mxu0 %v2904
  %3064 = vmatprep.subr.mxu0 %v2903
  %3065 = vmatpush2.msra.mxu0 %v2902
  %3066 = vmatprep.mubr.f32.mxu0 %v2957
  %3067 = vmatmul.mubr.f32.gmra.mxu0 %v2954
  %v3068 = vpop.f32.mrf.mxu0
  %v3069 = vadd.f32 0.0, %v3068
  %v3070 = vpop.f32.mrf.mxu0
  %v3071 = vadd.f32 0.0, %v3070
  %3072 = vmatprep.mubr.f32.mxu0 %v2961
  %3073 = vmatmul.mubr.f32.gmra.mxu0 %v2959
  %v3074 = vpop.f32.mrf.mxu0
  %v3075 = vadd.f32 0.0, %v3074
  %v3076 = vpop.f32.mrf.mxu0
  %v3077 = vadd.f32 0.0, %v3076
  %3078 = vmatprep.mubr.f32.mxu0 %v2965
  %3079 = vmatmul.mubr.f32.gmra.mxu0 %v2963
  %v3080 = vpop.f32.mrf.mxu0
  %v3081 = vadd.f32 0.0, %v3080
  %v3082 = vpop.f32.mrf.mxu0
  %v3083 = vadd.f32 0.0, %v3082
  %3084 = vmatprep.mubr.f32.mxu0 %v2969
  %3085 = vmatmul.mubr.f32.gmra.mxu0 %v2967
  %v3086 = vpop.f32.mrf.mxu0
  %v3087 = vadd.f32 0.0, %v3086
  %v3088 = vpop.f32.mrf.mxu0
  %v3089 = vadd.f32 0.0, %v3088
  %3090 = vmatprep.mubr.f32.mxu0 %v2973
  %3091 = vmatmul.mubr.f32.gmra.mxu0 %v2971
  %v3092 = vpop.f32.mrf.mxu0
  %v3093 = vadd.f32 0.0, %v3092
  %v3094 = vpop.f32.mrf.mxu0
  %v3095 = vadd.f32 0.0, %v3094
  %3096 = vmatprep.mubr.f32.mxu0 %v2977
  %3097 = vmatmul.mubr.f32.gmra.mxu0 %v2975
  %v3098 = vpop.f32.mrf.mxu0
  %v3099 = vadd.f32 0.0, %v3098
  %v3100 = vpop.f32.mrf.mxu0
  %v3101 = vadd.f32 0.0, %v3100
  %3102 = vmatprep.mubr.f32.mxu0 %v2981
  %3103 = vmatmul.mubr.f32.gmra.mxu0 %v2979
  %v3104 = vpop.f32.mrf.mxu0
  %v3105 = vadd.f32 0.0, %v3104
  %v3106 = vpop.f32.mrf.mxu0
  %v3107 = vadd.f32 0.0, %v3106
  %3108 = vmatprep.mubr.f32.mxu0 %v2985
  %3109 = vmatmul.mubr.f32.gmra.mxu0 %v2983
  %v3110 = vpop.f32.mrf.mxu0
  %v3111 = vadd.f32 0.0, %v3110
  %v3112 = vpop.f32.mrf.mxu0
  %v3113 = vadd.f32 0.0, %v3112
  %3114 = vdwg.mxu0
  %v3115 = vadd.f32 %v2806, %v3069
  %v3116 = vadd.f32 %v2808, %v3071
  %v3117 = vadd.f32 %v2812, %v3075
  %v3118 = vadd.f32 %v2814, %v3077
  %v3119 = vadd.f32 %v2818, %v3081
  %v3120 = vadd.f32 %v2820, %v3083
  %v3121 = vadd.f32 %v2824, %v3087
  %v3122 = vadd.f32 %v2826, %v3089
  %v3123 = vadd.f32 %v2830, %v3093
  %v3124 = vadd.f32 %v2832, %v3095
  %v3125 = vadd.f32 %v2836, %v3099
  %v3126 = vadd.f32 %v2838, %v3101
  %v3127 = vadd.f32 %v2842, %v3105
  %v3128 = vadd.f32 %v2844, %v3107
  %v3129 = vadd.f32 %v2848, %v3111
  %v3130 = vadd.f32 %v2850, %v3113
  %v3131 = vld [vmem:[%s0 + $0x90] sm:$0x80]
  %v3132 = vld [vmem:[%s0 + $0x98] sm:$0x80]
  %v3133 = vld [vmem:[%s0 + $0x110] sm:$0x7f]
  %v3134 = vld [vmem:[%s0 + $0x118] sm:$0x7f]
  %v3135 = vld [vmem:[%s779] sm:$0xff]
  %v3136 = vld [vmem:[%s779 + $0x8] sm:$0xff]
  %v3137 = vld [vmem:[%s779 + $0x10] sm:$0xff]
  %v3138 = vld [vmem:[%s779 + $0x18] sm:$0xff]
  %v3139 = vld [vmem:[%s779 + $0x20] sm:$0xff]
  %v3140 = vld [vmem:[%s779 + $0x28] sm:$0xff]
  %v3141 = vld [vmem:[%s779 + $0x30] sm:$0xff]
  %v3142 = vld [vmem:[%s779 + $0x38] sm:$0xff]
  %v3143 = vld [vmem:[%s779 + $0x40] sm:$0xff]
  %v3144 = vld [vmem:[%s779 + $0x48] sm:$0xff]
  %v3145 = vld [vmem:[%s779 + $0x50] sm:$0xff]
  %v3146 = vld [vmem:[%s779 + $0x58] sm:$0xff]
  %v3147 = vld [vmem:[%s779 + $0x60] sm:$0xff]
  %v3148 = vld [vmem:[%s779 + $0x68] sm:$0xff]
  %v3149 = vld [vmem:[%s779 + $0x70] sm:$0xff]
  %v3150 = vld [vmem:[%s779 + $0x78] sm:$0xff]
  %v3151 = vld [vmem:[%s779 + $0x80] sm:$0xff]
  %v3152 = vld [vmem:[%s779 + $0x88] sm:$0xff]
  %v3153 = vld [vmem:[%s779 + $0x90] sm:$0xff]
  %v3154 = vld [vmem:[%s779 + $0x98] sm:$0xff]
  %v3155 = vld [vmem:[%s779 + $0xa0] sm:$0xff]
  %v3156 = vld [vmem:[%s779 + $0xa8] sm:$0xff]
  %v3157 = vld [vmem:[%s779 + $0xb0] sm:$0xff]
  %v3158 = vld [vmem:[%s779 + $0xb8] sm:$0xff]
  %v3159 = vld [vmem:[%s779 + $0xc0] sm:$0xff]
  %v3160 = vld [vmem:[%s779 + $0xc8] sm:$0xff]
  %v3161 = vld [vmem:[%s779 + $0xd0] sm:$0xff]
  %v3162 = vld [vmem:[%s779 + $0xd8] sm:$0xff]
  %v3163 = vld [vmem:[%s779 + $0xe0] sm:$0xff]
  %v3164 = vld [vmem:[%s779 + $0xe8] sm:$0xff]
  %v3165 = vld [vmem:[%s779 + $0xf0] sm:$0xff]
  %v3166 = vld [vmem:[%s779 + $0xf8] sm:$0xff]
  %v3167 = vld [vmem:[%s779 + $0x100] sm:$0xff]
  %v3168 = vld [vmem:[%s779 + $0x108] sm:$0xff]
  %v3169 = vld [vmem:[%s779 + $0x110] sm:$0xff]
  %v3170 = vld [vmem:[%s779 + $0x118] sm:$0xff]
  %v3171 = vld [vmem:[%s779 + $0x120] sm:$0xff]
  %v3172 = vld [vmem:[%s779 + $0x128] sm:$0xff]
  %v3173 = vld [vmem:[%s779 + $0x130] sm:$0xff]
  %v3174 = vld [vmem:[%s779 + $0x138] sm:$0xff]
  %v3175 = vld [vmem:[%s779 + $0x140] sm:$0xff]
  %v3176 = vld [vmem:[%s779 + $0x148] sm:$0xff]
  %v3177 = vld [vmem:[%s779 + $0x150] sm:$0xff]
  %v3178 = vld [vmem:[%s779 + $0x158] sm:$0xff]
  %v3179 = vld [vmem:[%s779 + $0x160] sm:$0xff]
  %v3180 = vld [vmem:[%s779 + $0x168] sm:$0xff]
  %v3181 = vld [vmem:[%s779 + $0x170] sm:$0xff]
  %v3182 = vld [vmem:[%s779 + $0x178] sm:$0xff]
  %v3183 = vld [vmem:[%s779 + $0x180] sm:$0xff]
  %v3184 = vld [vmem:[%s779 + $0x188] sm:$0xff]
  %v3185 = vld [vmem:[%s779 + $0x190] sm:$0xff]
  %v3186 = vld [vmem:[%s779 + $0x198] sm:$0xff]
  %v3187 = vld [vmem:[%s779 + $0x1a0] sm:$0xff]
  %v3188 = vld [vmem:[%s779 + $0x1a8] sm:$0xff]
  %v3189 = vld [vmem:[%s779 + $0x1b0] sm:$0xff]
  %v3190 = vld [vmem:[%s779 + $0x1b8] sm:$0xff]
  %v3191 = vld [vmem:[%s779 + $0x1c0] sm:$0xff]
  %v3192 = vld [vmem:[%s779 + $0x1c8] sm:$0xff]
  %v3193 = vld [vmem:[%s779 + $0x1d0] sm:$0xff]
  %v3194 = vld [vmem:[%s779 + $0x1d8] sm:$0xff]
  %v3195 = vld [vmem:[%s779 + $0x1e0] sm:$0xff]
  %v3196 = vld [vmem:[%s779 + $0x1e8] sm:$0xff]
  %v3197 = vld [vmem:[%s779 + $0x1f0] sm:$0xff]
  %v3198 = vld [vmem:[%s779 + $0x1f8] sm:$0xff]
  %v3203 = vrot.slane %v3131, 7
  %v3204 = vrot.slane %v2854, 7
  %v3205 = vsel %vm330, %v3203, %v3204
  %v3206 = vrot.slane %v3132, 7
  %v3207 = vrot.slane %v2855, 7
  %v3208 = vsel %vm330, %v3206, %v3207
  %v3209 = vrot.slane %v2856, 7
  %v3210 = vsel %vm330, %v3204, %v3209
  %v3211 = vrot.slane %v2857, 7
  %v3212 = vsel %vm330, %v3207, %v3211
  %v3213 = vrot.slane %v2858, 7
  %v3214 = vsel %vm330, %v3209, %v3213
  %v3215 = vrot.slane %v2859, 7
  %v3216 = vsel %vm330, %v3211, %v3215
  %v3217 = vrot.slane %v2860, 7
  %v3218 = vsel %vm330, %v3213, %v3217
  %v3219 = vrot.slane %v2861, 7
  %v3220 = vsel %vm330, %v3215, %v3219
  %v3221 = vrot.slane %v2862, 7
  %v3222 = vsel %vm330, %v3217, %v3221
  %v3223 = vrot.slane %v2863, 7
  %v3224 = vsel %vm330, %v3219, %v3223
  %v3225 = vrot.slane %v2864, 7
  %v3226 = vsel %vm330, %v3221, %v3225
  %v3227 = vrot.slane %v2865, 7
  %v3228 = vsel %vm330, %v3223, %v3227
  %v3229 = vrot.slane %v2866, 7
  %v3230 = vsel %vm330, %v3225, %v3229
  %v3231 = vrot.slane %v2867, 7
  %v3232 = vsel %vm330, %v3227, %v3231
  %v3233 = vrot.slane %v3133, 7
  %v3234 = vsel %vm330, %v3229, %v3233
  %v3235 = vrot.slane %v3134, 7
  %v3236 = vsel %vm330, %v3231, %v3235
  %3253 = vmatprep.subr.mxu0 %v3166
  %3254 = vmatpush1.msra.mxu0 %v3165
  %3255 = vmatprep.subr.mxu0 %v3164
  %3256 = vmatpush1.msra.mxu0 %v3163
  %3257 = vmatprep.subr.mxu0 %v3162
  %3258 = vmatpush1.msra.mxu0 %v3161
  %3259 = vmatprep.subr.mxu0 %v3160
  %3260 = vmatpush1.msra.mxu0 %v3159
  %3261 = vmatprep.subr.mxu0 %v3158
  %3262 = vmatpush1.msra.mxu0 %v3157
  %3263 = vmatprep.subr.mxu0 %v3156
  %3264 = vmatpush1.msra.mxu0 %v3155
  %3265 = vmatprep.subr.mxu0 %v3154
  %3266 = vmatpush1.msra.mxu0 %v3153
  %3267 = vmatprep.subr.mxu0 %v3152
  %3268 = vmatpush1.msra.mxu0 %v3151
  %3269 = vmatprep.subr.mxu0 %v3150
  %3270 = vmatpush1.msra.mxu0 %v3149
  %3271 = vmatprep.subr.mxu0 %v3148
  %3272 = vmatpush1.msra.mxu0 %v3147
  %3273 = vmatprep.subr.mxu0 %v3146
  %3274 = vmatpush1.msra.mxu0 %v3145
  %3275 = vmatprep.subr.mxu0 %v3144
  %3276 = vmatpush1.msra.mxu0 %v3143
  %3277 = vmatprep.subr.mxu0 %v3142
  %3278 = vmatpush1.msra.mxu0 %v3141
  %3279 = vmatprep.subr.mxu0 %v3140
  %3280 = vmatpush1.msra.mxu0 %v3139
  %3281 = vmatprep.subr.mxu0 %v3138
  %3282 = vmatpush1.msra.mxu0 %v3137
  %3283 = vmatprep.subr.mxu0 %v3136
  %3284 = vmatpush1.msra.mxu0 %v3135
  %3285 = vmatprep.subr.mxu0 %v3198
  %3286 = vmatpush2.msra.mxu0 %v3197
  %3287 = vmatprep.subr.mxu0 %v3196
  %3288 = vmatpush2.msra.mxu0 %v3195
  %3289 = vmatprep.subr.mxu0 %v3194
  %3290 = vmatpush2.msra.mxu0 %v3193
  %3291 = vmatprep.subr.mxu0 %v3192
  %3292 = vmatpush2.msra.mxu0 %v3191
  %3293 = vmatprep.subr.mxu0 %v3190
  %3294 = vmatpush2.msra.mxu0 %v3189
  %3295 = vmatprep.subr.mxu0 %v3188
  %3296 = vmatpush2.msra.mxu0 %v3187
  %3297 = vmatprep.subr.mxu0 %v3186
  %3298 = vmatpush2.msra.mxu0 %v3185
  %3299 = vmatprep.subr.mxu0 %v3184
  %3300 = vmatpush2.msra.mxu0 %v3183
  %3301 = vmatprep.subr.mxu0 %v3182
  %3302 = vmatpush2.msra.mxu0 %v3181
  %3303 = vmatprep.subr.mxu0 %v3180
  %3304 = vmatpush2.msra.mxu0 %v3179
  %3305 = vmatprep.subr.mxu0 %v3178
  %3306 = vmatpush2.msra.mxu0 %v3177
  %3307 = vmatprep.subr.mxu0 %v3176
  %3308 = vmatpush2.msra.mxu0 %v3175
  %3309 = vmatprep.subr.mxu0 %v3174
  %3310 = vmatpush2.msra.mxu0 %v3173
  %3311 = vmatprep.subr.mxu0 %v3172
  %3312 = vmatpush2.msra.mxu0 %v3171
  %3313 = vmatprep.subr.mxu0 %v3170
  %3314 = vmatpush2.msra.mxu0 %v3169
  %3315 = vmatprep.subr.mxu0 %v3168
  %3316 = vmatpush2.msra.mxu0 %v3167
  %3317 = vmatprep.mubr.f32.mxu0 %v3208
  %3318 = vmatmul.mubr.f32.gmra.mxu0 %v3205
  %v3319 = vpop.f32.mrf.mxu0
  %v3320 = vadd.f32 0.0, %v3319
  %v3321 = vpop.f32.mrf.mxu0
  %v3322 = vadd.f32 0.0, %v3321
  %3323 = vmatprep.mubr.f32.mxu0 %v3212
  %3324 = vmatmul.mubr.f32.gmra.mxu0 %v3210
  %v3325 = vpop.f32.mrf.mxu0
  %v3326 = vadd.f32 0.0, %v3325
  %v3327 = vpop.f32.mrf.mxu0
  %v3328 = vadd.f32 0.0, %v3327
  %3329 = vmatprep.mubr.f32.mxu0 %v3216
  %3330 = vmatmul.mubr.f32.gmra.mxu0 %v3214
  %v3331 = vpop.f32.mrf.mxu0
  %v3332 = vadd.f32 0.0, %v3331
  %v3333 = vpop.f32.mrf.mxu0
  %v3334 = vadd.f32 0.0, %v3333
  %3335 = vmatprep.mubr.f32.mxu0 %v3220
  %3336 = vmatmul.mubr.f32.gmra.mxu0 %v3218
  %v3337 = vpop.f32.mrf.mxu0
  %v3338 = vadd.f32 0.0, %v3337
  %v3339 = vpop.f32.mrf.mxu0
  %v3340 = vadd.f32 0.0, %v3339
  %3341 = vmatprep.mubr.f32.mxu0 %v3224
  %3342 = vmatmul.mubr.f32.gmra.mxu0 %v3222
  %v3343 = vpop.f32.mrf.mxu0
  %v3344 = vadd.f32 0.0, %v3343
  %v3345 = vpop.f32.mrf.mxu0
  %v3346 = vadd.f32 0.0, %v3345
  %3347 = vmatprep.mubr.f32.mxu0 %v3228
  %3348 = vmatmul.mubr.f32.gmra.mxu0 %v3226
  %v3349 = vpop.f32.mrf.mxu0
  %v3350 = vadd.f32 0.0, %v3349
  %v3351 = vpop.f32.mrf.mxu0
  %v3352 = vadd.f32 0.0, %v3351
  %3353 = vmatprep.mubr.f32.mxu0 %v3232
  %3354 = vmatmul.mubr.f32.gmra.mxu0 %v3230
  %v3355 = vpop.f32.mrf.mxu0
  %v3356 = vadd.f32 0.0, %v3355
  %v3357 = vpop.f32.mrf.mxu0
  %v3358 = vadd.f32 0.0, %v3357
  %3359 = vmatprep.mubr.f32.mxu0 %v3236
  %3360 = vmatmul.mubr.f32.gmra.mxu0 %v3234
  %v3361 = vpop.f32.mrf.mxu0
  %v3362 = vadd.f32 0.0, %v3361
  %v3363 = vpop.f32.mrf.mxu0
  %v3364 = vadd.f32 0.0, %v3363
  %3365 = vdwg.mxu0
  %v3366 = vadd.f32 %v3115, %v3320
  %v3367 = vadd.f32 %v3116, %v3322
  %v3368 = vadd.f32 %v3117, %v3326
  %v3369 = vadd.f32 %v3118, %v3328
  %v3370 = vadd.f32 %v3119, %v3332
  %v3371 = vadd.f32 %v3120, %v3334
  %v3372 = vadd.f32 %v3121, %v3338
  %v3373 = vadd.f32 %v3122, %v3340
  %v3374 = vadd.f32 %v3123, %v3344
  %v3375 = vadd.f32 %v3124, %v3346
  %v3376 = vadd.f32 %v3125, %v3350
  %v3377 = vadd.f32 %v3126, %v3352
  %v3378 = vadd.f32 %v3127, %v3356
  %v3379 = vadd.f32 %v3128, %v3358
  %v3380 = vadd.f32 %v3129, %v3362
  %v3381 = vadd.f32 %v3130, %v3364
  %v3382 = vld [vmem:[%s0 + $0x110] sm:$0xff]
  %v3383 = vld [vmem:[%s0 + $0x118] sm:$0xff]
  %v3384 = vld [vmem:[%s1029] sm:$0xff]
  %v3385 = vld [vmem:[%s1029 + $0x8] sm:$0xff]
  %v3386 = vld [vmem:[%s1029 + $0x10] sm:$0xff]
  %v3387 = vld [vmem:[%s1029 + $0x18] sm:$0xff]
  %v3388 = vld [vmem:[%s1029 + $0x20] sm:$0xff]
  %v3389 = vld [vmem:[%s1029 + $0x28] sm:$0xff]
  %v3390 = vld [vmem:[%s1029 + $0x30] sm:$0xff]
  %v3391 = vld [vmem:[%s1029 + $0x38] sm:$0xff]
  %v3392 = vld [vmem:[%s1029 + $0x40] sm:$0xff]
  %v3393 = vld [vmem:[%s1029 + $0x48] sm:$0xff]
  %v3394 = vld [vmem:[%s1029 + $0x50] sm:$0xff]
  %v3395 = vld [vmem:[%s1029 + $0x58] sm:$0xff]
  %v3396 = vld [vmem:[%s1029 + $0x60] sm:$0xff]
  %v3397 = vld [vmem:[%s1029 + $0x68] sm:$0xff]
  %v3398 = vld [vmem:[%s1029 + $0x70] sm:$0xff]
  %v3399 = vld [vmem:[%s1029 + $0x78] sm:$0xff]
  %v3400 = vld [vmem:[%s1029 + $0x80] sm:$0xff]
  %v3401 = vld [vmem:[%s1029 + $0x88] sm:$0xff]
  %v3402 = vld [vmem:[%s1029 + $0x90] sm:$0xff]
  %v3403 = vld [vmem:[%s1029 + $0x98] sm:$0xff]
  %v3404 = vld [vmem:[%s1029 + $0xa0] sm:$0xff]
  %v3405 = vld [vmem:[%s1029 + $0xa8] sm:$0xff]
  %v3406 = vld [vmem:[%s1029 + $0xb0] sm:$0xff]
  %v3407 = vld [vmem:[%s1029 + $0xb8] sm:$0xff]
  %v3408 = vld [vmem:[%s1029 + $0xc0] sm:$0xff]
  %v3409 = vld [vmem:[%s1029 + $0xc8] sm:$0xff]
  %v3410 = vld [vmem:[%s1029 + $0xd0] sm:$0xff]
  %v3411 = vld [vmem:[%s1029 + $0xd8] sm:$0xff]
  %v3412 = vld [vmem:[%s1029 + $0xe0] sm:$0xff]
  %v3413 = vld [vmem:[%s1029 + $0xe8] sm:$0xff]
  %v3414 = vld [vmem:[%s1029 + $0xf0] sm:$0xff]
  %v3415 = vld [vmem:[%s1029 + $0xf8] sm:$0xff]
  %v3416 = vld [vmem:[%s1029 + $0x100] sm:$0xff]
  %v3417 = vld [vmem:[%s1029 + $0x108] sm:$0xff]
  %v3418 = vld [vmem:[%s1029 + $0x110] sm:$0xff]
  %v3419 = vld [vmem:[%s1029 + $0x118] sm:$0xff]
  %v3420 = vld [vmem:[%s1029 + $0x120] sm:$0xff]
  %v3421 = vld [vmem:[%s1029 + $0x128] sm:$0xff]
  %v3422 = vld [vmem:[%s1029 + $0x130] sm:$0xff]
  %v3423 = vld [vmem:[%s1029 + $0x138] sm:$0xff]
  %v3424 = vld [vmem:[%s1029 + $0x140] sm:$0xff]
  %v3425 = vld [vmem:[%s1029 + $0x148] sm:$0xff]
  %v3426 = vld [vmem:[%s1029 + $0x150] sm:$0xff]
  %v3427 = vld [vmem:[%s1029 + $0x158] sm:$0xff]
  %v3428 = vld [vmem:[%s1029 + $0x160] sm:$0xff]
  %v3429 = vld [vmem:[%s1029 + $0x168] sm:$0xff]
  %v3430 = vld [vmem:[%s1029 + $0x170] sm:$0xff]
  %v3431 = vld [vmem:[%s1029 + $0x178] sm:$0xff]
  %v3432 = vld [vmem:[%s1029 + $0x180] sm:$0xff]
  %v3433 = vld [vmem:[%s1029 + $0x188] sm:$0xff]
  %v3434 = vld [vmem:[%s1029 + $0x190] sm:$0xff]
  %v3435 = vld [vmem:[%s1029 + $0x198] sm:$0xff]
  %v3436 = vld [vmem:[%s1029 + $0x1a0] sm:$0xff]
  %v3437 = vld [vmem:[%s1029 + $0x1a8] sm:$0xff]
  %v3438 = vld [vmem:[%s1029 + $0x1b0] sm:$0xff]
  %v3439 = vld [vmem:[%s1029 + $0x1b8] sm:$0xff]
  %v3440 = vld [vmem:[%s1029 + $0x1c0] sm:$0xff]
  %v3441 = vld [vmem:[%s1029 + $0x1c8] sm:$0xff]
  %v3442 = vld [vmem:[%s1029 + $0x1d0] sm:$0xff]
  %v3443 = vld [vmem:[%s1029 + $0x1d8] sm:$0xff]
  %v3444 = vld [vmem:[%s1029 + $0x1e0] sm:$0xff]
  %v3445 = vld [vmem:[%s1029 + $0x1e8] sm:$0xff]
  %v3446 = vld [vmem:[%s1029 + $0x1f0] sm:$0xff]
  %v3447 = vld [vmem:[%s1029 + $0x1f8] sm:$0xff]
  %3448 = vmatprep.subr.mxu0 %v3415
  %3449 = vmatpush1.msra.mxu0 %v3414
  %3450 = vmatprep.subr.mxu0 %v3413
  %3451 = vmatpush1.msra.mxu0 %v3412
  %3452 = vmatprep.subr.mxu0 %v3411
  %3453 = vmatpush1.msra.mxu0 %v3410
  %3454 = vmatprep.subr.mxu0 %v3409
  %3455 = vmatpush1.msra.mxu0 %v3408
  %3456 = vmatprep.subr.mxu0 %v3407
  %3457 = vmatpush1.msra.mxu0 %v3406
  %3458 = vmatprep.subr.mxu0 %v3405
  %3459 = vmatpush1.msra.mxu0 %v3404
  %3460 = vmatprep.subr.mxu0 %v3403
  %3461 = vmatpush1.msra.mxu0 %v3402
  %3462 = vmatprep.subr.mxu0 %v3401
  %3463 = vmatpush1.msra.mxu0 %v3400
  %3464 = vmatprep.subr.mxu0 %v3399
  %3465 = vmatpush1.msra.mxu0 %v3398
  %3466 = vmatprep.subr.mxu0 %v3397
  %3467 = vmatpush1.msra.mxu0 %v3396
  %3468 = vmatprep.subr.mxu0 %v3395
  %3469 = vmatpush1.msra.mxu0 %v3394
  %3470 = vmatprep.subr.mxu0 %v3393
  %3471 = vmatpush1.msra.mxu0 %v3392
  %3472 = vmatprep.subr.mxu0 %v3391
  %3473 = vmatpush1.msra.mxu0 %v3390
  %3474 = vmatprep.subr.mxu0 %v3389
  %3475 = vmatpush1.msra.mxu0 %v3388
  %3476 = vmatprep.subr.mxu0 %v3387
  %3477 = vmatpush1.msra.mxu0 %v3386
  %3478 = vmatprep.subr.mxu0 %v3385
  %3479 = vmatpush1.msra.mxu0 %v3384
  %3480 = vmatprep.subr.mxu0 %v3447
  %3481 = vmatpush2.msra.mxu0 %v3446
  %3482 = vmatprep.subr.mxu0 %v3445
  %3483 = vmatpush2.msra.mxu0 %v3444
  %3484 = vmatprep.subr.mxu0 %v3443
  %3485 = vmatpush2.msra.mxu0 %v3442
  %3486 = vmatprep.subr.mxu0 %v3441
  %3487 = vmatpush2.msra.mxu0 %v3440
  %3488 = vmatprep.subr.mxu0 %v3439
  %3489 = vmatpush2.msra.mxu0 %v3438
  %3490 = vmatprep.subr.mxu0 %v3437
  %3491 = vmatpush2.msra.mxu0 %v3436
  %3492 = vmatprep.subr.mxu0 %v3435
  %3493 = vmatpush2.msra.mxu0 %v3434
  %3494 = vmatprep.subr.mxu0 %v3433
  %3495 = vmatpush2.msra.mxu0 %v3432
  %3496 = vmatprep.subr.mxu0 %v3431
  %3497 = vmatpush2.msra.mxu0 %v3430
  %3498 = vmatprep.subr.mxu0 %v3429
  %3499 = vmatpush2.msra.mxu0 %v3428
  %3500 = vmatprep.subr.mxu0 %v3427
  %3501 = vmatpush2.msra.mxu0 %v3426
  %3502 = vmatprep.subr.mxu0 %v3425
  %3503 = vmatpush2.msra.mxu0 %v3424
  %3504 = vmatprep.subr.mxu0 %v3423
  %3505 = vmatpush2.msra.mxu0 %v3422
  %3506 = vmatprep.subr.mxu0 %v3421
  %3507 = vmatpush2.msra.mxu0 %v3420
  %3508 = vmatprep.subr.mxu0 %v3419
  %3509 = vmatpush2.msra.mxu0 %v3418
  %3510 = vmatprep.subr.mxu0 %v3417
  %3511 = vmatpush2.msra.mxu0 %v3416
  %3512 = vmatprep.mubr.f32.mxu0 %v2855
  %3513 = vmatmul.mubr.f32.gmra.mxu0 %v2854
  %v3514 = vpop.f32.mrf.mxu0
  %v3515 = vadd.f32 0.0, %v3514
  %v3516 = vpop.f32.mrf.mxu0
  %v3517 = vadd.f32 0.0, %v3516
  %3518 = vmatprep.mubr.f32.mxu0 %v2857
  %3519 = vmatmul.mubr.f32.gmra.mxu0 %v2856
  %v3520 = vpop.f32.mrf.mxu0
  %v3521 = vadd.f32 0.0, %v3520
  %v3522 = vpop.f32.mrf.mxu0
  %v3523 = vadd.f32 0.0, %v3522
  %3524 = vmatprep.mubr.f32.mxu0 %v2859
  %3525 = vmatmul.mubr.f32.gmra.mxu0 %v2858
  %v3526 = vpop.f32.mrf.mxu0
  %v3527 = vadd.f32 0.0, %v3526
  %v3528 = vpop.f32.mrf.mxu0
  %v3529 = vadd.f32 0.0, %v3528
  %3530 = vmatprep.mubr.f32.mxu0 %v2861
  %3531 = vmatmul.mubr.f32.gmra.mxu0 %v2860
  %v3532 = vpop.f32.mrf.mxu0
  %v3533 = vadd.f32 0.0, %v3532
  %v3534 = vpop.f32.mrf.mxu0
  %v3535 = vadd.f32 0.0, %v3534
  %3536 = vmatprep.mubr.f32.mxu0 %v2863
  %3537 = vmatmul.mubr.f32.gmra.mxu0 %v2862
  %v3538 = vpop.f32.mrf.mxu0
  %v3539 = vadd.f32 0.0, %v3538
  %v3540 = vpop.f32.mrf.mxu0
  %v3541 = vadd.f32 0.0, %v3540
  %3542 = vmatprep.mubr.f32.mxu0 %v2865
  %3543 = vmatmul.mubr.f32.gmra.mxu0 %v2864
  %v3544 = vpop.f32.mrf.mxu0
  %v3545 = vadd.f32 0.0, %v3544
  %v3546 = vpop.f32.mrf.mxu0
  %v3547 = vadd.f32 0.0, %v3546
  %3548 = vmatprep.mubr.f32.mxu0 %v2867
  %3549 = vmatmul.mubr.f32.gmra.mxu0 %v2866
  %v3550 = vpop.f32.mrf.mxu0
  %v3551 = vadd.f32 0.0, %v3550
  %v3552 = vpop.f32.mrf.mxu0
  %v3553 = vadd.f32 0.0, %v3552
  %3554 = vmatprep.mubr.f32.mxu0 %v3383
  %3555 = vmatmul.mubr.f32.gmra.mxu0 %v3382
  %v3556 = vpop.f32.mrf.mxu0
  %v3557 = vadd.f32 0.0, %v3556
  %v3558 = vpop.f32.mrf.mxu0
  %v3559 = vadd.f32 0.0, %v3558
  %3560 = vdwg.mxu0
  %v3561 = vadd.f32 %v3366, %v3515
  %v3562 = vadd.f32 %v3367, %v3517
  %v3563 = vadd.f32 %v3368, %v3521
  %v3564 = vadd.f32 %v3369, %v3523
  %v3565 = vadd.f32 %v3370, %v3527
  %v3566 = vadd.f32 %v3371, %v3529
  %v3567 = vadd.f32 %v3372, %v3533
  %v3568 = vadd.f32 %v3373, %v3535
  %v3569 = vadd.f32 %v3374, %v3539
  %v3570 = vadd.f32 %v3375, %v3541
  %v3571 = vadd.f32 %v3376, %v3545
  %v3572 = vadd.f32 %v3377, %v3547
  %v3573 = vadd.f32 %v3378, %v3551
  %v3574 = vadd.f32 %v3379, %v3553
  %v3575 = vadd.f32 %v3380, %v3557
  %v3576 = vadd.f32 %v3381, %v3559
  %v3577 = vld [vmem:[%s0 + $0xa0] sm:$0xfe]
  %v3578 = vld [vmem:[%s0 + $0xa8] sm:$0xfe]
  %v3579 = vld [vmem:[%s0 + $0xb0] sm:$0xff]
  %v3580 = vld [vmem:[%s0 + $0xb8] sm:$0xff]
  %v3581 = vld [vmem:[%s0 + $0xc0] sm:$0xff]
  %v3582 = vld [vmem:[%s0 + $0xc8] sm:$0xff]
  %v3583 = vld [vmem:[%s0 + $0xd0] sm:$0xff]
  %v3584 = vld [vmem:[%s0 + $0xd8] sm:$0xff]
  %v3585 = vld [vmem:[%s0 + $0xe0] sm:$0xff]
  %v3586 = vld [vmem:[%s0 + $0xe8] sm:$0xff]
  %v3587 = vld [vmem:[%s0 + $0xf0] sm:$0xff]
  %v3588 = vld [vmem:[%s0 + $0xf8] sm:$0xff]
  %v3589 = vld [vmem:[%s0 + $0x100] sm:$0xff]
  %v3590 = vld [vmem:[%s0 + $0x108] sm:$0xff]
  %v3591 = vld [vmem:[%s0 + $0x110] sm:$0xff]
  %v3592 = vld [vmem:[%s0 + $0x118] sm:$0xff]
  %v3593 = vld [vmem:[%s0 + $0x120] sm:$0x1]
  %v3594 = vld [vmem:[%s0 + $0x128] sm:$0x1]
  %v3595 = vld [vmem:[%s1241] sm:$0xff]
  %v3596 = vld [vmem:[%s1241 + $0x8] sm:$0xff]
  %v3597 = vld [vmem:[%s1241 + $0x10] sm:$0xff]
  %v3598 = vld [vmem:[%s1241 + $0x18] sm:$0xff]
  %v3599 = vld [vmem:[%s1241 + $0x20] sm:$0xff]
  %v3600 = vld [vmem:[%s1241 + $0x28] sm:$0xff]
  %v3601 = vld [vmem:[%s1241 + $0x30] sm:$0xff]
  %v3602 = vld [vmem:[%s1241 + $0x38] sm:$0xff]
  %v3603 = vld [vmem:[%s1241 + $0x40] sm:$0xff]
  %v3604 = vld [vmem:[%s1241 + $0x48] sm:$0xff]
  %v3605 = vld [vmem:[%s1241 + $0x50] sm:$0xff]
  %v3606 = vld [vmem:[%s1241 + $0x58] sm:$0xff]
  %v3607 = vld [vmem:[%s1241 + $0x60] sm:$0xff]
  %v3608 = vld [vmem:[%s1241 + $0x68] sm:$0xff]
  %v3609 = vld [vmem:[%s1241 + $0x70] sm:$0xff]
  %v3610 = vld [vmem:[%s1241 + $0x78] sm:$0xff]
  %v3611 = vld [vmem:[%s1241 + $0x80] sm:$0xff]
  %v3612 = vld [vmem:[%s1241 + $0x88] sm:$0xff]
  %v3613 = vld [vmem:[%s1241 + $0x90] sm:$0xff]
  %v3614 = vld [vmem:[%s1241 + $0x98] sm:$0xff]
  %v3615 = vld [vmem:[%s1241 + $0xa0] sm:$0xff]
  %v3616 = vld [vmem:[%s1241 + $0xa8] sm:$0xff]
  %v3617 = vld [vmem:[%s1241 + $0xb0] sm:$0xff]
  %v3618 = vld [vmem:[%s1241 + $0xb8] sm:$0xff]
  %v3619 = vld [vmem:[%s1241 + $0xc0] sm:$0xff]
  %v3620 = vld [vmem:[%s1241 + $0xc8] sm:$0xff]
  %v3621 = vld [vmem:[%s1241 + $0xd0] sm:$0xff]
  %v3622 = vld [vmem:[%s1241 + $0xd8] sm:$0xff]
  %v3623 = vld [vmem:[%s1241 + $0xe0] sm:$0xff]
  %v3624 = vld [vmem:[%s1241 + $0xe8] sm:$0xff]
  %v3625 = vld [vmem:[%s1241 + $0xf0] sm:$0xff]
  %v3626 = vld [vmem:[%s1241 + $0xf8] sm:$0xff]
  %v3627 = vld [vmem:[%s1241 + $0x100] sm:$0xff]
  %v3628 = vld [vmem:[%s1241 + $0x108] sm:$0xff]
  %v3629 = vld [vmem:[%s1241 + $0x110] sm:$0xff]
  %v3630 = vld [vmem:[%s1241 + $0x118] sm:$0xff]
  %v3631 = vld [vmem:[%s1241 + $0x120] sm:$0xff]
  %v3632 = vld [vmem:[%s1241 + $0x128] sm:$0xff]
  %v3633 = vld [vmem:[%s1241 + $0x130] sm:$0xff]
  %v3634 = vld [vmem:[%s1241 + $0x138] sm:$0xff]
  %v3635 = vld [vmem:[%s1241 + $0x140] sm:$0xff]
  %v3636 = vld [vmem:[%s1241 + $0x148] sm:$0xff]
  %v3637 = vld [vmem:[%s1241 + $0x150] sm:$0xff]
  %v3638 = vld [vmem:[%s1241 + $0x158] sm:$0xff]
  %v3639 = vld [vmem:[%s1241 + $0x160] sm:$0xff]
  %v3640 = vld [vmem:[%s1241 + $0x168] sm:$0xff]
  %v3641 = vld [vmem:[%s1241 + $0x170] sm:$0xff]
  %v3642 = vld [vmem:[%s1241 + $0x178] sm:$0xff]
  %v3643 = vld [vmem:[%s1241 + $0x180] sm:$0xff]
  %v3644 = vld [vmem:[%s1241 + $0x188] sm:$0xff]
  %v3645 = vld [vmem:[%s1241 + $0x190] sm:$0xff]
  %v3646 = vld [vmem:[%s1241 + $0x198] sm:$0xff]
  %v3647 = vld [vmem:[%s1241 + $0x1a0] sm:$0xff]
  %v3648 = vld [vmem:[%s1241 + $0x1a8] sm:$0xff]
  %v3649 = vld [vmem:[%s1241 + $0x1b0] sm:$0xff]
  %v3650 = vld [vmem:[%s1241 + $0x1b8] sm:$0xff]
  %v3651 = vld [vmem:[%s1241 + $0x1c0] sm:$0xff]
  %v3652 = vld [vmem:[%s1241 + $0x1c8] sm:$0xff]
  %v3653 = vld [vmem:[%s1241 + $0x1d0] sm:$0xff]
  %v3654 = vld [vmem:[%s1241 + $0x1d8] sm:$0xff]
  %v3655 = vld [vmem:[%s1241 + $0x1e0] sm:$0xff]
  %v3656 = vld [vmem:[%s1241 + $0x1e8] sm:$0xff]
  %v3657 = vld [vmem:[%s1241 + $0x1f0] sm:$0xff]
  %v3658 = vld [vmem:[%s1241 + $0x1f8] sm:$0xff]
  %v3677 = vrot.slane %v3577, 1
  %v3678 = vrot.slane %v3579, 1
  %v3679 = vsel %vm595, %v3677, %v3678
  %v3680 = vrot.slane %v3578, 1
  %v3681 = vrot.slane %v3580, 1
  %v3682 = vsel %vm595, %v3680, %v3681
  %v3683 = vrot.slane %v3581, 1
  %v3684 = vsel %vm595, %v3678, %v3683
  %v3685 = vrot.slane %v3582, 1
  %v3686 = vsel %vm595, %v3681, %v3685
  %v3687 = vrot.slane %v3583, 1
  %v3688 = vsel %vm595, %v3683, %v3687
  %v3689 = vrot.slane %v3584, 1
  %v3690 = vsel %vm595, %v3685, %v3689
  %v3691 = vrot.slane %v3585, 1
  %v3692 = vsel %vm595, %v3687, %v3691
  %v3693 = vrot.slane %v3586, 1
  %v3694 = vsel %vm595, %v3689, %v3693
  %v3695 = vrot.slane %v3587, 1
  %v3696 = vsel %vm595, %v3691, %v3695
  %v3697 = vrot.slane %v3588, 1
  %v3698 = vsel %vm595, %v3693, %v3697
  %v3699 = vrot.slane %v3589, 1
  %v3700 = vsel %vm595, %v3695, %v3699
  %v3701 = vrot.slane %v3590, 1
  %v3702 = vsel %vm595, %v3697, %v3701
  %v3703 = vrot.slane %v3591, 1
  %v3704 = vsel %vm595, %v3699, %v3703
  %v3705 = vrot.slane %v3592, 1
  %v3706 = vsel %vm595, %v3701, %v3705
  %v3707 = vrot.slane %v3593, 1
  %v3708 = vsel %vm595, %v3703, %v3707
  %v3709 = vrot.slane %v3594, 1
  %v3710 = vsel %vm595, %v3705, %v3709
  %3727 = vmatprep.subr.mxu0 %v3626
  %3728 = vmatpush1.msra.mxu0 %v3625
  %3729 = vmatprep.subr.mxu0 %v3624
  %3730 = vmatpush1.msra.mxu0 %v3623
  %3731 = vmatprep.subr.mxu0 %v3622
  %3732 = vmatpush1.msra.mxu0 %v3621
  %3733 = vmatprep.subr.mxu0 %v3620
  %3734 = vmatpush1.msra.mxu0 %v3619
  %3735 = vmatprep.subr.mxu0 %v3618
  %3736 = vmatpush1.msra.mxu0 %v3617
  %3737 = vmatprep.subr.mxu0 %v3616
  %3738 = vmatpush1.msra.mxu0 %v3615
  %3739 = vmatprep.subr.mxu0 %v3614
  %3740 = vmatpush1.msra.mxu0 %v3613
  %3741 = vmatprep.subr.mxu0 %v3612
  %3742 = vmatpush1.msra.mxu0 %v3611
  %3743 = vmatprep.subr.mxu0 %v3610
  %3744 = vmatpush1.msra.mxu0 %v3609
  %3745 = vmatprep.subr.mxu0 %v3608
  %3746 = vmatpush1.msra.mxu0 %v3607
  %3747 = vmatprep.subr.mxu0 %v3606
  %3748 = vmatpush1.msra.mxu0 %v3605
  %3749 = vmatprep.subr.mxu0 %v3604
  %3750 = vmatpush1.msra.mxu0 %v3603
  %3751 = vmatprep.subr.mxu0 %v3602
  %3752 = vmatpush1.msra.mxu0 %v3601
  %3753 = vmatprep.subr.mxu0 %v3600
  %3754 = vmatpush1.msra.mxu0 %v3599
  %3755 = vmatprep.subr.mxu0 %v3598
  %3756 = vmatpush1.msra.mxu0 %v3597
  %3757 = vmatprep.subr.mxu0 %v3596
  %3758 = vmatpush1.msra.mxu0 %v3595
  %3759 = vmatprep.subr.mxu0 %v3658
  %3760 = vmatpush2.msra.mxu0 %v3657
  %3761 = vmatprep.subr.mxu0 %v3656
  %3762 = vmatpush2.msra.mxu0 %v3655
  %3763 = vmatprep.subr.mxu0 %v3654
  %3764 = vmatpush2.msra.mxu0 %v3653
  %3765 = vmatprep.subr.mxu0 %v3652
  %3766 = vmatpush2.msra.mxu0 %v3651
  %3767 = vmatprep.subr.mxu0 %v3650
  %3768 = vmatpush2.msra.mxu0 %v3649
  %3769 = vmatprep.subr.mxu0 %v3648
  %3770 = vmatpush2.msra.mxu0 %v3647
  %3771 = vmatprep.subr.mxu0 %v3646
  %3772 = vmatpush2.msra.mxu0 %v3645
  %3773 = vmatprep.subr.mxu0 %v3644
  %3774 = vmatpush2.msra.mxu0 %v3643
  %3775 = vmatprep.subr.mxu0 %v3642
  %3776 = vmatpush2.msra.mxu0 %v3641
  %3777 = vmatprep.subr.mxu0 %v3640
  %3778 = vmatpush2.msra.mxu0 %v3639
  %3779 = vmatprep.subr.mxu0 %v3638
  %3780 = vmatpush2.msra.mxu0 %v3637
  %3781 = vmatprep.subr.mxu0 %v3636
  %3782 = vmatpush2.msra.mxu0 %v3635
  %3783 = vmatprep.subr.mxu0 %v3634
  %3784 = vmatpush2.msra.mxu0 %v3633
  %3785 = vmatprep.subr.mxu0 %v3632
  %3786 = vmatpush2.msra.mxu0 %v3631
  %3787 = vmatprep.subr.mxu0 %v3630
  %3788 = vmatpush2.msra.mxu0 %v3629
  %3789 = vmatprep.subr.mxu0 %v3628
  %3790 = vmatpush2.msra.mxu0 %v3627
  %3791 = vmatprep.mubr.f32.mxu0 %v3682
  %3792 = vmatmul.mubr.f32.gmra.mxu0 %v3679
  %v3793 = vpop.f32.mrf.mxu0
  %v3794 = vadd.f32 0.0, %v3793
  %v3795 = vpop.f32.mrf.mxu0
  %v3796 = vadd.f32 0.0, %v3795
  %3797 = vmatprep.mubr.f32.mxu0 %v3686
  %3798 = vmatmul.mubr.f32.gmra.mxu0 %v3684
  %v3799 = vpop.f32.mrf.mxu0
  %v3800 = vadd.f32 0.0, %v3799
  %v3801 = vpop.f32.mrf.mxu0
  %v3802 = vadd.f32 0.0, %v3801
  %3803 = vmatprep.mubr.f32.mxu0 %v3690
  %3804 = vmatmul.mubr.f32.gmra.mxu0 %v3688
  %v3805 = vpop.f32.mrf.mxu0
  %v3806 = vadd.f32 0.0, %v3805
  %v3807 = vpop.f32.mrf.mxu0
  %v3808 = vadd.f32 0.0, %v3807
  %3809 = vmatprep.mubr.f32.mxu0 %v3694
  %3810 = vmatmul.mubr.f32.gmra.mxu0 %v3692
  %v3811 = vpop.f32.mrf.mxu0
  %v3812 = vadd.f32 0.0, %v3811
  %v3813 = vpop.f32.mrf.mxu0
  %v3814 = vadd.f32 0.0, %v3813
  %3815 = vmatprep.mubr.f32.mxu0 %v3698
  %3816 = vmatmul.mubr.f32.gmra.mxu0 %v3696
  %v3817 = vpop.f32.mrf.mxu0
  %v3818 = vadd.f32 0.0, %v3817
  %v3819 = vpop.f32.mrf.mxu0
  %v3820 = vadd.f32 0.0, %v3819
  %3821 = vmatprep.mubr.f32.mxu0 %v3702
  %3822 = vmatmul.mubr.f32.gmra.mxu0 %v3700
  %v3823 = vpop.f32.mrf.mxu0
  %v3824 = vadd.f32 0.0, %v3823
  %v3825 = vpop.f32.mrf.mxu0
  %v3826 = vadd.f32 0.0, %v3825
  %3827 = vmatprep.mubr.f32.mxu0 %v3706
  %3828 = vmatmul.mubr.f32.gmra.mxu0 %v3704
  %v3829 = vpop.f32.mrf.mxu0
  %v3830 = vadd.f32 0.0, %v3829
  %v3831 = vpop.f32.mrf.mxu0
  %v3832 = vadd.f32 0.0, %v3831
  %3833 = vmatprep.mubr.f32.mxu0 %v3710
  %3834 = vmatmul.mubr.f32.gmra.mxu0 %v3708
  %v3835 = vpop.f32.mrf.mxu0
  %v3836 = vadd.f32 0.0, %v3835
  %v3837 = vpop.f32.mrf.mxu0
  %v3838 = vadd.f32 0.0, %v3837
  %3839 = vdwg.mxu0
  %v3840 = vadd.f32 %v3561, %v3794
  %v3841 = vadd.f32 %v3562, %v3796
  %v3842 = vadd.f32 %v3563, %v3800
  %v3843 = vadd.f32 %v3564, %v3802
  %v3844 = vadd.f32 %v3565, %v3806
  %v3845 = vadd.f32 %v3566, %v3808
  %v3846 = vadd.f32 %v3567, %v3812
  %v3847 = vadd.f32 %v3568, %v3814
  %v3848 = vadd.f32 %v3569, %v3818
  %v3849 = vadd.f32 %v3570, %v3820
  %v3850 = vadd.f32 %v3571, %v3824
  %v3851 = vadd.f32 %v3572, %v3826
  %v3852 = vadd.f32 %v3573, %v3830
  %v3853 = vadd.f32 %v3574, %v3832
  %v3854 = vadd.f32 %v3575, %v3836
  %v3855 = vadd.f32 %v3576, %v3838
  %v3856 = vld [vmem:[%s0 + $0xa0] sm:$0x80]
  %v3857 = vld [vmem:[%s0 + $0xa8] sm:$0x80]
  %v3858 = vld [vmem:[%s0 + $0x120] sm:$0x7f]
  %v3859 = vld [vmem:[%s0 + $0x128] sm:$0x7f]
  %v3860 = vld [vmem:[%s1507] sm:$0xff]
  %v3861 = vld [vmem:[%s1507 + $0x8] sm:$0xff]
  %v3862 = vld [vmem:[%s1507 + $0x10] sm:$0xff]
  %v3863 = vld [vmem:[%s1507 + $0x18] sm:$0xff]
  %v3864 = vld [vmem:[%s1507 + $0x20] sm:$0xff]
  %v3865 = vld [vmem:[%s1507 + $0x28] sm:$0xff]
  %v3866 = vld [vmem:[%s1507 + $0x30] sm:$0xff]
  %v3867 = vld [vmem:[%s1507 + $0x38] sm:$0xff]
  %v3868 = vld [vmem:[%s1507 + $0x40] sm:$0xff]
  %v3869 = vld [vmem:[%s1507 + $0x48] sm:$0xff]
  %v3870 = vld [vmem:[%s1507 + $0x50] sm:$0xff]
  %v3871 = vld [vmem:[%s1507 + $0x58] sm:$0xff]
  %v3872 = vld [vmem:[%s1507 + $0x60] sm:$0xff]
  %v3873 = vld [vmem:[%s1507 + $0x68] sm:$0xff]
  %v3874 = vld [vmem:[%s1507 + $0x70] sm:$0xff]
  %v3875 = vld [vmem:[%s1507 + $0x78] sm:$0xff]
  %v3876 = vld [vmem:[%s1507 + $0x80] sm:$0xff]
  %v3877 = vld [vmem:[%s1507 + $0x88] sm:$0xff]
  %v3878 = vld [vmem:[%s1507 + $0x90] sm:$0xff]
  %v3879 = vld [vmem:[%s1507 + $0x98] sm:$0xff]
  %v3880 = vld [vmem:[%s1507 + $0xa0] sm:$0xff]
  %v3881 = vld [vmem:[%s1507 + $0xa8] sm:$0xff]
  %v3882 = vld [vmem:[%s1507 + $0xb0] sm:$0xff]
  %v3883 = vld [vmem:[%s1507 + $0xb8] sm:$0xff]
  %v3884 = vld [vmem:[%s1507 + $0xc0] sm:$0xff]
  %v3885 = vld [vmem:[%s1507 + $0xc8] sm:$0xff]
  %v3886 = vld [vmem:[%s1507 + $0xd0] sm:$0xff]
  %v3887 = vld [vmem:[%s1507 + $0xd8] sm:$0xff]
  %v3888 = vld [vmem:[%s1507 + $0xe0] sm:$0xff]
  %v3889 = vld [vmem:[%s1507 + $0xe8] sm:$0xff]
  %v3890 = vld [vmem:[%s1507 + $0xf0] sm:$0xff]
  %v3891 = vld [vmem:[%s1507 + $0xf8] sm:$0xff]
  %v3892 = vld [vmem:[%s1507 + $0x100] sm:$0xff]
  %v3893 = vld [vmem:[%s1507 + $0x108] sm:$0xff]
  %v3894 = vld [vmem:[%s1507 + $0x110] sm:$0xff]
  %v3895 = vld [vmem:[%s1507 + $0x118] sm:$0xff]
  %v3896 = vld [vmem:[%s1507 + $0x120] sm:$0xff]
  %v3897 = vld [vmem:[%s1507 + $0x128] sm:$0xff]
  %v3898 = vld [vmem:[%s1507 + $0x130] sm:$0xff]
  %v3899 = vld [vmem:[%s1507 + $0x138] sm:$0xff]
  %v3900 = vld [vmem:[%s1507 + $0x140] sm:$0xff]
  %v3901 = vld [vmem:[%s1507 + $0x148] sm:$0xff]
  %v3902 = vld [vmem:[%s1507 + $0x150] sm:$0xff]
  %v3903 = vld [vmem:[%s1507 + $0x158] sm:$0xff]
  %v3904 = vld [vmem:[%s1507 + $0x160] sm:$0xff]
  %v3905 = vld [vmem:[%s1507 + $0x168] sm:$0xff]
  %v3906 = vld [vmem:[%s1507 + $0x170] sm:$0xff]
  %v3907 = vld [vmem:[%s1507 + $0x178] sm:$0xff]
  %v3908 = vld [vmem:[%s1507 + $0x180] sm:$0xff]
  %v3909 = vld [vmem:[%s1507 + $0x188] sm:$0xff]
  %v3910 = vld [vmem:[%s1507 + $0x190] sm:$0xff]
  %v3911 = vld [vmem:[%s1507 + $0x198] sm:$0xff]
  %v3912 = vld [vmem:[%s1507 + $0x1a0] sm:$0xff]
  %v3913 = vld [vmem:[%s1507 + $0x1a8] sm:$0xff]
  %v3914 = vld [vmem:[%s1507 + $0x1b0] sm:$0xff]
  %v3915 = vld [vmem:[%s1507 + $0x1b8] sm:$0xff]
  %v3916 = vld [vmem:[%s1507 + $0x1c0] sm:$0xff]
  %v3917 = vld [vmem:[%s1507 + $0x1c8] sm:$0xff]
  %v3918 = vld [vmem:[%s1507 + $0x1d0] sm:$0xff]
  %v3919 = vld [vmem:[%s1507 + $0x1d8] sm:$0xff]
  %v3920 = vld [vmem:[%s1507 + $0x1e0] sm:$0xff]
  %v3921 = vld [vmem:[%s1507 + $0x1e8] sm:$0xff]
  %v3922 = vld [vmem:[%s1507 + $0x1f0] sm:$0xff]
  %v3923 = vld [vmem:[%s1507 + $0x1f8] sm:$0xff]
  %v3928 = vrot.slane %v3856, 7
  %v3929 = vrot.slane %v3579, 7
  %v3930 = vsel %vm330, %v3928, %v3929
  %v3931 = vrot.slane %v3857, 7
  %v3932 = vrot.slane %v3580, 7
  %v3933 = vsel %vm330, %v3931, %v3932
  %v3934 = vrot.slane %v3581, 7
  %v3935 = vsel %vm330, %v3929, %v3934
  %v3936 = vrot.slane %v3582, 7
  %v3937 = vsel %vm330, %v3932, %v3936
  %v3938 = vrot.slane %v3583, 7
  %v3939 = vsel %vm330, %v3934, %v3938
  %v3940 = vrot.slane %v3584, 7
  %v3941 = vsel %vm330, %v3936, %v3940
  %v3942 = vrot.slane %v3585, 7
  %v3943 = vsel %vm330, %v3938, %v3942
  %v3944 = vrot.slane %v3586, 7
  %v3945 = vsel %vm330, %v3940, %v3944
  %v3946 = vrot.slane %v3587, 7
  %v3947 = vsel %vm330, %v3942, %v3946
  %v3948 = vrot.slane %v3588, 7
  %v3949 = vsel %vm330, %v3944, %v3948
  %v3950 = vrot.slane %v3589, 7
  %v3951 = vsel %vm330, %v3946, %v3950
  %v3952 = vrot.slane %v3590, 7
  %v3953 = vsel %vm330, %v3948, %v3952
  %v3954 = vrot.slane %v3591, 7
  %v3955 = vsel %vm330, %v3950, %v3954
  %v3956 = vrot.slane %v3592, 7
  %v3957 = vsel %vm330, %v3952, %v3956
  %v3958 = vrot.slane %v3858, 7
  %v3959 = vsel %vm330, %v3954, %v3958
  %v3960 = vrot.slane %v3859, 7
  %v3961 = vsel %vm330, %v3956, %v3960
  %3978 = vmatprep.subr.mxu0 %v3891
  %3979 = vmatpush1.msra.mxu0 %v3890
  %3980 = vmatprep.subr.mxu0 %v3889
  %3981 = vmatpush1.msra.mxu0 %v3888
  %3982 = vmatprep.subr.mxu0 %v3887
  %3983 = vmatpush1.msra.mxu0 %v3886
  %3984 = vmatprep.subr.mxu0 %v3885
  %3985 = vmatpush1.msra.mxu0 %v3884
  %3986 = vmatprep.subr.mxu0 %v3883
  %3987 = vmatpush1.msra.mxu0 %v3882
  %3988 = vmatprep.subr.mxu0 %v3881
  %3989 = vmatpush1.msra.mxu0 %v3880
  %3990 = vmatprep.subr.mxu0 %v3879
  %3991 = vmatpush1.msra.mxu0 %v3878
  %3992 = vmatprep.subr.mxu0 %v3877
  %3993 = vmatpush1.msra.mxu0 %v3876
  %3994 = vmatprep.subr.mxu0 %v3875
  %3995 = vmatpush1.msra.mxu0 %v3874
  %3996 = vmatprep.subr.mxu0 %v3873
  %3997 = vmatpush1.msra.mxu0 %v3872
  %3998 = vmatprep.subr.mxu0 %v3871
  %3999 = vmatpush1.msra.mxu0 %v3870
  %4000 = vmatprep.subr.mxu0 %v3869
  %4001 = vmatpush1.msra.mxu0 %v3868
  %4002 = vmatprep.subr.mxu0 %v3867
  %4003 = vmatpush1.msra.mxu0 %v3866
  %4004 = vmatprep.subr.mxu0 %v3865
  %4005 = vmatpush1.msra.mxu0 %v3864
  %4006 = vmatprep.subr.mxu0 %v3863
  %4007 = vmatpush1.msra.mxu0 %v3862
  %4008 = vmatprep.subr.mxu0 %v3861
  %4009 = vmatpush1.msra.mxu0 %v3860
  %4010 = vmatprep.subr.mxu0 %v3923
  %4011 = vmatpush2.msra.mxu0 %v3922
  %4012 = vmatprep.subr.mxu0 %v3921
  %4013 = vmatpush2.msra.mxu0 %v3920
  %4014 = vmatprep.subr.mxu0 %v3919
  %4015 = vmatpush2.msra.mxu0 %v3918
  %4016 = vmatprep.subr.mxu0 %v3917
  %4017 = vmatpush2.msra.mxu0 %v3916
  %4018 = vmatprep.subr.mxu0 %v3915
  %4019 = vmatpush2.msra.mxu0 %v3914
  %4020 = vmatprep.subr.mxu0 %v3913
  %4021 = vmatpush2.msra.mxu0 %v3912
  %4022 = vmatprep.subr.mxu0 %v3911
  %4023 = vmatpush2.msra.mxu0 %v3910
  %4024 = vmatprep.subr.mxu0 %v3909
  %4025 = vmatpush2.msra.mxu0 %v3908
  %4026 = vmatprep.subr.mxu0 %v3907
  %4027 = vmatpush2.msra.mxu0 %v3906
  %4028 = vmatprep.subr.mxu0 %v3905
  %4029 = vmatpush2.msra.mxu0 %v3904
  %4030 = vmatprep.subr.mxu0 %v3903
  %4031 = vmatpush2.msra.mxu0 %v3902
  %4032 = vmatprep.subr.mxu0 %v3901
  %4033 = vmatpush2.msra.mxu0 %v3900
  %4034 = vmatprep.subr.mxu0 %v3899
  %4035 = vmatpush2.msra.mxu0 %v3898
  %4036 = vmatprep.subr.mxu0 %v3897
  %4037 = vmatpush2.msra.mxu0 %v3896
  %4038 = vmatprep.subr.mxu0 %v3895
  %4039 = vmatpush2.msra.mxu0 %v3894
  %4040 = vmatprep.subr.mxu0 %v3893
  %4041 = vmatpush2.msra.mxu0 %v3892
  %4042 = vmatprep.mubr.f32.mxu0 %v3933
  %4043 = vmatmul.mubr.f32.gmra.mxu0 %v3930
  %v4044 = vpop.f32.mrf.mxu0
  %v4045 = vadd.f32 0.0, %v4044
  %v4046 = vpop.f32.mrf.mxu0
  %v4047 = vadd.f32 0.0, %v4046
  %4048 = vmatprep.mubr.f32.mxu0 %v3937
  %4049 = vmatmul.mubr.f32.gmra.mxu0 %v3935
  %v4050 = vpop.f32.mrf.mxu0
  %v4051 = vadd.f32 0.0, %v4050
  %v4052 = vpop.f32.mrf.mxu0
  %v4053 = vadd.f32 0.0, %v4052
  %4054 = vmatprep.mubr.f32.mxu0 %v3941
  %4055 = vmatmul.mubr.f32.gmra.mxu0 %v3939
  %v4056 = vpop.f32.mrf.mxu0
  %v4057 = vadd.f32 0.0, %v4056
  %v4058 = vpop.f32.mrf.mxu0
  %v4059 = vadd.f32 0.0, %v4058
  %4060 = vmatprep.mubr.f32.mxu0 %v3945
  %4061 = vmatmul.mubr.f32.gmra.mxu0 %v3943
  %v4062 = vpop.f32.mrf.mxu0
  %v4063 = vadd.f32 0.0, %v4062
  %v4064 = vpop.f32.mrf.mxu0
  %v4065 = vadd.f32 0.0, %v4064
  %4066 = vmatprep.mubr.f32.mxu0 %v3949
  %4067 = vmatmul.mubr.f32.gmra.mxu0 %v3947
  %v4068 = vpop.f32.mrf.mxu0
  %v4069 = vadd.f32 0.0, %v4068
  %v4070 = vpop.f32.mrf.mxu0
  %v4071 = vadd.f32 0.0, %v4070
  %4072 = vmatprep.mubr.f32.mxu0 %v3953
  %4073 = vmatmul.mubr.f32.gmra.mxu0 %v3951
  %v4074 = vpop.f32.mrf.mxu0
  %v4075 = vadd.f32 0.0, %v4074
  %v4076 = vpop.f32.mrf.mxu0
  %v4077 = vadd.f32 0.0, %v4076
  %4078 = vmatprep.mubr.f32.mxu0 %v3957
  %4079 = vmatmul.mubr.f32.gmra.mxu0 %v3955
  %v4080 = vpop.f32.mrf.mxu0
  %v4081 = vadd.f32 0.0, %v4080
  %v4082 = vpop.f32.mrf.mxu0
  %v4083 = vadd.f32 0.0, %v4082
  %4084 = vmatprep.mubr.f32.mxu0 %v3961
  %4085 = vmatmul.mubr.f32.gmra.mxu0 %v3959
  %v4086 = vpop.f32.mrf.mxu0
  %v4087 = vadd.f32 0.0, %v4086
  %v4088 = vpop.f32.mrf.mxu0
  %v4089 = vadd.f32 0.0, %v4088
  %4090 = vdwg.mxu0
  %v4091 = vadd.f32 %v3840, %v4045
  %v4092 = vadd.f32 %v3841, %v4047
  %v4093 = vadd.f32 %v3842, %v4051
  %v4094 = vadd.f32 %v3843, %v4053
  %v4095 = vadd.f32 %v3844, %v4057
  %v4096 = vadd.f32 %v3845, %v4059
  %v4097 = vadd.f32 %v3846, %v4063
  %v4098 = vadd.f32 %v3847, %v4065
  %v4099 = vadd.f32 %v3848, %v4069
  %v4100 = vadd.f32 %v3849, %v4071
  %v4101 = vadd.f32 %v3850, %v4075
  %v4102 = vadd.f32 %v3851, %v4077
  %v4103 = vadd.f32 %v3852, %v4081
  %v4104 = vadd.f32 %v3853, %v4083
  %v4105 = vadd.f32 %v3854, %v4087
  %v4106 = vadd.f32 %v3855, %v4089
  %v4107 = vld [vmem:[%s0 + $0x120] sm:$0xff]
  %v4108 = vld [vmem:[%s0 + $0x128] sm:$0xff]
  %v4109 = vld [vmem:[%s1757] sm:$0xff]
  %v4110 = vld [vmem:[%s1757 + $0x8] sm:$0xff]
  %v4111 = vld [vmem:[%s1757 + $0x10] sm:$0xff]
  %v4112 = vld [vmem:[%s1757 + $0x18] sm:$0xff]
  %v4113 = vld [vmem:[%s1757 + $0x20] sm:$0xff]
  %v4114 = vld [vmem:[%s1757 + $0x28] sm:$0xff]
  %v4115 = vld [vmem:[%s1757 + $0x30] sm:$0xff]
  %v4116 = vld [vmem:[%s1757 + $0x38] sm:$0xff]
  %v4117 = vld [vmem:[%s1757 + $0x40] sm:$0xff]
  %v4118 = vld [vmem:[%s1757 + $0x48] sm:$0xff]
  %v4119 = vld [vmem:[%s1757 + $0x50] sm:$0xff]
  %v4120 = vld [vmem:[%s1757 + $0x58] sm:$0xff]
  %v4121 = vld [vmem:[%s1757 + $0x60] sm:$0xff]
  %v4122 = vld [vmem:[%s1757 + $0x68] sm:$0xff]
  %v4123 = vld [vmem:[%s1757 + $0x70] sm:$0xff]
  %v4124 = vld [vmem:[%s1757 + $0x78] sm:$0xff]
  %v4125 = vld [vmem:[%s1757 + $0x80] sm:$0xff]
  %v4126 = vld [vmem:[%s1757 + $0x88] sm:$0xff]
  %v4127 = vld [vmem:[%s1757 + $0x90] sm:$0xff]
  %v4128 = vld [vmem:[%s1757 + $0x98] sm:$0xff]
  %v4129 = vld [vmem:[%s1757 + $0xa0] sm:$0xff]
  %v4130 = vld [vmem:[%s1757 + $0xa8] sm:$0xff]
  %v4131 = vld [vmem:[%s1757 + $0xb0] sm:$0xff]
  %v4132 = vld [vmem:[%s1757 + $0xb8] sm:$0xff]
  %v4133 = vld [vmem:[%s1757 + $0xc0] sm:$0xff]
  %v4134 = vld [vmem:[%s1757 + $0xc8] sm:$0xff]
  %v4135 = vld [vmem:[%s1757 + $0xd0] sm:$0xff]
  %v4136 = vld [vmem:[%s1757 + $0xd8] sm:$0xff]
  %v4137 = vld [vmem:[%s1757 + $0xe0] sm:$0xff]
  %v4138 = vld [vmem:[%s1757 + $0xe8] sm:$0xff]
  %v4139 = vld [vmem:[%s1757 + $0xf0] sm:$0xff]
  %v4140 = vld [vmem:[%s1757 + $0xf8] sm:$0xff]
  %v4141 = vld [vmem:[%s1757 + $0x100] sm:$0xff]
  %v4142 = vld [vmem:[%s1757 + $0x108] sm:$0xff]
  %v4143 = vld [vmem:[%s1757 + $0x110] sm:$0xff]
  %v4144 = vld [vmem:[%s1757 + $0x118] sm:$0xff]
  %v4145 = vld [vmem:[%s1757 + $0x120] sm:$0xff]
  %v4146 = vld [vmem:[%s1757 + $0x128] sm:$0xff]
  %v4147 = vld [vmem:[%s1757 + $0x130] sm:$0xff]
  %v4148 = vld [vmem:[%s1757 + $0x138] sm:$0xff]
  %v4149 = vld [vmem:[%s1757 + $0x140] sm:$0xff]
  %v4150 = vld [vmem:[%s1757 + $0x148] sm:$0xff]
  %v4151 = vld [vmem:[%s1757 + $0x150] sm:$0xff]
  %v4152 = vld [vmem:[%s1757 + $0x158] sm:$0xff]
  %v4153 = vld [vmem:[%s1757 + $0x160] sm:$0xff]
  %v4154 = vld [vmem:[%s1757 + $0x168] sm:$0xff]
  %v4155 = vld [vmem:[%s1757 + $0x170] sm:$0xff]
  %v4156 = vld [vmem:[%s1757 + $0x178] sm:$0xff]
  %v4157 = vld [vmem:[%s1757 + $0x180] sm:$0xff]
  %v4158 = vld [vmem:[%s1757 + $0x188] sm:$0xff]
  %v4159 = vld [vmem:[%s1757 + $0x190] sm:$0xff]
  %v4160 = vld [vmem:[%s1757 + $0x198] sm:$0xff]
  %v4161 = vld [vmem:[%s1757 + $0x1a0] sm:$0xff]
  %v4162 = vld [vmem:[%s1757 + $0x1a8] sm:$0xff]
  %v4163 = vld [vmem:[%s1757 + $0x1b0] sm:$0xff]
  %v4164 = vld [vmem:[%s1757 + $0x1b8] sm:$0xff]
  %v4165 = vld [vmem:[%s1757 + $0x1c0] sm:$0xff]
  %v4166 = vld [vmem:[%s1757 + $0x1c8] sm:$0xff]
  %v4167 = vld [vmem:[%s1757 + $0x1d0] sm:$0xff]
  %v4168 = vld [vmem:[%s1757 + $0x1d8] sm:$0xff]
  %v4169 = vld [vmem:[%s1757 + $0x1e0] sm:$0xff]
  %v4170 = vld [vmem:[%s1757 + $0x1e8] sm:$0xff]
  %v4171 = vld [vmem:[%s1757 + $0x1f0] sm:$0xff]
  %v4172 = vld [vmem:[%s1757 + $0x1f8] sm:$0xff]
  %4173 = vmatprep.subr.mxu0 %v4140
  %4174 = vmatpush1.msra.mxu0 %v4139
  %4175 = vmatprep.subr.mxu0 %v4138
  %4176 = vmatpush1.msra.mxu0 %v4137
  %4177 = vmatprep.subr.mxu0 %v4136
  %4178 = vmatpush1.msra.mxu0 %v4135
  %4179 = vmatprep.subr.mxu0 %v4134
  %4180 = vmatpush1.msra.mxu0 %v4133
  %4181 = vmatprep.subr.mxu0 %v4132
  %4182 = vmatpush1.msra.mxu0 %v4131
  %4183 = vmatprep.subr.mxu0 %v4130
  %4184 = vmatpush1.msra.mxu0 %v4129
  %4185 = vmatprep.subr.mxu0 %v4128
  %4186 = vmatpush1.msra.mxu0 %v4127
  %4187 = vmatprep.subr.mxu0 %v4126
  %4188 = vmatpush1.msra.mxu0 %v4125
  %4189 = vmatprep.subr.mxu0 %v4124
  %4190 = vmatpush1.msra.mxu0 %v4123
  %4191 = vmatprep.subr.mxu0 %v4122
  %4192 = vmatpush1.msra.mxu0 %v4121
  %4193 = vmatprep.subr.mxu0 %v4120
  %4194 = vmatpush1.msra.mxu0 %v4119
  %4195 = vmatprep.subr.mxu0 %v4118
  %4196 = vmatpush1.msra.mxu0 %v4117
  %4197 = vmatprep.subr.mxu0 %v4116
  %4198 = vmatpush1.msra.mxu0 %v4115
  %4199 = vmatprep.subr.mxu0 %v4114
  %4200 = vmatpush1.msra.mxu0 %v4113
  %4201 = vmatprep.subr.mxu0 %v4112
  %4202 = vmatpush1.msra.mxu0 %v4111
  %4203 = vmatprep.subr.mxu0 %v4110
  %4204 = vmatpush1.msra.mxu0 %v4109
  %4205 = vmatprep.subr.mxu0 %v4172
  %4206 = vmatpush2.msra.mxu0 %v4171
  %4207 = vmatprep.subr.mxu0 %v4170
  %4208 = vmatpush2.msra.mxu0 %v4169
  %4209 = vmatprep.subr.mxu0 %v4168
  %4210 = vmatpush2.msra.mxu0 %v4167
  %4211 = vmatprep.subr.mxu0 %v4166
  %4212 = vmatpush2.msra.mxu0 %v4165
  %4213 = vmatprep.subr.mxu0 %v4164
  %4214 = vmatpush2.msra.mxu0 %v4163
  %4215 = vmatprep.subr.mxu0 %v4162
  %4216 = vmatpush2.msra.mxu0 %v4161
  %4217 = vmatprep.subr.mxu0 %v4160
  %4218 = vmatpush2.msra.mxu0 %v4159
  %4219 = vmatprep.subr.mxu0 %v4158
  %4220 = vmatpush2.msra.mxu0 %v4157
  %4221 = vmatprep.subr.mxu0 %v4156
  %4222 = vmatpush2.msra.mxu0 %v4155
  %4223 = vmatprep.subr.mxu0 %v4154
  %4224 = vmatpush2.msra.mxu0 %v4153
  %4225 = vmatprep.subr.mxu0 %v4152
  %4226 = vmatpush2.msra.mxu0 %v4151
  %4227 = vmatprep.subr.mxu0 %v4150
  %4228 = vmatpush2.msra.mxu0 %v4149
  %4229 = vmatprep.subr.mxu0 %v4148
  %4230 = vmatpush2.msra.mxu0 %v4147
  %4231 = vmatprep.subr.mxu0 %v4146
  %4232 = vmatpush2.msra.mxu0 %v4145
  %4233 = vmatprep.subr.mxu0 %v4144
  %4234 = vmatpush2.msra.mxu0 %v4143
  %4235 = vmatprep.subr.mxu0 %v4142
  %4236 = vmatpush2.msra.mxu0 %v4141
  %4237 = vmatprep.mubr.f32.mxu0 %v3580
  %4238 = vmatmul.mubr.f32.gmra.mxu0 %v3579
  %v4239 = vpop.f32.mrf.mxu0
  %v4240 = vadd.f32 0.0, %v4239
  %v4241 = vpop.f32.mrf.mxu0
  %v4242 = vadd.f32 0.0, %v4241
  %4243 = vmatprep.mubr.f32.mxu0 %v3582
  %4244 = vmatmul.mubr.f32.gmra.mxu0 %v3581
  %v4245 = vpop.f32.mrf.mxu0
  %v4246 = vadd.f32 0.0, %v4245
  %v4247 = vpop.f32.mrf.mxu0
  %v4248 = vadd.f32 0.0, %v4247
  %4249 = vmatprep.mubr.f32.mxu0 %v3584
  %4250 = vmatmul.mubr.f32.gmra.mxu0 %v3583
  %v4251 = vpop.f32.mrf.mxu0
  %v4252 = vadd.f32 0.0, %v4251
  %v4253 = vpop.f32.mrf.mxu0
  %v4254 = vadd.f32 0.0, %v4253
  %4255 = vmatprep.mubr.f32.mxu0 %v3586
  %4256 = vmatmul.mubr.f32.gmra.mxu0 %v3585
  %v4257 = vpop.f32.mrf.mxu0
  %v4258 = vadd.f32 0.0, %v4257
  %v4259 = vpop.f32.mrf.mxu0
  %v4260 = vadd.f32 0.0, %v4259
  %4261 = vmatprep.mubr.f32.mxu0 %v3588
  %4262 = vmatmul.mubr.f32.gmra.mxu0 %v3587
  %v4263 = vpop.f32.mrf.mxu0
  %v4264 = vadd.f32 0.0, %v4263
  %v4265 = vpop.f32.mrf.mxu0
  %v4266 = vadd.f32 0.0, %v4265
  %4267 = vmatprep.mubr.f32.mxu0 %v3590
  %4268 = vmatmul.mubr.f32.gmra.mxu0 %v3589
  %v4269 = vpop.f32.mrf.mxu0
  %v4270 = vadd.f32 0.0, %v4269
  %v4271 = vpop.f32.mrf.mxu0
  %v4272 = vadd.f32 0.0, %v4271
  %4273 = vmatprep.mubr.f32.mxu0 %v3592
  %4274 = vmatmul.mubr.f32.gmra.mxu0 %v3591
  %v4275 = vpop.f32.mrf.mxu0
  %v4276 = vadd.f32 0.0, %v4275
  %v4277 = vpop.f32.mrf.mxu0
  %v4278 = vadd.f32 0.0, %v4277
  %4279 = vmatprep.mubr.f32.mxu0 %v4108
  %4280 = vmatmul.mubr.f32.gmra.mxu0 %v4107
  %v4281 = vpop.f32.mrf.mxu0
  %v4282 = vadd.f32 0.0, %v4281
  %v4283 = vpop.f32.mrf.mxu0
  %v4284 = vadd.f32 0.0, %v4283
  %4285 = vdwg.mxu0
  %v4286 = vadd.f32 %v4091, %v4240
  %v4287 = vadd.f32 %v4092, %v4242
  %v4288 = vadd.f32 %v4093, %v4246
  %v4289 = vadd.f32 %v4094, %v4248
  %v4290 = vadd.f32 %v4095, %v4252
  %v4291 = vadd.f32 %v4096, %v4254
  %v4292 = vadd.f32 %v4097, %v4258
  %v4293 = vadd.f32 %v4098, %v4260
  %v4294 = vadd.f32 %v4099, %v4264
  %v4295 = vadd.f32 %v4100, %v4266
  %v4296 = vadd.f32 %v4101, %v4270
  %v4297 = vadd.f32 %v4102, %v4272
  %v4298 = vadd.f32 %v4103, %v4276
  %v4299 = vadd.f32 %v4104, %v4278
  %v4300 = vadd.f32 %v4105, %v4282
  %v4301 = vadd.f32 %v4106, %v4284
  %v4302 = vld [vmem:[%s0 + $0xb0] sm:$0xfe]
  %v4303 = vld [vmem:[%s0 + $0xb8] sm:$0xfe]
  %v4304 = vld [vmem:[%s0 + $0xc0] sm:$0xff]
  %v4305 = vld [vmem:[%s0 + $0xc8] sm:$0xff]
  %v4306 = vld [vmem:[%s0 + $0xd0] sm:$0xff]
  %v4307 = vld [vmem:[%s0 + $0xd8] sm:$0xff]
  %v4308 = vld [vmem:[%s0 + $0xe0] sm:$0xff]
  %v4309 = vld [vmem:[%s0 + $0xe8] sm:$0xff]
  %v4310 = vld [vmem:[%s0 + $0xf0] sm:$0xff]
  %v4311 = vld [vmem:[%s0 + $0xf8] sm:$0xff]
  %v4312 = vld [vmem:[%s0 + $0x100] sm:$0xff]
  %v4313 = vld [vmem:[%s0 + $0x108] sm:$0xff]
  %v4314 = vld [vmem:[%s0 + $0x110] sm:$0xff]
  %v4315 = vld [vmem:[%s0 + $0x118] sm:$0xff]
  %v4316 = vld [vmem:[%s0 + $0x120] sm:$0xff]
  %v4317 = vld [vmem:[%s0 + $0x128] sm:$0xff]
  %v4318 = vld [vmem:[%s0 + $0x130] sm:$0x1]
  %v4319 = vld [vmem:[%s0 + $0x138] sm:$0x1]
  %v4320 = vld [vmem:[%s1969] sm:$0xff]
  %v4321 = vld [vmem:[%s1969 + $0x8] sm:$0xff]
  %v4322 = vld [vmem:[%s1969 + $0x10] sm:$0xff]
  %v4323 = vld [vmem:[%s1969 + $0x18] sm:$0xff]
  %v4324 = vld [vmem:[%s1969 + $0x20] sm:$0xff]
  %v4325 = vld [vmem:[%s1969 + $0x28] sm:$0xff]
  %v4326 = vld [vmem:[%s1969 + $0x30] sm:$0xff]
  %v4327 = vld [vmem:[%s1969 + $0x38] sm:$0xff]
  %v4328 = vld [vmem:[%s1969 + $0x40] sm:$0xff]
  %v4329 = vld [vmem:[%s1969 + $0x48] sm:$0xff]
  %v4330 = vld [vmem:[%s1969 + $0x50] sm:$0xff]
  %v4331 = vld [vmem:[%s1969 + $0x58] sm:$0xff]
  %v4332 = vld [vmem:[%s1969 + $0x60] sm:$0xff]
  %v4333 = vld [vmem:[%s1969 + $0x68] sm:$0xff]
  %v4334 = vld [vmem:[%s1969 + $0x70] sm:$0xff]
  %v4335 = vld [vmem:[%s1969 + $0x78] sm:$0xff]
  %v4336 = vld [vmem:[%s1969 + $0x80] sm:$0xff]
  %v4337 = vld [vmem:[%s1969 + $0x88] sm:$0xff]
  %v4338 = vld [vmem:[%s1969 + $0x90] sm:$0xff]
  %v4339 = vld [vmem:[%s1969 + $0x98] sm:$0xff]
  %v4340 = vld [vmem:[%s1969 + $0xa0] sm:$0xff]
  %v4341 = vld [vmem:[%s1969 + $0xa8] sm:$0xff]
  %v4342 = vld [vmem:[%s1969 + $0xb0] sm:$0xff]
  %v4343 = vld [vmem:[%s1969 + $0xb8] sm:$0xff]
  %v4344 = vld [vmem:[%s1969 + $0xc0] sm:$0xff]
  %v4345 = vld [vmem:[%s1969 + $0xc8] sm:$0xff]
  %v4346 = vld [vmem:[%s1969 + $0xd0] sm:$0xff]
  %v4347 = vld [vmem:[%s1969 + $0xd8] sm:$0xff]
  %v4348 = vld [vmem:[%s1969 + $0xe0] sm:$0xff]
  %v4349 = vld [vmem:[%s1969 + $0xe8] sm:$0xff]
  %v4350 = vld [vmem:[%s1969 + $0xf0] sm:$0xff]
  %v4351 = vld [vmem:[%s1969 + $0xf8] sm:$0xff]
  %v4352 = vld [vmem:[%s1969 + $0x100] sm:$0xff]
  %v4353 = vld [vmem:[%s1969 + $0x108] sm:$0xff]
  %v4354 = vld [vmem:[%s1969 + $0x110] sm:$0xff]
  %v4355 = vld [vmem:[%s1969 + $0x118] sm:$0xff]
  %v4356 = vld [vmem:[%s1969 + $0x120] sm:$0xff]
  %v4357 = vld [vmem:[%s1969 + $0x128] sm:$0xff]
  %v4358 = vld [vmem:[%s1969 + $0x130] sm:$0xff]
  %v4359 = vld [vmem:[%s1969 + $0x138] sm:$0xff]
  %v4360 = vld [vmem:[%s1969 + $0x140] sm:$0xff]
  %v4361 = vld [vmem:[%s1969 + $0x148] sm:$0xff]
  %v4362 = vld [vmem:[%s1969 + $0x150] sm:$0xff]
  %v4363 = vld [vmem:[%s1969 + $0x158] sm:$0xff]
  %v4364 = vld [vmem:[%s1969 + $0x160] sm:$0xff]
  %v4365 = vld [vmem:[%s1969 + $0x168] sm:$0xff]
  %v4366 = vld [vmem:[%s1969 + $0x170] sm:$0xff]
  %v4367 = vld [vmem:[%s1969 + $0x178] sm:$0xff]
  %v4368 = vld [vmem:[%s1969 + $0x180] sm:$0xff]
  %v4369 = vld [vmem:[%s1969 + $0x188] sm:$0xff]
  %v4370 = vld [vmem:[%s1969 + $0x190] sm:$0xff]
  %v4371 = vld [vmem:[%s1969 + $0x198] sm:$0xff]
  %v4372 = vld [vmem:[%s1969 + $0x1a0] sm:$0xff]
  %v4373 = vld [vmem:[%s1969 + $0x1a8] sm:$0xff]
  %v4374 = vld [vmem:[%s1969 + $0x1b0] sm:$0xff]
  %v4375 = vld [vmem:[%s1969 + $0x1b8] sm:$0xff]
  %v4376 = vld [vmem:[%s1969 + $0x1c0] sm:$0xff]
  %v4377 = vld [vmem:[%s1969 + $0x1c8] sm:$0xff]
  %v4378 = vld [vmem:[%s1969 + $0x1d0] sm:$0xff]
  %v4379 = vld [vmem:[%s1969 + $0x1d8] sm:$0xff]
  %v4380 = vld [vmem:[%s1969 + $0x1e0] sm:$0xff]
  %v4381 = vld [vmem:[%s1969 + $0x1e8] sm:$0xff]
  %v4382 = vld [vmem:[%s1969 + $0x1f0] sm:$0xff]
  %v4383 = vld [vmem:[%s1969 + $0x1f8] sm:$0xff]
  %v4402 = vrot.slane %v4302, 1
  %v4403 = vrot.slane %v4304, 1
  %v4404 = vsel %vm595, %v4402, %v4403
  %v4405 = vrot.slane %v4303, 1
  %v4406 = vrot.slane %v4305, 1
  %v4407 = vsel %vm595, %v4405, %v4406
  %v4408 = vrot.slane %v4306, 1
  %v4409 = vsel %vm595, %v4403, %v4408
  %v4410 = vrot.slane %v4307, 1
  %v4411 = vsel %vm595, %v4406, %v4410
  %v4412 = vrot.slane %v4308, 1
  %v4413 = vsel %vm595, %v4408, %v4412
  %v4414 = vrot.slane %v4309, 1
  %v4415 = vsel %vm595, %v4410, %v4414
  %v4416 = vrot.slane %v4310, 1
  %v4417 = vsel %vm595, %v4412, %v4416
  %v4418 = vrot.slane %v4311, 1
  %v4419 = vsel %vm595, %v4414, %v4418
  %v4420 = vrot.slane %v4312, 1
  %v4421 = vsel %vm595, %v4416, %v4420
  %v4422 = vrot.slane %v4313, 1
  %v4423 = vsel %vm595, %v4418, %v4422
  %v4424 = vrot.slane %v4314, 1
  %v4425 = vsel %vm595, %v4420, %v4424
  %v4426 = vrot.slane %v4315, 1
  %v4427 = vsel %vm595, %v4422, %v4426
  %v4428 = vrot.slane %v4316, 1
  %v4429 = vsel %vm595, %v4424, %v4428
  %v4430 = vrot.slane %v4317, 1
  %v4431 = vsel %vm595, %v4426, %v4430
  %v4432 = vrot.slane %v4318, 1
  %v4433 = vsel %vm595, %v4428, %v4432
  %v4434 = vrot.slane %v4319, 1
  %v4435 = vsel %vm595, %v4430, %v4434
  %4452 = vmatprep.subr.mxu0 %v4351
  %4453 = vmatpush1.msra.mxu0 %v4350
  %4454 = vmatprep.subr.mxu0 %v4349
  %4455 = vmatpush1.msra.mxu0 %v4348
  %4456 = vmatprep.subr.mxu0 %v4347
  %4457 = vmatpush1.msra.mxu0 %v4346
  %4458 = vmatprep.subr.mxu0 %v4345
  %4459 = vmatpush1.msra.mxu0 %v4344
  %4460 = vmatprep.subr.mxu0 %v4343
  %4461 = vmatpush1.msra.mxu0 %v4342
  %4462 = vmatprep.subr.mxu0 %v4341
  %4463 = vmatpush1.msra.mxu0 %v4340
  %4464 = vmatprep.subr.mxu0 %v4339
  %4465 = vmatpush1.msra.mxu0 %v4338
  %4466 = vmatprep.subr.mxu0 %v4337
  %4467 = vmatpush1.msra.mxu0 %v4336
  %4468 = vmatprep.subr.mxu0 %v4335
  %4469 = vmatpush1.msra.mxu0 %v4334
  %4470 = vmatprep.subr.mxu0 %v4333
  %4471 = vmatpush1.msra.mxu0 %v4332
  %4472 = vmatprep.subr.mxu0 %v4331
  %4473 = vmatpush1.msra.mxu0 %v4330
  %4474 = vmatprep.subr.mxu0 %v4329
  %4475 = vmatpush1.msra.mxu0 %v4328
  %4476 = vmatprep.subr.mxu0 %v4327
  %4477 = vmatpush1.msra.mxu0 %v4326
  %4478 = vmatprep.subr.mxu0 %v4325
  %4479 = vmatpush1.msra.mxu0 %v4324
  %4480 = vmatprep.subr.mxu0 %v4323
  %4481 = vmatpush1.msra.mxu0 %v4322
  %4482 = vmatprep.subr.mxu0 %v4321
  %4483 = vmatpush1.msra.mxu0 %v4320
  %4484 = vmatprep.subr.mxu0 %v4383
  %4485 = vmatpush2.msra.mxu0 %v4382
  %4486 = vmatprep.subr.mxu0 %v4381
  %4487 = vmatpush2.msra.mxu0 %v4380
  %4488 = vmatprep.subr.mxu0 %v4379
  %4489 = vmatpush2.msra.mxu0 %v4378
  %4490 = vmatprep.subr.mxu0 %v4377
  %4491 = vmatpush2.msra.mxu0 %v4376
  %4492 = vmatprep.subr.mxu0 %v4375
  %4493 = vmatpush2.msra.mxu0 %v4374
  %4494 = vmatprep.subr.mxu0 %v4373
  %4495 = vmatpush2.msra.mxu0 %v4372
  %4496 = vmatprep.subr.mxu0 %v4371
  %4497 = vmatpush2.msra.mxu0 %v4370
  %4498 = vmatprep.subr.mxu0 %v4369
  %4499 = vmatpush2.msra.mxu0 %v4368
  %4500 = vmatprep.subr.mxu0 %v4367
  %4501 = vmatpush2.msra.mxu0 %v4366
  %4502 = vmatprep.subr.mxu0 %v4365
  %4503 = vmatpush2.msra.mxu0 %v4364
  %4504 = vmatprep.subr.mxu0 %v4363
  %4505 = vmatpush2.msra.mxu0 %v4362
  %4506 = vmatprep.subr.mxu0 %v4361
  %4507 = vmatpush2.msra.mxu0 %v4360
  %4508 = vmatprep.subr.mxu0 %v4359
  %4509 = vmatpush2.msra.mxu0 %v4358
  %4510 = vmatprep.subr.mxu0 %v4357
  %4511 = vmatpush2.msra.mxu0 %v4356
  %4512 = vmatprep.subr.mxu0 %v4355
  %4513 = vmatpush2.msra.mxu0 %v4354
  %4514 = vmatprep.subr.mxu0 %v4353
  %4515 = vmatpush2.msra.mxu0 %v4352
  %4516 = vmatprep.mubr.f32.mxu0 %v4407
  %4517 = vmatmul.mubr.f32.gmra.mxu0 %v4404
  %v4518 = vpop.f32.mrf.mxu0
  %v4519 = vadd.f32 0.0, %v4518
  %v4520 = vpop.f32.mrf.mxu0
  %v4521 = vadd.f32 0.0, %v4520
  %4522 = vmatprep.mubr.f32.mxu0 %v4411
  %4523 = vmatmul.mubr.f32.gmra.mxu0 %v4409
  %v4524 = vpop.f32.mrf.mxu0
  %v4525 = vadd.f32 0.0, %v4524
  %v4526 = vpop.f32.mrf.mxu0
  %v4527 = vadd.f32 0.0, %v4526
  %4528 = vmatprep.mubr.f32.mxu0 %v4415
  %4529 = vmatmul.mubr.f32.gmra.mxu0 %v4413
  %v4530 = vpop.f32.mrf.mxu0
  %v4531 = vadd.f32 0.0, %v4530
  %v4532 = vpop.f32.mrf.mxu0
  %v4533 = vadd.f32 0.0, %v4532
  %4534 = vmatprep.mubr.f32.mxu0 %v4419
  %4535 = vmatmul.mubr.f32.gmra.mxu0 %v4417
  %v4536 = vpop.f32.mrf.mxu0
  %v4537 = vadd.f32 0.0, %v4536
  %v4538 = vpop.f32.mrf.mxu0
  %v4539 = vadd.f32 0.0, %v4538
  %4540 = vmatprep.mubr.f32.mxu0 %v4423
  %4541 = vmatmul.mubr.f32.gmra.mxu0 %v4421
  %v4542 = vpop.f32.mrf.mxu0
  %v4543 = vadd.f32 0.0, %v4542
  %v4544 = vpop.f32.mrf.mxu0
  %v4545 = vadd.f32 0.0, %v4544
  %4546 = vmatprep.mubr.f32.mxu0 %v4427
  %4547 = vmatmul.mubr.f32.gmra.mxu0 %v4425
  %v4548 = vpop.f32.mrf.mxu0
  %v4549 = vadd.f32 0.0, %v4548
  %v4550 = vpop.f32.mrf.mxu0
  %v4551 = vadd.f32 0.0, %v4550
  %4552 = vmatprep.mubr.f32.mxu0 %v4431
  %4553 = vmatmul.mubr.f32.gmra.mxu0 %v4429
  %v4554 = vpop.f32.mrf.mxu0
  %v4555 = vadd.f32 0.0, %v4554
  %v4556 = vpop.f32.mrf.mxu0
  %v4557 = vadd.f32 0.0, %v4556
  %4558 = vmatprep.mubr.f32.mxu0 %v4435
  %4559 = vmatmul.mubr.f32.gmra.mxu0 %v4433
  %v4560 = vpop.f32.mrf.mxu0
  %v4561 = vadd.f32 0.0, %v4560
  %v4562 = vpop.f32.mrf.mxu0
  %v4563 = vadd.f32 0.0, %v4562
  %4564 = vdwg.mxu0
  %v4565 = vadd.f32 %v4286, %v4519
  %v4566 = vadd.f32 %v4287, %v4521
  %v4567 = vadd.f32 %v4288, %v4525
  %v4568 = vadd.f32 %v4289, %v4527
  %v4569 = vadd.f32 %v4290, %v4531
  %v4570 = vadd.f32 %v4291, %v4533
  %v4571 = vadd.f32 %v4292, %v4537
  %v4572 = vadd.f32 %v4293, %v4539
  %v4573 = vadd.f32 %v4294, %v4543
  %v4574 = vadd.f32 %v4295, %v4545
  %v4575 = vadd.f32 %v4296, %v4549
  %v4576 = vadd.f32 %v4297, %v4551
  %v4577 = vadd.f32 %v4298, %v4555
  %v4578 = vadd.f32 %v4299, %v4557
  %v4579 = vadd.f32 %v4300, %v4561
  %v4580 = vadd.f32 %v4301, %v4563
  %v4581 = vadd.f32 %v4565, %v2235
  %v4582 = vadd.f32 %v4566, %v2239
  %v4583 = vadd.f32 %v4567, %v2235
  %v4584 = vadd.f32 %v4568, %v2239
  %v4585 = vadd.f32 %v4569, %v2235
  %v4586 = vadd.f32 %v4570, %v2239
  %v4587 = vadd.f32 %v4571, %v2235
  %v4588 = vadd.f32 %v4572, %v2239
  %v4589 = vadd.f32 %v4573, %v2235
  %v4590 = vadd.f32 %v4574, %v2239
  %v4591 = vadd.f32 %v4575, %v2235
  %v4592 = vadd.f32 %v4576, %v2239
  %v4593 = vadd.f32 %v4577, %v2235
  %v4594 = vadd.f32 %v4578, %v2239
  %v4595 = vadd.f32 %v4579, %v2235
  %v4596 = vadd.f32 %v4580, %v2239
  %v4597 = vld [vmem:[%s1 + $0x40] sm:$0xff]
  %v4598 = vld [vmem:[%s1 + $0x48] sm:$0xff]
  %v4599 = vld [vmem:[%s1 + $0x50] sm:$0xff]
  %v4600 = vld [vmem:[%s1 + $0x58] sm:$0xff]
  %v4601 = vld [vmem:[%s1 + $0x60] sm:$0xff]
  %v4602 = vld [vmem:[%s1 + $0x68] sm:$0xff]
  %v4603 = vld [vmem:[%s1 + $0x70] sm:$0xff]
  %v4604 = vld [vmem:[%s1 + $0x78] sm:$0xff]
  %4606 = vset.pattern.permute.xlu0 0
  %4607 = vperm.xlu0 %4606, %v4597
  %v4608 = vpop.permute.xlu0 %4607
  %4611 = vset.pattern.permute.xlu0 0
  %4612 = vperm.xlu0 %4611, %v4598
  %v4613 = vpop.permute.xlu0 %4612
  %4616 = vset.pattern.permute.xlu0 0
  %4617 = vperm.xlu0 %4616, %v4599
  %v4618 = vpop.permute.xlu0 %4617
  %4621 = vset.pattern.permute.xlu0 0
  %4622 = vperm.xlu0 %4621, %v4600
  %v4623 = vpop.permute.xlu0 %4622
  %4626 = vset.pattern.permute.xlu0 0
  %4627 = vperm.xlu0 %4626, %v4601
  %v4628 = vpop.permute.xlu0 %4627
  %4631 = vset.pattern.permute.xlu0 0
  %4632 = vperm.xlu0 %4631, %v4602
  %v4633 = vpop.permute.xlu0 %4632
  %4636 = vset.pattern.permute.xlu0 0
  %4637 = vperm.xlu0 %4636, %v4603
  %v4638 = vpop.permute.xlu0 %4637
  %4641 = vset.pattern.permute.xlu0 0
  %4642 = vperm.xlu0 %4641, %v4604
  %v4643 = vpop.permute.xlu0 %4642
  %v4645 = vmul.f32 %v4581, %v4608
  %v4646 = vmul.f32 %v4582, %v4608
  %v4647 = vmul.f32 %v4583, %v4613
  %v4648 = vmul.f32 %v4584, %v4613
  %v4649 = vmul.f32 %v4585, %v4618
  %v4650 = vmul.f32 %v4586, %v4618
  %v4651 = vmul.f32 %v4587, %v4623
  %v4652 = vmul.f32 %v4588, %v4623
  %v4653 = vmul.f32 %v4589, %v4628
  %v4654 = vmul.f32 %v4590, %v4628
  %v4655 = vmul.f32 %v4591, %v4633
  %v4656 = vmul.f32 %v4592, %v4633
  %v4657 = vmul.f32 %v4593, %v4638
  %v4658 = vmul.f32 %v4594, %v4638
  %v4659 = vmul.f32 %v4595, %v4643
  %v4660 = vmul.f32 %v4596, %v4643
  %v4661 = vadd.f32 %v4645, %v4647
  %v4662 = vadd.f32 %v4661, %v4649
  %v4663 = vadd.f32 %v4662, %v4651
  %v4664 = vadd.f32 %v4663, %v4653
  %v4665 = vadd.f32 %v4664, %v4655
  %v4666 = vadd.f32 %v4665, %v4657
  %v4667 = vadd.f32 %v4666, %v4659
  %v4668 = vrot.slane %v4667, 4
  %v4669 = vadd.f32 %v4667, %v4668
  %v4670 = vrot.slane %v4669, 2
  %v4671 = vadd.f32 %v4669, %v4670
  %v4672 = vrot.slane %v4671, 1
  %v4673 = vadd.f32 %v4671, %v4672
  %v4674 = vadd.f32 %v4646, %v4648
  %v4675 = vadd.f32 %v4674, %v4650
  %v4676 = vadd.f32 %v4675, %v4652
  %v4677 = vadd.f32 %v4676, %v4654
  %v4678 = vadd.f32 %v4677, %v4656
  %v4679 = vadd.f32 %v4678, %v4658
  %v4680 = vadd.f32 %v4679, %v4660
  %v4681 = vrot.slane %v4680, 4
  %v4682 = vadd.f32 %v4680, %v4681
  %v4683 = vrot.slane %v4682, 2
  %v4684 = vadd.f32 %v4682, %v4683
  %v4685 = vrot.slane %v4684, 1
  %v4686 = vadd.f32 %v4684, %v4685
  %v4687 = vadd.f32 %v2348, %v4673
  %v4688 = vadd.f32 %v2349, %v4686
  %v4689 = vmul.f32 %v4645, %v4645
  %v4690 = vmul.f32 %v4646, %v4646
  %v4691 = vmul.f32 %v4647, %v4647
  %v4692 = vmul.f32 %v4648, %v4648
  %v4693 = vmul.f32 %v4649, %v4649
  %v4694 = vmul.f32 %v4650, %v4650
  %v4695 = vmul.f32 %v4651, %v4651
  %v4696 = vmul.f32 %v4652, %v4652
  %v4697 = vmul.f32 %v4653, %v4653
  %v4698 = vmul.f32 %v4654, %v4654
  %v4699 = vmul.f32 %v4655, %v4655
  %v4700 = vmul.f32 %v4656, %v4656
  %v4701 = vmul.f32 %v4657, %v4657
  %v4702 = vmul.f32 %v4658, %v4658
  %v4703 = vmul.f32 %v4659, %v4659
  %v4704 = vmul.f32 %v4660, %v4660
  %v4705 = vadd.f32 %v4689, %v4691
  %v4706 = vadd.f32 %v4705, %v4693
  %v4707 = vadd.f32 %v4706, %v4695
  %v4708 = vadd.f32 %v4707, %v4697
  %v4709 = vadd.f32 %v4708, %v4699
  %v4710 = vadd.f32 %v4709, %v4701
  %v4711 = vadd.f32 %v4710, %v4703
  %v4712 = vrot.slane %v4711, 4
  %v4713 = vadd.f32 %v4711, %v4712
  %v4714 = vrot.slane %v4713, 2
  %v4715 = vadd.f32 %v4713, %v4714
  %v4716 = vrot.slane %v4715, 1
  %v4717 = vadd.f32 %v4715, %v4716
  %v4718 = vadd.f32 %v4690, %v4692
  %v4719 = vadd.f32 %v4718, %v4694
  %v4720 = vadd.f32 %v4719, %v4696
  %v4721 = vadd.f32 %v4720, %v4698
  %v4722 = vadd.f32 %v4721, %v4700
  %v4723 = vadd.f32 %v4722, %v4702
  %v4724 = vadd.f32 %v4723, %v4704
  %v4725 = vrot.slane %v4724, 4
  %v4726 = vadd.f32 %v4724, %v4725
  %v4727 = vrot.slane %v4726, 2
  %v4728 = vadd.f32 %v4726, %v4727
  %v4729 = vrot.slane %v4728, 1
  %v4730 = vadd.f32 %v4728, %v4729
  %v4731 = vadd.f32 %v2392, %v4717
  %v4732 = vadd.f32 %v2393, %v4730
  %4733 = vst [vmem:[#allocation2 + $0xa0] sm:$0xff] %v4645
  %4734 = vst [vmem:[#allocation2 + $0xa8] sm:$0xff] %v4646
  %4735 = vst [vmem:[#allocation2 + $0xb0] sm:$0xff] %v4647
  %4736 = vst [vmem:[#allocation2 + $0xb8] sm:$0xff] %v4648
  %4737 = vst [vmem:[#allocation2 + $0xc0] sm:$0xff] %v4649
  %4738 = vst [vmem:[#allocation2 + $0xc8] sm:$0xff] %v4650
  %4739 = vst [vmem:[#allocation2 + $0xd0] sm:$0xff] %v4651
  %4740 = vst [vmem:[#allocation2 + $0xd8] sm:$0xff] %v4652
  %4741 = vst [vmem:[#allocation2 + $0xe0] sm:$0xff] %v4653
  %4742 = vst [vmem:[#allocation2 + $0xe8] sm:$0xff] %v4654
  %4743 = vst [vmem:[#allocation2 + $0xf0] sm:$0xff] %v4655
  %4744 = vst [vmem:[#allocation2 + $0xf8] sm:$0xff] %v4656
  %4745 = vst [vmem:[#allocation2 + $0x100] sm:$0xff] %v4657
  %4746 = vst [vmem:[#allocation2 + $0x108] sm:$0xff] %v4658
  %4747 = vst [vmem:[#allocation2 + $0x110] sm:$0xff] %v4659
  %4748 = vst [vmem:[#allocation2 + $0x118] sm:$0xff] %v4660
  %v4749 = vld [vmem:[%s10] sm:$0xff]
  %v4750 = vld [vmem:[%s10 + $0x8] sm:$0xff]
  %v4751 = vld [vmem:[%s10 + $0x10] sm:$0xff]
  %v4752 = vld [vmem:[%s10 + $0x18] sm:$0xff]
  %v4753 = vld [vmem:[%s10 + $0x20] sm:$0xff]
  %v4754 = vld [vmem:[%s10 + $0x28] sm:$0xff]
  %v4755 = vld [vmem:[%s10 + $0x30] sm:$0xff]
  %v4756 = vld [vmem:[%s10 + $0x38] sm:$0xff]
  %v4757 = vld [vmem:[%s10 + $0x40] sm:$0xff]
  %v4758 = vld [vmem:[%s10 + $0x48] sm:$0xff]
  %v4759 = vld [vmem:[%s10 + $0x50] sm:$0xff]
  %v4760 = vld [vmem:[%s10 + $0x58] sm:$0xff]
  %v4761 = vld [vmem:[%s10 + $0x60] sm:$0xff]
  %v4762 = vld [vmem:[%s10 + $0x68] sm:$0xff]
  %v4763 = vld [vmem:[%s10 + $0x70] sm:$0xff]
  %v4764 = vld [vmem:[%s10 + $0x78] sm:$0xff]
  %v4765 = vld [vmem:[%s10 + $0x80] sm:$0xff]
  %v4766 = vld [vmem:[%s10 + $0x88] sm:$0xff]
  %v4767 = vld [vmem:[%s10 + $0x90] sm:$0xff]
  %v4768 = vld [vmem:[%s10 + $0x98] sm:$0xff]
  %v4769 = vld [vmem:[%s10 + $0xa0] sm:$0xff]
  %v4770 = vld [vmem:[%s10 + $0xa8] sm:$0xff]
  %v4771 = vld [vmem:[%s10 + $0xb0] sm:$0xff]
  %v4772 = vld [vmem:[%s10 + $0xb8] sm:$0xff]
  %v4773 = vld [vmem:[%s10 + $0xc0] sm:$0xff]
  %v4774 = vld [vmem:[%s10 + $0xc8] sm:$0xff]
  %v4775 = vld [vmem:[%s10 + $0xd0] sm:$0xff]
  %v4776 = vld [vmem:[%s10 + $0xd8] sm:$0xff]
  %v4777 = vld [vmem:[%s10 + $0xe0] sm:$0xff]
  %v4778 = vld [vmem:[%s10 + $0xe8] sm:$0xff]
  %v4779 = vld [vmem:[%s10 + $0xf0] sm:$0xff]
  %v4780 = vld [vmem:[%s10 + $0xf8] sm:$0xff]
  %4781 = vmatprep.subr.mxu0 0.0
  %4782 = vmatpush1.msra.mxu0 %v4764
  %4783 = vmatprep.subr.mxu0 0.0
  %4784 = vmatpush1.msra.mxu0 %v4763
  %4785 = vmatprep.subr.mxu0 0.0
  %4786 = vmatpush1.msra.mxu0 %v4762
  %4787 = vmatprep.subr.mxu0 0.0
  %4788 = vmatpush1.msra.mxu0 %v4761
  %4789 = vmatprep.subr.mxu0 0.0
  %4790 = vmatpush1.msra.mxu0 %v4760
  %4791 = vmatprep.subr.mxu0 0.0
  %4792 = vmatpush1.msra.mxu0 %v4759
  %4793 = vmatprep.subr.mxu0 0.0
  %4794 = vmatpush1.msra.mxu0 %v4758
  %4795 = vmatprep.subr.mxu0 0.0
  %4796 = vmatpush1.msra.mxu0 %v4757
  %4797 = vmatprep.subr.mxu0 0.0
  %4798 = vmatpush1.msra.mxu0 %v4756
  %4799 = vmatprep.subr.mxu0 0.0
  %4800 = vmatpush1.msra.mxu0 %v4755
  %4801 = vmatprep.subr.mxu0 0.0
  %4802 = vmatpush1.msra.mxu0 %v4754
  %4803 = vmatprep.subr.mxu0 0.0
  %4804 = vmatpush1.msra.mxu0 %v4753
  %4805 = vmatprep.subr.mxu0 0.0
  %4806 = vmatpush1.msra.mxu0 %v4752
  %4807 = vmatprep.subr.mxu0 0.0
  %4808 = vmatpush1.msra.mxu0 %v4751
  %4809 = vmatprep.subr.mxu0 0.0
  %4810 = vmatpush1.msra.mxu0 %v4750
  %4811 = vmatprep.subr.mxu0 0.0
  %4812 = vmatpush1.msra.mxu0 %v4749
  %4813 = vmatprep.subr.mxu0 0.0
  %4814 = vmatpush2.msra.mxu0 %v4780
  %4815 = vmatprep.subr.mxu0 0.0
  %4816 = vmatpush2.msra.mxu0 %v4779
  %4817 = vmatprep.subr.mxu0 0.0
  %4818 = vmatpush2.msra.mxu0 %v4778
  %4819 = vmatprep.subr.mxu0 0.0
  %4820 = vmatpush2.msra.mxu0 %v4777
  %4821 = vmatprep.subr.mxu0 0.0
  %4822 = vmatpush2.msra.mxu0 %v4776
  %4823 = vmatprep.subr.mxu0 0.0
  %4824 = vmatpush2.msra.mxu0 %v4775
  %4825 = vmatprep.subr.mxu0 0.0
  %4826 = vmatpush2.msra.mxu0 %v4774
  %4827 = vmatprep.subr.mxu0 0.0
  %4828 = vmatpush2.msra.mxu0 %v4773
  %4829 = vmatprep.subr.mxu0 0.0
  %4830 = vmatpush2.msra.mxu0 %v4772
  %4831 = vmatprep.subr.mxu0 0.0
  %4832 = vmatpush2.msra.mxu0 %v4771
  %4833 = vmatprep.subr.mxu0 0.0
  %4834 = vmatpush2.msra.mxu0 %v4770
  %4835 = vmatprep.subr.mxu0 0.0
  %4836 = vmatpush2.msra.mxu0 %v4769
  %4837 = vmatprep.subr.mxu0 0.0
  %4838 = vmatpush2.msra.mxu0 %v4768
  %4839 = vmatprep.subr.mxu0 0.0
  %4840 = vmatpush2.msra.mxu0 %v4767
  %4841 = vmatprep.subr.mxu0 0.0
  %4842 = vmatpush2.msra.mxu0 %v4766
  %4843 = vmatprep.subr.mxu0 0.0
  %4844 = vmatpush2.msra.mxu0 %v4765
  %4845 = vmatprep.mubr.f32.mxu0 %v4688
  %4846 = vmatmul.mubr.f32.gmra.mxu0 %v4687
  %v4847 = vpop.f32.mrf.mxu0
  %v4848 = vadd.f32 0.0, %v4847
  %v4849 = vpop.f32.mrf.mxu0
  %4850 = vdwg.mxu0
  %v4851 = vmul.f32 %v4848, 0.0023148148
  %4852 = vmatprep.subr.mxu0 0.0
  %4853 = vmatpush1.msra.mxu0 %v4764
  %4854 = vmatprep.subr.mxu0 0.0
  %4855 = vmatpush1.msra.mxu0 %v4763
  %4856 = vmatprep.subr.mxu0 0.0
  %4857 = vmatpush1.msra.mxu0 %v4762
  %4858 = vmatprep.subr.mxu0 0.0
  %4859 = vmatpush1.msra.mxu0 %v4761
  %4860 = vmatprep.subr.mxu0 0.0
  %4861 = vmatpush1.msra.mxu0 %v4760
  %4862 = vmatprep.subr.mxu0 0.0
  %4863 = vmatpush1.msra.mxu0 %v4759
  %4864 = vmatprep.subr.mxu0 0.0
  %4865 = vmatpush1.msra.mxu0 %v4758
  %4866 = vmatprep.subr.mxu0 0.0
  %4867 = vmatpush1.msra.mxu0 %v4757
  %4868 = vmatprep.subr.mxu0 0.0
  %4869 = vmatpush1.msra.mxu0 %v4756
  %4870 = vmatprep.subr.mxu0 0.0
  %4871 = vmatpush1.msra.mxu0 %v4755
  %4872 = vmatprep.subr.mxu0 0.0
  %4873 = vmatpush1.msra.mxu0 %v4754
  %4874 = vmatprep.subr.mxu0 0.0
  %4875 = vmatpush1.msra.mxu0 %v4753
  %4876 = vmatprep.subr.mxu0 0.0
  %4877 = vmatpush1.msra.mxu0 %v4752
  %4878 = vmatprep.subr.mxu0 0.0
  %4879 = vmatpush1.msra.mxu0 %v4751
  %4880 = vmatprep.subr.mxu0 0.0
  %4881 = vmatpush1.msra.mxu0 %v4750
  %4882 = vmatprep.subr.mxu0 0.0
  %4883 = vmatpush1.msra.mxu0 %v4749
  %4884 = vmatprep.subr.mxu0 0.0
  %4885 = vmatpush2.msra.mxu0 %v4780
  %4886 = vmatprep.subr.mxu0 0.0
  %4887 = vmatpush2.msra.mxu0 %v4779
  %4888 = vmatprep.subr.mxu0 0.0
  %4889 = vmatpush2.msra.mxu0 %v4778
  %4890 = vmatprep.subr.mxu0 0.0
  %4891 = vmatpush2.msra.mxu0 %v4777
  %4892 = vmatprep.subr.mxu0 0.0
  %4893 = vmatpush2.msra.mxu0 %v4776
  %4894 = vmatprep.subr.mxu0 0.0
  %4895 = vmatpush2.msra.mxu0 %v4775
  %4896 = vmatprep.subr.mxu0 0.0
  %4897 = vmatpush2.msra.mxu0 %v4774
  %4898 = vmatprep.subr.mxu0 0.0
  %4899 = vmatpush2.msra.mxu0 %v4773
  %4900 = vmatprep.subr.mxu0 0.0
  %4901 = vmatpush2.msra.mxu0 %v4772
  %4902 = vmatprep.subr.mxu0 0.0
  %4903 = vmatpush2.msra.mxu0 %v4771
  %4904 = vmatprep.subr.mxu0 0.0
  %4905 = vmatpush2.msra.mxu0 %v4770
  %4906 = vmatprep.subr.mxu0 0.0
  %4907 = vmatpush2.msra.mxu0 %v4769
  %4908 = vmatprep.subr.mxu0 0.0
  %4909 = vmatpush2.msra.mxu0 %v4768
  %4910 = vmatprep.subr.mxu0 0.0
  %4911 = vmatpush2.msra.mxu0 %v4767
  %4912 = vmatprep.subr.mxu0 0.0
  %4913 = vmatpush2.msra.mxu0 %v4766
  %4914 = vmatprep.subr.mxu0 0.0
  %4915 = vmatpush2.msra.mxu0 %v4765
  %4916 = vmatprep.mubr.f32.mxu0 %v4732
  %4917 = vmatmul.mubr.f32.gmra.mxu0 %v4731
  %v4918 = vpop.f32.mrf.mxu0
  %v4919 = vadd.f32 0.0, %v4918
  %v4920 = vpop.f32.mrf.mxu0
  %4921 = vdwg.mxu0
  %v4922 = vmul.f32 %v4919, 0.0023148148
  %v4923 = vmul.f32 %v4851, %v4851
  %v4924 = vsub.f32 %v4922, %v4923
  %v4925 = vld [vmem:[%s4] sm:$0x1]
  %v4926 = vadd.f32 %v4924, 1e-05
  %v4927 = vrsqrt.pop %v4926
  %v4928 = vmul.f32 %v4925, %v4927
  %v4929 = vld [vmem:[%s5] sm:$0x1]
  %v4930 = vmul.f32 %v4851, %v4928
  %v4931 = vsub.f32 %v4929, %v4930
  %v4932 = vld [vmem:[%s11] sm:$0xff]
  %v4933 = vld [vmem:[%s11 + $0x8] sm:$0xff]
  %v4934 = vld [vmem:[%s11 + $0x10] sm:$0xff]
  %v4935 = vld [vmem:[%s11 + $0x18] sm:$0xff]
  %v4936 = vld [vmem:[%s11 + $0x20] sm:$0xff]
  %v4937 = vld [vmem:[%s11 + $0x28] sm:$0xff]
  %v4938 = vld [vmem:[%s11 + $0x30] sm:$0xff]
  %v4939 = vld [vmem:[%s11 + $0x38] sm:$0xff]
  %vm4940 = vcmask 261120
  %v4942 = vsel %vm4940, %v4928, 0
  %4944 = vmatprep.subr.mxu0 0.0
  %4945 = vmatpush1.msra.mxu0 0.0
  %4946 = vmatprep.subr.mxu0 0.0
  %4947 = vmatpush1.msra.mxu0 0.0
  %4948 = vmatprep.subr.mxu0 0.0
  %4949 = vmatpush1.msra.mxu0 0.0
  %4950 = vmatprep.subr.mxu0 0.0
  %4951 = vmatpush1.msra.mxu0 0.0
  %4952 = vmatprep.subr.mxu0 0.0
  %4953 = vmatpush1.msra.mxu0 0.0
  %4954 = vmatprep.subr.mxu0 0.0
  %4955 = vmatpush1.msra.mxu0 0.0
  %4956 = vmatprep.subr.mxu0 0.0
  %4957 = vmatpush1.msra.mxu0 0.0
  %4958 = vmatprep.subr.mxu0 0.0
  %4959 = vmatpush1.msra.mxu0 0.0
  %4960 = vmatprep.subr.mxu0 0.0
  %4961 = vmatpush1.msra.mxu0 0.0
  %4962 = vmatprep.subr.mxu0 0.0
  %4963 = vmatpush1.msra.mxu0 0.0
  %4964 = vmatprep.subr.mxu0 0.0
  %4965 = vmatpush1.msra.mxu0 0.0
  %4966 = vmatprep.subr.mxu0 0.0
  %4967 = vmatpush1.msra.mxu0 0.0
  %4968 = vmatprep.subr.mxu0 %v4939
  %4969 = vmatpush1.msra.mxu0 %v4938
  %4970 = vmatprep.subr.mxu0 %v4937
  %4971 = vmatpush1.msra.mxu0 %v4936
  %4972 = vmatprep.subr.mxu0 %v4935
  %4973 = vmatpush1.msra.mxu0 %v4934
  %4974 = vmatprep.subr.mxu0 %v4933
  %4975 = vmatpush1.msra.mxu0 %v4932
  %4976 = vmatprep.subr.mxu0 0.0
  %4977 = vmatpush2.msra.mxu0 0.0
  %4978 = vmatprep.subr.mxu0 0.0
  %4979 = vmatpush2.msra.mxu0 0.0
  %4980 = vmatprep.subr.mxu0 0.0
  %4981 = vmatpush2.msra.mxu0 0.0
  %4982 = vmatprep.subr.mxu0 0.0
  %4983 = vmatpush2.msra.mxu0 0.0
  %4984 = vmatprep.subr.mxu0 0.0
  %4985 = vmatpush2.msra.mxu0 0.0
  %4986 = vmatprep.subr.mxu0 0.0
  %4987 = vmatpush2.msra.mxu0 0.0
  %4988 = vmatprep.subr.mxu0 0.0
  %4989 = vmatpush2.msra.mxu0 0.0
  %4990 = vmatprep.subr.mxu0 0.0
  %4991 = vmatpush2.msra.mxu0 0.0
  %4992 = vmatprep.subr.mxu0 0.0
  %4993 = vmatpush2.msra.mxu0 0.0
  %4994 = vmatprep.subr.mxu0 0.0
  %4995 = vmatpush2.msra.mxu0 0.0
  %4996 = vmatprep.subr.mxu0 0.0
  %4997 = vmatpush2.msra.mxu0 0.0
  %4998 = vmatprep.subr.mxu0 0.0
  %4999 = vmatpush2.msra.mxu0 0.0
  %5000 = vmatprep.subr.mxu0 0.0
  %5001 = vmatpush2.msra.mxu0 0.0
  %5002 = vmatprep.subr.mxu0 0.0
  %5003 = vmatpush2.msra.mxu0 0.0
  %5004 = vmatprep.subr.mxu0 0.0
  %5005 = vmatpush2.msra.mxu0 0.0
  %5006 = vmatprep.subr.mxu0 0.0
  %5007 = vmatpush2.msra.mxu0 0.0
  %5008 = vmatprep.mubr.f32.mxu0 0.0
  %5009 = vmatmul.mubr.f32.gmra.mxu0 %v4942
  %v5010 = vpop.f32.mrf.mxu0
  %v5011 = vadd.f32 0.0, %v5010
  %v5012 = vpop.f32.mrf.mxu0
  %v5013 = vadd.f32 0.0, %v5012
  %5014 = vdwg.mxu0
  %v5016 = vsel %vm4940, %v4931, 0
  %5018 = vmatprep.subr.mxu0 0.0
  %5019 = vmatpush1.msra.mxu0 0.0
  %5020 = vmatprep.subr.mxu0 0.0
  %5021 = vmatpush1.msra.mxu0 0.0
  %5022 = vmatprep.subr.mxu0 0.0
  %5023 = vmatpush1.msra.mxu0 0.0
  %5024 = vmatprep.subr.mxu0 0.0
  %5025 = vmatpush1.msra.mxu0 0.0
  %5026 = vmatprep.subr.mxu0 0.0
  %5027 = vmatpush1.msra.mxu0 0.0
  %5028 = vmatprep.subr.mxu0 0.0
  %5029 = vmatpush1.msra.mxu0 0.0
  %5030 = vmatprep.subr.mxu0 0.0
  %5031 = vmatpush1.msra.mxu0 0.0
  %5032 = vmatprep.subr.mxu0 0.0
  %5033 = vmatpush1.msra.mxu0 0.0
  %5034 = vmatprep.subr.mxu0 0.0
  %5035 = vmatpush1.msra.mxu0 0.0
  %5036 = vmatprep.subr.mxu0 0.0
  %5037 = vmatpush1.msra.mxu0 0.0
  %5038 = vmatprep.subr.mxu0 0.0
  %5039 = vmatpush1.msra.mxu0 0.0
  %5040 = vmatprep.subr.mxu0 0.0
  %5041 = vmatpush1.msra.mxu0 0.0
  %5042 = vmatprep.subr.mxu0 %v4939
  %5043 = vmatpush1.msra.mxu0 %v4938
  %5044 = vmatprep.subr.mxu0 %v4937
  %5045 = vmatpush1.msra.mxu0 %v4936
  %5046 = vmatprep.subr.mxu0 %v4935
  %5047 = vmatpush1.msra.mxu0 %v4934
  %5048 = vmatprep.subr.mxu0 %v4933
  %5049 = vmatpush1.msra.mxu0 %v4932
  %5050 = vmatprep.subr.mxu0 0.0
  %5051 = vmatpush2.msra.mxu0 0.0
  %5052 = vmatprep.subr.mxu0 0.0
  %5053 = vmatpush2.msra.mxu0 0.0
  %5054 = vmatprep.subr.mxu0 0.0
  %5055 = vmatpush2.msra.mxu0 0.0
  %5056 = vmatprep.subr.mxu0 0.0
  %5057 = vmatpush2.msra.mxu0 0.0
  %5058 = vmatprep.subr.mxu0 0.0
  %5059 = vmatpush2.msra.mxu0 0.0
  %5060 = vmatprep.subr.mxu0 0.0
  %5061 = vmatpush2.msra.mxu0 0.0
  %5062 = vmatprep.subr.mxu0 0.0
  %5063 = vmatpush2.msra.mxu0 0.0
  %5064 = vmatprep.subr.mxu0 0.0
  %5065 = vmatpush2.msra.mxu0 0.0
  %5066 = vmatprep.subr.mxu0 0.0
  %5067 = vmatpush2.msra.mxu0 0.0
  %5068 = vmatprep.subr.mxu0 0.0
  %5069 = vmatpush2.msra.mxu0 0.0
  %5070 = vmatprep.subr.mxu0 0.0
  %5071 = vmatpush2.msra.mxu0 0.0
  %5072 = vmatprep.subr.mxu0 0.0
  %5073 = vmatpush2.msra.mxu0 0.0
  %5074 = vmatprep.subr.mxu0 0.0
  %5075 = vmatpush2.msra.mxu0 0.0
  %5076 = vmatprep.subr.mxu0 0.0
  %5077 = vmatpush2.msra.mxu0 0.0
  %5078 = vmatprep.subr.mxu0 0.0
  %5079 = vmatpush2.msra.mxu0 0.0
  %5080 = vmatprep.subr.mxu0 0.0
  %5081 = vmatpush2.msra.mxu0 0.0
  %5082 = vmatprep.mubr.f32.mxu0 0.0
  %5083 = vmatmul.mubr.f32.gmra.mxu0 %v5016
  %v5084 = vpop.f32.mrf.mxu0
  %v5085 = vadd.f32 0.0, %v5084
  %v5086 = vpop.f32.mrf.mxu0
  %v5087 = vadd.f32 0.0, %v5086
  %5088 = vdwg.mxu0
  %v5089 = vld [vmem:[#allocation2 + $0x20] sm:$0xff]
  %v5090 = vld [vmem:[#allocation2 + $0x28] sm:$0xff]
  %v5091 = vld [vmem:[#allocation2 + $0x30] sm:$0xff]
  %v5092 = vld [vmem:[#allocation2 + $0x38] sm:$0xff]
  %v5093 = vld [vmem:[#allocation2 + $0x40] sm:$0xff]
  %v5094 = vld [vmem:[#allocation2 + $0x48] sm:$0xff]
  %v5095 = vld [vmem:[#allocation2 + $0x50] sm:$0xff]
  %v5096 = vld [vmem:[#allocation2 + $0x58] sm:$0xff]
  %v5097 = vld [vmem:[#allocation2 + $0x60] sm:$0xff]
  %v5098 = vld [vmem:[#allocation2 + $0x68] sm:$0xff]
  %v5099 = vld [vmem:[#allocation2 + $0x70] sm:$0xff]
  %v5100 = vld [vmem:[#allocation2 + $0x78] sm:$0xff]
  %v5101 = vld [vmem:[#allocation2 + $0x80] sm:$0xff]
  %v5102 = vld [vmem:[#allocation2 + $0x88] sm:$0xff]
  %v5103 = vld [vmem:[#allocation2 + $0x90] sm:$0xff]
  %v5104 = vld [vmem:[#allocation2 + $0x98] sm:$0xff]
  %v5105 = vlaneseq
  %v5106 = vshrl.u32 %v5105, 7
  %v5107 = vsub.s32 0, %v5106
  %v5108 = vrot.slane %v5011, %v5107
  %v5109 = vlaneseq
  %v5110 = vshrl.u32 %v5109, 7
  %v5111 = vsub.s32 0, %v5110
  %v5112 = vrot.slane %v5013, %v5111
  %v5113 = vmul.f32 %v5089, %v5108
  %v5114 = vmul.f32 %v5090, %v5112
  %v5115 = vmul.f32 %v5091, %v5108
  %v5116 = vmul.f32 %v5092, %v5112
  %v5117 = vmul.f32 %v5093, %v5108
  %v5118 = vmul.f32 %v5094, %v5112
  %v5119 = vmul.f32 %v5095, %v5108
  %v5120 = vmul.f32 %v5096, %v5112
  %v5121 = vmul.f32 %v5097, %v5108
  %v5122 = vmul.f32 %v5098, %v5112
  %v5123 = vmul.f32 %v5099, %v5108
  %v5124 = vmul.f32 %v5100, %v5112
  %v5125 = vmul.f32 %v5101, %v5108
  %v5126 = vmul.f32 %v5102, %v5112
  %v5127 = vmul.f32 %v5103, %v5108
  %v5128 = vmul.f32 %v5104, %v5112
  %v5129 = vlaneseq
  %v5130 = vshrl.u32 %v5129, 7
  %v5131 = vsub.s32 0, %v5130
  %v5132 = vrot.slane %v5085, %v5131
  %v5133 = vlaneseq
  %v5134 = vshrl.u32 %v5133, 7
  %v5135 = vsub.s32 0, %v5134
  %v5136 = vrot.slane %v5087, %v5135
  %v5137 = vadd.f32 %v5113, %v5132
  %v5138 = vadd.f32 %v5114, %v5136
  %v5139 = vadd.f32 %v5115, %v5132
  %v5140 = vadd.f32 %v5116, %v5136
  %v5141 = vadd.f32 %v5117, %v5132
  %v5142 = vadd.f32 %v5118, %v5136
  %v5143 = vadd.f32 %v5119, %v5132
  %v5144 = vadd.f32 %v5120, %v5136
  %v5145 = vadd.f32 %v5121, %v5132
  %v5146 = vadd.f32 %v5122, %v5136
  %v5147 = vadd.f32 %v5123, %v5132
  %v5148 = vadd.f32 %v5124, %v5136
  %v5149 = vadd.f32 %v5125, %v5132
  %v5150 = vadd.f32 %v5126, %v5136
  %v5151 = vadd.f32 %v5127, %v5132
  %v5152 = vadd.f32 %v5128, %v5136
  %v5153 = vmax.f32 %v5137, 0.0
  %v5154 = vmax.f32 %v5138, 0.0
  %v5155 = vmax.f32 %v5139, 0.0
  %v5156 = vmax.f32 %v5140, 0.0
  %v5157 = vmax.f32 %v5141, 0.0
  %v5158 = vmax.f32 %v5142, 0.0
  %v5159 = vmax.f32 %v5143, 0.0
  %v5160 = vmax.f32 %v5144, 0.0
  %v5161 = vmax.f32 %v5145, 0.0
  %v5162 = vmax.f32 %v5146, 0.0
  %v5163 = vmax.f32 %v5147, 0.0
  %v5164 = vmax.f32 %v5148, 0.0
  %v5165 = vmax.f32 %v5149, 0.0
  %v5166 = vmax.f32 %v5150, 0.0
  %v5167 = vmax.f32 %v5151, 0.0
  %v5168 = vmax.f32 %v5152, 0.0
  %v5169 = vld [vmem:[%s1] sm:$0xff]
  %v5170 = vld [vmem:[%s1 + $0x8] sm:$0xff]
  %v5171 = vld [vmem:[%s1 + $0x10] sm:$0xff]
  %v5172 = vld [vmem:[%s1 + $0x18] sm:$0xff]
  %v5173 = vld [vmem:[%s1 + $0x20] sm:$0xff]
  %v5174 = vld [vmem:[%s1 + $0x28] sm:$0xff]
  %v5175 = vld [vmem:[%s1 + $0x30] sm:$0xff]
  %v5176 = vld [vmem:[%s1 + $0x38] sm:$0xff]
  %5178 = vset.pattern.permute.xlu0 0
  %5179 = vperm.xlu0 %5178, %v5169
  %v5180 = vpop.permute.xlu0 %5179
  %5183 = vset.pattern.permute.xlu0 0
  %5184 = vperm.xlu0 %5183, %v5170
  %v5185 = vpop.permute.xlu0 %5184
  %5188 = vset.pattern.permute.xlu0 0
  %5189 = vperm.xlu0 %5188, %v5171
  %v5190 = vpop.permute.xlu0 %5189
  %5193 = vset.pattern.permute.xlu0 0
  %5194 = vperm.xlu0 %5193, %v5172
  %v5195 = vpop.permute.xlu0 %5194
  %5198 = vset.pattern.permute.xlu0 0
  %5199 = vperm.xlu0 %5198, %v5173
  %v5200 = vpop.permute.xlu0 %5199
  %5203 = vset.pattern.permute.xlu0 0
  %5204 = vperm.xlu0 %5203, %v5174
  %v5205 = vpop.permute.xlu0 %5204
  %5208 = vset.pattern.permute.xlu0 0
  %5209 = vperm.xlu0 %5208, %v5175
  %v5210 = vpop.permute.xlu0 %5209
  %5213 = vset.pattern.permute.xlu0 0
  %5214 = vperm.xlu0 %5213, %v5176
  %v5215 = vpop.permute.xlu0 %5214
  %v5217 = vmul.f32 %v5153, %v5180
  %v5218 = vmul.f32 %v5154, %v5180
  %v5219 = vmul.f32 %v5155, %v5185
  %v5220 = vmul.f32 %v5156, %v5185
  %v5221 = vmul.f32 %v5157, %v5190
  %v5222 = vmul.f32 %v5158, %v5190
  %v5223 = vmul.f32 %v5159, %v5195
  %v5224 = vmul.f32 %v5160, %v5195
  %v5225 = vmul.f32 %v5161, %v5200
  %v5226 = vmul.f32 %v5162, %v5200
  %v5227 = vmul.f32 %v5163, %v5205
  %v5228 = vmul.f32 %v5164, %v5205
  %v5229 = vmul.f32 %v5165, %v5210
  %v5230 = vmul.f32 %v5166, %v5210
  %v5231 = vmul.f32 %v5167, %v5215
  %v5232 = vmul.f32 %v5168, %v5215
  %5233 = vst [vmem:[#allocation2 + $0x20] sm:$0xff] %v5217
  %5234 = vst [vmem:[#allocation2 + $0x28] sm:$0xff] %v5218
  %5235 = vst [vmem:[#allocation2 + $0x30] sm:$0xff] %v5219
  %5236 = vst [vmem:[#allocation2 + $0x38] sm:$0xff] %v5220
  %5237 = vst [vmem:[#allocation2 + $0x40] sm:$0xff] %v5221
  %5238 = vst [vmem:[#allocation2 + $0x48] sm:$0xff] %v5222
  %5239 = vst [vmem:[#allocation2 + $0x50] sm:$0xff] %v5223
  %5240 = vst [vmem:[#allocation2 + $0x58] sm:$0xff] %v5224
  %5241 = vst [vmem:[#allocation2 + $0x60] sm:$0xff] %v5225
  %5242 = vst [vmem:[#allocation2 + $0x68] sm:$0xff] %v5226
  %5243 = vst [vmem:[#allocation2 + $0x70] sm:$0xff] %v5227
  %5244 = vst [vmem:[#allocation2 + $0x78] sm:$0xff] %v5228
  %5245 = vst [vmem:[#allocation2 + $0x80] sm:$0xff] %v5229
  %5246 = vst [vmem:[#allocation2 + $0x88] sm:$0xff] %v5230
  %5247 = vst [vmem:[#allocation2 + $0x90] sm:$0xff] %v5231
  %5248 = vst [vmem:[#allocation2 + $0x98] sm:$0xff] %v5232
  %v5249 = vld [vmem:[#allocation2 + $0xa0] sm:$0xff]
  %v5250 = vld [vmem:[#allocation2 + $0xa8] sm:$0xff]
  %v5251 = vld [vmem:[#allocation2 + $0xb0] sm:$0xff]
  %v5252 = vld [vmem:[#allocation2 + $0xb8] sm:$0xff]
  %v5253 = vld [vmem:[#allocation2 + $0xc0] sm:$0xff]
  %v5254 = vld [vmem:[#allocation2 + $0xc8] sm:$0xff]
  %v5255 = vld [vmem:[#allocation2 + $0xd0] sm:$0xff]
  %v5256 = vld [vmem:[#allocation2 + $0xd8] sm:$0xff]
  %v5257 = vld [vmem:[#allocation2 + $0xe0] sm:$0xff]
  %v5258 = vld [vmem:[#allocation2 + $0xe8] sm:$0xff]
  %v5259 = vld [vmem:[#allocation2 + $0xf0] sm:$0xff]
  %v5260 = vld [vmem:[#allocation2 + $0xf8] sm:$0xff]
  %v5261 = vld [vmem:[#allocation2 + $0x100] sm:$0xff]
  %v5262 = vld [vmem:[#allocation2 + $0x108] sm:$0xff]
  %v5263 = vld [vmem:[#allocation2 + $0x110] sm:$0xff]
  %v5264 = vld [vmem:[#allocation2 + $0x118] sm:$0xff]
  %v5265 = vmul.f32 %v5249, %v5108
  %v5266 = vmul.f32 %v5250, %v5112
  %v5267 = vmul.f32 %v5251, %v5108
  %v5268 = vmul.f32 %v5252, %v5112
  %v5269 = vmul.f32 %v5253, %v5108
  %v5270 = vmul.f32 %v5254, %v5112
  %v5271 = vmul.f32 %v5255, %v5108
  %v5272 = vmul.f32 %v5256, %v5112
  %v5273 = vmul.f32 %v5257, %v5108
  %v5274 = vmul.f32 %v5258, %v5112
  %v5275 = vmul.f32 %v5259, %v5108
  %v5276 = vmul.f32 %v5260, %v5112
  %v5277 = vmul.f32 %v5261, %v5108
  %v5278 = vmul.f32 %v5262, %v5112
  %v5279 = vmul.f32 %v5263, %v5108
  %v5280 = vmul.f32 %v5264, %v5112
  %v5281 = vadd.f32 %v5265, %v5132
  %v5282 = vadd.f32 %v5266, %v5136
  %v5283 = vadd.f32 %v5267, %v5132
  %v5284 = vadd.f32 %v5268, %v5136
  %v5285 = vadd.f32 %v5269, %v5132
  %v5286 = vadd.f32 %v5270, %v5136
  %v5287 = vadd.f32 %v5271, %v5132
  %v5288 = vadd.f32 %v5272, %v5136
  %v5289 = vadd.f32 %v5273, %v5132
  %v5290 = vadd.f32 %v5274, %v5136
  %v5291 = vadd.f32 %v5275, %v5132
  %v5292 = vadd.f32 %v5276, %v5136
  %v5293 = vadd.f32 %v5277, %v5132
  %v5294 = vadd.f32 %v5278, %v5136
  %v5295 = vadd.f32 %v5279, %v5132
  %v5296 = vadd.f32 %v5280, %v5136
  %v5297 = vmax.f32 %v5281, 0.0
  %v5298 = vmax.f32 %v5282, 0.0
  %v5299 = vmax.f32 %v5283, 0.0
  %v5300 = vmax.f32 %v5284, 0.0
  %v5301 = vmax.f32 %v5285, 0.0
  %v5302 = vmax.f32 %v5286, 0.0
  %v5303 = vmax.f32 %v5287, 0.0
  %v5304 = vmax.f32 %v5288, 0.0
  %v5305 = vmax.f32 %v5289, 0.0
  %v5306 = vmax.f32 %v5290, 0.0
  %v5307 = vmax.f32 %v5291, 0.0
  %v5308 = vmax.f32 %v5292, 0.0
  %v5309 = vmax.f32 %v5293, 0.0
  %v5310 = vmax.f32 %v5294, 0.0
  %v5311 = vmax.f32 %v5295, 0.0
  %v5312 = vmax.f32 %v5296, 0.0
  %v5313 = vld [vmem:[%s1 + $0x40] sm:$0xff]
  %v5314 = vld [vmem:[%s1 + $0x48] sm:$0xff]
  %v5315 = vld [vmem:[%s1 + $0x50] sm:$0xff]
  %v5316 = vld [vmem:[%s1 + $0x58] sm:$0xff]
  %v5317 = vld [vmem:[%s1 + $0x60] sm:$0xff]
  %v5318 = vld [vmem:[%s1 + $0x68] sm:$0xff]
  %v5319 = vld [vmem:[%s1 + $0x70] sm:$0xff]
  %v5320 = vld [vmem:[%s1 + $0x78] sm:$0xff]
  %5322 = vset.pattern.permute.xlu0 0
  %5323 = vperm.xlu0 %5322, %v5313
  %v5324 = vpop.permute.xlu0 %5323
  %5327 = vset.pattern.permute.xlu0 0
  %5328 = vperm.xlu0 %5327, %v5314
  %v5329 = vpop.permute.xlu0 %5328
  %5332 = vset.pattern.permute.xlu0 0
  %5333 = vperm.xlu0 %5332, %v5315
  %v5334 = vpop.permute.xlu0 %5333
  %5337 = vset.pattern.permute.xlu0 0
  %5338 = vperm.xlu0 %5337, %v5316
  %v5339 = vpop.permute.xlu0 %5338
  %5342 = vset.pattern.permute.xlu0 0
  %5343 = vperm.xlu0 %5342, %v5317
  %v5344 = vpop.permute.xlu0 %5343
  %5347 = vset.pattern.permute.xlu0 0
  %5348 = vperm.xlu0 %5347, %v5318
  %v5349 = vpop.permute.xlu0 %5348
  %5352 = vset.pattern.permute.xlu0 0
  %5353 = vperm.xlu0 %5352, %v5319
  %v5354 = vpop.permute.xlu0 %5353
  %5357 = vset.pattern.permute.xlu0 0
  %5358 = vperm.xlu0 %5357, %v5320
  %v5359 = vpop.permute.xlu0 %5358
  %v5361 = vmul.f32 %v5297, %v5324
  %v5362 = vmul.f32 %v5298, %v5324
  %v5363 = vmul.f32 %v5299, %v5329
  %v5364 = vmul.f32 %v5300, %v5329
  %v5365 = vmul.f32 %v5301, %v5334
  %v5366 = vmul.f32 %v5302, %v5334
  %v5367 = vmul.f32 %v5303, %v5339
  %v5368 = vmul.f32 %v5304, %v5339
  %v5369 = vmul.f32 %v5305, %v5344
  %v5370 = vmul.f32 %v5306, %v5344
  %v5371 = vmul.f32 %v5307, %v5349
  %v5372 = vmul.f32 %v5308, %v5349
  %v5373 = vmul.f32 %v5309, %v5354
  %v5374 = vmul.f32 %v5310, %v5354
  %v5375 = vmul.f32 %v5311, %v5359
  %v5376 = vmul.f32 %v5312, %v5359
  %5377 = vst [vmem:[#allocation2 + $0xa0] sm:$0xff] %v5361
  %5378 = vst [vmem:[#allocation2 + $0xa8] sm:$0xff] %v5362
  %5379 = vst [vmem:[#allocation2 + $0xb0] sm:$0xff] %v5363
  %5380 = vst [vmem:[#allocation2 + $0xb8] sm:$0xff] %v5364
  %5381 = vst [vmem:[#allocation2 + $0xc0] sm:$0xff] %v5365
  %5382 = vst [vmem:[#allocation2 + $0xc8] sm:$0xff] %v5366
  %5383 = vst [vmem:[#allocation2 + $0xd0] sm:$0xff] %v5367
  %5384 = vst [vmem:[#allocation2 + $0xd8] sm:$0xff] %v5368
  %5385 = vst [vmem:[#allocation2 + $0xe0] sm:$0xff] %v5369
  %5386 = vst [vmem:[#allocation2 + $0xe8] sm:$0xff] %v5370
  %5387 = vst [vmem:[#allocation2 + $0xf0] sm:$0xff] %v5371
  %5388 = vst [vmem:[#allocation2 + $0xf8] sm:$0xff] %v5372
  %5389 = vst [vmem:[#allocation2 + $0x100] sm:$0xff] %v5373
  %5390 = vst [vmem:[#allocation2 + $0x108] sm:$0xff] %v5374
  %5391 = vst [vmem:[#allocation2 + $0x110] sm:$0xff] %v5375
  %5392 = vst [vmem:[#allocation2 + $0x118] sm:$0xff] %v5376
  %v5393 = vld [vmem:[%s7] sm:$0x3]
  %v5394 = vld [vmem:[#allocation2] sm:$0x80]
  %v5395 = vld [vmem:[#allocation2 + $0x8] sm:$0x80]
  %v5396 = vld [vmem:[#allocation2 + $0x10] sm:$0xff]
  %v5397 = vld [vmem:[#allocation2 + $0x18] sm:$0xff]
  %v5398 = vld [vmem:[#allocation2 + $0x20] sm:$0xff]
  %v5399 = vld [vmem:[#allocation2 + $0x28] sm:$0xff]
  %v5400 = vld [vmem:[#allocation2 + $0x30] sm:$0xff]
  %v5401 = vld [vmem:[#allocation2 + $0x38] sm:$0xff]
  %v5402 = vld [vmem:[#allocation2 + $0x40] sm:$0xff]
  %v5403 = vld [vmem:[#allocation2 + $0x48] sm:$0xff]
  %v5404 = vld [vmem:[#allocation2 + $0x50] sm:$0xff]
  %v5405 = vld [vmem:[#allocation2 + $0x58] sm:$0xff]
  %v5406 = vld [vmem:[#allocation2 + $0x60] sm:$0xff]
  %v5407 = vld [vmem:[#allocation2 + $0x68] sm:$0xff]
  %v5408 = vld [vmem:[#allocation2 + $0x70] sm:$0xff]
  %v5409 = vld [vmem:[#allocation2 + $0x78] sm:$0xff]
  %v5410 = vld [vmem:[#allocation2 + $0x80] sm:$0x7f]
  %v5411 = vld [vmem:[#allocation2 + $0x88] sm:$0x7f]
  %v5412 = vld [vmem:[%s6] sm:$0xff]
  %v5413 = vld [vmem:[%s6 + $0x8] sm:$0xff]
  %v5414 = vld [vmem:[%s6 + $0x10] sm:$0xff]
  %v5415 = vld [vmem:[%s6 + $0x18] sm:$0xff]
  %v5416 = vld [vmem:[%s6 + $0x20] sm:$0xff]
  %v5417 = vld [vmem:[%s6 + $0x28] sm:$0xff]
  %v5418 = vld [vmem:[%s6 + $0x30] sm:$0xff]
  %v5419 = vld [vmem:[%s6 + $0x38] sm:$0xff]
  %v5420 = vld [vmem:[%s6 + $0x40] sm:$0xff]
  %v5421 = vld [vmem:[%s6 + $0x48] sm:$0xff]
  %v5422 = vld [vmem:[%s6 + $0x50] sm:$0xff]
  %v5423 = vld [vmem:[%s6 + $0x58] sm:$0xff]
  %v5424 = vld [vmem:[%s6 + $0x60] sm:$0xff]
  %v5425 = vld [vmem:[%s6 + $0x68] sm:$0xff]
  %v5426 = vld [vmem:[%s6 + $0x70] sm:$0xff]
  %v5427 = vld [vmem:[%s6 + $0x78] sm:$0xff]
  %v5428 = vld [vmem:[%s6 + $0x80] sm:$0xff]
  %v5429 = vld [vmem:[%s6 + $0x88] sm:$0xff]
  %v5430 = vld [vmem:[%s6 + $0x90] sm:$0xff]
  %v5431 = vld [vmem:[%s6 + $0x98] sm:$0xff]
  %v5432 = vld [vmem:[%s6 + $0xa0] sm:$0xff]
  %v5433 = vld [vmem:[%s6 + $0xa8] sm:$0xff]
  %v5434 = vld [vmem:[%s6 + $0xb0] sm:$0xff]
  %v5435 = vld [vmem:[%s6 + $0xb8] sm:$0xff]
  %v5436 = vld [vmem:[%s6 + $0xc0] sm:$0xff]
  %v5437 = vld [vmem:[%s6 + $0xc8] sm:$0xff]
  %v5438 = vld [vmem:[%s6 + $0xd0] sm:$0xff]
  %v5439 = vld [vmem:[%s6 + $0xd8] sm:$0xff]
  %v5440 = vld [vmem:[%s6 + $0xe0] sm:$0xff]
  %v5441 = vld [vmem:[%s6 + $0xe8] sm:$0xff]
  %v5442 = vld [vmem:[%s6 + $0xf0] sm:$0xff]
  %v5443 = vld [vmem:[%s6 + $0xf8] sm:$0xff]
  %v5444 = vld [vmem:[%s6 + $0x100] sm:$0xff]
  %v5445 = vld [vmem:[%s6 + $0x108] sm:$0xff]
  %v5446 = vld [vmem:[%s6 + $0x110] sm:$0xff]
  %v5447 = vld [vmem:[%s6 + $0x118] sm:$0xff]
  %v5448 = vld [vmem:[%s6 + $0x120] sm:$0xff]
  %v5449 = vld [vmem:[%s6 + $0x128] sm:$0xff]
  %v5450 = vld [vmem:[%s6 + $0x130] sm:$0xff]
  %v5451 = vld [vmem:[%s6 + $0x138] sm:$0xff]
  %v5452 = vld [vmem:[%s6 + $0x140] sm:$0xff]
  %v5453 = vld [vmem:[%s6 + $0x148] sm:$0xff]
  %v5454 = vld [vmem:[%s6 + $0x150] sm:$0xff]
  %v5455 = vld [vmem:[%s6 + $0x158] sm:$0xff]
  %v5456 = vld [vmem:[%s6 + $0x160] sm:$0xff]
  %v5457 = vld [vmem:[%s6 + $0x168] sm:$0xff]
  %v5458 = vld [vmem:[%s6 + $0x170] sm:$0xff]
  %v5459 = vld [vmem:[%s6 + $0x178] sm:$0xff]
  %v5460 = vld [vmem:[%s6 + $0x180] sm:$0xff]
  %v5461 = vld [vmem:[%s6 + $0x188] sm:$0xff]
  %v5462 = vld [vmem:[%s6 + $0x190] sm:$0xff]
  %v5463 = vld [vmem:[%s6 + $0x198] sm:$0xff]
  %v5464 = vld [vmem:[%s6 + $0x1a0] sm:$0xff]
  %v5465 = vld [vmem:[%s6 + $0x1a8] sm:$0xff]
  %v5466 = vld [vmem:[%s6 + $0x1b0] sm:$0xff]
  %v5467 = vld [vmem:[%s6 + $0x1b8] sm:$0xff]
  %v5468 = vld [vmem:[%s6 + $0x1c0] sm:$0xff]
  %v5469 = vld [vmem:[%s6 + $0x1c8] sm:$0xff]
  %v5470 = vld [vmem:[%s6 + $0x1d0] sm:$0xff]
  %v5471 = vld [vmem:[%s6 + $0x1d8] sm:$0xff]
  %v5472 = vld [vmem:[%s6 + $0x1e0] sm:$0xff]
  %v5473 = vld [vmem:[%s6 + $0x1e8] sm:$0xff]
  %v5474 = vld [vmem:[%s6 + $0x1f0] sm:$0xff]
  %v5475 = vld [vmem:[%s6 + $0x1f8] sm:$0xff]
  %v5476 = vld [vmem:[#allocation2 + $0x80] sm:$0xff]
  %v5477 = vld [vmem:[#allocation2 + $0x88] sm:$0xff]
  %s5478 = scalar_lea.vmem %s6, 512
  %v5479 = vld [vmem:[%s5478] sm:$0xff]
  %v5480 = vld [vmem:[%s5478 + $0x8] sm:$0xff]
  %v5481 = vld [vmem:[%s5478 + $0x10] sm:$0xff]
  %v5482 = vld [vmem:[%s5478 + $0x18] sm:$0xff]
  %v5483 = vld [vmem:[%s5478 + $0x20] sm:$0xff]
  %v5484 = vld [vmem:[%s5478 + $0x28] sm:$0xff]
  %v5485 = vld [vmem:[%s5478 + $0x30] sm:$0xff]
  %v5486 = vld [vmem:[%s5478 + $0x38] sm:$0xff]
  %v5487 = vld [vmem:[%s5478 + $0x40] sm:$0xff]
  %v5488 = vld [vmem:[%s5478 + $0x48] sm:$0xff]
  %v5489 = vld [vmem:[%s5478 + $0x50] sm:$0xff]
  %v5490 = vld [vmem:[%s5478 + $0x58] sm:$0xff]
  %v5491 = vld [vmem:[%s5478 + $0x60] sm:$0xff]
  %v5492 = vld [vmem:[%s5478 + $0x68] sm:$0xff]
  %v5493 = vld [vmem:[%s5478 + $0x70] sm:$0xff]
  %v5494 = vld [vmem:[%s5478 + $0x78] sm:$0xff]
  %v5495 = vld [vmem:[%s5478 + $0x80] sm:$0xff]
  %v5496 = vld [vmem:[%s5478 + $0x88] sm:$0xff]
  %v5497 = vld [vmem:[%s5478 + $0x90] sm:$0xff]
  %v5498 = vld [vmem:[%s5478 + $0x98] sm:$0xff]
  %v5499 = vld [vmem:[%s5478 + $0xa0] sm:$0xff]
  %v5500 = vld [vmem:[%s5478 + $0xa8] sm:$0xff]
  %v5501 = vld [vmem:[%s5478 + $0xb0] sm:$0xff]
  %v5502 = vld [vmem:[%s5478 + $0xb8] sm:$0xff]
  %v5503 = vld [vmem:[%s5478 + $0xc0] sm:$0xff]
  %v5504 = vld [vmem:[%s5478 + $0xc8] sm:$0xff]
  %v5505 = vld [vmem:[%s5478 + $0xd0] sm:$0xff]
  %v5506 = vld [vmem:[%s5478 + $0xd8] sm:$0xff]
  %v5507 = vld [vmem:[%s5478 + $0xe0] sm:$0xff]
  %v5508 = vld [vmem:[%s5478 + $0xe8] sm:$0xff]
  %v5509 = vld [vmem:[%s5478 + $0xf0] sm:$0xff]
  %v5510 = vld [vmem:[%s5478 + $0xf8] sm:$0xff]
  %v5511 = vld [vmem:[%s5478 + $0x100] sm:$0xff]
  %v5512 = vld [vmem:[%s5478 + $0x108] sm:$0xff]
  %v5513 = vld [vmem:[%s5478 + $0x110] sm:$0xff]
  %v5514 = vld [vmem:[%s5478 + $0x118] sm:$0xff]
  %v5515 = vld [vmem:[%s5478 + $0x120] sm:$0xff]
  %v5516 = vld [vmem:[%s5478 + $0x128] sm:$0xff]
  %v5517 = vld [vmem:[%s5478 + $0x130] sm:$0xff]
  %v5518 = vld [vmem:[%s5478 + $0x138] sm:$0xff]
  %v5519 = vld [vmem:[%s5478 + $0x140] sm:$0xff]
  %v5520 = vld [vmem:[%s5478 + $0x148] sm:$0xff]
  %v5521 = vld [vmem:[%s5478 + $0x150] sm:$0xff]
  %v5522 = vld [vmem:[%s5478 + $0x158] sm:$0xff]
  %v5523 = vld [vmem:[%s5478 + $0x160] sm:$0xff]
  %v5524 = vld [vmem:[%s5478 + $0x168] sm:$0xff]
  %v5525 = vld [vmem:[%s5478 + $0x170] sm:$0xff]
  %v5526 = vld [vmem:[%s5478 + $0x178] sm:$0xff]
  %v5527 = vld [vmem:[%s5478 + $0x180] sm:$0xff]
  %v5528 = vld [vmem:[%s5478 + $0x188] sm:$0xff]
  %v5529 = vld [vmem:[%s5478 + $0x190] sm:$0xff]
  %v5530 = vld [vmem:[%s5478 + $0x198] sm:$0xff]
  %v5531 = vld [vmem:[%s5478 + $0x1a0] sm:$0xff]
  %v5532 = vld [vmem:[%s5478 + $0x1a8] sm:$0xff]
  %v5533 = vld [vmem:[%s5478 + $0x1b0] sm:$0xff]
  %v5534 = vld [vmem:[%s5478 + $0x1b8] sm:$0xff]
  %v5535 = vld [vmem:[%s5478 + $0x1c0] sm:$0xff]
  %v5536 = vld [vmem:[%s5478 + $0x1c8] sm:$0xff]
  %v5537 = vld [vmem:[%s5478 + $0x1d0] sm:$0xff]
  %v5538 = vld [vmem:[%s5478 + $0x1d8] sm:$0xff]
  %v5539 = vld [vmem:[%s5478 + $0x1e0] sm:$0xff]
  %v5540 = vld [vmem:[%s5478 + $0x1e8] sm:$0xff]
  %v5541 = vld [vmem:[%s5478 + $0x1f0] sm:$0xff]
  %v5542 = vld [vmem:[%s5478 + $0x1f8] sm:$0xff]
  %5543 = vmatprep.subr.mxu0 %v5510
  %5544 = vmatpush1.msra.mxu0 %v5509
  %5545 = vmatprep.subr.mxu0 %v5508
  %5546 = vmatpush1.msra.mxu0 %v5507
  %5547 = vmatprep.subr.mxu0 %v5506
  %5548 = vmatpush1.msra.mxu0 %v5505
  %5549 = vmatprep.subr.mxu0 %v5504
  %5550 = vmatpush1.msra.mxu0 %v5503
  %5551 = vmatprep.subr.mxu0 %v5502
  %5552 = vmatpush1.msra.mxu0 %v5501
  %5553 = vmatprep.subr.mxu0 %v5500
  %5554 = vmatpush1.msra.mxu0 %v5499
  %5555 = vmatprep.subr.mxu0 %v5498
  %5556 = vmatpush1.msra.mxu0 %v5497
  %5557 = vmatprep.subr.mxu0 %v5496
  %5558 = vmatpush1.msra.mxu0 %v5495
  %5559 = vmatprep.subr.mxu0 %v5494
  %5560 = vmatpush1.msra.mxu0 %v5493
  %5561 = vmatprep.subr.mxu0 %v5492
  %5562 = vmatpush1.msra.mxu0 %v5491
  %5563 = vmatprep.subr.mxu0 %v5490
  %5564 = vmatpush1.msra.mxu0 %v5489
  %5565 = vmatprep.subr.mxu0 %v5488
  %5566 = vmatpush1.msra.mxu0 %v5487
  %5567 = vmatprep.subr.mxu0 %v5486
  %5568 = vmatpush1.msra.mxu0 %v5485
  %5569 = vmatprep.subr.mxu0 %v5484
  %5570 = vmatpush1.msra.mxu0 %v5483
  %5571 = vmatprep.subr.mxu0 %v5482
  %5572 = vmatpush1.msra.mxu0 %v5481
  %5573 = vmatprep.subr.mxu0 %v5480
  %5574 = vmatpush1.msra.mxu0 %v5479
  %5575 = vmatprep.subr.mxu0 %v5542
  %5576 = vmatpush2.msra.mxu0 %v5541
  %5577 = vmatprep.subr.mxu0 %v5540
  %5578 = vmatpush2.msra.mxu0 %v5539
  %5579 = vmatprep.subr.mxu0 %v5538
  %5580 = vmatpush2.msra.mxu0 %v5537
  %5581 = vmatprep.subr.mxu0 %v5536
  %5582 = vmatpush2.msra.mxu0 %v5535
  %5583 = vmatprep.subr.mxu0 %v5534
  %5584 = vmatpush2.msra.mxu0 %v5533
  %5585 = vmatprep.subr.mxu0 %v5532
  %5586 = vmatpush2.msra.mxu0 %v5531
  %5587 = vmatprep.subr.mxu0 %v5530
  %5588 = vmatpush2.msra.mxu0 %v5529
  %5589 = vmatprep.subr.mxu0 %v5528
  %5590 = vmatpush2.msra.mxu0 %v5527
  %5591 = vmatprep.subr.mxu0 %v5526
  %5592 = vmatpush2.msra.mxu0 %v5525
  %5593 = vmatprep.subr.mxu0 %v5524
  %5594 = vmatpush2.msra.mxu0 %v5523
  %5595 = vmatprep.subr.mxu0 %v5522
  %5596 = vmatpush2.msra.mxu0 %v5521
  %5597 = vmatprep.subr.mxu0 %v5520
  %5598 = vmatpush2.msra.mxu0 %v5519
  %5599 = vmatprep.subr.mxu0 %v5518
  %5600 = vmatpush2.msra.mxu0 %v5517
  %5601 = vmatprep.subr.mxu0 %v5516
  %5602 = vmatpush2.msra.mxu0 %v5515
  %5603 = vmatprep.subr.mxu0 %v5514
  %5604 = vmatpush2.msra.mxu0 %v5513
  %5605 = vmatprep.subr.mxu0 %v5512
  %5606 = vmatpush2.msra.mxu0 %v5511
  %5607 = vmatprep.mubr.f32.mxu0 %v5397
  %5608 = vmatmul.mubr.f32.gmra.mxu0 %v5396
  %v5609 = vpop.f32.mrf.mxu0
  %v5610 = vadd.f32 0.0, %v5609
  %v5611 = vpop.f32.mrf.mxu0
  %v5612 = vadd.f32 0.0, %v5611
  %5613 = vmatprep.mubr.f32.mxu0 %v5399
  %5614 = vmatmul.mubr.f32.gmra.mxu0 %v5398
  %v5615 = vpop.f32.mrf.mxu0
  %v5616 = vadd.f32 0.0, %v5615
  %v5617 = vpop.f32.mrf.mxu0
  %v5618 = vadd.f32 0.0, %v5617
  %5619 = vmatprep.mubr.f32.mxu0 %v5401
  %5620 = vmatmul.mubr.f32.gmra.mxu0 %v5400
  %v5621 = vpop.f32.mrf.mxu0
  %v5622 = vadd.f32 0.0, %v5621
  %v5623 = vpop.f32.mrf.mxu0
  %v5624 = vadd.f32 0.0, %v5623
  %5625 = vmatprep.mubr.f32.mxu0 %v5403
  %5626 = vmatmul.mubr.f32.gmra.mxu0 %v5402
  %v5627 = vpop.f32.mrf.mxu0
  %v5628 = vadd.f32 0.0, %v5627
  %v5629 = vpop.f32.mrf.mxu0
  %v5630 = vadd.f32 0.0, %v5629
  %5631 = vmatprep.mubr.f32.mxu0 %v5405
  %5632 = vmatmul.mubr.f32.gmra.mxu0 %v5404
  %v5633 = vpop.f32.mrf.mxu0
  %v5634 = vadd.f32 0.0, %v5633
  %v5635 = vpop.f32.mrf.mxu0
  %v5636 = vadd.f32 0.0, %v5635
  %5637 = vmatprep.mubr.f32.mxu0 %v5407
  %5638 = vmatmul.mubr.f32.gmra.mxu0 %v5406
  %v5639 = vpop.f32.mrf.mxu0
  %v5640 = vadd.f32 0.0, %v5639
  %v5641 = vpop.f32.mrf.mxu0
  %v5642 = vadd.f32 0.0, %v5641
  %5643 = vmatprep.mubr.f32.mxu0 %v5409
  %5644 = vmatmul.mubr.f32.gmra.mxu0 %v5408
  %v5645 = vpop.f32.mrf.mxu0
  %v5646 = vadd.f32 0.0, %v5645
  %v5647 = vpop.f32.mrf.mxu0
  %v5648 = vadd.f32 0.0, %v5647
  %5649 = vmatprep.mubr.f32.mxu0 %v5477
  %5650 = vmatmul.mubr.f32.gmra.mxu0 %v5476
  %v5651 = vpop.f32.mrf.mxu0
  %v5652 = vadd.f32 0.0, %v5651
  %v5653 = vpop.f32.mrf.mxu0
  %v5654 = vadd.f32 0.0, %v5653
  %5655 = vdwg.mxu0
  %v5674 = vrot.slane %v5394, 7
  %v5675 = vrot.slane %v5396, 7
  %v5676 = vsel %vm330, %v5674, %v5675
  %v5677 = vrot.slane %v5395, 7
  %v5678 = vrot.slane %v5397, 7
  %v5679 = vsel %vm330, %v5677, %v5678
  %v5680 = vrot.slane %v5398, 7
  %v5681 = vsel %vm330, %v5675, %v5680
  %v5682 = vrot.slane %v5399, 7
  %v5683 = vsel %vm330, %v5678, %v5682
  %v5684 = vrot.slane %v5400, 7
  %v5685 = vsel %vm330, %v5680, %v5684
  %v5686 = vrot.slane %v5401, 7
  %v5687 = vsel %vm330, %v5682, %v5686
  %v5688 = vrot.slane %v5402, 7
  %v5689 = vsel %vm330, %v5684, %v5688
  %v5690 = vrot.slane %v5403, 7
  %v5691 = vsel %vm330, %v5686, %v5690
  %v5692 = vrot.slane %v5404, 7
  %v5693 = vsel %vm330, %v5688, %v5692
  %v5694 = vrot.slane %v5405, 7
  %v5695 = vsel %vm330, %v5690, %v5694
  %v5696 = vrot.slane %v5406, 7
  %v5697 = vsel %vm330, %v5692, %v5696
  %v5698 = vrot.slane %v5407, 7
  %v5699 = vsel %vm330, %v5694, %v5698
  %v5700 = vrot.slane %v5408, 7
  %v5701 = vsel %vm330, %v5696, %v5700
  %v5702 = vrot.slane %v5409, 7
  %v5703 = vsel %vm330, %v5698, %v5702
  %v5704 = vrot.slane %v5410, 7
  %v5705 = vsel %vm330, %v5700, %v5704
  %v5706 = vrot.slane %v5411, 7
  %v5707 = vsel %vm330, %v5702, %v5706
  %5724 = vmatprep.subr.mxu0 %v5443
  %5725 = vmatpush1.msra.mxu0 %v5442
  %5726 = vmatprep.subr.mxu0 %v5441
  %5727 = vmatpush1.msra.mxu0 %v5440
  %5728 = vmatprep.subr.mxu0 %v5439
  %5729 = vmatpush1.msra.mxu0 %v5438
  %5730 = vmatprep.subr.mxu0 %v5437
  %5731 = vmatpush1.msra.mxu0 %v5436
  %5732 = vmatprep.subr.mxu0 %v5435
  %5733 = vmatpush1.msra.mxu0 %v5434
  %5734 = vmatprep.subr.mxu0 %v5433
  %5735 = vmatpush1.msra.mxu0 %v5432
  %5736 = vmatprep.subr.mxu0 %v5431
  %5737 = vmatpush1.msra.mxu0 %v5430
  %5738 = vmatprep.subr.mxu0 %v5429
  %5739 = vmatpush1.msra.mxu0 %v5428
  %5740 = vmatprep.subr.mxu0 %v5427
  %5741 = vmatpush1.msra.mxu0 %v5426
  %5742 = vmatprep.subr.mxu0 %v5425
  %5743 = vmatpush1.msra.mxu0 %v5424
  %5744 = vmatprep.subr.mxu0 %v5423
  %5745 = vmatpush1.msra.mxu0 %v5422
  %5746 = vmatprep.subr.mxu0 %v5421
  %5747 = vmatpush1.msra.mxu0 %v5420
  %5748 = vmatprep.subr.mxu0 %v5419
  %5749 = vmatpush1.msra.mxu0 %v5418
  %5750 = vmatprep.subr.mxu0 %v5417
  %5751 = vmatpush1.msra.mxu0 %v5416
  %5752 = vmatprep.subr.mxu0 %v5415
  %5753 = vmatpush1.msra.mxu0 %v5414
  %5754 = vmatprep.subr.mxu0 %v5413
  %5755 = vmatpush1.msra.mxu0 %v5412
  %5756 = vmatprep.subr.mxu0 %v5475
  %5757 = vmatpush2.msra.mxu0 %v5474
  %5758 = vmatprep.subr.mxu0 %v5473
  %5759 = vmatpush2.msra.mxu0 %v5472
  %5760 = vmatprep.subr.mxu0 %v5471
  %5761 = vmatpush2.msra.mxu0 %v5470
  %5762 = vmatprep.subr.mxu0 %v5469
  %5763 = vmatpush2.msra.mxu0 %v5468
  %5764 = vmatprep.subr.mxu0 %v5467
  %5765 = vmatpush2.msra.mxu0 %v5466
  %5766 = vmatprep.subr.mxu0 %v5465
  %5767 = vmatpush2.msra.mxu0 %v5464
  %5768 = vmatprep.subr.mxu0 %v5463
  %5769 = vmatpush2.msra.mxu0 %v5462
  %5770 = vmatprep.subr.mxu0 %v5461
  %5771 = vmatpush2.msra.mxu0 %v5460
  %5772 = vmatprep.subr.mxu0 %v5459
  %5773 = vmatpush2.msra.mxu0 %v5458
  %5774 = vmatprep.subr.mxu0 %v5457
  %5775 = vmatpush2.msra.mxu0 %v5456
  %5776 = vmatprep.subr.mxu0 %v5455
  %5777 = vmatpush2.msra.mxu0 %v5454
  %5778 = vmatprep.subr.mxu0 %v5453
  %5779 = vmatpush2.msra.mxu0 %v5452
  %5780 = vmatprep.subr.mxu0 %v5451
  %5781 = vmatpush2.msra.mxu0 %v5450
  %5782 = vmatprep.subr.mxu0 %v5449
  %5783 = vmatpush2.msra.mxu0 %v5448
  %5784 = vmatprep.subr.mxu0 %v5447
  %5785 = vmatpush2.msra.mxu0 %v5446
  %5786 = vmatprep.subr.mxu0 %v5445
  %5787 = vmatpush2.msra.mxu0 %v5444
  %5788 = vmatprep.mubr.f32.mxu0 %v5679
  %5789 = vmatmul.mubr.f32.gmra.mxu0 %v5676
  %v5790 = vpop.f32.mrf.mxu0
  %v5791 = vadd.f32 %v5610, %v5790
  %v5792 = vpop.f32.mrf.mxu0
  %v5793 = vadd.f32 %v5612, %v5792
  %5794 = vmatprep.mubr.f32.mxu0 %v5683
  %5795 = vmatmul.mubr.f32.gmra.mxu0 %v5681
  %v5796 = vpop.f32.mrf.mxu0
  %v5797 = vadd.f32 %v5616, %v5796
  %v5798 = vpop.f32.mrf.mxu0
  %v5799 = vadd.f32 %v5618, %v5798
  %5800 = vmatprep.mubr.f32.mxu0 %v5687
  %5801 = vmatmul.mubr.f32.gmra.mxu0 %v5685
  %v5802 = vpop.f32.mrf.mxu0
  %v5803 = vadd.f32 %v5622, %v5802
  %v5804 = vpop.f32.mrf.mxu0
  %v5805 = vadd.f32 %v5624, %v5804
  %5806 = vmatprep.mubr.f32.mxu0 %v5691
  %5807 = vmatmul.mubr.f32.gmra.mxu0 %v5689
  %v5808 = vpop.f32.mrf.mxu0
  %v5809 = vadd.f32 %v5628, %v5808
  %v5810 = vpop.f32.mrf.mxu0
  %v5811 = vadd.f32 %v5630, %v5810
  %5812 = vmatprep.mubr.f32.mxu0 %v5695
  %5813 = vmatmul.mubr.f32.gmra.mxu0 %v5693
  %v5814 = vpop.f32.mrf.mxu0
  %v5815 = vadd.f32 %v5634, %v5814
  %v5816 = vpop.f32.mrf.mxu0
  %v5817 = vadd.f32 %v5636, %v5816
  %5818 = vmatprep.mubr.f32.mxu0 %v5699
  %5819 = vmatmul.mubr.f32.gmra.mxu0 %v5697
  %v5820 = vpop.f32.mrf.mxu0
  %v5821 = vadd.f32 %v5640, %v5820
  %v5822 = vpop.f32.mrf.mxu0
  %v5823 = vadd.f32 %v5642, %v5822
  %5824 = vmatprep.mubr.f32.mxu0 %v5703
  %5825 = vmatmul.mubr.f32.gmra.mxu0 %v5701
  %v5826 = vpop.f32.mrf.mxu0
  %v5827 = vadd.f32 %v5646, %v5826
  %v5828 = vpop.f32.mrf.mxu0
  %v5829 = vadd.f32 %v5648, %v5828
  %5830 = vmatprep.mubr.f32.mxu0 %v5707
  %5831 = vmatmul.mubr.f32.gmra.mxu0 %v5705
  %v5832 = vpop.f32.mrf.mxu0
  %v5833 = vadd.f32 %v5652, %v5832
  %v5834 = vpop.f32.mrf.mxu0
  %v5835 = vadd.f32 %v5654, %v5834
  %5836 = vdwg.mxu0
  %v5837 = vld [vmem:[#allocation2 + $0x10] sm:$0xfe]
  %v5838 = vld [vmem:[#allocation2 + $0x18] sm:$0xfe]
  %v5839 = vld [vmem:[#allocation2 + $0x20] sm:$0xff]
  %v5840 = vld [vmem:[#allocation2 + $0x28] sm:$0xff]
  %v5841 = vld [vmem:[#allocation2 + $0x30] sm:$0xff]
  %v5842 = vld [vmem:[#allocation2 + $0x38] sm:$0xff]
  %v5843 = vld [vmem:[#allocation2 + $0x40] sm:$0xff]
  %v5844 = vld [vmem:[#allocation2 + $0x48] sm:$0xff]
  %v5845 = vld [vmem:[#allocation2 + $0x50] sm:$0xff]
  %v5846 = vld [vmem:[#allocation2 + $0x58] sm:$0xff]
  %v5847 = vld [vmem:[#allocation2 + $0x60] sm:$0xff]
  %v5848 = vld [vmem:[#allocation2 + $0x68] sm:$0xff]
  %v5849 = vld [vmem:[#allocation2 + $0x70] sm:$0xff]
  %v5850 = vld [vmem:[#allocation2 + $0x78] sm:$0xff]
  %v5851 = vld [vmem:[#allocation2 + $0x80] sm:$0xff]
  %v5852 = vld [vmem:[#allocation2 + $0x88] sm:$0xff]
  %v5853 = vld [vmem:[#allocation2 + $0x90] sm:$0x1]
  %v5854 = vld [vmem:[#allocation2 + $0x98] sm:$0x1]
  %s5855 = scalar_lea.vmem %s6, 1024
  %v5856 = vld [vmem:[%s5855] sm:$0xff]
  %v5857 = vld [vmem:[%s5855 + $0x8] sm:$0xff]
  %v5858 = vld [vmem:[%s5855 + $0x10] sm:$0xff]
  %v5859 = vld [vmem:[%s5855 + $0x18] sm:$0xff]
  %v5860 = vld [vmem:[%s5855 + $0x20] sm:$0xff]
  %v5861 = vld [vmem:[%s5855 + $0x28] sm:$0xff]
  %v5862 = vld [vmem:[%s5855 + $0x30] sm:$0xff]
  %v5863 = vld [vmem:[%s5855 + $0x38] sm:$0xff]
  %v5864 = vld [vmem:[%s5855 + $0x40] sm:$0xff]
  %v5865 = vld [vmem:[%s5855 + $0x48] sm:$0xff]
  %v5866 = vld [vmem:[%s5855 + $0x50] sm:$0xff]
  %v5867 = vld [vmem:[%s5855 + $0x58] sm:$0xff]
  %v5868 = vld [vmem:[%s5855 + $0x60] sm:$0xff]
  %v5869 = vld [vmem:[%s5855 + $0x68] sm:$0xff]
  %v5870 = vld [vmem:[%s5855 + $0x70] sm:$0xff]
  %v5871 = vld [vmem:[%s5855 + $0x78] sm:$0xff]
  %v5872 = vld [vmem:[%s5855 + $0x80] sm:$0xff]
  %v5873 = vld [vmem:[%s5855 + $0x88] sm:$0xff]
  %v5874 = vld [vmem:[%s5855 + $0x90] sm:$0xff]
  %v5875 = vld [vmem:[%s5855 + $0x98] sm:$0xff]
  %v5876 = vld [vmem:[%s5855 + $0xa0] sm:$0xff]
  %v5877 = vld [vmem:[%s5855 + $0xa8] sm:$0xff]
  %v5878 = vld [vmem:[%s5855 + $0xb0] sm:$0xff]
  %v5879 = vld [vmem:[%s5855 + $0xb8] sm:$0xff]
  %v5880 = vld [vmem:[%s5855 + $0xc0] sm:$0xff]
  %v5881 = vld [vmem:[%s5855 + $0xc8] sm:$0xff]
  %v5882 = vld [vmem:[%s5855 + $0xd0] sm:$0xff]
  %v5883 = vld [vmem:[%s5855 + $0xd8] sm:$0xff]
  %v5884 = vld [vmem:[%s5855 + $0xe0] sm:$0xff]
  %v5885 = vld [vmem:[%s5855 + $0xe8] sm:$0xff]
  %v5886 = vld [vmem:[%s5855 + $0xf0] sm:$0xff]
  %v5887 = vld [vmem:[%s5855 + $0xf8] sm:$0xff]
  %v5888 = vld [vmem:[%s5855 + $0x100] sm:$0xff]
  %v5889 = vld [vmem:[%s5855 + $0x108] sm:$0xff]
  %v5890 = vld [vmem:[%s5855 + $0x110] sm:$0xff]
  %v5891 = vld [vmem:[%s5855 + $0x118] sm:$0xff]
  %v5892 = vld [vmem:[%s5855 + $0x120] sm:$0xff]
  %v5893 = vld [vmem:[%s5855 + $0x128] sm:$0xff]
  %v5894 = vld [vmem:[%s5855 + $0x130] sm:$0xff]
  %v5895 = vld [vmem:[%s5855 + $0x138] sm:$0xff]
  %v5896 = vld [vmem:[%s5855 + $0x140] sm:$0xff]
  %v5897 = vld [vmem:[%s5855 + $0x148] sm:$0xff]
  %v5898 = vld [vmem:[%s5855 + $0x150] sm:$0xff]
  %v5899 = vld [vmem:[%s5855 + $0x158] sm:$0xff]
  %v5900 = vld [vmem:[%s5855 + $0x160] sm:$0xff]
  %v5901 = vld [vmem:[%s5855 + $0x168] sm:$0xff]
  %v5902 = vld [vmem:[%s5855 + $0x170] sm:$0xff]
  %v5903 = vld [vmem:[%s5855 + $0x178] sm:$0xff]
  %v5904 = vld [vmem:[%s5855 + $0x180] sm:$0xff]
  %v5905 = vld [vmem:[%s5855 + $0x188] sm:$0xff]
  %v5906 = vld [vmem:[%s5855 + $0x190] sm:$0xff]
  %v5907 = vld [vmem:[%s5855 + $0x198] sm:$0xff]
  %v5908 = vld [vmem:[%s5855 + $0x1a0] sm:$0xff]
  %v5909 = vld [vmem:[%s5855 + $0x1a8] sm:$0xff]
  %v5910 = vld [vmem:[%s5855 + $0x1b0] sm:$0xff]
  %v5911 = vld [vmem:[%s5855 + $0x1b8] sm:$0xff]
  %v5912 = vld [vmem:[%s5855 + $0x1c0] sm:$0xff]
  %v5913 = vld [vmem:[%s5855 + $0x1c8] sm:$0xff]
  %v5914 = vld [vmem:[%s5855 + $0x1d0] sm:$0xff]
  %v5915 = vld [vmem:[%s5855 + $0x1d8] sm:$0xff]
  %v5916 = vld [vmem:[%s5855 + $0x1e0] sm:$0xff]
  %v5917 = vld [vmem:[%s5855 + $0x1e8] sm:$0xff]
  %v5918 = vld [vmem:[%s5855 + $0x1f0] sm:$0xff]
  %v5919 = vld [vmem:[%s5855 + $0x1f8] sm:$0xff]
  %v5938 = vrot.slane %v5837, 1
  %v5939 = vrot.slane %v5839, 1
  %v5940 = vsel %vm595, %v5938, %v5939
  %v5941 = vrot.slane %v5838, 1
  %v5942 = vrot.slane %v5840, 1
  %v5943 = vsel %vm595, %v5941, %v5942
  %v5944 = vrot.slane %v5841, 1
  %v5945 = vsel %vm595, %v5939, %v5944
  %v5946 = vrot.slane %v5842, 1
  %v5947 = vsel %vm595, %v5942, %v5946
  %v5948 = vrot.slane %v5843, 1
  %v5949 = vsel %vm595, %v5944, %v5948
  %v5950 = vrot.slane %v5844, 1
  %v5951 = vsel %vm595, %v5946, %v5950
  %v5952 = vrot.slane %v5845, 1
  %v5953 = vsel %vm595, %v5948, %v5952
  %v5954 = vrot.slane %v5846, 1
  %v5955 = vsel %vm595, %v5950, %v5954
  %v5956 = vrot.slane %v5847, 1
  %v5957 = vsel %vm595, %v5952, %v5956
  %v5958 = vrot.slane %v5848, 1
  %v5959 = vsel %vm595, %v5954, %v5958
  %v5960 = vrot.slane %v5849, 1
  %v5961 = vsel %vm595, %v5956, %v5960
  %v5962 = vrot.slane %v5850, 1
  %v5963 = vsel %vm595, %v5958, %v5962
  %v5964 = vrot.slane %v5851, 1
  %v5965 = vsel %vm595, %v5960, %v5964
  %v5966 = vrot.slane %v5852, 1
  %v5967 = vsel %vm595, %v5962, %v5966
  %v5968 = vrot.slane %v5853, 1
  %v5969 = vsel %vm595, %v5964, %v5968
  %v5970 = vrot.slane %v5854, 1
  %v5971 = vsel %vm595, %v5966, %v5970
  %5988 = vmatprep.subr.mxu0 %v5887
  %5989 = vmatpush1.msra.mxu0 %v5886
  %5990 = vmatprep.subr.mxu0 %v5885
  %5991 = vmatpush1.msra.mxu0 %v5884
  %5992 = vmatprep.subr.mxu0 %v5883
  %5993 = vmatpush1.msra.mxu0 %v5882
  %5994 = vmatprep.subr.mxu0 %v5881
  %5995 = vmatpush1.msra.mxu0 %v5880
  %5996 = vmatprep.subr.mxu0 %v5879
  %5997 = vmatpush1.msra.mxu0 %v5878
  %5998 = vmatprep.subr.mxu0 %v5877
  %5999 = vmatpush1.msra.mxu0 %v5876
  %6000 = vmatprep.subr.mxu0 %v5875
  %6001 = vmatpush1.msra.mxu0 %v5874
  %6002 = vmatprep.subr.mxu0 %v5873
  %6003 = vmatpush1.msra.mxu0 %v5872
  %6004 = vmatprep.subr.mxu0 %v5871
  %6005 = vmatpush1.msra.mxu0 %v5870
  %6006 = vmatprep.subr.mxu0 %v5869
  %6007 = vmatpush1.msra.mxu0 %v5868
  %6008 = vmatprep.subr.mxu0 %v5867
  %6009 = vmatpush1.msra.mxu0 %v5866
  %6010 = vmatprep.subr.mxu0 %v5865
  %6011 = vmatpush1.msra.mxu0 %v5864
  %6012 = vmatprep.subr.mxu0 %v5863
  %6013 = vmatpush1.msra.mxu0 %v5862
  %6014 = vmatprep.subr.mxu0 %v5861
  %6015 = vmatpush1.msra.mxu0 %v5860
  %6016 = vmatprep.subr.mxu0 %v5859
  %6017 = vmatpush1.msra.mxu0 %v5858
  %6018 = vmatprep.subr.mxu0 %v5857
  %6019 = vmatpush1.msra.mxu0 %v5856
  %6020 = vmatprep.subr.mxu0 %v5919
  %6021 = vmatpush2.msra.mxu0 %v5918
  %6022 = vmatprep.subr.mxu0 %v5917
  %6023 = vmatpush2.msra.mxu0 %v5916
  %6024 = vmatprep.subr.mxu0 %v5915
  %6025 = vmatpush2.msra.mxu0 %v5914
  %6026 = vmatprep.subr.mxu0 %v5913
  %6027 = vmatpush2.msra.mxu0 %v5912
  %6028 = vmatprep.subr.mxu0 %v5911
  %6029 = vmatpush2.msra.mxu0 %v5910
  %6030 = vmatprep.subr.mxu0 %v5909
  %6031 = vmatpush2.msra.mxu0 %v5908
  %6032 = vmatprep.subr.mxu0 %v5907
  %6033 = vmatpush2.msra.mxu0 %v5906
  %6034 = vmatprep.subr.mxu0 %v5905
  %6035 = vmatpush2.msra.mxu0 %v5904
  %6036 = vmatprep.subr.mxu0 %v5903
  %6037 = vmatpush2.msra.mxu0 %v5902
  %6038 = vmatprep.subr.mxu0 %v5901
  %6039 = vmatpush2.msra.mxu0 %v5900
  %6040 = vmatprep.subr.mxu0 %v5899
  %6041 = vmatpush2.msra.mxu0 %v5898
  %6042 = vmatprep.subr.mxu0 %v5897
  %6043 = vmatpush2.msra.mxu0 %v5896
  %6044 = vmatprep.subr.mxu0 %v5895
  %6045 = vmatpush2.msra.mxu0 %v5894
  %6046 = vmatprep.subr.mxu0 %v5893
  %6047 = vmatpush2.msra.mxu0 %v5892
  %6048 = vmatprep.subr.mxu0 %v5891
  %6049 = vmatpush2.msra.mxu0 %v5890
  %6050 = vmatprep.subr.mxu0 %v5889
  %6051 = vmatpush2.msra.mxu0 %v5888
  %6052 = vmatprep.mubr.f32.mxu0 %v5943
  %6053 = vmatmul.mubr.f32.gmra.mxu0 %v5940
  %v6054 = vpop.f32.mrf.mxu0
  %v6055 = vadd.f32 0.0, %v6054
  %v6056 = vpop.f32.mrf.mxu0
  %v6057 = vadd.f32 0.0, %v6056
  %6058 = vmatprep.mubr.f32.mxu0 %v5947
  %6059 = vmatmul.mubr.f32.gmra.mxu0 %v5945
  %v6060 = vpop.f32.mrf.mxu0
  %v6061 = vadd.f32 0.0, %v6060
  %v6062 = vpop.f32.mrf.mxu0
  %v6063 = vadd.f32 0.0, %v6062
  %6064 = vmatprep.mubr.f32.mxu0 %v5951
  %6065 = vmatmul.mubr.f32.gmra.mxu0 %v5949
  %v6066 = vpop.f32.mrf.mxu0
  %v6067 = vadd.f32 0.0, %v6066
  %v6068 = vpop.f32.mrf.mxu0
  %v6069 = vadd.f32 0.0, %v6068
  %6070 = vmatprep.mubr.f32.mxu0 %v5955
  %6071 = vmatmul.mubr.f32.gmra.mxu0 %v5953
  %v6072 = vpop.f32.mrf.mxu0
  %v6073 = vadd.f32 0.0, %v6072
  %v6074 = vpop.f32.mrf.mxu0
  %v6075 = vadd.f32 0.0, %v6074
  %6076 = vmatprep.mubr.f32.mxu0 %v5959
  %6077 = vmatmul.mubr.f32.gmra.mxu0 %v5957
  %v6078 = vpop.f32.mrf.mxu0
  %v6079 = vadd.f32 0.0, %v6078
  %v6080 = vpop.f32.mrf.mxu0
  %v6081 = vadd.f32 0.0, %v6080
  %6082 = vmatprep.mubr.f32.mxu0 %v5963
  %6083 = vmatmul.mubr.f32.gmra.mxu0 %v5961
  %v6084 = vpop.f32.mrf.mxu0
  %v6085 = vadd.f32 0.0, %v6084
  %v6086 = vpop.f32.mrf.mxu0
  %v6087 = vadd.f32 0.0, %v6086
  %6088 = vmatprep.mubr.f32.mxu0 %v5967
  %6089 = vmatmul.mubr.f32.gmra.mxu0 %v5965
  %v6090 = vpop.f32.mrf.mxu0
  %v6091 = vadd.f32 0.0, %v6090
  %v6092 = vpop.f32.mrf.mxu0
  %v6093 = vadd.f32 0.0, %v6092
  %6094 = vmatprep.mubr.f32.mxu0 %v5971
  %6095 = vmatmul.mubr.f32.gmra.mxu0 %v5969
  %v6096 = vpop.f32.mrf.mxu0
  %v6097 = vadd.f32 0.0, %v6096
  %v6098 = vpop.f32.mrf.mxu0
  %v6099 = vadd.f32 0.0, %v6098
  %6100 = vdwg.mxu0
  %v6101 = vadd.f32 %v5791, %v6055
  %v6102 = vadd.f32 %v5793, %v6057
  %v6103 = vadd.f32 %v5797, %v6061
  %v6104 = vadd.f32 %v5799, %v6063
  %v6105 = vadd.f32 %v5803, %v6067
  %v6106 = vadd.f32 %v5805, %v6069
  %v6107 = vadd.f32 %v5809, %v6073
  %v6108 = vadd.f32 %v5811, %v6075
  %v6109 = vadd.f32 %v5815, %v6079
  %v6110 = vadd.f32 %v5817, %v6081
  %v6111 = vadd.f32 %v5821, %v6085
  %v6112 = vadd.f32 %v5823, %v6087
  %v6113 = vadd.f32 %v5827, %v6091
  %v6114 = vadd.f32 %v5829, %v6093
  %v6115 = vadd.f32 %v5833, %v6097
  %v6116 = vadd.f32 %v5835, %v6099
  %v6117 = vld [vmem:[#allocation2 + $0x10] sm:$0x80]
  %v6118 = vld [vmem:[#allocation2 + $0x18] sm:$0x80]
  %v6119 = vld [vmem:[#allocation2 + $0x90] sm:$0x7f]
  %v6120 = vld [vmem:[#allocation2 + $0x98] sm:$0x7f]
  %s6121 = scalar_lea.vmem %s6, 1536
  %v6122 = vld [vmem:[%s6121] sm:$0xff]
  %v6123 = vld [vmem:[%s6121 + $0x8] sm:$0xff]
  %v6124 = vld [vmem:[%s6121 + $0x10] sm:$0xff]
  %v6125 = vld [vmem:[%s6121 + $0x18] sm:$0xff]
  %v6126 = vld [vmem:[%s6121 + $0x20] sm:$0xff]
  %v6127 = vld [vmem:[%s6121 + $0x28] sm:$0xff]
  %v6128 = vld [vmem:[%s6121 + $0x30] sm:$0xff]
  %v6129 = vld [vmem:[%s6121 + $0x38] sm:$0xff]
  %v6130 = vld [vmem:[%s6121 + $0x40] sm:$0xff]
  %v6131 = vld [vmem:[%s6121 + $0x48] sm:$0xff]
  %v6132 = vld [vmem:[%s6121 + $0x50] sm:$0xff]
  %v6133 = vld [vmem:[%s6121 + $0x58] sm:$0xff]
  %v6134 = vld [vmem:[%s6121 + $0x60] sm:$0xff]
  %v6135 = vld [vmem:[%s6121 + $0x68] sm:$0xff]
  %v6136 = vld [vmem:[%s6121 + $0x70] sm:$0xff]
  %v6137 = vld [vmem:[%s6121 + $0x78] sm:$0xff]
  %v6138 = vld [vmem:[%s6121 + $0x80] sm:$0xff]
  %v6139 = vld [vmem:[%s6121 + $0x88] sm:$0xff]
  %v6140 = vld [vmem:[%s6121 + $0x90] sm:$0xff]
  %v6141 = vld [vmem:[%s6121 + $0x98] sm:$0xff]
  %v6142 = vld [vmem:[%s6121 + $0xa0] sm:$0xff]
  %v6143 = vld [vmem:[%s6121 + $0xa8] sm:$0xff]
  %v6144 = vld [vmem:[%s6121 + $0xb0] sm:$0xff]
  %v6145 = vld [vmem:[%s6121 + $0xb8] sm:$0xff]
  %v6146 = vld [vmem:[%s6121 + $0xc0] sm:$0xff]
  %v6147 = vld [vmem:[%s6121 + $0xc8] sm:$0xff]
  %v6148 = vld [vmem:[%s6121 + $0xd0] sm:$0xff]
  %v6149 = vld [vmem:[%s6121 + $0xd8] sm:$0xff]
  %v6150 = vld [vmem:[%s6121 + $0xe0] sm:$0xff]
  %v6151 = vld [vmem:[%s6121 + $0xe8] sm:$0xff]
  %v6152 = vld [vmem:[%s6121 + $0xf0] sm:$0xff]
  %v6153 = vld [vmem:[%s6121 + $0xf8] sm:$0xff]
  %v6154 = vld [vmem:[%s6121 + $0x100] sm:$0xff]
  %v6155 = vld [vmem:[%s6121 + $0x108] sm:$0xff]
  %v6156 = vld [vmem:[%s6121 + $0x110] sm:$0xff]
  %v6157 = vld [vmem:[%s6121 + $0x118] sm:$0xff]
  %v6158 = vld [vmem:[%s6121 + $0x120] sm:$0xff]
  %v6159 = vld [vmem:[%s6121 + $0x128] sm:$0xff]
  %v6160 = vld [vmem:[%s6121 + $0x130] sm:$0xff]
  %v6161 = vld [vmem:[%s6121 + $0x138] sm:$0xff]
  %v6162 = vld [vmem:[%s6121 + $0x140] sm:$0xff]
  %v6163 = vld [vmem:[%s6121 + $0x148] sm:$0xff]
  %v6164 = vld [vmem:[%s6121 + $0x150] sm:$0xff]
  %v6165 = vld [vmem:[%s6121 + $0x158] sm:$0xff]
  %v6166 = vld [vmem:[%s6121 + $0x160] sm:$0xff]
  %v6167 = vld [vmem:[%s6121 + $0x168] sm:$0xff]
  %v6168 = vld [vmem:[%s6121 + $0x170] sm:$0xff]
  %v6169 = vld [vmem:[%s6121 + $0x178] sm:$0xff]
  %v6170 = vld [vmem:[%s6121 + $0x180] sm:$0xff]
  %v6171 = vld [vmem:[%s6121 + $0x188] sm:$0xff]
  %v6172 = vld [vmem:[%s6121 + $0x190] sm:$0xff]
  %v6173 = vld [vmem:[%s6121 + $0x198] sm:$0xff]
  %v6174 = vld [vmem:[%s6121 + $0x1a0] sm:$0xff]
  %v6175 = vld [vmem:[%s6121 + $0x1a8] sm:$0xff]
  %v6176 = vld [vmem:[%s6121 + $0x1b0] sm:$0xff]
  %v6177 = vld [vmem:[%s6121 + $0x1b8] sm:$0xff]
  %v6178 = vld [vmem:[%s6121 + $0x1c0] sm:$0xff]
  %v6179 = vld [vmem:[%s6121 + $0x1c8] sm:$0xff]
  %v6180 = vld [vmem:[%s6121 + $0x1d0] sm:$0xff]
  %v6181 = vld [vmem:[%s6121 + $0x1d8] sm:$0xff]
  %v6182 = vld [vmem:[%s6121 + $0x1e0] sm:$0xff]
  %v6183 = vld [vmem:[%s6121 + $0x1e8] sm:$0xff]
  %v6184 = vld [vmem:[%s6121 + $0x1f0] sm:$0xff]
  %v6185 = vld [vmem:[%s6121 + $0x1f8] sm:$0xff]
  %v6190 = vrot.slane %v6117, 7
  %v6191 = vrot.slane %v5839, 7
  %v6192 = vsel %vm330, %v6190, %v6191
  %v6193 = vrot.slane %v6118, 7
  %v6194 = vrot.slane %v5840, 7
  %v6195 = vsel %vm330, %v6193, %v6194
  %v6196 = vrot.slane %v5841, 7
  %v6197 = vsel %vm330, %v6191, %v6196
  %v6198 = vrot.slane %v5842, 7
  %v6199 = vsel %vm330, %v6194, %v6198
  %v6200 = vrot.slane %v5843, 7
  %v6201 = vsel %vm330, %v6196, %v6200
  %v6202 = vrot.slane %v5844, 7
  %v6203 = vsel %vm330, %v6198, %v6202
  %v6204 = vrot.slane %v5845, 7
  %v6205 = vsel %vm330, %v6200, %v6204
  %v6206 = vrot.slane %v5846, 7
  %v6207 = vsel %vm330, %v6202, %v6206
  %v6208 = vrot.slane %v5847, 7
  %v6209 = vsel %vm330, %v6204, %v6208
  %v6210 = vrot.slane %v5848, 7
  %v6211 = vsel %vm330, %v6206, %v6210
  %v6212 = vrot.slane %v5849, 7
  %v6213 = vsel %vm330, %v6208, %v6212
  %v6214 = vrot.slane %v5850, 7
  %v6215 = vsel %vm330, %v6210, %v6214
  %v6216 = vrot.slane %v5851, 7
  %v6217 = vsel %vm330, %v6212, %v6216
  %v6218 = vrot.slane %v5852, 7
  %v6219 = vsel %vm330, %v6214, %v6218
  %v6220 = vrot.slane %v6119, 7
  %v6221 = vsel %vm330, %v6216, %v6220
  %v6222 = vrot.slane %v6120, 7
  %v6223 = vsel %vm330, %v6218, %v6222
  %6240 = vmatprep.subr.mxu0 %v6153
  %6241 = vmatpush1.msra.mxu0 %v6152
  %6242 = vmatprep.subr.mxu0 %v6151
  %6243 = vmatpush1.msra.mxu0 %v6150
  %6244 = vmatprep.subr.mxu0 %v6149
  %6245 = vmatpush1.msra.mxu0 %v6148
  %6246 = vmatprep.subr.mxu0 %v6147
  %6247 = vmatpush1.msra.mxu0 %v6146
  %6248 = vmatprep.subr.mxu0 %v6145
  %6249 = vmatpush1.msra.mxu0 %v6144
  %6250 = vmatprep.subr.mxu0 %v6143
  %6251 = vmatpush1.msra.mxu0 %v6142
  %6252 = vmatprep.subr.mxu0 %v6141
  %6253 = vmatpush1.msra.mxu0 %v6140
  %6254 = vmatprep.subr.mxu0 %v6139
  %6255 = vmatpush1.msra.mxu0 %v6138
  %6256 = vmatprep.subr.mxu0 %v6137
  %6257 = vmatpush1.msra.mxu0 %v6136
  %6258 = vmatprep.subr.mxu0 %v6135
  %6259 = vmatpush1.msra.mxu0 %v6134
  %6260 = vmatprep.subr.mxu0 %v6133
  %6261 = vmatpush1.msra.mxu0 %v6132
  %6262 = vmatprep.subr.mxu0 %v6131
  %6263 = vmatpush1.msra.mxu0 %v6130
  %6264 = vmatprep.subr.mxu0 %v6129
  %6265 = vmatpush1.msra.mxu0 %v6128
  %6266 = vmatprep.subr.mxu0 %v6127
  %6267 = vmatpush1.msra.mxu0 %v6126
  %6268 = vmatprep.subr.mxu0 %v6125
  %6269 = vmatpush1.msra.mxu0 %v6124
  %6270 = vmatprep.subr.mxu0 %v6123
  %6271 = vmatpush1.msra.mxu0 %v6122
  %6272 = vmatprep.subr.mxu0 %v6185
  %6273 = vmatpush2.msra.mxu0 %v6184
  %6274 = vmatprep.subr.mxu0 %v6183
  %6275 = vmatpush2.msra.mxu0 %v6182
  %6276 = vmatprep.subr.mxu0 %v6181
  %6277 = vmatpush2.msra.mxu0 %v6180
  %6278 = vmatprep.subr.mxu0 %v6179
  %6279 = vmatpush2.msra.mxu0 %v6178
  %6280 = vmatprep.subr.mxu0 %v6177
  %6281 = vmatpush2.msra.mxu0 %v6176
  %6282 = vmatprep.subr.mxu0 %v6175
  %6283 = vmatpush2.msra.mxu0 %v6174
  %6284 = vmatprep.subr.mxu0 %v6173
  %6285 = vmatpush2.msra.mxu0 %v6172
  %6286 = vmatprep.subr.mxu0 %v6171
  %6287 = vmatpush2.msra.mxu0 %v6170
  %6288 = vmatprep.subr.mxu0 %v6169
  %6289 = vmatpush2.msra.mxu0 %v6168
  %6290 = vmatprep.subr.mxu0 %v6167
  %6291 = vmatpush2.msra.mxu0 %v6166
  %6292 = vmatprep.subr.mxu0 %v6165
  %6293 = vmatpush2.msra.mxu0 %v6164
  %6294 = vmatprep.subr.mxu0 %v6163
  %6295 = vmatpush2.msra.mxu0 %v6162
  %6296 = vmatprep.subr.mxu0 %v6161
  %6297 = vmatpush2.msra.mxu0 %v6160
  %6298 = vmatprep.subr.mxu0 %v6159
  %6299 = vmatpush2.msra.mxu0 %v6158
  %6300 = vmatprep.subr.mxu0 %v6157
  %6301 = vmatpush2.msra.mxu0 %v6156
  %6302 = vmatprep.subr.mxu0 %v6155
  %6303 = vmatpush2.msra.mxu0 %v6154
  %6304 = vmatprep.mubr.f32.mxu0 %v6195
  %6305 = vmatmul.mubr.f32.gmra.mxu0 %v6192
  %v6306 = vpop.f32.mrf.mxu0
  %v6307 = vadd.f32 0.0, %v6306
  %v6308 = vpop.f32.mrf.mxu0
  %v6309 = vadd.f32 0.0, %v6308
  %6310 = vmatprep.mubr.f32.mxu0 %v6199
  %6311 = vmatmul.mubr.f32.gmra.mxu0 %v6197
  %v6312 = vpop.f32.mrf.mxu0
  %v6313 = vadd.f32 0.0, %v6312
  %v6314 = vpop.f32.mrf.mxu0
  %v6315 = vadd.f32 0.0, %v6314
  %6316 = vmatprep.mubr.f32.mxu0 %v6203
  %6317 = vmatmul.mubr.f32.gmra.mxu0 %v6201
  %v6318 = vpop.f32.mrf.mxu0
  %v6319 = vadd.f32 0.0, %v6318
  %v6320 = vpop.f32.mrf.mxu0
  %v6321 = vadd.f32 0.0, %v6320
  %6322 = vmatprep.mubr.f32.mxu0 %v6207
  %6323 = vmatmul.mubr.f32.gmra.mxu0 %v6205
  %v6324 = vpop.f32.mrf.mxu0
  %v6325 = vadd.f32 0.0, %v6324
  %v6326 = vpop.f32.mrf.mxu0
  %v6327 = vadd.f32 0.0, %v6326
  %6328 = vmatprep.mubr.f32.mxu0 %v6211
  %6329 = vmatmul.mubr.f32.gmra.mxu0 %v6209
  %v6330 = vpop.f32.mrf.mxu0
  %v6331 = vadd.f32 0.0, %v6330
  %v6332 = vpop.f32.mrf.mxu0
  %v6333 = vadd.f32 0.0, %v6332
  %6334 = vmatprep.mubr.f32.mxu0 %v6215
  %6335 = vmatmul.mubr.f32.gmra.mxu0 %v6213
  %v6336 = vpop.f32.mrf.mxu0
  %v6337 = vadd.f32 0.0, %v6336
  %v6338 = vpop.f32.mrf.mxu0
  %v6339 = vadd.f32 0.0, %v6338
  %6340 = vmatprep.mubr.f32.mxu0 %v6219
  %6341 = vmatmul.mubr.f32.gmra.mxu0 %v6217
  %v6342 = vpop.f32.mrf.mxu0
  %v6343 = vadd.f32 0.0, %v6342
  %v6344 = vpop.f32.mrf.mxu0
  %v6345 = vadd.f32 0.0, %v6344
  %6346 = vmatprep.mubr.f32.mxu0 %v6223
  %6347 = vmatmul.mubr.f32.gmra.mxu0 %v6221
  %v6348 = vpop.f32.mrf.mxu0
  %v6349 = vadd.f32 0.0, %v6348
  %v6350 = vpop.f32.mrf.mxu0
  %v6351 = vadd.f32 0.0, %v6350
  %6352 = vdwg.mxu0
  %v6353 = vadd.f32 %v6101, %v6307
  %v6354 = vadd.f32 %v6102, %v6309
  %v6355 = vadd.f32 %v6103, %v6313
  %v6356 = vadd.f32 %v6104, %v6315
  %v6357 = vadd.f32 %v6105, %v6319
  %v6358 = vadd.f32 %v6106, %v6321
  %v6359 = vadd.f32 %v6107, %v6325
  %v6360 = vadd.f32 %v6108, %v6327
  %v6361 = vadd.f32 %v6109, %v6331
  %v6362 = vadd.f32 %v6110, %v6333
  %v6363 = vadd.f32 %v6111, %v6337
  %v6364 = vadd.f32 %v6112, %v6339
  %v6365 = vadd.f32 %v6113, %v6343
  %v6366 = vadd.f32 %v6114, %v6345
  %v6367 = vadd.f32 %v6115, %v6349
  %v6368 = vadd.f32 %v6116, %v6351
  %v6369 = vld [vmem:[#allocation2 + $0x90] sm:$0xff]
  %v6370 = vld [vmem:[#allocation2 + $0x98] sm:$0xff]
  %s6371 = scalar_lea.vmem %s6, 2048
  %v6372 = vld [vmem:[%s6371] sm:$0xff]
  %v6373 = vld [vmem:[%s6371 + $0x8] sm:$0xff]
  %v6374 = vld [vmem:[%s6371 + $0x10] sm:$0xff]
  %v6375 = vld [vmem:[%s6371 + $0x18] sm:$0xff]
  %v6376 = vld [vmem:[%s6371 + $0x20] sm:$0xff]
  %v6377 = vld [vmem:[%s6371 + $0x28] sm:$0xff]
  %v6378 = vld [vmem:[%s6371 + $0x30] sm:$0xff]
  %v6379 = vld [vmem:[%s6371 + $0x38] sm:$0xff]
  %v6380 = vld [vmem:[%s6371 + $0x40] sm:$0xff]
  %v6381 = vld [vmem:[%s6371 + $0x48] sm:$0xff]
  %v6382 = vld [vmem:[%s6371 + $0x50] sm:$0xff]
  %v6383 = vld [vmem:[%s6371 + $0x58] sm:$0xff]
  %v6384 = vld [vmem:[%s6371 + $0x60] sm:$0xff]
  %v6385 = vld [vmem:[%s6371 + $0x68] sm:$0xff]
  %v6386 = vld [vmem:[%s6371 + $0x70] sm:$0xff]
  %v6387 = vld [vmem:[%s6371 + $0x78] sm:$0xff]
  %v6388 = vld [vmem:[%s6371 + $0x80] sm:$0xff]
  %v6389 = vld [vmem:[%s6371 + $0x88] sm:$0xff]
  %v6390 = vld [vmem:[%s6371 + $0x90] sm:$0xff]
  %v6391 = vld [vmem:[%s6371 + $0x98] sm:$0xff]
  %v6392 = vld [vmem:[%s6371 + $0xa0] sm:$0xff]
  %v6393 = vld [vmem:[%s6371 + $0xa8] sm:$0xff]
  %v6394 = vld [vmem:[%s6371 + $0xb0] sm:$0xff]
  %v6395 = vld [vmem:[%s6371 + $0xb8] sm:$0xff]
  %v6396 = vld [vmem:[%s6371 + $0xc0] sm:$0xff]
  %v6397 = vld [vmem:[%s6371 + $0xc8] sm:$0xff]
  %v6398 = vld [vmem:[%s6371 + $0xd0] sm:$0xff]
  %v6399 = vld [vmem:[%s6371 + $0xd8] sm:$0xff]
  %v6400 = vld [vmem:[%s6371 + $0xe0] sm:$0xff]
  %v6401 = vld [vmem:[%s6371 + $0xe8] sm:$0xff]
  %v6402 = vld [vmem:[%s6371 + $0xf0] sm:$0xff]
  %v6403 = vld [vmem:[%s6371 + $0xf8] sm:$0xff]
  %v6404 = vld [vmem:[%s6371 + $0x100] sm:$0xff]
  %v6405 = vld [vmem:[%s6371 + $0x108] sm:$0xff]
  %v6406 = vld [vmem:[%s6371 + $0x110] sm:$0xff]
  %v6407 = vld [vmem:[%s6371 + $0x118] sm:$0xff]
  %v6408 = vld [vmem:[%s6371 + $0x120] sm:$0xff]
  %v6409 = vld [vmem:[%s6371 + $0x128] sm:$0xff]
  %v6410 = vld [vmem:[%s6371 + $0x130] sm:$0xff]
  %v6411 = vld [vmem:[%s6371 + $0x138] sm:$0xff]
  %v6412 = vld [vmem:[%s6371 + $0x140] sm:$0xff]
  %v6413 = vld [vmem:[%s6371 + $0x148] sm:$0xff]
  %v6414 = vld [vmem:[%s6371 + $0x150] sm:$0xff]
  %v6415 = vld [vmem:[%s6371 + $0x158] sm:$0xff]
  %v6416 = vld [vmem:[%s6371 + $0x160] sm:$0xff]
  %v6417 = vld [vmem:[%s6371 + $0x168] sm:$0xff]
  %v6418 = vld [vmem:[%s6371 + $0x170] sm:$0xff]
  %v6419 = vld [vmem:[%s6371 + $0x178] sm:$0xff]
  %v6420 = vld [vmem:[%s6371 + $0x180] sm:$0xff]
  %v6421 = vld [vmem:[%s6371 + $0x188] sm:$0xff]
  %v6422 = vld [vmem:[%s6371 + $0x190] sm:$0xff]
  %v6423 = vld [vmem:[%s6371 + $0x198] sm:$0xff]
  %v6424 = vld [vmem:[%s6371 + $0x1a0] sm:$0xff]
  %v6425 = vld [vmem:[%s6371 + $0x1a8] sm:$0xff]
  %v6426 = vld [vmem:[%s6371 + $0x1b0] sm:$0xff]
  %v6427 = vld [vmem:[%s6371 + $0x1b8] sm:$0xff]
  %v6428 = vld [vmem:[%s6371 + $0x1c0] sm:$0xff]
  %v6429 = vld [vmem:[%s6371 + $0x1c8] sm:$0xff]
  %v6430 = vld [vmem:[%s6371 + $0x1d0] sm:$0xff]
  %v6431 = vld [vmem:[%s6371 + $0x1d8] sm:$0xff]
  %v6432 = vld [vmem:[%s6371 + $0x1e0] sm:$0xff]
  %v6433 = vld [vmem:[%s6371 + $0x1e8] sm:$0xff]
  %v6434 = vld [vmem:[%s6371 + $0x1f0] sm:$0xff]
  %v6435 = vld [vmem:[%s6371 + $0x1f8] sm:$0xff]
  %6436 = vmatprep.subr.mxu0 %v6403
  %6437 = vmatpush1.msra.mxu0 %v6402
  %6438 = vmatprep.subr.mxu0 %v6401
  %6439 = vmatpush1.msra.mxu0 %v6400
  %6440 = vmatprep.subr.mxu0 %v6399
  %6441 = vmatpush1.msra.mxu0 %v6398
  %6442 = vmatprep.subr.mxu0 %v6397
  %6443 = vmatpush1.msra.mxu0 %v6396
  %6444 = vmatprep.subr.mxu0 %v6395
  %6445 = vmatpush1.msra.mxu0 %v6394
  %6446 = vmatprep.subr.mxu0 %v6393
  %6447 = vmatpush1.msra.mxu0 %v6392
  %6448 = vmatprep.subr.mxu0 %v6391
  %6449 = vmatpush1.msra.mxu0 %v6390
  %6450 = vmatprep.subr.mxu0 %v6389
  %6451 = vmatpush1.msra.mxu0 %v6388
  %6452 = vmatprep.subr.mxu0 %v6387
  %6453 = vmatpush1.msra.mxu0 %v6386
  %6454 = vmatprep.subr.mxu0 %v6385
  %6455 = vmatpush1.msra.mxu0 %v6384
  %6456 = vmatprep.subr.mxu0 %v6383
  %6457 = vmatpush1.msra.mxu0 %v6382
  %6458 = vmatprep.subr.mxu0 %v6381
  %6459 = vmatpush1.msra.mxu0 %v6380
  %6460 = vmatprep.subr.mxu0 %v6379
  %6461 = vmatpush1.msra.mxu0 %v6378
  %6462 = vmatprep.subr.mxu0 %v6377
  %6463 = vmatpush1.msra.mxu0 %v6376
  %6464 = vmatprep.subr.mxu0 %v6375
  %6465 = vmatpush1.msra.mxu0 %v6374
  %6466 = vmatprep.subr.mxu0 %v6373
  %6467 = vmatpush1.msra.mxu0 %v6372
  %6468 = vmatprep.subr.mxu0 %v6435
  %6469 = vmatpush2.msra.mxu0 %v6434
  %6470 = vmatprep.subr.mxu0 %v6433
  %6471 = vmatpush2.msra.mxu0 %v6432
  %6472 = vmatprep.subr.mxu0 %v6431
  %6473 = vmatpush2.msra.mxu0 %v6430
  %6474 = vmatprep.subr.mxu0 %v6429
  %6475 = vmatpush2.msra.mxu0 %v6428
  %6476 = vmatprep.subr.mxu0 %v6427
  %6477 = vmatpush2.msra.mxu0 %v6426
  %6478 = vmatprep.subr.mxu0 %v6425
  %6479 = vmatpush2.msra.mxu0 %v6424
  %6480 = vmatprep.subr.mxu0 %v6423
  %6481 = vmatpush2.msra.mxu0 %v6422
  %6482 = vmatprep.subr.mxu0 %v6421
  %6483 = vmatpush2.msra.mxu0 %v6420
  %6484 = vmatprep.subr.mxu0 %v6419
  %6485 = vmatpush2.msra.mxu0 %v6418
  %6486 = vmatprep.subr.mxu0 %v6417
  %6487 = vmatpush2.msra.mxu0 %v6416
  %6488 = vmatprep.subr.mxu0 %v6415
  %6489 = vmatpush2.msra.mxu0 %v6414
  %6490 = vmatprep.subr.mxu0 %v6413
  %6491 = vmatpush2.msra.mxu0 %v6412
  %6492 = vmatprep.subr.mxu0 %v6411
  %6493 = vmatpush2.msra.mxu0 %v6410
  %6494 = vmatprep.subr.mxu0 %v6409
  %6495 = vmatpush2.msra.mxu0 %v6408
  %6496 = vmatprep.subr.mxu0 %v6407
  %6497 = vmatpush2.msra.mxu0 %v6406
  %6498 = vmatprep.subr.mxu0 %v6405
  %6499 = vmatpush2.msra.mxu0 %v6404
  %6500 = vmatprep.mubr.f32.mxu0 %v5840
  %6501 = vmatmul.mubr.f32.gmra.mxu0 %v5839
  %v6502 = vpop.f32.mrf.mxu0
  %v6503 = vadd.f32 0.0, %v6502
  %v6504 = vpop.f32.mrf.mxu0
  %v6505 = vadd.f32 0.0, %v6504
  %6506 = vmatprep.mubr.f32.mxu0 %v5842
  %6507 = vmatmul.mubr.f32.gmra.mxu0 %v5841
  %v6508 = vpop.f32.mrf.mxu0
  %v6509 = vadd.f32 0.0, %v6508
  %v6510 = vpop.f32.mrf.mxu0
  %v6511 = vadd.f32 0.0, %v6510
  %6512 = vmatprep.mubr.f32.mxu0 %v5844
  %6513 = vmatmul.mubr.f32.gmra.mxu0 %v5843
  %v6514 = vpop.f32.mrf.mxu0
  %v6515 = vadd.f32 0.0, %v6514
  %v6516 = vpop.f32.mrf.mxu0
  %v6517 = vadd.f32 0.0, %v6516
  %6518 = vmatprep.mubr.f32.mxu0 %v5846
  %6519 = vmatmul.mubr.f32.gmra.mxu0 %v5845
  %v6520 = vpop.f32.mrf.mxu0
  %v6521 = vadd.f32 0.0, %v6520
  %v6522 = vpop.f32.mrf.mxu0
  %v6523 = vadd.f32 0.0, %v6522
  %6524 = vmatprep.mubr.f32.mxu0 %v5848
  %6525 = vmatmul.mubr.f32.gmra.mxu0 %v5847
  %v6526 = vpop.f32.mrf.mxu0
  %v6527 = vadd.f32 0.0, %v6526
  %v6528 = vpop.f32.mrf.mxu0
  %v6529 = vadd.f32 0.0, %v6528
  %6530 = vmatprep.mubr.f32.mxu0 %v5850
  %6531 = vmatmul.mubr.f32.gmra.mxu0 %v5849
  %v6532 = vpop.f32.mrf.mxu0
  %v6533 = vadd.f32 0.0, %v6532
  %v6534 = vpop.f32.mrf.mxu0
  %v6535 = vadd.f32 0.0, %v6534
  %6536 = vmatprep.mubr.f32.mxu0 %v5852
  %6537 = vmatmul.mubr.f32.gmra.mxu0 %v5851
  %v6538 = vpop.f32.mrf.mxu0
  %v6539 = vadd.f32 0.0, %v6538
  %v6540 = vpop.f32.mrf.mxu0
  %v6541 = vadd.f32 0.0, %v6540
  %6542 = vmatprep.mubr.f32.mxu0 %v6370
  %6543 = vmatmul.mubr.f32.gmra.mxu0 %v6369
  %v6544 = vpop.f32.mrf.mxu0
  %v6545 = vadd.f32 0.0, %v6544
  %v6546 = vpop.f32.mrf.mxu0
  %v6547 = vadd.f32 0.0, %v6546
  %6548 = vdwg.mxu0
  %v6549 = vadd.f32 %v6353, %v6503
  %v6550 = vadd.f32 %v6354, %v6505
  %v6551 = vadd.f32 %v6355, %v6509
  %v6552 = vadd.f32 %v6356, %v6511
  %v6553 = vadd.f32 %v6357, %v6515
  %v6554 = vadd.f32 %v6358, %v6517
  %v6555 = vadd.f32 %v6359, %v6521
  %v6556 = vadd.f32 %v6360, %v6523
  %v6557 = vadd.f32 %v6361, %v6527
  %v6558 = vadd.f32 %v6362, %v6529
  %v6559 = vadd.f32 %v6363, %v6533
  %v6560 = vadd.f32 %v6364, %v6535
  %v6561 = vadd.f32 %v6365, %v6539
  %v6562 = vadd.f32 %v6366, %v6541
  %v6563 = vadd.f32 %v6367, %v6545
  %v6564 = vadd.f32 %v6368, %v6547
  %v6565 = vld [vmem:[#allocation2 + $0x20] sm:$0xfe]
  %v6566 = vld [vmem:[#allocation2 + $0x28] sm:$0xfe]
  %v6567 = vld [vmem:[#allocation2 + $0x30] sm:$0xff]
  %v6568 = vld [vmem:[#allocation2 + $0x38] sm:$0xff]
  %v6569 = vld [vmem:[#allocation2 + $0x40] sm:$0xff]
  %v6570 = vld [vmem:[#allocation2 + $0x48] sm:$0xff]
  %v6571 = vld [vmem:[#allocation2 + $0x50] sm:$0xff]
  %v6572 = vld [vmem:[#allocation2 + $0x58] sm:$0xff]
  %v6573 = vld [vmem:[#allocation2 + $0x60] sm:$0xff]
  %v6574 = vld [vmem:[#allocation2 + $0x68] sm:$0xff]
  %v6575 = vld [vmem:[#allocation2 + $0x70] sm:$0xff]
  %v6576 = vld [vmem:[#allocation2 + $0x78] sm:$0xff]
  %v6577 = vld [vmem:[#allocation2 + $0x80] sm:$0xff]
  %v6578 = vld [vmem:[#allocation2 + $0x88] sm:$0xff]
  %v6579 = vld [vmem:[#allocation2 + $0x90] sm:$0xff]
  %v6580 = vld [vmem:[#allocation2 + $0x98] sm:$0xff]
  %v6581 = vld [vmem:[#allocation2 + $0xa0] sm:$0x1]
  %v6582 = vld [vmem:[#allocation2 + $0xa8] sm:$0x1]
  %s6583 = scalar_lea.vmem %s6, 2560
  %v6584 = vld [vmem:[%s6583] sm:$0xff]
  %v6585 = vld [vmem:[%s6583 + $0x8] sm:$0xff]
  %v6586 = vld [vmem:[%s6583 + $0x10] sm:$0xff]
  %v6587 = vld [vmem:[%s6583 + $0x18] sm:$0xff]
  %v6588 = vld [vmem:[%s6583 + $0x20] sm:$0xff]
  %v6589 = vld [vmem:[%s6583 + $0x28] sm:$0xff]
  %v6590 = vld [vmem:[%s6583 + $0x30] sm:$0xff]
  %v6591 = vld [vmem:[%s6583 + $0x38] sm:$0xff]
  %v6592 = vld [vmem:[%s6583 + $0x40] sm:$0xff]
  %v6593 = vld [vmem:[%s6583 + $0x48] sm:$0xff]
  %v6594 = vld [vmem:[%s6583 + $0x50] sm:$0xff]
  %v6595 = vld [vmem:[%s6583 + $0x58] sm:$0xff]
  %v6596 = vld [vmem:[%s6583 + $0x60] sm:$0xff]
  %v6597 = vld [vmem:[%s6583 + $0x68] sm:$0xff]
  %v6598 = vld [vmem:[%s6583 + $0x70] sm:$0xff]
  %v6599 = vld [vmem:[%s6583 + $0x78] sm:$0xff]
  %v6600 = vld [vmem:[%s6583 + $0x80] sm:$0xff]
  %v6601 = vld [vmem:[%s6583 + $0x88] sm:$0xff]
  %v6602 = vld [vmem:[%s6583 + $0x90] sm:$0xff]
  %v6603 = vld [vmem:[%s6583 + $0x98] sm:$0xff]
  %v6604 = vld [vmem:[%s6583 + $0xa0] sm:$0xff]
  %v6605 = vld [vmem:[%s6583 + $0xa8] sm:$0xff]
  %v6606 = vld [vmem:[%s6583 + $0xb0] sm:$0xff]
  %v6607 = vld [vmem:[%s6583 + $0xb8] sm:$0xff]
  %v6608 = vld [vmem:[%s6583 + $0xc0] sm:$0xff]
  %v6609 = vld [vmem:[%s6583 + $0xc8] sm:$0xff]
  %v6610 = vld [vmem:[%s6583 + $0xd0] sm:$0xff]
  %v6611 = vld [vmem:[%s6583 + $0xd8] sm:$0xff]
  %v6612 = vld [vmem:[%s6583 + $0xe0] sm:$0xff]
  %v6613 = vld [vmem:[%s6583 + $0xe8] sm:$0xff]
  %v6614 = vld [vmem:[%s6583 + $0xf0] sm:$0xff]
  %v6615 = vld [vmem:[%s6583 + $0xf8] sm:$0xff]
  %v6616 = vld [vmem:[%s6583 + $0x100] sm:$0xff]
  %v6617 = vld [vmem:[%s6583 + $0x108] sm:$0xff]
  %v6618 = vld [vmem:[%s6583 + $0x110] sm:$0xff]
  %v6619 = vld [vmem:[%s6583 + $0x118] sm:$0xff]
  %v6620 = vld [vmem:[%s6583 + $0x120] sm:$0xff]
  %v6621 = vld [vmem:[%s6583 + $0x128] sm:$0xff]
  %v6622 = vld [vmem:[%s6583 + $0x130] sm:$0xff]
  %v6623 = vld [vmem:[%s6583 + $0x138] sm:$0xff]
  %v6624 = vld [vmem:[%s6583 + $0x140] sm:$0xff]
  %v6625 = vld [vmem:[%s6583 + $0x148] sm:$0xff]
  %v6626 = vld [vmem:[%s6583 + $0x150] sm:$0xff]
  %v6627 = vld [vmem:[%s6583 + $0x158] sm:$0xff]
  %v6628 = vld [vmem:[%s6583 + $0x160] sm:$0xff]
  %v6629 = vld [vmem:[%s6583 + $0x168] sm:$0xff]
  %v6630 = vld [vmem:[%s6583 + $0x170] sm:$0xff]
  %v6631 = vld [vmem:[%s6583 + $0x178] sm:$0xff]
  %v6632 = vld [vmem:[%s6583 + $0x180] sm:$0xff]
  %v6633 = vld [vmem:[%s6583 + $0x188] sm:$0xff]
  %v6634 = vld [vmem:[%s6583 + $0x190] sm:$0xff]
  %v6635 = vld [vmem:[%s6583 + $0x198] sm:$0xff]
  %v6636 = vld [vmem:[%s6583 + $0x1a0] sm:$0xff]
  %v6637 = vld [vmem:[%s6583 + $0x1a8] sm:$0xff]
  %v6638 = vld [vmem:[%s6583 + $0x1b0] sm:$0xff]
  %v6639 = vld [vmem:[%s6583 + $0x1b8] sm:$0xff]
  %v6640 = vld [vmem:[%s6583 + $0x1c0] sm:$0xff]
  %v6641 = vld [vmem:[%s6583 + $0x1c8] sm:$0xff]
  %v6642 = vld [vmem:[%s6583 + $0x1d0] sm:$0xff]
  %v6643 = vld [vmem:[%s6583 + $0x1d8] sm:$0xff]
  %v6644 = vld [vmem:[%s6583 + $0x1e0] sm:$0xff]
  %v6645 = vld [vmem:[%s6583 + $0x1e8] sm:$0xff]
  %v6646 = vld [vmem:[%s6583 + $0x1f0] sm:$0xff]
  %v6647 = vld [vmem:[%s6583 + $0x1f8] sm:$0xff]
  %v6666 = vrot.slane %v6565, 1
  %v6667 = vrot.slane %v6567, 1
  %v6668 = vsel %vm595, %v6666, %v6667
  %v6669 = vrot.slane %v6566, 1
  %v6670 = vrot.slane %v6568, 1
  %v6671 = vsel %vm595, %v6669, %v6670
  %v6672 = vrot.slane %v6569, 1
  %v6673 = vsel %vm595, %v6667, %v6672
  %v6674 = vrot.slane %v6570, 1
  %v6675 = vsel %vm595, %v6670, %v6674
  %v6676 = vrot.slane %v6571, 1
  %v6677 = vsel %vm595, %v6672, %v6676
  %v6678 = vrot.slane %v6572, 1
  %v6679 = vsel %vm595, %v6674, %v6678
  %v6680 = vrot.slane %v6573, 1
  %v6681 = vsel %vm595, %v6676, %v6680
  %v6682 = vrot.slane %v6574, 1
  %v6683 = vsel %vm595, %v6678, %v6682
  %v6684 = vrot.slane %v6575, 1
  %v6685 = vsel %vm595, %v6680, %v6684
  %v6686 = vrot.slane %v6576, 1
  %v6687 = vsel %vm595, %v6682, %v6686
  %v6688 = vrot.slane %v6577, 1
  %v6689 = vsel %vm595, %v6684, %v6688
  %v6690 = vrot.slane %v6578, 1
  %v6691 = vsel %vm595, %v6686, %v6690
  %v6692 = vrot.slane %v6579, 1
  %v6693 = vsel %vm595, %v6688, %v6692
  %v6694 = vrot.slane %v6580, 1
  %v6695 = vsel %vm595, %v6690, %v6694
  %v6696 = vrot.slane %v6581, 1
  %v6697 = vsel %vm595, %v6692, %v6696
  %v6698 = vrot.slane %v6582, 1
  %v6699 = vsel %vm595, %v6694, %v6698
  %6716 = vmatprep.subr.mxu0 %v6615
  %6717 = vmatpush1.msra.mxu0 %v6614
  %6718 = vmatprep.subr.mxu0 %v6613
  %6719 = vmatpush1.msra.mxu0 %v6612
  %6720 = vmatprep.subr.mxu0 %v6611
  %6721 = vmatpush1.msra.mxu0 %v6610
  %6722 = vmatprep.subr.mxu0 %v6609
  %6723 = vmatpush1.msra.mxu0 %v6608
  %6724 = vmatprep.subr.mxu0 %v6607
  %6725 = vmatpush1.msra.mxu0 %v6606
  %6726 = vmatprep.subr.mxu0 %v6605
  %6727 = vmatpush1.msra.mxu0 %v6604
  %6728 = vmatprep.subr.mxu0 %v6603
  %6729 = vmatpush1.msra.mxu0 %v6602
  %6730 = vmatprep.subr.mxu0 %v6601
  %6731 = vmatpush1.msra.mxu0 %v6600
  %6732 = vmatprep.subr.mxu0 %v6599
  %6733 = vmatpush1.msra.mxu0 %v6598
  %6734 = vmatprep.subr.mxu0 %v6597
  %6735 = vmatpush1.msra.mxu0 %v6596
  %6736 = vmatprep.subr.mxu0 %v6595
  %6737 = vmatpush1.msra.mxu0 %v6594
  %6738 = vmatprep.subr.mxu0 %v6593
  %6739 = vmatpush1.msra.mxu0 %v6592
  %6740 = vmatprep.subr.mxu0 %v6591
  %6741 = vmatpush1.msra.mxu0 %v6590
  %6742 = vmatprep.subr.mxu0 %v6589
  %6743 = vmatpush1.msra.mxu0 %v6588
  %6744 = vmatprep.subr.mxu0 %v6587
  %6745 = vmatpush1.msra.mxu0 %v6586
  %6746 = vmatprep.subr.mxu0 %v6585
  %6747 = vmatpush1.msra.mxu0 %v6584
  %6748 = vmatprep.subr.mxu0 %v6647
  %6749 = vmatpush2.msra.mxu0 %v6646
  %6750 = vmatprep.subr.mxu0 %v6645
  %6751 = vmatpush2.msra.mxu0 %v6644
  %6752 = vmatprep.subr.mxu0 %v6643
  %6753 = vmatpush2.msra.mxu0 %v6642
  %6754 = vmatprep.subr.mxu0 %v6641
  %6755 = vmatpush2.msra.mxu0 %v6640
  %6756 = vmatprep.subr.mxu0 %v6639
  %6757 = vmatpush2.msra.mxu0 %v6638
  %6758 = vmatprep.subr.mxu0 %v6637
  %6759 = vmatpush2.msra.mxu0 %v6636
  %6760 = vmatprep.subr.mxu0 %v6635
  %6761 = vmatpush2.msra.mxu0 %v6634
  %6762 = vmatprep.subr.mxu0 %v6633
  %6763 = vmatpush2.msra.mxu0 %v6632
  %6764 = vmatprep.subr.mxu0 %v6631
  %6765 = vmatpush2.msra.mxu0 %v6630
  %6766 = vmatprep.subr.mxu0 %v6629
  %6767 = vmatpush2.msra.mxu0 %v6628
  %6768 = vmatprep.subr.mxu0 %v6627
  %6769 = vmatpush2.msra.mxu0 %v6626
  %6770 = vmatprep.subr.mxu0 %v6625
  %6771 = vmatpush2.msra.mxu0 %v6624
  %6772 = vmatprep.subr.mxu0 %v6623
  %6773 = vmatpush2.msra.mxu0 %v6622
  %6774 = vmatprep.subr.mxu0 %v6621
  %6775 = vmatpush2.msra.mxu0 %v6620
  %6776 = vmatprep.subr.mxu0 %v6619
  %6777 = vmatpush2.msra.mxu0 %v6618
  %6778 = vmatprep.subr.mxu0 %v6617
  %6779 = vmatpush2.msra.mxu0 %v6616
  %6780 = vmatprep.mubr.f32.mxu0 %v6671
  %6781 = vmatmul.mubr.f32.gmra.mxu0 %v6668
  %v6782 = vpop.f32.mrf.mxu0
  %v6783 = vadd.f32 0.0, %v6782
  %v6784 = vpop.f32.mrf.mxu0
  %v6785 = vadd.f32 0.0, %v6784
  %6786 = vmatprep.mubr.f32.mxu0 %v6675
  %6787 = vmatmul.mubr.f32.gmra.mxu0 %v6673
  %v6788 = vpop.f32.mrf.mxu0
  %v6789 = vadd.f32 0.0, %v6788
  %v6790 = vpop.f32.mrf.mxu0
  %v6791 = vadd.f32 0.0, %v6790
  %6792 = vmatprep.mubr.f32.mxu0 %v6679
  %6793 = vmatmul.mubr.f32.gmra.mxu0 %v6677
  %v6794 = vpop.f32.mrf.mxu0
  %v6795 = vadd.f32 0.0, %v6794
  %v6796 = vpop.f32.mrf.mxu0
  %v6797 = vadd.f32 0.0, %v6796
  %6798 = vmatprep.mubr.f32.mxu0 %v6683
  %6799 = vmatmul.mubr.f32.gmra.mxu0 %v6681
  %v6800 = vpop.f32.mrf.mxu0
  %v6801 = vadd.f32 0.0, %v6800
  %v6802 = vpop.f32.mrf.mxu0
  %v6803 = vadd.f32 0.0, %v6802
  %6804 = vmatprep.mubr.f32.mxu0 %v6687
  %6805 = vmatmul.mubr.f32.gmra.mxu0 %v6685
  %v6806 = vpop.f32.mrf.mxu0
  %v6807 = vadd.f32 0.0, %v6806
  %v6808 = vpop.f32.mrf.mxu0
  %v6809 = vadd.f32 0.0, %v6808
  %6810 = vmatprep.mubr.f32.mxu0 %v6691
  %6811 = vmatmul.mubr.f32.gmra.mxu0 %v6689
  %v6812 = vpop.f32.mrf.mxu0
  %v6813 = vadd.f32 0.0, %v6812
  %v6814 = vpop.f32.mrf.mxu0
  %v6815 = vadd.f32 0.0, %v6814
  %6816 = vmatprep.mubr.f32.mxu0 %v6695
  %6817 = vmatmul.mubr.f32.gmra.mxu0 %v6693
  %v6818 = vpop.f32.mrf.mxu0
  %v6819 = vadd.f32 0.0, %v6818
  %v6820 = vpop.f32.mrf.mxu0
  %v6821 = vadd.f32 0.0, %v6820
  %6822 = vmatprep.mubr.f32.mxu0 %v6699
  %6823 = vmatmul.mubr.f32.gmra.mxu0 %v6697
  %v6824 = vpop.f32.mrf.mxu0
  %v6825 = vadd.f32 0.0, %v6824
  %v6826 = vpop.f32.mrf.mxu0
  %v6827 = vadd.f32 0.0, %v6826
  %6828 = vdwg.mxu0
  %v6829 = vadd.f32 %v6549, %v6783
  %v6830 = vadd.f32 %v6550, %v6785
  %v6831 = vadd.f32 %v6551, %v6789
  %v6832 = vadd.f32 %v6552, %v6791
  %v6833 = vadd.f32 %v6553, %v6795
  %v6834 = vadd.f32 %v6554, %v6797
  %v6835 = vadd.f32 %v6555, %v6801
  %v6836 = vadd.f32 %v6556, %v6803
  %v6837 = vadd.f32 %v6557, %v6807
  %v6838 = vadd.f32 %v6558, %v6809
  %v6839 = vadd.f32 %v6559, %v6813
  %v6840 = vadd.f32 %v6560, %v6815
  %v6841 = vadd.f32 %v6561, %v6819
  %v6842 = vadd.f32 %v6562, %v6821
  %v6843 = vadd.f32 %v6563, %v6825
  %v6844 = vadd.f32 %v6564, %v6827
  %v6845 = vld [vmem:[#allocation2 + $0x20] sm:$0x80]
  %v6846 = vld [vmem:[#allocation2 + $0x28] sm:$0x80]
  %v6847 = vld [vmem:[#allocation2 + $0xa0] sm:$0x7f]
  %v6848 = vld [vmem:[#allocation2 + $0xa8] sm:$0x7f]
  %s6849 = scalar_lea.vmem %s6, 3072
  %v6850 = vld [vmem:[%s6849] sm:$0xff]
  %v6851 = vld [vmem:[%s6849 + $0x8] sm:$0xff]
  %v6852 = vld [vmem:[%s6849 + $0x10] sm:$0xff]
  %v6853 = vld [vmem:[%s6849 + $0x18] sm:$0xff]
  %v6854 = vld [vmem:[%s6849 + $0x20] sm:$0xff]
  %v6855 = vld [vmem:[%s6849 + $0x28] sm:$0xff]
  %v6856 = vld [vmem:[%s6849 + $0x30] sm:$0xff]
  %v6857 = vld [vmem:[%s6849 + $0x38] sm:$0xff]
  %v6858 = vld [vmem:[%s6849 + $0x40] sm:$0xff]
  %v6859 = vld [vmem:[%s6849 + $0x48] sm:$0xff]
  %v6860 = vld [vmem:[%s6849 + $0x50] sm:$0xff]
  %v6861 = vld [vmem:[%s6849 + $0x58] sm:$0xff]
  %v6862 = vld [vmem:[%s6849 + $0x60] sm:$0xff]
  %v6863 = vld [vmem:[%s6849 + $0x68] sm:$0xff]
  %v6864 = vld [vmem:[%s6849 + $0x70] sm:$0xff]
  %v6865 = vld [vmem:[%s6849 + $0x78] sm:$0xff]
  %v6866 = vld [vmem:[%s6849 + $0x80] sm:$0xff]
  %v6867 = vld [vmem:[%s6849 + $0x88] sm:$0xff]
  %v6868 = vld [vmem:[%s6849 + $0x90] sm:$0xff]
  %v6869 = vld [vmem:[%s6849 + $0x98] sm:$0xff]
  %v6870 = vld [vmem:[%s6849 + $0xa0] sm:$0xff]
  %v6871 = vld [vmem:[%s6849 + $0xa8] sm:$0xff]
  %v6872 = vld [vmem:[%s6849 + $0xb0] sm:$0xff]
  %v6873 = vld [vmem:[%s6849 + $0xb8] sm:$0xff]
  %v6874 = vld [vmem:[%s6849 + $0xc0] sm:$0xff]
  %v6875 = vld [vmem:[%s6849 + $0xc8] sm:$0xff]
  %v6876 = vld [vmem:[%s6849 + $0xd0] sm:$0xff]
  %v6877 = vld [vmem:[%s6849 + $0xd8] sm:$0xff]
  %v6878 = vld [vmem:[%s6849 + $0xe0] sm:$0xff]
  %v6879 = vld [vmem:[%s6849 + $0xe8] sm:$0xff]
  %v6880 = vld [vmem:[%s6849 + $0xf0] sm:$0xff]
  %v6881 = vld [vmem:[%s6849 + $0xf8] sm:$0xff]
  %v6882 = vld [vmem:[%s6849 + $0x100] sm:$0xff]
  %v6883 = vld [vmem:[%s6849 + $0x108] sm:$0xff]
  %v6884 = vld [vmem:[%s6849 + $0x110] sm:$0xff]
  %v6885 = vld [vmem:[%s6849 + $0x118] sm:$0xff]
  %v6886 = vld [vmem:[%s6849 + $0x120] sm:$0xff]
  %v6887 = vld [vmem:[%s6849 + $0x128] sm:$0xff]
  %v6888 = vld [vmem:[%s6849 + $0x130] sm:$0xff]
  %v6889 = vld [vmem:[%s6849 + $0x138] sm:$0xff]
  %v6890 = vld [vmem:[%s6849 + $0x140] sm:$0xff]
  %v6891 = vld [vmem:[%s6849 + $0x148] sm:$0xff]
  %v6892 = vld [vmem:[%s6849 + $0x150] sm:$0xff]
  %v6893 = vld [vmem:[%s6849 + $0x158] sm:$0xff]
  %v6894 = vld [vmem:[%s6849 + $0x160] sm:$0xff]
  %v6895 = vld [vmem:[%s6849 + $0x168] sm:$0xff]
  %v6896 = vld [vmem:[%s6849 + $0x170] sm:$0xff]
  %v6897 = vld [vmem:[%s6849 + $0x178] sm:$0xff]
  %v6898 = vld [vmem:[%s6849 + $0x180] sm:$0xff]
  %v6899 = vld [vmem:[%s6849 + $0x188] sm:$0xff]
  %v6900 = vld [vmem:[%s6849 + $0x190] sm:$0xff]
  %v6901 = vld [vmem:[%s6849 + $0x198] sm:$0xff]
  %v6902 = vld [vmem:[%s6849 + $0x1a0] sm:$0xff]
  %v6903 = vld [vmem:[%s6849 + $0x1a8] sm:$0xff]
  %v6904 = vld [vmem:[%s6849 + $0x1b0] sm:$0xff]
  %v6905 = vld [vmem:[%s6849 + $0x1b8] sm:$0xff]
  %v6906 = vld [vmem:[%s6849 + $0x1c0] sm:$0xff]
  %v6907 = vld [vmem:[%s6849 + $0x1c8] sm:$0xff]
  %v6908 = vld [vmem:[%s6849 + $0x1d0] sm:$0xff]
  %v6909 = vld [vmem:[%s6849 + $0x1d8] sm:$0xff]
  %v6910 = vld [vmem:[%s6849 + $0x1e0] sm:$0xff]
  %v6911 = vld [vmem:[%s6849 + $0x1e8] sm:$0xff]
  %v6912 = vld [vmem:[%s6849 + $0x1f0] sm:$0xff]
  %v6913 = vld [vmem:[%s6849 + $0x1f8] sm:$0xff]
  %v6918 = vrot.slane %v6845, 7
  %v6919 = vrot.slane %v6567, 7
  %v6920 = vsel %vm330, %v6918, %v6919
  %v6921 = vrot.slane %v6846, 7
  %v6922 = vrot.slane %v6568, 7
  %v6923 = vsel %vm330, %v6921, %v6922
  %v6924 = vrot.slane %v6569, 7
  %v6925 = vsel %vm330, %v6919, %v6924
  %v6926 = vrot.slane %v6570, 7
  %v6927 = vsel %vm330, %v6922, %v6926
  %v6928 = vrot.slane %v6571, 7
  %v6929 = vsel %vm330, %v6924, %v6928
  %v6930 = vrot.slane %v6572, 7
  %v6931 = vsel %vm330, %v6926, %v6930
  %v6932 = vrot.slane %v6573, 7
  %v6933 = vsel %vm330, %v6928, %v6932
  %v6934 = vrot.slane %v6574, 7
  %v6935 = vsel %vm330, %v6930, %v6934
  %v6936 = vrot.slane %v6575, 7
  %v6937 = vsel %vm330, %v6932, %v6936
  %v6938 = vrot.slane %v6576, 7
  %v6939 = vsel %vm330, %v6934, %v6938
  %v6940 = vrot.slane %v6577, 7
  %v6941 = vsel %vm330, %v6936, %v6940
  %v6942 = vrot.slane %v6578, 7
  %v6943 = vsel %vm330, %v6938, %v6942
  %v6944 = vrot.slane %v6579, 7
  %v6945 = vsel %vm330, %v6940, %v6944
  %v6946 = vrot.slane %v6580, 7
  %v6947 = vsel %vm330, %v6942, %v6946
  %v6948 = vrot.slane %v6847, 7
  %v6949 = vsel %vm330, %v6944, %v6948
  %v6950 = vrot.slane %v6848, 7
  %v6951 = vsel %vm330, %v6946, %v6950
  %6968 = vmatprep.subr.mxu0 %v6881
  %6969 = vmatpush1.msra.mxu0 %v6880
  %6970 = vmatprep.subr.mxu0 %v6879
  %6971 = vmatpush1.msra.mxu0 %v6878
  %6972 = vmatprep.subr.mxu0 %v6877
  %6973 = vmatpush1.msra.mxu0 %v6876
  %6974 = vmatprep.subr.mxu0 %v6875
  %6975 = vmatpush1.msra.mxu0 %v6874
  %6976 = vmatprep.subr.mxu0 %v6873
  %6977 = vmatpush1.msra.mxu0 %v6872
  %6978 = vmatprep.subr.mxu0 %v6871
  %6979 = vmatpush1.msra.mxu0 %v6870
  %6980 = vmatprep.subr.mxu0 %v6869
  %6981 = vmatpush1.msra.mxu0 %v6868
  %6982 = vmatprep.subr.mxu0 %v6867
  %6983 = vmatpush1.msra.mxu0 %v6866
  %6984 = vmatprep.subr.mxu0 %v6865
  %6985 = vmatpush1.msra.mxu0 %v6864
  %6986 = vmatprep.subr.mxu0 %v6863
  %6987 = vmatpush1.msra.mxu0 %v6862
  %6988 = vmatprep.subr.mxu0 %v6861
  %6989 = vmatpush1.msra.mxu0 %v6860
  %6990 = vmatprep.subr.mxu0 %v6859
  %6991 = vmatpush1.msra.mxu0 %v6858
  %6992 = vmatprep.subr.mxu0 %v6857
  %6993 = vmatpush1.msra.mxu0 %v6856
  %6994 = vmatprep.subr.mxu0 %v6855
  %6995 = vmatpush1.msra.mxu0 %v6854
  %6996 = vmatprep.subr.mxu0 %v6853
  %6997 = vmatpush1.msra.mxu0 %v6852
  %6998 = vmatprep.subr.mxu0 %v6851
  %6999 = vmatpush1.msra.mxu0 %v6850
  %7000 = vmatprep.subr.mxu0 %v6913
  %7001 = vmatpush2.msra.mxu0 %v6912
  %7002 = vmatprep.subr.mxu0 %v6911
  %7003 = vmatpush2.msra.mxu0 %v6910
  %7004 = vmatprep.subr.mxu0 %v6909
  %7005 = vmatpush2.msra.mxu0 %v6908
  %7006 = vmatprep.subr.mxu0 %v6907
  %7007 = vmatpush2.msra.mxu0 %v6906
  %7008 = vmatprep.subr.mxu0 %v6905
  %7009 = vmatpush2.msra.mxu0 %v6904
  %7010 = vmatprep.subr.mxu0 %v6903
  %7011 = vmatpush2.msra.mxu0 %v6902
  %7012 = vmatprep.subr.mxu0 %v6901
  %7013 = vmatpush2.msra.mxu0 %v6900
  %7014 = vmatprep.subr.mxu0 %v6899
  %7015 = vmatpush2.msra.mxu0 %v6898
  %7016 = vmatprep.subr.mxu0 %v6897
  %7017 = vmatpush2.msra.mxu0 %v6896
  %7018 = vmatprep.subr.mxu0 %v6895
  %7019 = vmatpush2.msra.mxu0 %v6894
  %7020 = vmatprep.subr.mxu0 %v6893
  %7021 = vmatpush2.msra.mxu0 %v6892
  %7022 = vmatprep.subr.mxu0 %v6891
  %7023 = vmatpush2.msra.mxu0 %v6890
  %7024 = vmatprep.subr.mxu0 %v6889
  %7025 = vmatpush2.msra.mxu0 %v6888
  %7026 = vmatprep.subr.mxu0 %v6887
  %7027 = vmatpush2.msra.mxu0 %v6886
  %7028 = vmatprep.subr.mxu0 %v6885
  %7029 = vmatpush2.msra.mxu0 %v6884
  %7030 = vmatprep.subr.mxu0 %v6883
  %7031 = vmatpush2.msra.mxu0 %v6882
  %7032 = vmatprep.mubr.f32.mxu0 %v6923
  %7033 = vmatmul.mubr.f32.gmra.mxu0 %v6920
  %v7034 = vpop.f32.mrf.mxu0
  %v7035 = vadd.f32 0.0, %v7034
  %v7036 = vpop.f32.mrf.mxu0
  %v7037 = vadd.f32 0.0, %v7036
  %7038 = vmatprep.mubr.f32.mxu0 %v6927
  %7039 = vmatmul.mubr.f32.gmra.mxu0 %v6925
  %v7040 = vpop.f32.mrf.mxu0
  %v7041 = vadd.f32 0.0, %v7040
  %v7042 = vpop.f32.mrf.mxu0
  %v7043 = vadd.f32 0.0, %v7042
  %7044 = vmatprep.mubr.f32.mxu0 %v6931
  %7045 = vmatmul.mubr.f32.gmra.mxu0 %v6929
  %v7046 = vpop.f32.mrf.mxu0
  %v7047 = vadd.f32 0.0, %v7046
  %v7048 = vpop.f32.mrf.mxu0
  %v7049 = vadd.f32 0.0, %v7048
  %7050 = vmatprep.mubr.f32.mxu0 %v6935
  %7051 = vmatmul.mubr.f32.gmra.mxu0 %v6933
  %v7052 = vpop.f32.mrf.mxu0
  %v7053 = vadd.f32 0.0, %v7052
  %v7054 = vpop.f32.mrf.mxu0
  %v7055 = vadd.f32 0.0, %v7054
  %7056 = vmatprep.mubr.f32.mxu0 %v6939
  %7057 = vmatmul.mubr.f32.gmra.mxu0 %v6937
  %v7058 = vpop.f32.mrf.mxu0
  %v7059 = vadd.f32 0.0, %v7058
  %v7060 = vpop.f32.mrf.mxu0
  %v7061 = vadd.f32 0.0, %v7060
  %7062 = vmatprep.mubr.f32.mxu0 %v6943
  %7063 = vmatmul.mubr.f32.gmra.mxu0 %v6941
  %v7064 = vpop.f32.mrf.mxu0
  %v7065 = vadd.f32 0.0, %v7064
  %v7066 = vpop.f32.mrf.mxu0
  %v7067 = vadd.f32 0.0, %v7066
  %7068 = vmatprep.mubr.f32.mxu0 %v6947
  %7069 = vmatmul.mubr.f32.gmra.mxu0 %v6945
  %v7070 = vpop.f32.mrf.mxu0
  %v7071 = vadd.f32 0.0, %v7070
  %v7072 = vpop.f32.mrf.mxu0
  %v7073 = vadd.f32 0.0, %v7072
  %7074 = vmatprep.mubr.f32.mxu0 %v6951
  %7075 = vmatmul.mubr.f32.gmra.mxu0 %v6949
  %v7076 = vpop.f32.mrf.mxu0
  %v7077 = vadd.f32 0.0, %v7076
  %v7078 = vpop.f32.mrf.mxu0
  %v7079 = vadd.f32 0.0, %v7078
  %7080 = vdwg.mxu0
  %v7081 = vadd.f32 %v6829, %v7035
  %v7082 = vadd.f32 %v6830, %v7037
  %v7083 = vadd.f32 %v6831, %v7041
  %v7084 = vadd.f32 %v6832, %v7043
  %v7085 = vadd.f32 %v6833, %v7047
  %v7086 = vadd.f32 %v6834, %v7049
  %v7087 = vadd.f32 %v6835, %v7053
  %v7088 = vadd.f32 %v6836, %v7055
  %v7089 = vadd.f32 %v6837, %v7059
  %v7090 = vadd.f32 %v6838, %v7061
  %v7091 = vadd.f32 %v6839, %v7065
  %v7092 = vadd.f32 %v6840, %v7067
  %v7093 = vadd.f32 %v6841, %v7071
  %v7094 = vadd.f32 %v6842, %v7073
  %v7095 = vadd.f32 %v6843, %v7077
  %v7096 = vadd.f32 %v6844, %v7079
  %v7097 = vld [vmem:[#allocation2 + $0xa0] sm:$0xff]
  %v7098 = vld [vmem:[#allocation2 + $0xa8] sm:$0xff]
  %s7099 = scalar_lea.vmem %s6, 3584
  %v7100 = vld [vmem:[%s7099] sm:$0xff]
  %v7101 = vld [vmem:[%s7099 + $0x8] sm:$0xff]
  %v7102 = vld [vmem:[%s7099 + $0x10] sm:$0xff]
  %v7103 = vld [vmem:[%s7099 + $0x18] sm:$0xff]
  %v7104 = vld [vmem:[%s7099 + $0x20] sm:$0xff]
  %v7105 = vld [vmem:[%s7099 + $0x28] sm:$0xff]
  %v7106 = vld [vmem:[%s7099 + $0x30] sm:$0xff]
  %v7107 = vld [vmem:[%s7099 + $0x38] sm:$0xff]
  %v7108 = vld [vmem:[%s7099 + $0x40] sm:$0xff]
  %v7109 = vld [vmem:[%s7099 + $0x48] sm:$0xff]
  %v7110 = vld [vmem:[%s7099 + $0x50] sm:$0xff]
  %v7111 = vld [vmem:[%s7099 + $0x58] sm:$0xff]
  %v7112 = vld [vmem:[%s7099 + $0x60] sm:$0xff]
  %v7113 = vld [vmem:[%s7099 + $0x68] sm:$0xff]
  %v7114 = vld [vmem:[%s7099 + $0x70] sm:$0xff]
  %v7115 = vld [vmem:[%s7099 + $0x78] sm:$0xff]
  %v7116 = vld [vmem:[%s7099 + $0x80] sm:$0xff]
  %v7117 = vld [vmem:[%s7099 + $0x88] sm:$0xff]
  %v7118 = vld [vmem:[%s7099 + $0x90] sm:$0xff]
  %v7119 = vld [vmem:[%s7099 + $0x98] sm:$0xff]
  %v7120 = vld [vmem:[%s7099 + $0xa0] sm:$0xff]
  %v7121 = vld [vmem:[%s7099 + $0xa8] sm:$0xff]
  %v7122 = vld [vmem:[%s7099 + $0xb0] sm:$0xff]
  %v7123 = vld [vmem:[%s7099 + $0xb8] sm:$0xff]
  %v7124 = vld [vmem:[%s7099 + $0xc0] sm:$0xff]
  %v7125 = vld [vmem:[%s7099 + $0xc8] sm:$0xff]
  %v7126 = vld [vmem:[%s7099 + $0xd0] sm:$0xff]
  %v7127 = vld [vmem:[%s7099 + $0xd8] sm:$0xff]
  %v7128 = vld [vmem:[%s7099 + $0xe0] sm:$0xff]
  %v7129 = vld [vmem:[%s7099 + $0xe8] sm:$0xff]
  %v7130 = vld [vmem:[%s7099 + $0xf0] sm:$0xff]
  %v7131 = vld [vmem:[%s7099 + $0xf8] sm:$0xff]
  %v7132 = vld [vmem:[%s7099 + $0x100] sm:$0xff]
  %v7133 = vld [vmem:[%s7099 + $0x108] sm:$0xff]
  %v7134 = vld [vmem:[%s7099 + $0x110] sm:$0xff]
  %v7135 = vld [vmem:[%s7099 + $0x118] sm:$0xff]
  %v7136 = vld [vmem:[%s7099 + $0x120] sm:$0xff]
  %v7137 = vld [vmem:[%s7099 + $0x128] sm:$0xff]
  %v7138 = vld [vmem:[%s7099 + $0x130] sm:$0xff]
  %v7139 = vld [vmem:[%s7099 + $0x138] sm:$0xff]
  %v7140 = vld [vmem:[%s7099 + $0x140] sm:$0xff]
  %v7141 = vld [vmem:[%s7099 + $0x148] sm:$0xff]
  %v7142 = vld [vmem:[%s7099 + $0x150] sm:$0xff]
  %v7143 = vld [vmem:[%s7099 + $0x158] sm:$0xff]
  %v7144 = vld [vmem:[%s7099 + $0x160] sm:$0xff]
  %v7145 = vld [vmem:[%s7099 + $0x168] sm:$0xff]
  %v7146 = vld [vmem:[%s7099 + $0x170] sm:$0xff]
  %v7147 = vld [vmem:[%s7099 + $0x178] sm:$0xff]
  %v7148 = vld [vmem:[%s7099 + $0x180] sm:$0xff]
  %v7149 = vld [vmem:[%s7099 + $0x188] sm:$0xff]
  %v7150 = vld [vmem:[%s7099 + $0x190] sm:$0xff]
  %v7151 = vld [vmem:[%s7099 + $0x198] sm:$0xff]
  %v7152 = vld [vmem:[%s7099 + $0x1a0] sm:$0xff]
  %v7153 = vld [vmem:[%s7099 + $0x1a8] sm:$0xff]
  %v7154 = vld [vmem:[%s7099 + $0x1b0] sm:$0xff]
  %v7155 = vld [vmem:[%s7099 + $0x1b8] sm:$0xff]
  %v7156 = vld [vmem:[%s7099 + $0x1c0] sm:$0xff]
  %v7157 = vld [vmem:[%s7099 + $0x1c8] sm:$0xff]
  %v7158 = vld [vmem:[%s7099 + $0x1d0] sm:$0xff]
  %v7159 = vld [vmem:[%s7099 + $0x1d8] sm:$0xff]
  %v7160 = vld [vmem:[%s7099 + $0x1e0] sm:$0xff]
  %v7161 = vld [vmem:[%s7099 + $0x1e8] sm:$0xff]
  %v7162 = vld [vmem:[%s7099 + $0x1f0] sm:$0xff]
  %v7163 = vld [vmem:[%s7099 + $0x1f8] sm:$0xff]
  %7164 = vmatprep.subr.mxu0 %v7131
  %7165 = vmatpush1.msra.mxu0 %v7130
  %7166 = vmatprep.subr.mxu0 %v7129
  %7167 = vmatpush1.msra.mxu0 %v7128
  %7168 = vmatprep.subr.mxu0 %v7127
  %7169 = vmatpush1.msra.mxu0 %v7126
  %7170 = vmatprep.subr.mxu0 %v7125
  %7171 = vmatpush1.msra.mxu0 %v7124
  %7172 = vmatprep.subr.mxu0 %v7123
  %7173 = vmatpush1.msra.mxu0 %v7122
  %7174 = vmatprep.subr.mxu0 %v7121
  %7175 = vmatpush1.msra.mxu0 %v7120
  %7176 = vmatprep.subr.mxu0 %v7119
  %7177 = vmatpush1.msra.mxu0 %v7118
  %7178 = vmatprep.subr.mxu0 %v7117
  %7179 = vmatpush1.msra.mxu0 %v7116
  %7180 = vmatprep.subr.mxu0 %v7115
  %7181 = vmatpush1.msra.mxu0 %v7114
  %7182 = vmatprep.subr.mxu0 %v7113
  %7183 = vmatpush1.msra.mxu0 %v7112
  %7184 = vmatprep.subr.mxu0 %v7111
  %7185 = vmatpush1.msra.mxu0 %v7110
  %7186 = vmatprep.subr.mxu0 %v7109
  %7187 = vmatpush1.msra.mxu0 %v7108
  %7188 = vmatprep.subr.mxu0 %v7107
  %7189 = vmatpush1.msra.mxu0 %v7106
  %7190 = vmatprep.subr.mxu0 %v7105
  %7191 = vmatpush1.msra.mxu0 %v7104
  %7192 = vmatprep.subr.mxu0 %v7103
  %7193 = vmatpush1.msra.mxu0 %v7102
  %7194 = vmatprep.subr.mxu0 %v7101
  %7195 = vmatpush1.msra.mxu0 %v7100
  %7196 = vmatprep.subr.mxu0 %v7163
  %7197 = vmatpush2.msra.mxu0 %v7162
  %7198 = vmatprep.subr.mxu0 %v7161
  %7199 = vmatpush2.msra.mxu0 %v7160
  %7200 = vmatprep.subr.mxu0 %v7159
  %7201 = vmatpush2.msra.mxu0 %v7158
  %7202 = vmatprep.subr.mxu0 %v7157
  %7203 = vmatpush2.msra.mxu0 %v7156
  %7204 = vmatprep.subr.mxu0 %v7155
  %7205 = vmatpush2.msra.mxu0 %v7154
  %7206 = vmatprep.subr.mxu0 %v7153
  %7207 = vmatpush2.msra.mxu0 %v7152
  %7208 = vmatprep.subr.mxu0 %v7151
  %7209 = vmatpush2.msra.mxu0 %v7150
  %7210 = vmatprep.subr.mxu0 %v7149
  %7211 = vmatpush2.msra.mxu0 %v7148
  %7212 = vmatprep.subr.mxu0 %v7147
  %7213 = vmatpush2.msra.mxu0 %v7146
  %7214 = vmatprep.subr.mxu0 %v7145
  %7215 = vmatpush2.msra.mxu0 %v7144
  %7216 = vmatprep.subr.mxu0 %v7143
  %7217 = vmatpush2.msra.mxu0 %v7142
  %7218 = vmatprep.subr.mxu0 %v7141
  %7219 = vmatpush2.msra.mxu0 %v7140
  %7220 = vmatprep.subr.mxu0 %v7139
  %7221 = vmatpush2.msra.mxu0 %v7138
  %7222 = vmatprep.subr.mxu0 %v7137
  %7223 = vmatpush2.msra.mxu0 %v7136
  %7224 = vmatprep.subr.mxu0 %v7135
  %7225 = vmatpush2.msra.mxu0 %v7134
  %7226 = vmatprep.subr.mxu0 %v7133
  %7227 = vmatpush2.msra.mxu0 %v7132
  %7228 = vmatprep.mubr.f32.mxu0 %v6568
  %7229 = vmatmul.mubr.f32.gmra.mxu0 %v6567
  %v7230 = vpop.f32.mrf.mxu0
  %v7231 = vadd.f32 0.0, %v7230
  %v7232 = vpop.f32.mrf.mxu0
  %v7233 = vadd.f32 0.0, %v7232
  %7234 = vmatprep.mubr.f32.mxu0 %v6570
  %7235 = vmatmul.mubr.f32.gmra.mxu0 %v6569
  %v7236 = vpop.f32.mrf.mxu0
  %v7237 = vadd.f32 0.0, %v7236
  %v7238 = vpop.f32.mrf.mxu0
  %v7239 = vadd.f32 0.0, %v7238
  %7240 = vmatprep.mubr.f32.mxu0 %v6572
  %7241 = vmatmul.mubr.f32.gmra.mxu0 %v6571
  %v7242 = vpop.f32.mrf.mxu0
  %v7243 = vadd.f32 0.0, %v7242
  %v7244 = vpop.f32.mrf.mxu0
  %v7245 = vadd.f32 0.0, %v7244
  %7246 = vmatprep.mubr.f32.mxu0 %v6574
  %7247 = vmatmul.mubr.f32.gmra.mxu0 %v6573
  %v7248 = vpop.f32.mrf.mxu0
  %v7249 = vadd.f32 0.0, %v7248
  %v7250 = vpop.f32.mrf.mxu0
  %v7251 = vadd.f32 0.0, %v7250
  %7252 = vmatprep.mubr.f32.mxu0 %v6576
  %7253 = vmatmul.mubr.f32.gmra.mxu0 %v6575
  %v7254 = vpop.f32.mrf.mxu0
  %v7255 = vadd.f32 0.0, %v7254
  %v7256 = vpop.f32.mrf.mxu0
  %v7257 = vadd.f32 0.0, %v7256
  %7258 = vmatprep.mubr.f32.mxu0 %v6578
  %7259 = vmatmul.mubr.f32.gmra.mxu0 %v6577
  %v7260 = vpop.f32.mrf.mxu0
  %v7261 = vadd.f32 0.0, %v7260
  %v7262 = vpop.f32.mrf.mxu0
  %v7263 = vadd.f32 0.0, %v7262
  %7264 = vmatprep.mubr.f32.mxu0 %v6580
  %7265 = vmatmul.mubr.f32.gmra.mxu0 %v6579
  %v7266 = vpop.f32.mrf.mxu0
  %v7267 = vadd.f32 0.0, %v7266
  %v7268 = vpop.f32.mrf.mxu0
  %v7269 = vadd.f32 0.0, %v7268
  %7270 = vmatprep.mubr.f32.mxu0 %v7098
  %7271 = vmatmul.mubr.f32.gmra.mxu0 %v7097
  %v7272 = vpop.f32.mrf.mxu0
  %v7273 = vadd.f32 0.0, %v7272
  %v7274 = vpop.f32.mrf.mxu0
  %v7275 = vadd.f32 0.0, %v7274
  %7276 = vdwg.mxu0
  %v7277 = vadd.f32 %v7081, %v7231
  %v7278 = vadd.f32 %v7082, %v7233
  %v7279 = vadd.f32 %v7083, %v7237
  %v7280 = vadd.f32 %v7084, %v7239
  %v7281 = vadd.f32 %v7085, %v7243
  %v7282 = vadd.f32 %v7086, %v7245
  %v7283 = vadd.f32 %v7087, %v7249
  %v7284 = vadd.f32 %v7088, %v7251
  %v7285 = vadd.f32 %v7089, %v7255
  %v7286 = vadd.f32 %v7090, %v7257
  %v7287 = vadd.f32 %v7091, %v7261
  %v7288 = vadd.f32 %v7092, %v7263
  %v7289 = vadd.f32 %v7093, %v7267
  %v7290 = vadd.f32 %v7094, %v7269
  %v7291 = vadd.f32 %v7095, %v7273
  %v7292 = vadd.f32 %v7096, %v7275
  %v7293 = vld [vmem:[#allocation2 + $0x30] sm:$0xfe]
  %v7294 = vld [vmem:[#allocation2 + $0x38] sm:$0xfe]
  %v7295 = vld [vmem:[#allocation2 + $0x40] sm:$0xff]
  %v7296 = vld [vmem:[#allocation2 + $0x48] sm:$0xff]
  %v7297 = vld [vmem:[#allocation2 + $0x50] sm:$0xff]
  %v7298 = vld [vmem:[#allocation2 + $0x58] sm:$0xff]
  %v7299 = vld [vmem:[#allocation2 + $0x60] sm:$0xff]
  %v7300 = vld [vmem:[#allocation2 + $0x68] sm:$0xff]
  %v7301 = vld [vmem:[#allocation2 + $0x70] sm:$0xff]
  %v7302 = vld [vmem:[#allocation2 + $0x78] sm:$0xff]
  %v7303 = vld [vmem:[#allocation2 + $0x80] sm:$0xff]
  %v7304 = vld [vmem:[#allocation2 + $0x88] sm:$0xff]
  %v7305 = vld [vmem:[#allocation2 + $0x90] sm:$0xff]
  %v7306 = vld [vmem:[#allocation2 + $0x98] sm:$0xff]
  %v7307 = vld [vmem:[#allocation2 + $0xa0] sm:$0xff]
  %v7308 = vld [vmem:[#allocation2 + $0xa8] sm:$0xff]
  %v7309 = vld [vmem:[#allocation2 + $0xb0] sm:$0x1]
  %v7310 = vld [vmem:[#allocation2 + $0xb8] sm:$0x1]
  %s7311 = scalar_lea.vmem %s6, 4096
  %v7312 = vld [vmem:[%s7311] sm:$0xff]
  %v7313 = vld [vmem:[%s7311 + $0x8] sm:$0xff]
  %v7314 = vld [vmem:[%s7311 + $0x10] sm:$0xff]
  %v7315 = vld [vmem:[%s7311 + $0x18] sm:$0xff]
  %v7316 = vld [vmem:[%s7311 + $0x20] sm:$0xff]
  %v7317 = vld [vmem:[%s7311 + $0x28] sm:$0xff]
  %v7318 = vld [vmem:[%s7311 + $0x30] sm:$0xff]
  %v7319 = vld [vmem:[%s7311 + $0x38] sm:$0xff]
  %v7320 = vld [vmem:[%s7311 + $0x40] sm:$0xff]
  %v7321 = vld [vmem:[%s7311 + $0x48] sm:$0xff]
  %v7322 = vld [vmem:[%s7311 + $0x50] sm:$0xff]
  %v7323 = vld [vmem:[%s7311 + $0x58] sm:$0xff]
  %v7324 = vld [vmem:[%s7311 + $0x60] sm:$0xff]
  %v7325 = vld [vmem:[%s7311 + $0x68] sm:$0xff]
  %v7326 = vld [vmem:[%s7311 + $0x70] sm:$0xff]
  %v7327 = vld [vmem:[%s7311 + $0x78] sm:$0xff]
  %v7328 = vld [vmem:[%s7311 + $0x80] sm:$0xff]
  %v7329 = vld [vmem:[%s7311 + $0x88] sm:$0xff]
  %v7330 = vld [vmem:[%s7311 + $0x90] sm:$0xff]
  %v7331 = vld [vmem:[%s7311 + $0x98] sm:$0xff]
  %v7332 = vld [vmem:[%s7311 + $0xa0] sm:$0xff]
  %v7333 = vld [vmem:[%s7311 + $0xa8] sm:$0xff]
  %v7334 = vld [vmem:[%s7311 + $0xb0] sm:$0xff]
  %v7335 = vld [vmem:[%s7311 + $0xb8] sm:$0xff]
  %v7336 = vld [vmem:[%s7311 + $0xc0] sm:$0xff]
  %v7337 = vld [vmem:[%s7311 + $0xc8] sm:$0xff]
  %v7338 = vld [vmem:[%s7311 + $0xd0] sm:$0xff]
  %v7339 = vld [vmem:[%s7311 + $0xd8] sm:$0xff]
  %v7340 = vld [vmem:[%s7311 + $0xe0] sm:$0xff]
  %v7341 = vld [vmem:[%s7311 + $0xe8] sm:$0xff]
  %v7342 = vld [vmem:[%s7311 + $0xf0] sm:$0xff]
  %v7343 = vld [vmem:[%s7311 + $0xf8] sm:$0xff]
  %v7344 = vld [vmem:[%s7311 + $0x100] sm:$0xff]
  %v7345 = vld [vmem:[%s7311 + $0x108] sm:$0xff]
  %v7346 = vld [vmem:[%s7311 + $0x110] sm:$0xff]
  %v7347 = vld [vmem:[%s7311 + $0x118] sm:$0xff]
  %v7348 = vld [vmem:[%s7311 + $0x120] sm:$0xff]
  %v7349 = vld [vmem:[%s7311 + $0x128] sm:$0xff]
  %v7350 = vld [vmem:[%s7311 + $0x130] sm:$0xff]
  %v7351 = vld [vmem:[%s7311 + $0x138] sm:$0xff]
  %v7352 = vld [vmem:[%s7311 + $0x140] sm:$0xff]
  %v7353 = vld [vmem:[%s7311 + $0x148] sm:$0xff]
  %v7354 = vld [vmem:[%s7311 + $0x150] sm:$0xff]
  %v7355 = vld [vmem:[%s7311 + $0x158] sm:$0xff]
  %v7356 = vld [vmem:[%s7311 + $0x160] sm:$0xff]
  %v7357 = vld [vmem:[%s7311 + $0x168] sm:$0xff]
  %v7358 = vld [vmem:[%s7311 + $0x170] sm:$0xff]
  %v7359 = vld [vmem:[%s7311 + $0x178] sm:$0xff]
  %v7360 = vld [vmem:[%s7311 + $0x180] sm:$0xff]
  %v7361 = vld [vmem:[%s7311 + $0x188] sm:$0xff]
  %v7362 = vld [vmem:[%s7311 + $0x190] sm:$0xff]
  %v7363 = vld [vmem:[%s7311 + $0x198] sm:$0xff]
  %v7364 = vld [vmem:[%s7311 + $0x1a0] sm:$0xff]
  %v7365 = vld [vmem:[%s7311 + $0x1a8] sm:$0xff]
  %v7366 = vld [vmem:[%s7311 + $0x1b0] sm:$0xff]
  %v7367 = vld [vmem:[%s7311 + $0x1b8] sm:$0xff]
  %v7368 = vld [vmem:[%s7311 + $0x1c0] sm:$0xff]
  %v7369 = vld [vmem:[%s7311 + $0x1c8] sm:$0xff]
  %v7370 = vld [vmem:[%s7311 + $0x1d0] sm:$0xff]
  %v7371 = vld [vmem:[%s7311 + $0x1d8] sm:$0xff]
  %v7372 = vld [vmem:[%s7311 + $0x1e0] sm:$0xff]
  %v7373 = vld [vmem:[%s7311 + $0x1e8] sm:$0xff]
  %v7374 = vld [vmem:[%s7311 + $0x1f0] sm:$0xff]
  %v7375 = vld [vmem:[%s7311 + $0x1f8] sm:$0xff]
  %v7394 = vrot.slane %v7293, 1
  %v7395 = vrot.slane %v7295, 1
  %v7396 = vsel %vm595, %v7394, %v7395
  %v7397 = vrot.slane %v7294, 1
  %v7398 = vrot.slane %v7296, 1
  %v7399 = vsel %vm595, %v7397, %v7398
  %v7400 = vrot.slane %v7297, 1
  %v7401 = vsel %vm595, %v7395, %v7400
  %v7402 = vrot.slane %v7298, 1
  %v7403 = vsel %vm595, %v7398, %v7402
  %v7404 = vrot.slane %v7299, 1
  %v7405 = vsel %vm595, %v7400, %v7404
  %v7406 = vrot.slane %v7300, 1
  %v7407 = vsel %vm595, %v7402, %v7406
  %v7408 = vrot.slane %v7301, 1
  %v7409 = vsel %vm595, %v7404, %v7408
  %v7410 = vrot.slane %v7302, 1
  %v7411 = vsel %vm595, %v7406, %v7410
  %v7412 = vrot.slane %v7303, 1
  %v7413 = vsel %vm595, %v7408, %v7412
  %v7414 = vrot.slane %v7304, 1
  %v7415 = vsel %vm595, %v7410, %v7414
  %v7416 = vrot.slane %v7305, 1
  %v7417 = vsel %vm595, %v7412, %v7416
  %v7418 = vrot.slane %v7306, 1
  %v7419 = vsel %vm595, %v7414, %v7418
  %v7420 = vrot.slane %v7307, 1
  %v7421 = vsel %vm595, %v7416, %v7420
  %v7422 = vrot.slane %v7308, 1
  %v7423 = vsel %vm595, %v7418, %v7422
  %v7424 = vrot.slane %v7309, 1
  %v7425 = vsel %vm595, %v7420, %v7424
  %v7426 = vrot.slane %v7310, 1
  %v7427 = vsel %vm595, %v7422, %v7426
  %7444 = vmatprep.subr.mxu0 %v7343
  %7445 = vmatpush1.msra.mxu0 %v7342
  %7446 = vmatprep.subr.mxu0 %v7341
  %7447 = vmatpush1.msra.mxu0 %v7340
  %7448 = vmatprep.subr.mxu0 %v7339
  %7449 = vmatpush1.msra.mxu0 %v7338
  %7450 = vmatprep.subr.mxu0 %v7337
  %7451 = vmatpush1.msra.mxu0 %v7336
  %7452 = vmatprep.subr.mxu0 %v7335
  %7453 = vmatpush1.msra.mxu0 %v7334
  %7454 = vmatprep.subr.mxu0 %v7333
  %7455 = vmatpush1.msra.mxu0 %v7332
  %7456 = vmatprep.subr.mxu0 %v7331
  %7457 = vmatpush1.msra.mxu0 %v7330
  %7458 = vmatprep.subr.mxu0 %v7329
  %7459 = vmatpush1.msra.mxu0 %v7328
  %7460 = vmatprep.subr.mxu0 %v7327
  %7461 = vmatpush1.msra.mxu0 %v7326
  %7462 = vmatprep.subr.mxu0 %v7325
  %7463 = vmatpush1.msra.mxu0 %v7324
  %7464 = vmatprep.subr.mxu0 %v7323
  %7465 = vmatpush1.msra.mxu0 %v7322
  %7466 = vmatprep.subr.mxu0 %v7321
  %7467 = vmatpush1.msra.mxu0 %v7320
  %7468 = vmatprep.subr.mxu0 %v7319
  %7469 = vmatpush1.msra.mxu0 %v7318
  %7470 = vmatprep.subr.mxu0 %v7317
  %7471 = vmatpush1.msra.mxu0 %v7316
  %7472 = vmatprep.subr.mxu0 %v7315
  %7473 = vmatpush1.msra.mxu0 %v7314
  %7474 = vmatprep.subr.mxu0 %v7313
  %7475 = vmatpush1.msra.mxu0 %v7312
  %7476 = vmatprep.subr.mxu0 %v7375
  %7477 = vmatpush2.msra.mxu0 %v7374
  %7478 = vmatprep.subr.mxu0 %v7373
  %7479 = vmatpush2.msra.mxu0 %v7372
  %7480 = vmatprep.subr.mxu0 %v7371
  %7481 = vmatpush2.msra.mxu0 %v7370
  %7482 = vmatprep.subr.mxu0 %v7369
  %7483 = vmatpush2.msra.mxu0 %v7368
  %7484 = vmatprep.subr.mxu0 %v7367
  %7485 = vmatpush2.msra.mxu0 %v7366
  %7486 = vmatprep.subr.mxu0 %v7365
  %7487 = vmatpush2.msra.mxu0 %v7364
  %7488 = vmatprep.subr.mxu0 %v7363
  %7489 = vmatpush2.msra.mxu0 %v7362
  %7490 = vmatprep.subr.mxu0 %v7361
  %7491 = vmatpush2.msra.mxu0 %v7360
  %7492 = vmatprep.subr.mxu0 %v7359
  %7493 = vmatpush2.msra.mxu0 %v7358
  %7494 = vmatprep.subr.mxu0 %v7357
  %7495 = vmatpush2.msra.mxu0 %v7356
  %7496 = vmatprep.subr.mxu0 %v7355
  %7497 = vmatpush2.msra.mxu0 %v7354
  %7498 = vmatprep.subr.mxu0 %v7353
  %7499 = vmatpush2.msra.mxu0 %v7352
  %7500 = vmatprep.subr.mxu0 %v7351
  %7501 = vmatpush2.msra.mxu0 %v7350
  %7502 = vmatprep.subr.mxu0 %v7349
  %7503 = vmatpush2.msra.mxu0 %v7348
  %7504 = vmatprep.subr.mxu0 %v7347
  %7505 = vmatpush2.msra.mxu0 %v7346
  %7506 = vmatprep.subr.mxu0 %v7345
  %7507 = vmatpush2.msra.mxu0 %v7344
  %7508 = vmatprep.mubr.f32.mxu0 %v7399
  %7509 = vmatmul.mubr.f32.gmra.mxu0 %v7396
  %v7510 = vpop.f32.mrf.mxu0
  %v7511 = vadd.f32 0.0, %v7510
  %v7512 = vpop.f32.mrf.mxu0
  %v7513 = vadd.f32 0.0, %v7512
  %7514 = vmatprep.mubr.f32.mxu0 %v7403
  %7515 = vmatmul.mubr.f32.gmra.mxu0 %v7401
  %v7516 = vpop.f32.mrf.mxu0
  %v7517 = vadd.f32 0.0, %v7516
  %v7518 = vpop.f32.mrf.mxu0
  %v7519 = vadd.f32 0.0, %v7518
  %7520 = vmatprep.mubr.f32.mxu0 %v7407
  %7521 = vmatmul.mubr.f32.gmra.mxu0 %v7405
  %v7522 = vpop.f32.mrf.mxu0
  %v7523 = vadd.f32 0.0, %v7522
  %v7524 = vpop.f32.mrf.mxu0
  %v7525 = vadd.f32 0.0, %v7524
  %7526 = vmatprep.mubr.f32.mxu0 %v7411
  %7527 = vmatmul.mubr.f32.gmra.mxu0 %v7409
  %v7528 = vpop.f32.mrf.mxu0
  %v7529 = vadd.f32 0.0, %v7528
  %v7530 = vpop.f32.mrf.mxu0
  %v7531 = vadd.f32 0.0, %v7530
  %7532 = vmatprep.mubr.f32.mxu0 %v7415
  %7533 = vmatmul.mubr.f32.gmra.mxu0 %v7413
  %v7534 = vpop.f32.mrf.mxu0
  %v7535 = vadd.f32 0.0, %v7534
  %v7536 = vpop.f32.mrf.mxu0
  %v7537 = vadd.f32 0.0, %v7536
  %7538 = vmatprep.mubr.f32.mxu0 %v7419
  %7539 = vmatmul.mubr.f32.gmra.mxu0 %v7417
  %v7540 = vpop.f32.mrf.mxu0
  %v7541 = vadd.f32 0.0, %v7540
  %v7542 = vpop.f32.mrf.mxu0
  %v7543 = vadd.f32 0.0, %v7542
  %7544 = vmatprep.mubr.f32.mxu0 %v7423
  %7545 = vmatmul.mubr.f32.gmra.mxu0 %v7421
  %v7546 = vpop.f32.mrf.mxu0
  %v7547 = vadd.f32 0.0, %v7546
  %v7548 = vpop.f32.mrf.mxu0
  %v7549 = vadd.f32 0.0, %v7548
  %7550 = vmatprep.mubr.f32.mxu0 %v7427
  %7551 = vmatmul.mubr.f32.gmra.mxu0 %v7425
  %v7552 = vpop.f32.mrf.mxu0
  %v7553 = vadd.f32 0.0, %v7552
  %v7554 = vpop.f32.mrf.mxu0
  %v7555 = vadd.f32 0.0, %v7554
  %7556 = vdwg.mxu0
  %v7557 = vadd.f32 %v7277, %v7511
  %v7558 = vadd.f32 %v7278, %v7513
  %v7559 = vadd.f32 %v7279, %v7517
  %v7560 = vadd.f32 %v7280, %v7519
  %v7561 = vadd.f32 %v7281, %v7523
  %v7562 = vadd.f32 %v7282, %v7525
  %v7563 = vadd.f32 %v7283, %v7529
  %v7564 = vadd.f32 %v7284, %v7531
  %v7565 = vadd.f32 %v7285, %v7535
  %v7566 = vadd.f32 %v7286, %v7537
  %v7567 = vadd.f32 %v7287, %v7541
  %v7568 = vadd.f32 %v7288, %v7543
  %v7569 = vadd.f32 %v7289, %v7547
  %v7570 = vadd.f32 %v7290, %v7549
  %v7571 = vadd.f32 %v7291, %v7553
  %v7572 = vadd.f32 %v7292, %v7555
  %v7574 = vlaneseq
  %v7575 = vshrl.u32 %v7574, 7
  %v7576 = vsub.s32 0, %v7575
  %v7577 = vrot.slane %v5393, %v7576
  %v7578 = vlaneseq
  %v7579 = vshrl.u32 %v7578, 7
  %v7580 = vsub.s32 1, %v7579
  %v7581 = vrot.slane %v5393, %v7580
  %v7584 = vadd.f32 %v7557, %v7577
  %v7585 = vadd.f32 %v7558, %v7581
  %v7586 = vadd.f32 %v7559, %v7577
  %v7587 = vadd.f32 %v7560, %v7581
  %v7588 = vadd.f32 %v7561, %v7577
  %v7589 = vadd.f32 %v7562, %v7581
  %v7590 = vadd.f32 %v7563, %v7577
  %v7591 = vadd.f32 %v7564, %v7581
  %v7592 = vadd.f32 %v7565, %v7577
  %v7593 = vadd.f32 %v7566, %v7581
  %v7594 = vadd.f32 %v7567, %v7577
  %v7595 = vadd.f32 %v7568, %v7581
  %v7596 = vadd.f32 %v7569, %v7577
  %v7597 = vadd.f32 %v7570, %v7581
  %v7598 = vadd.f32 %v7571, %v7577
  %v7599 = vadd.f32 %v7572, %v7581
  %v7600 = vld [vmem:[%s1] sm:$0xff]
  %v7601 = vld [vmem:[%s1 + $0x8] sm:$0xff]
  %v7602 = vld [vmem:[%s1 + $0x10] sm:$0xff]
  %v7603 = vld [vmem:[%s1 + $0x18] sm:$0xff]
  %v7604 = vld [vmem:[%s1 + $0x20] sm:$0xff]
  %v7605 = vld [vmem:[%s1 + $0x28] sm:$0xff]
  %v7606 = vld [vmem:[%s1 + $0x30] sm:$0xff]
  %v7607 = vld [vmem:[%s1 + $0x38] sm:$0xff]
  %7609 = vset.pattern.permute.xlu0 0
  %7610 = vperm.xlu0 %7609, %v7600
  %v7611 = vpop.permute.xlu0 %7610
  %7614 = vset.pattern.permute.xlu0 0
  %7615 = vperm.xlu0 %7614, %v7601
  %v7616 = vpop.permute.xlu0 %7615
  %7619 = vset.pattern.permute.xlu0 0
  %7620 = vperm.xlu0 %7619, %v7602
  %v7621 = vpop.permute.xlu0 %7620
  %7624 = vset.pattern.permute.xlu0 0
  %7625 = vperm.xlu0 %7624, %v7603
  %v7626 = vpop.permute.xlu0 %7625
  %7629 = vset.pattern.permute.xlu0 0
  %7630 = vperm.xlu0 %7629, %v7604
  %v7631 = vpop.permute.xlu0 %7630
  %7634 = vset.pattern.permute.xlu0 0
  %7635 = vperm.xlu0 %7634, %v7605
  %v7636 = vpop.permute.xlu0 %7635
  %7639 = vset.pattern.permute.xlu0 0
  %7640 = vperm.xlu0 %7639, %v7606
  %v7641 = vpop.permute.xlu0 %7640
  %7644 = vset.pattern.permute.xlu0 0
  %7645 = vperm.xlu0 %7644, %v7607
  %v7646 = vpop.permute.xlu0 %7645
  %v7648 = vmul.f32 %v7584, %v7611
  %v7649 = vmul.f32 %v7585, %v7611
  %v7650 = vmul.f32 %v7586, %v7616
  %v7651 = vmul.f32 %v7587, %v7616
  %v7652 = vmul.f32 %v7588, %v7621
  %v7653 = vmul.f32 %v7589, %v7621
  %v7654 = vmul.f32 %v7590, %v7626
  %v7655 = vmul.f32 %v7591, %v7626
  %v7656 = vmul.f32 %v7592, %v7631
  %v7657 = vmul.f32 %v7593, %v7631
  %v7658 = vmul.f32 %v7594, %v7636
  %v7659 = vmul.f32 %v7595, %v7636
  %v7660 = vmul.f32 %v7596, %v7641
  %v7661 = vmul.f32 %v7597, %v7641
  %v7662 = vmul.f32 %v7598, %v7646
  %v7663 = vmul.f32 %v7599, %v7646
  %v7664 = vadd.f32 %v7648, %v7650
  %v7665 = vadd.f32 %v7664, %v7652
  %v7666 = vadd.f32 %v7665, %v7654
  %v7667 = vadd.f32 %v7666, %v7656
  %v7668 = vadd.f32 %v7667, %v7658
  %v7669 = vadd.f32 %v7668, %v7660
  %v7670 = vadd.f32 %v7669, %v7662
  %v7671 = vrot.slane %v7670, 4
  %v7672 = vadd.f32 %v7670, %v7671
  %v7673 = vrot.slane %v7672, 2
  %v7674 = vadd.f32 %v7672, %v7673
  %v7675 = vrot.slane %v7674, 1
  %v7676 = vadd.f32 %v7674, %v7675
  %v7677 = vadd.f32 %v7649, %v7651
  %v7678 = vadd.f32 %v7677, %v7653
  %v7679 = vadd.f32 %v7678, %v7655
  %v7680 = vadd.f32 %v7679, %v7657
  %v7681 = vadd.f32 %v7680, %v7659
  %v7682 = vadd.f32 %v7681, %v7661
  %v7683 = vadd.f32 %v7682, %v7663
  %v7684 = vrot.slane %v7683, 4
  %v7685 = vadd.f32 %v7683, %v7684
  %v7686 = vrot.slane %v7685, 2
  %v7687 = vadd.f32 %v7685, %v7686
  %v7688 = vrot.slane %v7687, 1
  %v7689 = vadd.f32 %v7687, %v7688
  %v7690 = vadd.f32 %v7676, 0.0
  %v7691 = vadd.f32 %v7689, 0.0
  %v7692 = vmul.f32 %v7648, %v7648
  %v7693 = vmul.f32 %v7649, %v7649
  %v7694 = vmul.f32 %v7650, %v7650
  %v7695 = vmul.f32 %v7651, %v7651
  %v7696 = vmul.f32 %v7652, %v7652
  %v7697 = vmul.f32 %v7653, %v7653
  %v7698 = vmul.f32 %v7654, %v7654
  %v7699 = vmul.f32 %v7655, %v7655
  %v7700 = vmul.f32 %v7656, %v7656
  %v7701 = vmul.f32 %v7657, %v7657
  %v7702 = vmul.f32 %v7658, %v7658
  %v7703 = vmul.f32 %v7659, %v7659
  %v7704 = vmul.f32 %v7660, %v7660
  %v7705 = vmul.f32 %v7661, %v7661
  %v7706 = vmul.f32 %v7662, %v7662
  %v7707 = vmul.f32 %v7663, %v7663
  %v7708 = vadd.f32 %v7692, %v7694
  %v7709 = vadd.f32 %v7708, %v7696
  %v7710 = vadd.f32 %v7709, %v7698
  %v7711 = vadd.f32 %v7710, %v7700
  %v7712 = vadd.f32 %v7711, %v7702
  %v7713 = vadd.f32 %v7712, %v7704
  %v7714 = vadd.f32 %v7713, %v7706
  %v7715 = vrot.slane %v7714, 4
  %v7716 = vadd.f32 %v7714, %v7715
  %v7717 = vrot.slane %v7716, 2
  %v7718 = vadd.f32 %v7716, %v7717
  %v7719 = vrot.slane %v7718, 1
  %v7720 = vadd.f32 %v7718, %v7719
  %v7721 = vadd.f32 %v7693, %v7695
  %v7722 = vadd.f32 %v7721, %v7697
  %v7723 = vadd.f32 %v7722, %v7699
  %v7724 = vadd.f32 %v7723, %v7701
  %v7725 = vadd.f32 %v7724, %v7703
  %v7726 = vadd.f32 %v7725, %v7705
  %v7727 = vadd.f32 %v7726, %v7707
  %v7728 = vrot.slane %v7727, 4
  %v7729 = vadd.f32 %v7727, %v7728
  %v7730 = vrot.slane %v7729, 2
  %v7731 = vadd.f32 %v7729, %v7730
  %v7732 = vrot.slane %v7731, 1
  %v7733 = vadd.f32 %v7731, %v7732
  %v7734 = vadd.f32 %v7720, 0.0
  %v7735 = vadd.f32 %v7733, 0.0
  %7736 = vst [vmem:[%s12] sm:$0xff] %v7648
  %7737 = vst [vmem:[%s12 + $0x8] sm:$0xff] %v7649
  %7738 = vst [vmem:[%s12 + $0x10] sm:$0xff] %v7650
  %7739 = vst [vmem:[%s12 + $0x18] sm:$0xff] %v7651
  %7740 = vst [vmem:[%s12 + $0x20] sm:$0xff] %v7652
  %7741 = vst [vmem:[%s12 + $0x28] sm:$0xff] %v7653
  %7742 = vst [vmem:[%s12 + $0x30] sm:$0xff] %v7654
  %7743 = vst [vmem:[%s12 + $0x38] sm:$0xff] %v7655
  %7744 = vst [vmem:[%s12 + $0x40] sm:$0xff] %v7656
  %7745 = vst [vmem:[%s12 + $0x48] sm:$0xff] %v7657
  %7746 = vst [vmem:[%s12 + $0x50] sm:$0xff] %v7658
  %7747 = vst [vmem:[%s12 + $0x58] sm:$0xff] %v7659
  %7748 = vst [vmem:[%s12 + $0x60] sm:$0xff] %v7660
  %7749 = vst [vmem:[%s12 + $0x68] sm:$0xff] %v7661
  %7750 = vst [vmem:[%s12 + $0x70] sm:$0xff] %v7662
  %7751 = vst [vmem:[%s12 + $0x78] sm:$0xff] %v7663
  %v7752 = vld [vmem:[#allocation2 + $0x80] sm:$0x80]
  %v7753 = vld [vmem:[#allocation2 + $0x88] sm:$0x80]
  %v7754 = vld [vmem:[#allocation2 + $0x90] sm:$0xff]
  %v7755 = vld [vmem:[#allocation2 + $0x98] sm:$0xff]
  %v7756 = vld [vmem:[#allocation2 + $0xa0] sm:$0xff]
  %v7757 = vld [vmem:[#allocation2 + $0xa8] sm:$0xff]
  %v7758 = vld [vmem:[#allocation2 + $0xb0] sm:$0xff]
  %v7759 = vld [vmem:[#allocation2 + $0xb8] sm:$0xff]
  %v7760 = vld [vmem:[#allocation2 + $0xc0] sm:$0xff]
  %v7761 = vld [vmem:[#allocation2 + $0xc8] sm:$0xff]
  %v7762 = vld [vmem:[#allocation2 + $0xd0] sm:$0xff]
  %v7763 = vld [vmem:[#allocation2 + $0xd8] sm:$0xff]
  %v7764 = vld [vmem:[#allocation2 + $0xe0] sm:$0xff]
  %v7765 = vld [vmem:[#allocation2 + $0xe8] sm:$0xff]
  %v7766 = vld [vmem:[#allocation2 + $0xf0] sm:$0xff]
  %v7767 = vld [vmem:[#allocation2 + $0xf8] sm:$0xff]
  %v7768 = vld [vmem:[#allocation2 + $0x100] sm:$0x7f]
  %v7769 = vld [vmem:[#allocation2 + $0x108] sm:$0x7f]
  %v7770 = vld [vmem:[%s6] sm:$0xff]
  %v7771 = vld [vmem:[%s6 + $0x8] sm:$0xff]
  %v7772 = vld [vmem:[%s6 + $0x10] sm:$0xff]
  %v7773 = vld [vmem:[%s6 + $0x18] sm:$0xff]
  %v7774 = vld [vmem:[%s6 + $0x20] sm:$0xff]
  %v7775 = vld [vmem:[%s6 + $0x28] sm:$0xff]
  %v7776 = vld [vmem:[%s6 + $0x30] sm:$0xff]
  %v7777 = vld [vmem:[%s6 + $0x38] sm:$0xff]
  %v7778 = vld [vmem:[%s6 + $0x40] sm:$0xff]
  %v7779 = vld [vmem:[%s6 + $0x48] sm:$0xff]
  %v7780 = vld [vmem:[%s6 + $0x50] sm:$0xff]
  %v7781 = vld [vmem:[%s6 + $0x58] sm:$0xff]
  %v7782 = vld [vmem:[%s6 + $0x60] sm:$0xff]
  %v7783 = vld [vmem:[%s6 + $0x68] sm:$0xff]
  %v7784 = vld [vmem:[%s6 + $0x70] sm:$0xff]
  %v7785 = vld [vmem:[%s6 + $0x78] sm:$0xff]
  %v7786 = vld [vmem:[%s6 + $0x80] sm:$0xff]
  %v7787 = vld [vmem:[%s6 + $0x88] sm:$0xff]
  %v7788 = vld [vmem:[%s6 + $0x90] sm:$0xff]
  %v7789 = vld [vmem:[%s6 + $0x98] sm:$0xff]
  %v7790 = vld [vmem:[%s6 + $0xa0] sm:$0xff]
  %v7791 = vld [vmem:[%s6 + $0xa8] sm:$0xff]
  %v7792 = vld [vmem:[%s6 + $0xb0] sm:$0xff]
  %v7793 = vld [vmem:[%s6 + $0xb8] sm:$0xff]
  %v7794 = vld [vmem:[%s6 + $0xc0] sm:$0xff]
  %v7795 = vld [vmem:[%s6 + $0xc8] sm:$0xff]
  %v7796 = vld [vmem:[%s6 + $0xd0] sm:$0xff]
  %v7797 = vld [vmem:[%s6 + $0xd8] sm:$0xff]
  %v7798 = vld [vmem:[%s6 + $0xe0] sm:$0xff]
  %v7799 = vld [vmem:[%s6 + $0xe8] sm:$0xff]
  %v7800 = vld [vmem:[%s6 + $0xf0] sm:$0xff]
  %v7801 = vld [vmem:[%s6 + $0xf8] sm:$0xff]
  %v7802 = vld [vmem:[%s6 + $0x100] sm:$0xff]
  %v7803 = vld [vmem:[%s6 + $0x108] sm:$0xff]
  %v7804 = vld [vmem:[%s6 + $0x110] sm:$0xff]
  %v7805 = vld [vmem:[%s6 + $0x118] sm:$0xff]
  %v7806 = vld [vmem:[%s6 + $0x120] sm:$0xff]
  %v7807 = vld [vmem:[%s6 + $0x128] sm:$0xff]
  %v7808 = vld [vmem:[%s6 + $0x130] sm:$0xff]
  %v7809 = vld [vmem:[%s6 + $0x138] sm:$0xff]
  %v7810 = vld [vmem:[%s6 + $0x140] sm:$0xff]
  %v7811 = vld [vmem:[%s6 + $0x148] sm:$0xff]
  %v7812 = vld [vmem:[%s6 + $0x150] sm:$0xff]
  %v7813 = vld [vmem:[%s6 + $0x158] sm:$0xff]
  %v7814 = vld [vmem:[%s6 + $0x160] sm:$0xff]
  %v7815 = vld [vmem:[%s6 + $0x168] sm:$0xff]
  %v7816 = vld [vmem:[%s6 + $0x170] sm:$0xff]
  %v7817 = vld [vmem:[%s6 + $0x178] sm:$0xff]
  %v7818 = vld [vmem:[%s6 + $0x180] sm:$0xff]
  %v7819 = vld [vmem:[%s6 + $0x188] sm:$0xff]
  %v7820 = vld [vmem:[%s6 + $0x190] sm:$0xff]
  %v7821 = vld [vmem:[%s6 + $0x198] sm:$0xff]
  %v7822 = vld [vmem:[%s6 + $0x1a0] sm:$0xff]
  %v7823 = vld [vmem:[%s6 + $0x1a8] sm:$0xff]
  %v7824 = vld [vmem:[%s6 + $0x1b0] sm:$0xff]
  %v7825 = vld [vmem:[%s6 + $0x1b8] sm:$0xff]
  %v7826 = vld [vmem:[%s6 + $0x1c0] sm:$0xff]
  %v7827 = vld [vmem:[%s6 + $0x1c8] sm:$0xff]
  %v7828 = vld [vmem:[%s6 + $0x1d0] sm:$0xff]
  %v7829 = vld [vmem:[%s6 + $0x1d8] sm:$0xff]
  %v7830 = vld [vmem:[%s6 + $0x1e0] sm:$0xff]
  %v7831 = vld [vmem:[%s6 + $0x1e8] sm:$0xff]
  %v7832 = vld [vmem:[%s6 + $0x1f0] sm:$0xff]
  %v7833 = vld [vmem:[%s6 + $0x1f8] sm:$0xff]
  %v7834 = vld [vmem:[#allocation2 + $0x100] sm:$0xff]
  %v7835 = vld [vmem:[#allocation2 + $0x108] sm:$0xff]
  %v7836 = vld [vmem:[%s5478] sm:$0xff]
  %v7837 = vld [vmem:[%s5478 + $0x8] sm:$0xff]
  %v7838 = vld [vmem:[%s5478 + $0x10] sm:$0xff]
  %v7839 = vld [vmem:[%s5478 + $0x18] sm:$0xff]
  %v7840 = vld [vmem:[%s5478 + $0x20] sm:$0xff]
  %v7841 = vld [vmem:[%s5478 + $0x28] sm:$0xff]
  %v7842 = vld [vmem:[%s5478 + $0x30] sm:$0xff]
  %v7843 = vld [vmem:[%s5478 + $0x38] sm:$0xff]
  %v7844 = vld [vmem:[%s5478 + $0x40] sm:$0xff]
  %v7845 = vld [vmem:[%s5478 + $0x48] sm:$0xff]
  %v7846 = vld [vmem:[%s5478 + $0x50] sm:$0xff]
  %v7847 = vld [vmem:[%s5478 + $0x58] sm:$0xff]
  %v7848 = vld [vmem:[%s5478 + $0x60] sm:$0xff]
  %v7849 = vld [vmem:[%s5478 + $0x68] sm:$0xff]
  %v7850 = vld [vmem:[%s5478 + $0x70] sm:$0xff]
  %v7851 = vld [vmem:[%s5478 + $0x78] sm:$0xff]
  %v7852 = vld [vmem:[%s5478 + $0x80] sm:$0xff]
  %v7853 = vld [vmem:[%s5478 + $0x88] sm:$0xff]
  %v7854 = vld [vmem:[%s5478 + $0x90] sm:$0xff]
  %v7855 = vld [vmem:[%s5478 + $0x98] sm:$0xff]
  %v7856 = vld [vmem:[%s5478 + $0xa0] sm:$0xff]
  %v7857 = vld [vmem:[%s5478 + $0xa8] sm:$0xff]
  %v7858 = vld [vmem:[%s5478 + $0xb0] sm:$0xff]
  %v7859 = vld [vmem:[%s5478 + $0xb8] sm:$0xff]
  %v7860 = vld [vmem:[%s5478 + $0xc0] sm:$0xff]
  %v7861 = vld [vmem:[%s5478 + $0xc8] sm:$0xff]
  %v7862 = vld [vmem:[%s5478 + $0xd0] sm:$0xff]
  %v7863 = vld [vmem:[%s5478 + $0xd8] sm:$0xff]
  %v7864 = vld [vmem:[%s5478 + $0xe0] sm:$0xff]
  %v7865 = vld [vmem:[%s5478 + $0xe8] sm:$0xff]
  %v7866 = vld [vmem:[%s5478 + $0xf0] sm:$0xff]
  %v7867 = vld [vmem:[%s5478 + $0xf8] sm:$0xff]
  %v7868 = vld [vmem:[%s5478 + $0x100] sm:$0xff]
  %v7869 = vld [vmem:[%s5478 + $0x108] sm:$0xff]
  %v7870 = vld [vmem:[%s5478 + $0x110] sm:$0xff]
  %v7871 = vld [vmem:[%s5478 + $0x118] sm:$0xff]
  %v7872 = vld [vmem:[%s5478 + $0x120] sm:$0xff]
  %v7873 = vld [vmem:[%s5478 + $0x128] sm:$0xff]
  %v7874 = vld [vmem:[%s5478 + $0x130] sm:$0xff]
  %v7875 = vld [vmem:[%s5478 + $0x138] sm:$0xff]
  %v7876 = vld [vmem:[%s5478 + $0x140] sm:$0xff]
  %v7877 = vld [vmem:[%s5478 + $0x148] sm:$0xff]
  %v7878 = vld [vmem:[%s5478 + $0x150] sm:$0xff]
  %v7879 = vld [vmem:[%s5478 + $0x158] sm:$0xff]
  %v7880 = vld [vmem:[%s5478 + $0x160] sm:$0xff]
  %v7881 = vld [vmem:[%s5478 + $0x168] sm:$0xff]
  %v7882 = vld [vmem:[%s5478 + $0x170] sm:$0xff]
  %v7883 = vld [vmem:[%s5478 + $0x178] sm:$0xff]
  %v7884 = vld [vmem:[%s5478 + $0x180] sm:$0xff]
  %v7885 = vld [vmem:[%s5478 + $0x188] sm:$0xff]
  %v7886 = vld [vmem:[%s5478 + $0x190] sm:$0xff]
  %v7887 = vld [vmem:[%s5478 + $0x198] sm:$0xff]
  %v7888 = vld [vmem:[%s5478 + $0x1a0] sm:$0xff]
  %v7889 = vld [vmem:[%s5478 + $0x1a8] sm:$0xff]
  %v7890 = vld [vmem:[%s5478 + $0x1b0] sm:$0xff]
  %v7891 = vld [vmem:[%s5478 + $0x1b8] sm:$0xff]
  %v7892 = vld [vmem:[%s5478 + $0x1c0] sm:$0xff]
  %v7893 = vld [vmem:[%s5478 + $0x1c8] sm:$0xff]
  %v7894 = vld [vmem:[%s5478 + $0x1d0] sm:$0xff]
  %v7895 = vld [vmem:[%s5478 + $0x1d8] sm:$0xff]
  %v7896 = vld [vmem:[%s5478 + $0x1e0] sm:$0xff]
  %v7897 = vld [vmem:[%s5478 + $0x1e8] sm:$0xff]
  %v7898 = vld [vmem:[%s5478 + $0x1f0] sm:$0xff]
  %v7899 = vld [vmem:[%s5478 + $0x1f8] sm:$0xff]
  %7900 = vmatprep.subr.mxu0 %v7867
  %7901 = vmatpush1.msra.mxu0 %v7866
  %7902 = vmatprep.subr.mxu0 %v7865
  %7903 = vmatpush1.msra.mxu0 %v7864
  %7904 = vmatprep.subr.mxu0 %v7863
  %7905 = vmatpush1.msra.mxu0 %v7862
  %7906 = vmatprep.subr.mxu0 %v7861
  %7907 = vmatpush1.msra.mxu0 %v7860
  %7908 = vmatprep.subr.mxu0 %v7859
  %7909 = vmatpush1.msra.mxu0 %v7858
  %7910 = vmatprep.subr.mxu0 %v7857
  %7911 = vmatpush1.msra.mxu0 %v7856
  %7912 = vmatprep.subr.mxu0 %v7855
  %7913 = vmatpush1.msra.mxu0 %v7854
  %7914 = vmatprep.subr.mxu0 %v7853
  %7915 = vmatpush1.msra.mxu0 %v7852
  %7916 = vmatprep.subr.mxu0 %v7851
  %7917 = vmatpush1.msra.mxu0 %v7850
  %7918 = vmatprep.subr.mxu0 %v7849
  %7919 = vmatpush1.msra.mxu0 %v7848
  %7920 = vmatprep.subr.mxu0 %v7847
  %7921 = vmatpush1.msra.mxu0 %v7846
  %7922 = vmatprep.subr.mxu0 %v7845
  %7923 = vmatpush1.msra.mxu0 %v7844
  %7924 = vmatprep.subr.mxu0 %v7843
  %7925 = vmatpush1.msra.mxu0 %v7842
  %7926 = vmatprep.subr.mxu0 %v7841
  %7927 = vmatpush1.msra.mxu0 %v7840
  %7928 = vmatprep.subr.mxu0 %v7839
  %7929 = vmatpush1.msra.mxu0 %v7838
  %7930 = vmatprep.subr.mxu0 %v7837
  %7931 = vmatpush1.msra.mxu0 %v7836
  %7932 = vmatprep.subr.mxu0 %v7899
  %7933 = vmatpush2.msra.mxu0 %v7898
  %7934 = vmatprep.subr.mxu0 %v7897
  %7935 = vmatpush2.msra.mxu0 %v7896
  %7936 = vmatprep.subr.mxu0 %v7895
  %7937 = vmatpush2.msra.mxu0 %v7894
  %7938 = vmatprep.subr.mxu0 %v7893
  %7939 = vmatpush2.msra.mxu0 %v7892
  %7940 = vmatprep.subr.mxu0 %v7891
  %7941 = vmatpush2.msra.mxu0 %v7890
  %7942 = vmatprep.subr.mxu0 %v7889
  %7943 = vmatpush2.msra.mxu0 %v7888
  %7944 = vmatprep.subr.mxu0 %v7887
  %7945 = vmatpush2.msra.mxu0 %v7886
  %7946 = vmatprep.subr.mxu0 %v7885
  %7947 = vmatpush2.msra.mxu0 %v7884
  %7948 = vmatprep.subr.mxu0 %v7883
  %7949 = vmatpush2.msra.mxu0 %v7882
  %7950 = vmatprep.subr.mxu0 %v7881
  %7951 = vmatpush2.msra.mxu0 %v7880
  %7952 = vmatprep.subr.mxu0 %v7879
  %7953 = vmatpush2.msra.mxu0 %v7878
  %7954 = vmatprep.subr.mxu0 %v7877
  %7955 = vmatpush2.msra.mxu0 %v7876
  %7956 = vmatprep.subr.mxu0 %v7875
  %7957 = vmatpush2.msra.mxu0 %v7874
  %7958 = vmatprep.subr.mxu0 %v7873
  %7959 = vmatpush2.msra.mxu0 %v7872
  %7960 = vmatprep.subr.mxu0 %v7871
  %7961 = vmatpush2.msra.mxu0 %v7870
  %7962 = vmatprep.subr.mxu0 %v7869
  %7963 = vmatpush2.msra.mxu0 %v7868
  %7964 = vmatprep.mubr.f32.mxu0 %v7755
  %7965 = vmatmul.mubr.f32.gmra.mxu0 %v7754
  %v7966 = vpop.f32.mrf.mxu0
  %v7967 = vadd.f32 0.0, %v7966
  %v7968 = vpop.f32.mrf.mxu0
  %v7969 = vadd.f32 0.0, %v7968
  %7970 = vmatprep.mubr.f32.mxu0 %v7757
  %7971 = vmatmul.mubr.f32.gmra.mxu0 %v7756
  %v7972 = vpop.f32.mrf.mxu0
  %v7973 = vadd.f32 0.0, %v7972
  %v7974 = vpop.f32.mrf.mxu0
  %v7975 = vadd.f32 0.0, %v7974
  %7976 = vmatprep.mubr.f32.mxu0 %v7759
  %7977 = vmatmul.mubr.f32.gmra.mxu0 %v7758
  %v7978 = vpop.f32.mrf.mxu0
  %v7979 = vadd.f32 0.0, %v7978
  %v7980 = vpop.f32.mrf.mxu0
  %v7981 = vadd.f32 0.0, %v7980
  %7982 = vmatprep.mubr.f32.mxu0 %v7761
  %7983 = vmatmul.mubr.f32.gmra.mxu0 %v7760
  %v7984 = vpop.f32.mrf.mxu0
  %v7985 = vadd.f32 0.0, %v7984
  %v7986 = vpop.f32.mrf.mxu0
  %v7987 = vadd.f32 0.0, %v7986
  %7988 = vmatprep.mubr.f32.mxu0 %v7763
  %7989 = vmatmul.mubr.f32.gmra.mxu0 %v7762
  %v7990 = vpop.f32.mrf.mxu0
  %v7991 = vadd.f32 0.0, %v7990
  %v7992 = vpop.f32.mrf.mxu0
  %v7993 = vadd.f32 0.0, %v7992
  %7994 = vmatprep.mubr.f32.mxu0 %v7765
  %7995 = vmatmul.mubr.f32.gmra.mxu0 %v7764
  %v7996 = vpop.f32.mrf.mxu0
  %v7997 = vadd.f32 0.0, %v7996
  %v7998 = vpop.f32.mrf.mxu0
  %v7999 = vadd.f32 0.0, %v7998
  %8000 = vmatprep.mubr.f32.mxu0 %v7767
  %8001 = vmatmul.mubr.f32.gmra.mxu0 %v7766
  %v8002 = vpop.f32.mrf.mxu0
  %v8003 = vadd.f32 0.0, %v8002
  %v8004 = vpop.f32.mrf.mxu0
  %v8005 = vadd.f32 0.0, %v8004
  %8006 = vmatprep.mubr.f32.mxu0 %v7835
  %8007 = vmatmul.mubr.f32.gmra.mxu0 %v7834
  %v8008 = vpop.f32.mrf.mxu0
  %v8009 = vadd.f32 0.0, %v8008
  %v8010 = vpop.f32.mrf.mxu0
  %v8011 = vadd.f32 0.0, %v8010
  %8012 = vdwg.mxu0
  %v8031 = vrot.slane %v7752, 7
  %v8032 = vrot.slane %v7754, 7
  %v8033 = vsel %vm330, %v8031, %v8032
  %v8034 = vrot.slane %v7753, 7
  %v8035 = vrot.slane %v7755, 7
  %v8036 = vsel %vm330, %v8034, %v8035
  %v8037 = vrot.slane %v7756, 7
  %v8038 = vsel %vm330, %v8032, %v8037
  %v8039 = vrot.slane %v7757, 7
  %v8040 = vsel %vm330, %v8035, %v8039
  %v8041 = vrot.slane %v7758, 7
  %v8042 = vsel %vm330, %v8037, %v8041
  %v8043 = vrot.slane %v7759, 7
  %v8044 = vsel %vm330, %v8039, %v8043
  %v8045 = vrot.slane %v7760, 7
  %v8046 = vsel %vm330, %v8041, %v8045
  %v8047 = vrot.slane %v7761, 7
  %v8048 = vsel %vm330, %v8043, %v8047
  %v8049 = vrot.slane %v7762, 7
  %v8050 = vsel %vm330, %v8045, %v8049
  %v8051 = vrot.slane %v7763, 7
  %v8052 = vsel %vm330, %v8047, %v8051
  %v8053 = vrot.slane %v7764, 7
  %v8054 = vsel %vm330, %v8049, %v8053
  %v8055 = vrot.slane %v7765, 7
  %v8056 = vsel %vm330, %v8051, %v8055
  %v8057 = vrot.slane %v7766, 7
  %v8058 = vsel %vm330, %v8053, %v8057
  %v8059 = vrot.slane %v7767, 7
  %v8060 = vsel %vm330, %v8055, %v8059
  %v8061 = vrot.slane %v7768, 7
  %v8062 = vsel %vm330, %v8057, %v8061
  %v8063 = vrot.slane %v7769, 7
  %v8064 = vsel %vm330, %v8059, %v8063
  %8081 = vmatprep.subr.mxu0 %v7801
  %8082 = vmatpush1.msra.mxu0 %v7800
  %8083 = vmatprep.subr.mxu0 %v7799
  %8084 = vmatpush1.msra.mxu0 %v7798
  %8085 = vmatprep.subr.mxu0 %v7797
  %8086 = vmatpush1.msra.mxu0 %v7796
  %8087 = vmatprep.subr.mxu0 %v7795
  %8088 = vmatpush1.msra.mxu0 %v7794
  %8089 = vmatprep.subr.mxu0 %v7793
  %8090 = vmatpush1.msra.mxu0 %v7792
  %8091 = vmatprep.subr.mxu0 %v7791
  %8092 = vmatpush1.msra.mxu0 %v7790
  %8093 = vmatprep.subr.mxu0 %v7789
  %8094 = vmatpush1.msra.mxu0 %v7788
  %8095 = vmatprep.subr.mxu0 %v7787
  %8096 = vmatpush1.msra.mxu0 %v7786
  %8097 = vmatprep.subr.mxu0 %v7785
  %8098 = vmatpush1.msra.mxu0 %v7784
  %8099 = vmatprep.subr.mxu0 %v7783
  %8100 = vmatpush1.msra.mxu0 %v7782
  %8101 = vmatprep.subr.mxu0 %v7781
  %8102 = vmatpush1.msra.mxu0 %v7780
  %8103 = vmatprep.subr.mxu0 %v7779
  %8104 = vmatpush1.msra.mxu0 %v7778
  %8105 = vmatprep.subr.mxu0 %v7777
  %8106 = vmatpush1.msra.mxu0 %v7776
  %8107 = vmatprep.subr.mxu0 %v7775
  %8108 = vmatpush1.msra.mxu0 %v7774
  %8109 = vmatprep.subr.mxu0 %v7773
  %8110 = vmatpush1.msra.mxu0 %v7772
  %8111 = vmatprep.subr.mxu0 %v7771
  %8112 = vmatpush1.msra.mxu0 %v7770
  %8113 = vmatprep.subr.mxu0 %v7833
  %8114 = vmatpush2.msra.mxu0 %v7832
  %8115 = vmatprep.subr.mxu0 %v7831
  %8116 = vmatpush2.msra.mxu0 %v7830
  %8117 = vmatprep.subr.mxu0 %v7829
  %8118 = vmatpush2.msra.mxu0 %v7828
  %8119 = vmatprep.subr.mxu0 %v7827
  %8120 = vmatpush2.msra.mxu0 %v7826
  %8121 = vmatprep.subr.mxu0 %v7825
  %8122 = vmatpush2.msra.mxu0 %v7824
  %8123 = vmatprep.subr.mxu0 %v7823
  %8124 = vmatpush2.msra.mxu0 %v7822
  %8125 = vmatprep.subr.mxu0 %v7821
  %8126 = vmatpush2.msra.mxu0 %v7820
  %8127 = vmatprep.subr.mxu0 %v7819
  %8128 = vmatpush2.msra.mxu0 %v7818
  %8129 = vmatprep.subr.mxu0 %v7817
  %8130 = vmatpush2.msra.mxu0 %v7816
  %8131 = vmatprep.subr.mxu0 %v7815
  %8132 = vmatpush2.msra.mxu0 %v7814
  %8133 = vmatprep.subr.mxu0 %v7813
  %8134 = vmatpush2.msra.mxu0 %v7812
  %8135 = vmatprep.subr.mxu0 %v7811
  %8136 = vmatpush2.msra.mxu0 %v7810
  %8137 = vmatprep.subr.mxu0 %v7809
  %8138 = vmatpush2.msra.mxu0 %v7808
  %8139 = vmatprep.subr.mxu0 %v7807
  %8140 = vmatpush2.msra.mxu0 %v7806
  %8141 = vmatprep.subr.mxu0 %v7805
  %8142 = vmatpush2.msra.mxu0 %v7804
  %8143 = vmatprep.subr.mxu0 %v7803
  %8144 = vmatpush2.msra.mxu0 %v7802
  %8145 = vmatprep.mubr.f32.mxu0 %v8036
  %8146 = vmatmul.mubr.f32.gmra.mxu0 %v8033
  %v8147 = vpop.f32.mrf.mxu0
  %v8148 = vadd.f32 %v7967, %v8147
  %v8149 = vpop.f32.mrf.mxu0
  %v8150 = vadd.f32 %v7969, %v8149
  %8151 = vmatprep.mubr.f32.mxu0 %v8040
  %8152 = vmatmul.mubr.f32.gmra.mxu0 %v8038
  %v8153 = vpop.f32.mrf.mxu0
  %v8154 = vadd.f32 %v7973, %v8153
  %v8155 = vpop.f32.mrf.mxu0
  %v8156 = vadd.f32 %v7975, %v8155
  %8157 = vmatprep.mubr.f32.mxu0 %v8044
  %8158 = vmatmul.mubr.f32.gmra.mxu0 %v8042
  %v8159 = vpop.f32.mrf.mxu0
  %v8160 = vadd.f32 %v7979, %v8159
  %v8161 = vpop.f32.mrf.mxu0
  %v8162 = vadd.f32 %v7981, %v8161
  %8163 = vmatprep.mubr.f32.mxu0 %v8048
  %8164 = vmatmul.mubr.f32.gmra.mxu0 %v8046
  %v8165 = vpop.f32.mrf.mxu0
  %v8166 = vadd.f32 %v7985, %v8165
  %v8167 = vpop.f32.mrf.mxu0
  %v8168 = vadd.f32 %v7987, %v8167
  %8169 = vmatprep.mubr.f32.mxu0 %v8052
  %8170 = vmatmul.mubr.f32.gmra.mxu0 %v8050
  %v8171 = vpop.f32.mrf.mxu0
  %v8172 = vadd.f32 %v7991, %v8171
  %v8173 = vpop.f32.mrf.mxu0
  %v8174 = vadd.f32 %v7993, %v8173
  %8175 = vmatprep.mubr.f32.mxu0 %v8056
  %8176 = vmatmul.mubr.f32.gmra.mxu0 %v8054
  %v8177 = vpop.f32.mrf.mxu0
  %v8178 = vadd.f32 %v7997, %v8177
  %v8179 = vpop.f32.mrf.mxu0
  %v8180 = vadd.f32 %v7999, %v8179
  %8181 = vmatprep.mubr.f32.mxu0 %v8060
  %8182 = vmatmul.mubr.f32.gmra.mxu0 %v8058
  %v8183 = vpop.f32.mrf.mxu0
  %v8184 = vadd.f32 %v8003, %v8183
  %v8185 = vpop.f32.mrf.mxu0
  %v8186 = vadd.f32 %v8005, %v8185
  %8187 = vmatprep.mubr.f32.mxu0 %v8064
  %8188 = vmatmul.mubr.f32.gmra.mxu0 %v8062
  %v8189 = vpop.f32.mrf.mxu0
  %v8190 = vadd.f32 %v8009, %v8189
  %v8191 = vpop.f32.mrf.mxu0
  %v8192 = vadd.f32 %v8011, %v8191
  %8193 = vdwg.mxu0
  %v8194 = vld [vmem:[#allocation2 + $0x90] sm:$0xfe]
  %v8195 = vld [vmem:[#allocation2 + $0x98] sm:$0xfe]
  %v8196 = vld [vmem:[#allocation2 + $0xa0] sm:$0xff]
  %v8197 = vld [vmem:[#allocation2 + $0xa8] sm:$0xff]
  %v8198 = vld [vmem:[#allocation2 + $0xb0] sm:$0xff]
  %v8199 = vld [vmem:[#allocation2 + $0xb8] sm:$0xff]
  %v8200 = vld [vmem:[#allocation2 + $0xc0] sm:$0xff]
  %v8201 = vld [vmem:[#allocation2 + $0xc8] sm:$0xff]
  %v8202 = vld [vmem:[#allocation2 + $0xd0] sm:$0xff]
  %v8203 = vld [vmem:[#allocation2 + $0xd8] sm:$0xff]
  %v8204 = vld [vmem:[#allocation2 + $0xe0] sm:$0xff]
  %v8205 = vld [vmem:[#allocation2 + $0xe8] sm:$0xff]
  %v8206 = vld [vmem:[#allocation2 + $0xf0] sm:$0xff]
  %v8207 = vld [vmem:[#allocation2 + $0xf8] sm:$0xff]
  %v8208 = vld [vmem:[#allocation2 + $0x100] sm:$0xff]
  %v8209 = vld [vmem:[#allocation2 + $0x108] sm:$0xff]
  %v8210 = vld [vmem:[#allocation2 + $0x110] sm:$0x1]
  %v8211 = vld [vmem:[#allocation2 + $0x118] sm:$0x1]
  %v8212 = vld [vmem:[%s5855] sm:$0xff]
  %v8213 = vld [vmem:[%s5855 + $0x8] sm:$0xff]
  %v8214 = vld [vmem:[%s5855 + $0x10] sm:$0xff]
  %v8215 = vld [vmem:[%s5855 + $0x18] sm:$0xff]
  %v8216 = vld [vmem:[%s5855 + $0x20] sm:$0xff]
  %v8217 = vld [vmem:[%s5855 + $0x28] sm:$0xff]
  %v8218 = vld [vmem:[%s5855 + $0x30] sm:$0xff]
  %v8219 = vld [vmem:[%s5855 + $0x38] sm:$0xff]
  %v8220 = vld [vmem:[%s5855 + $0x40] sm:$0xff]
  %v8221 = vld [vmem:[%s5855 + $0x48] sm:$0xff]
  %v8222 = vld [vmem:[%s5855 + $0x50] sm:$0xff]
  %v8223 = vld [vmem:[%s5855 + $0x58] sm:$0xff]
  %v8224 = vld [vmem:[%s5855 + $0x60] sm:$0xff]
  %v8225 = vld [vmem:[%s5855 + $0x68] sm:$0xff]
  %v8226 = vld [vmem:[%s5855 + $0x70] sm:$0xff]
  %v8227 = vld [vmem:[%s5855 + $0x78] sm:$0xff]
  %v8228 = vld [vmem:[%s5855 + $0x80] sm:$0xff]
  %v8229 = vld [vmem:[%s5855 + $0x88] sm:$0xff]
  %v8230 = vld [vmem:[%s5855 + $0x90] sm:$0xff]
  %v8231 = vld [vmem:[%s5855 + $0x98] sm:$0xff]
  %v8232 = vld [vmem:[%s5855 + $0xa0] sm:$0xff]
  %v8233 = vld [vmem:[%s5855 + $0xa8] sm:$0xff]
  %v8234 = vld [vmem:[%s5855 + $0xb0] sm:$0xff]
  %v8235 = vld [vmem:[%s5855 + $0xb8] sm:$0xff]
  %v8236 = vld [vmem:[%s5855 + $0xc0] sm:$0xff]
  %v8237 = vld [vmem:[%s5855 + $0xc8] sm:$0xff]
  %v8238 = vld [vmem:[%s5855 + $0xd0] sm:$0xff]
  %v8239 = vld [vmem:[%s5855 + $0xd8] sm:$0xff]
  %v8240 = vld [vmem:[%s5855 + $0xe0] sm:$0xff]
  %v8241 = vld [vmem:[%s5855 + $0xe8] sm:$0xff]
  %v8242 = vld [vmem:[%s5855 + $0xf0] sm:$0xff]
  %v8243 = vld [vmem:[%s5855 + $0xf8] sm:$0xff]
  %v8244 = vld [vmem:[%s5855 + $0x100] sm:$0xff]
  %v8245 = vld [vmem:[%s5855 + $0x108] sm:$0xff]
  %v8246 = vld [vmem:[%s5855 + $0x110] sm:$0xff]
  %v8247 = vld [vmem:[%s5855 + $0x118] sm:$0xff]
  %v8248 = vld [vmem:[%s5855 + $0x120] sm:$0xff]
  %v8249 = vld [vmem:[%s5855 + $0x128] sm:$0xff]
  %v8250 = vld [vmem:[%s5855 + $0x130] sm:$0xff]
  %v8251 = vld [vmem:[%s5855 + $0x138] sm:$0xff]
  %v8252 = vld [vmem:[%s5855 + $0x140] sm:$0xff]
  %v8253 = vld [vmem:[%s5855 + $0x148] sm:$0xff]
  %v8254 = vld [vmem:[%s5855 + $0x150] sm:$0xff]
  %v8255 = vld [vmem:[%s5855 + $0x158] sm:$0xff]
  %v8256 = vld [vmem:[%s5855 + $0x160] sm:$0xff]
  %v8257 = vld [vmem:[%s5855 + $0x168] sm:$0xff]
  %v8258 = vld [vmem:[%s5855 + $0x170] sm:$0xff]
  %v8259 = vld [vmem:[%s5855 + $0x178] sm:$0xff]
  %v8260 = vld [vmem:[%s5855 + $0x180] sm:$0xff]
  %v8261 = vld [vmem:[%s5855 + $0x188] sm:$0xff]
  %v8262 = vld [vmem:[%s5855 + $0x190] sm:$0xff]
  %v8263 = vld [vmem:[%s5855 + $0x198] sm:$0xff]
  %v8264 = vld [vmem:[%s5855 + $0x1a0] sm:$0xff]
  %v8265 = vld [vmem:[%s5855 + $0x1a8] sm:$0xff]
  %v8266 = vld [vmem:[%s5855 + $0x1b0] sm:$0xff]
  %v8267 = vld [vmem:[%s5855 + $0x1b8] sm:$0xff]
  %v8268 = vld [vmem:[%s5855 + $0x1c0] sm:$0xff]
  %v8269 = vld [vmem:[%s5855 + $0x1c8] sm:$0xff]
  %v8270 = vld [vmem:[%s5855 + $0x1d0] sm:$0xff]
  %v8271 = vld [vmem:[%s5855 + $0x1d8] sm:$0xff]
  %v8272 = vld [vmem:[%s5855 + $0x1e0] sm:$0xff]
  %v8273 = vld [vmem:[%s5855 + $0x1e8] sm:$0xff]
  %v8274 = vld [vmem:[%s5855 + $0x1f0] sm:$0xff]
  %v8275 = vld [vmem:[%s5855 + $0x1f8] sm:$0xff]
  %v8294 = vrot.slane %v8194, 1
  %v8295 = vrot.slane %v8196, 1
  %v8296 = vsel %vm595, %v8294, %v8295
  %v8297 = vrot.slane %v8195, 1
  %v8298 = vrot.slane %v8197, 1
  %v8299 = vsel %vm595, %v8297, %v8298
  %v8300 = vrot.slane %v8198, 1
  %v8301 = vsel %vm595, %v8295, %v8300
  %v8302 = vrot.slane %v8199, 1
  %v8303 = vsel %vm595, %v8298, %v8302
  %v8304 = vrot.slane %v8200, 1
  %v8305 = vsel %vm595, %v8300, %v8304
  %v8306 = vrot.slane %v8201, 1
  %v8307 = vsel %vm595, %v8302, %v8306
  %v8308 = vrot.slane %v8202, 1
  %v8309 = vsel %vm595, %v8304, %v8308
  %v8310 = vrot.slane %v8203, 1
  %v8311 = vsel %vm595, %v8306, %v8310
  %v8312 = vrot.slane %v8204, 1
  %v8313 = vsel %vm595, %v8308, %v8312
  %v8314 = vrot.slane %v8205, 1
  %v8315 = vsel %vm595, %v8310, %v8314
  %v8316 = vrot.slane %v8206, 1
  %v8317 = vsel %vm595, %v8312, %v8316
  %v8318 = vrot.slane %v8207, 1
  %v8319 = vsel %vm595, %v8314, %v8318
  %v8320 = vrot.slane %v8208, 1
  %v8321 = vsel %vm595, %v8316, %v8320
  %v8322 = vrot.slane %v8209, 1
  %v8323 = vsel %vm595, %v8318, %v8322
  %v8324 = vrot.slane %v8210, 1
  %v8325 = vsel %vm595, %v8320, %v8324
  %v8326 = vrot.slane %v8211, 1
  %v8327 = vsel %vm595, %v8322, %v8326
  %8344 = vmatprep.subr.mxu0 %v8243
  %8345 = vmatpush1.msra.mxu0 %v8242
  %8346 = vmatprep.subr.mxu0 %v8241
  %8347 = vmatpush1.msra.mxu0 %v8240
  %8348 = vmatprep.subr.mxu0 %v8239
  %8349 = vmatpush1.msra.mxu0 %v8238
  %8350 = vmatprep.subr.mxu0 %v8237
  %8351 = vmatpush1.msra.mxu0 %v8236
  %8352 = vmatprep.subr.mxu0 %v8235
  %8353 = vmatpush1.msra.mxu0 %v8234
  %8354 = vmatprep.subr.mxu0 %v8233
  %8355 = vmatpush1.msra.mxu0 %v8232
  %8356 = vmatprep.subr.mxu0 %v8231
  %8357 = vmatpush1.msra.mxu0 %v8230
  %8358 = vmatprep.subr.mxu0 %v8229
  %8359 = vmatpush1.msra.mxu0 %v8228
  %8360 = vmatprep.subr.mxu0 %v8227
  %8361 = vmatpush1.msra.mxu0 %v8226
  %8362 = vmatprep.subr.mxu0 %v8225
  %8363 = vmatpush1.msra.mxu0 %v8224
  %8364 = vmatprep.subr.mxu0 %v8223
  %8365 = vmatpush1.msra.mxu0 %v8222
  %8366 = vmatprep.subr.mxu0 %v8221
  %8367 = vmatpush1.msra.mxu0 %v8220
  %8368 = vmatprep.subr.mxu0 %v8219
  %8369 = vmatpush1.msra.mxu0 %v8218
  %8370 = vmatprep.subr.mxu0 %v8217
  %8371 = vmatpush1.msra.mxu0 %v8216
  %8372 = vmatprep.subr.mxu0 %v8215
  %8373 = vmatpush1.msra.mxu0 %v8214
  %8374 = vmatprep.subr.mxu0 %v8213
  %8375 = vmatpush1.msra.mxu0 %v8212
  %8376 = vmatprep.subr.mxu0 %v8275
  %8377 = vmatpush2.msra.mxu0 %v8274
  %8378 = vmatprep.subr.mxu0 %v8273
  %8379 = vmatpush2.msra.mxu0 %v8272
  %8380 = vmatprep.subr.mxu0 %v8271
  %8381 = vmatpush2.msra.mxu0 %v8270
  %8382 = vmatprep.subr.mxu0 %v8269
  %8383 = vmatpush2.msra.mxu0 %v8268
  %8384 = vmatprep.subr.mxu0 %v8267
  %8385 = vmatpush2.msra.mxu0 %v8266
  %8386 = vmatprep.subr.mxu0 %v8265
  %8387 = vmatpush2.msra.mxu0 %v8264
  %8388 = vmatprep.subr.mxu0 %v8263
  %8389 = vmatpush2.msra.mxu0 %v8262
  %8390 = vmatprep.subr.mxu0 %v8261
  %8391 = vmatpush2.msra.mxu0 %v8260
  %8392 = vmatprep.subr.mxu0 %v8259
  %8393 = vmatpush2.msra.mxu0 %v8258
  %8394 = vmatprep.subr.mxu0 %v8257
  %8395 = vmatpush2.msra.mxu0 %v8256
  %8396 = vmatprep.subr.mxu0 %v8255
  %8397 = vmatpush2.msra.mxu0 %v8254
  %8398 = vmatprep.subr.mxu0 %v8253
  %8399 = vmatpush2.msra.mxu0 %v8252
  %8400 = vmatprep.subr.mxu0 %v8251
  %8401 = vmatpush2.msra.mxu0 %v8250
  %8402 = vmatprep.subr.mxu0 %v8249
  %8403 = vmatpush2.msra.mxu0 %v8248
  %8404 = vmatprep.subr.mxu0 %v8247
  %8405 = vmatpush2.msra.mxu0 %v8246
  %8406 = vmatprep.subr.mxu0 %v8245
  %8407 = vmatpush2.msra.mxu0 %v8244
  %8408 = vmatprep.mubr.f32.mxu0 %v8299
  %8409 = vmatmul.mubr.f32.gmra.mxu0 %v8296
  %v8410 = vpop.f32.mrf.mxu0
  %v8411 = vadd.f32 0.0, %v8410
  %v8412 = vpop.f32.mrf.mxu0
  %v8413 = vadd.f32 0.0, %v8412
  %8414 = vmatprep.mubr.f32.mxu0 %v8303
  %8415 = vmatmul.mubr.f32.gmra.mxu0 %v8301
  %v8416 = vpop.f32.mrf.mxu0
  %v8417 = vadd.f32 0.0, %v8416
  %v8418 = vpop.f32.mrf.mxu0
  %v8419 = vadd.f32 0.0, %v8418
  %8420 = vmatprep.mubr.f32.mxu0 %v8307
  %8421 = vmatmul.mubr.f32.gmra.mxu0 %v8305
  %v8422 = vpop.f32.mrf.mxu0
  %v8423 = vadd.f32 0.0, %v8422
  %v8424 = vpop.f32.mrf.mxu0
  %v8425 = vadd.f32 0.0, %v8424
  %8426 = vmatprep.mubr.f32.mxu0 %v8311
  %8427 = vmatmul.mubr.f32.gmra.mxu0 %v8309
  %v8428 = vpop.f32.mrf.mxu0
  %v8429 = vadd.f32 0.0, %v8428
  %v8430 = vpop.f32.mrf.mxu0
  %v8431 = vadd.f32 0.0, %v8430
  %8432 = vmatprep.mubr.f32.mxu0 %v8315
  %8433 = vmatmul.mubr.f32.gmra.mxu0 %v8313
  %v8434 = vpop.f32.mrf.mxu0
  %v8435 = vadd.f32 0.0, %v8434
  %v8436 = vpop.f32.mrf.mxu0
  %v8437 = vadd.f32 0.0, %v8436
  %8438 = vmatprep.mubr.f32.mxu0 %v8319
  %8439 = vmatmul.mubr.f32.gmra.mxu0 %v8317
  %v8440 = vpop.f32.mrf.mxu0
  %v8441 = vadd.f32 0.0, %v8440
  %v8442 = vpop.f32.mrf.mxu0
  %v8443 = vadd.f32 0.0, %v8442
  %8444 = vmatprep.mubr.f32.mxu0 %v8323
  %8445 = vmatmul.mubr.f32.gmra.mxu0 %v8321
  %v8446 = vpop.f32.mrf.mxu0
  %v8447 = vadd.f32 0.0, %v8446
  %v8448 = vpop.f32.mrf.mxu0
  %v8449 = vadd.f32 0.0, %v8448
  %8450 = vmatprep.mubr.f32.mxu0 %v8327
  %8451 = vmatmul.mubr.f32.gmra.mxu0 %v8325
  %v8452 = vpop.f32.mrf.mxu0
  %v8453 = vadd.f32 0.0, %v8452
  %v8454 = vpop.f32.mrf.mxu0
  %v8455 = vadd.f32 0.0, %v8454
  %8456 = vdwg.mxu0
  %v8457 = vadd.f32 %v8148, %v8411
  %v8458 = vadd.f32 %v8150, %v8413
  %v8459 = vadd.f32 %v8154, %v8417
  %v8460 = vadd.f32 %v8156, %v8419
  %v8461 = vadd.f32 %v8160, %v8423
  %v8462 = vadd.f32 %v8162, %v8425
  %v8463 = vadd.f32 %v8166, %v8429
  %v8464 = vadd.f32 %v8168, %v8431
  %v8465 = vadd.f32 %v8172, %v8435
  %v8466 = vadd.f32 %v8174, %v8437
  %v8467 = vadd.f32 %v8178, %v8441
  %v8468 = vadd.f32 %v8180, %v8443
  %v8469 = vadd.f32 %v8184, %v8447
  %v8470 = vadd.f32 %v8186, %v8449
  %v8471 = vadd.f32 %v8190, %v8453
  %v8472 = vadd.f32 %v8192, %v8455
  %v8473 = vld [vmem:[#allocation2 + $0x90] sm:$0x80]
  %v8474 = vld [vmem:[#allocation2 + $0x98] sm:$0x80]
  %v8475 = vld [vmem:[#allocation2 + $0x110] sm:$0x7f]
  %v8476 = vld [vmem:[#allocation2 + $0x118] sm:$0x7f]
  %v8477 = vld [vmem:[%s6121] sm:$0xff]
  %v8478 = vld [vmem:[%s6121 + $0x8] sm:$0xff]
  %v8479 = vld [vmem:[%s6121 + $0x10] sm:$0xff]
  %v8480 = vld [vmem:[%s6121 + $0x18] sm:$0xff]
  %v8481 = vld [vmem:[%s6121 + $0x20] sm:$0xff]
  %v8482 = vld [vmem:[%s6121 + $0x28] sm:$0xff]
  %v8483 = vld [vmem:[%s6121 + $0x30] sm:$0xff]
  %v8484 = vld [vmem:[%s6121 + $0x38] sm:$0xff]
  %v8485 = vld [vmem:[%s6121 + $0x40] sm:$0xff]
  %v8486 = vld [vmem:[%s6121 + $0x48] sm:$0xff]
  %v8487 = vld [vmem:[%s6121 + $0x50] sm:$0xff]
  %v8488 = vld [vmem:[%s6121 + $0x58] sm:$0xff]
  %v8489 = vld [vmem:[%s6121 + $0x60] sm:$0xff]
  %v8490 = vld [vmem:[%s6121 + $0x68] sm:$0xff]
  %v8491 = vld [vmem:[%s6121 + $0x70] sm:$0xff]
  %v8492 = vld [vmem:[%s6121 + $0x78] sm:$0xff]
  %v8493 = vld [vmem:[%s6121 + $0x80] sm:$0xff]
  %v8494 = vld [vmem:[%s6121 + $0x88] sm:$0xff]
  %v8495 = vld [vmem:[%s6121 + $0x90] sm:$0xff]
  %v8496 = vld [vmem:[%s6121 + $0x98] sm:$0xff]
  %v8497 = vld [vmem:[%s6121 + $0xa0] sm:$0xff]
  %v8498 = vld [vmem:[%s6121 + $0xa8] sm:$0xff]
  %v8499 = vld [vmem:[%s6121 + $0xb0] sm:$0xff]
  %v8500 = vld [vmem:[%s6121 + $0xb8] sm:$0xff]
  %v8501 = vld [vmem:[%s6121 + $0xc0] sm:$0xff]
  %v8502 = vld [vmem:[%s6121 + $0xc8] sm:$0xff]
  %v8503 = vld [vmem:[%s6121 + $0xd0] sm:$0xff]
  %v8504 = vld [vmem:[%s6121 + $0xd8] sm:$0xff]
  %v8505 = vld [vmem:[%s6121 + $0xe0] sm:$0xff]
  %v8506 = vld [vmem:[%s6121 + $0xe8] sm:$0xff]
  %v8507 = vld [vmem:[%s6121 + $0xf0] sm:$0xff]
  %v8508 = vld [vmem:[%s6121 + $0xf8] sm:$0xff]
  %v8509 = vld [vmem:[%s6121 + $0x100] sm:$0xff]
  %v8510 = vld [vmem:[%s6121 + $0x108] sm:$0xff]
  %v8511 = vld [vmem:[%s6121 + $0x110] sm:$0xff]
  %v8512 = vld [vmem:[%s6121 + $0x118] sm:$0xff]
  %v8513 = vld [vmem:[%s6121 + $0x120] sm:$0xff]
  %v8514 = vld [vmem:[%s6121 + $0x128] sm:$0xff]
  %v8515 = vld [vmem:[%s6121 + $0x130] sm:$0xff]
  %v8516 = vld [vmem:[%s6121 + $0x138] sm:$0xff]
  %v8517 = vld [vmem:[%s6121 + $0x140] sm:$0xff]
  %v8518 = vld [vmem:[%s6121 + $0x148] sm:$0xff]
  %v8519 = vld [vmem:[%s6121 + $0x150] sm:$0xff]
  %v8520 = vld [vmem:[%s6121 + $0x158] sm:$0xff]
  %v8521 = vld [vmem:[%s6121 + $0x160] sm:$0xff]
  %v8522 = vld [vmem:[%s6121 + $0x168] sm:$0xff]
  %v8523 = vld [vmem:[%s6121 + $0x170] sm:$0xff]
  %v8524 = vld [vmem:[%s6121 + $0x178] sm:$0xff]
  %v8525 = vld [vmem:[%s6121 + $0x180] sm:$0xff]
  %v8526 = vld [vmem:[%s6121 + $0x188] sm:$0xff]
  %v8527 = vld [vmem:[%s6121 + $0x190] sm:$0xff]
  %v8528 = vld [vmem:[%s6121 + $0x198] sm:$0xff]
  %v8529 = vld [vmem:[%s6121 + $0x1a0] sm:$0xff]
  %v8530 = vld [vmem:[%s6121 + $0x1a8] sm:$0xff]
  %v8531 = vld [vmem:[%s6121 + $0x1b0] sm:$0xff]
  %v8532 = vld [vmem:[%s6121 + $0x1b8] sm:$0xff]
  %v8533 = vld [vmem:[%s6121 + $0x1c0] sm:$0xff]
  %v8534 = vld [vmem:[%s6121 + $0x1c8] sm:$0xff]
  %v8535 = vld [vmem:[%s6121 + $0x1d0] sm:$0xff]
  %v8536 = vld [vmem:[%s6121 + $0x1d8] sm:$0xff]
  %v8537 = vld [vmem:[%s6121 + $0x1e0] sm:$0xff]
  %v8538 = vld [vmem:[%s6121 + $0x1e8] sm:$0xff]
  %v8539 = vld [vmem:[%s6121 + $0x1f0] sm:$0xff]
  %v8540 = vld [vmem:[%s6121 + $0x1f8] sm:$0xff]
  %v8545 = vrot.slane %v8473, 7
  %v8546 = vrot.slane %v8196, 7
  %v8547 = vsel %vm330, %v8545, %v8546
  %v8548 = vrot.slane %v8474, 7
  %v8549 = vrot.slane %v8197, 7
  %v8550 = vsel %vm330, %v8548, %v8549
  %v8551 = vrot.slane %v8198, 7
  %v8552 = vsel %vm330, %v8546, %v8551
  %v8553 = vrot.slane %v8199, 7
  %v8554 = vsel %vm330, %v8549, %v8553
  %v8555 = vrot.slane %v8200, 7
  %v8556 = vsel %vm330, %v8551, %v8555
  %v8557 = vrot.slane %v8201, 7
  %v8558 = vsel %vm330, %v8553, %v8557
  %v8559 = vrot.slane %v8202, 7
  %v8560 = vsel %vm330, %v8555, %v8559
  %v8561 = vrot.slane %v8203, 7
  %v8562 = vsel %vm330, %v8557, %v8561
  %v8563 = vrot.slane %v8204, 7
  %v8564 = vsel %vm330, %v8559, %v8563
  %v8565 = vrot.slane %v8205, 7
  %v8566 = vsel %vm330, %v8561, %v8565
  %v8567 = vrot.slane %v8206, 7
  %v8568 = vsel %vm330, %v8563, %v8567
  %v8569 = vrot.slane %v8207, 7
  %v8570 = vsel %vm330, %v8565, %v8569
  %v8571 = vrot.slane %v8208, 7
  %v8572 = vsel %vm330, %v8567, %v8571
  %v8573 = vrot.slane %v8209, 7
  %v8574 = vsel %vm330, %v8569, %v8573
  %v8575 = vrot.slane %v8475, 7
  %v8576 = vsel %vm330, %v8571, %v8575
  %v8577 = vrot.slane %v8476, 7
  %v8578 = vsel %vm330, %v8573, %v8577
  %8595 = vmatprep.subr.mxu0 %v8508
  %8596 = vmatpush1.msra.mxu0 %v8507
  %8597 = vmatprep.subr.mxu0 %v8506
  %8598 = vmatpush1.msra.mxu0 %v8505
  %8599 = vmatprep.subr.mxu0 %v8504
  %8600 = vmatpush1.msra.mxu0 %v8503
  %8601 = vmatprep.subr.mxu0 %v8502
  %8602 = vmatpush1.msra.mxu0 %v8501
  %8603 = vmatprep.subr.mxu0 %v8500
  %8604 = vmatpush1.msra.mxu0 %v8499
  %8605 = vmatprep.subr.mxu0 %v8498
  %8606 = vmatpush1.msra.mxu0 %v8497
  %8607 = vmatprep.subr.mxu0 %v8496
  %8608 = vmatpush1.msra.mxu0 %v8495
  %8609 = vmatprep.subr.mxu0 %v8494
  %8610 = vmatpush1.msra.mxu0 %v8493
  %8611 = vmatprep.subr.mxu0 %v8492
  %8612 = vmatpush1.msra.mxu0 %v8491
  %8613 = vmatprep.subr.mxu0 %v8490
  %8614 = vmatpush1.msra.mxu0 %v8489
  %8615 = vmatprep.subr.mxu0 %v8488
  %8616 = vmatpush1.msra.mxu0 %v8487
  %8617 = vmatprep.subr.mxu0 %v8486
  %8618 = vmatpush1.msra.mxu0 %v8485
  %8619 = vmatprep.subr.mxu0 %v8484
  %8620 = vmatpush1.msra.mxu0 %v8483
  %8621 = vmatprep.subr.mxu0 %v8482
  %8622 = vmatpush1.msra.mxu0 %v8481
  %8623 = vmatprep.subr.mxu0 %v8480
  %8624 = vmatpush1.msra.mxu0 %v8479
  %8625 = vmatprep.subr.mxu0 %v8478
  %8626 = vmatpush1.msra.mxu0 %v8477
  %8627 = vmatprep.subr.mxu0 %v8540
  %8628 = vmatpush2.msra.mxu0 %v8539
  %8629 = vmatprep.subr.mxu0 %v8538
  %8630 = vmatpush2.msra.mxu0 %v8537
  %8631 = vmatprep.subr.mxu0 %v8536
  %8632 = vmatpush2.msra.mxu0 %v8535
  %8633 = vmatprep.subr.mxu0 %v8534
  %8634 = vmatpush2.msra.mxu0 %v8533
  %8635 = vmatprep.subr.mxu0 %v8532
  %8636 = vmatpush2.msra.mxu0 %v8531
  %8637 = vmatprep.subr.mxu0 %v8530
  %8638 = vmatpush2.msra.mxu0 %v8529
  %8639 = vmatprep.subr.mxu0 %v8528
  %8640 = vmatpush2.msra.mxu0 %v8527
  %8641 = vmatprep.subr.mxu0 %v8526
  %8642 = vmatpush2.msra.mxu0 %v8525
  %8643 = vmatprep.subr.mxu0 %v8524
  %8644 = vmatpush2.msra.mxu0 %v8523
  %8645 = vmatprep.subr.mxu0 %v8522
  %8646 = vmatpush2.msra.mxu0 %v8521
  %8647 = vmatprep.subr.mxu0 %v8520
  %8648 = vmatpush2.msra.mxu0 %v8519
  %8649 = vmatprep.subr.mxu0 %v8518
  %8650 = vmatpush2.msra.mxu0 %v8517
  %8651 = vmatprep.subr.mxu0 %v8516
  %8652 = vmatpush2.msra.mxu0 %v8515
  %8653 = vmatprep.subr.mxu0 %v8514
  %8654 = vmatpush2.msra.mxu0 %v8513
  %8655 = vmatprep.subr.mxu0 %v8512
  %8656 = vmatpush2.msra.mxu0 %v8511
  %8657 = vmatprep.subr.mxu0 %v8510
  %8658 = vmatpush2.msra.mxu0 %v8509
  %8659 = vmatprep.mubr.f32.mxu0 %v8550
  %8660 = vmatmul.mubr.f32.gmra.mxu0 %v8547
  %v8661 = vpop.f32.mrf.mxu0
  %v8662 = vadd.f32 0.0, %v8661
  %v8663 = vpop.f32.mrf.mxu0
  %v8664 = vadd.f32 0.0, %v8663
  %8665 = vmatprep.mubr.f32.mxu0 %v8554
  %8666 = vmatmul.mubr.f32.gmra.mxu0 %v8552
  %v8667 = vpop.f32.mrf.mxu0
  %v8668 = vadd.f32 0.0, %v8667
  %v8669 = vpop.f32.mrf.mxu0
  %v8670 = vadd.f32 0.0, %v8669
  %8671 = vmatprep.mubr.f32.mxu0 %v8558
  %8672 = vmatmul.mubr.f32.gmra.mxu0 %v8556
  %v8673 = vpop.f32.mrf.mxu0
  %v8674 = vadd.f32 0.0, %v8673
  %v8675 = vpop.f32.mrf.mxu0
  %v8676 = vadd.f32 0.0, %v8675
  %8677 = vmatprep.mubr.f32.mxu0 %v8562
  %8678 = vmatmul.mubr.f32.gmra.mxu0 %v8560
  %v8679 = vpop.f32.mrf.mxu0
  %v8680 = vadd.f32 0.0, %v8679
  %v8681 = vpop.f32.mrf.mxu0
  %v8682 = vadd.f32 0.0, %v8681
  %8683 = vmatprep.mubr.f32.mxu0 %v8566
  %8684 = vmatmul.mubr.f32.gmra.mxu0 %v8564
  %v8685 = vpop.f32.mrf.mxu0
  %v8686 = vadd.f32 0.0, %v8685
  %v8687 = vpop.f32.mrf.mxu0
  %v8688 = vadd.f32 0.0, %v8687
  %8689 = vmatprep.mubr.f32.mxu0 %v8570
  %8690 = vmatmul.mubr.f32.gmra.mxu0 %v8568
  %v8691 = vpop.f32.mrf.mxu0
  %v8692 = vadd.f32 0.0, %v8691
  %v8693 = vpop.f32.mrf.mxu0
  %v8694 = vadd.f32 0.0, %v8693
  %8695 = vmatprep.mubr.f32.mxu0 %v8574
  %8696 = vmatmul.mubr.f32.gmra.mxu0 %v8572
  %v8697 = vpop.f32.mrf.mxu0
  %v8698 = vadd.f32 0.0, %v8697
  %v8699 = vpop.f32.mrf.mxu0
  %v8700 = vadd.f32 0.0, %v8699
  %8701 = vmatprep.mubr.f32.mxu0 %v8578
  %8702 = vmatmul.mubr.f32.gmra.mxu0 %v8576
  %v8703 = vpop.f32.mrf.mxu0
  %v8704 = vadd.f32 0.0, %v8703
  %v8705 = vpop.f32.mrf.mxu0
  %v8706 = vadd.f32 0.0, %v8705
  %8707 = vdwg.mxu0
  %v8708 = vadd.f32 %v8457, %v8662
  %v8709 = vadd.f32 %v8458, %v8664
  %v8710 = vadd.f32 %v8459, %v8668
  %v8711 = vadd.f32 %v8460, %v8670
  %v8712 = vadd.f32 %v8461, %v8674
  %v8713 = vadd.f32 %v8462, %v8676
  %v8714 = vadd.f32 %v8463, %v8680
  %v8715 = vadd.f32 %v8464, %v8682
  %v8716 = vadd.f32 %v8465, %v8686
  %v8717 = vadd.f32 %v8466, %v8688
  %v8718 = vadd.f32 %v8467, %v8692
  %v8719 = vadd.f32 %v8468, %v8694
  %v8720 = vadd.f32 %v8469, %v8698
  %v8721 = vadd.f32 %v8470, %v8700
  %v8722 = vadd.f32 %v8471, %v8704
  %v8723 = vadd.f32 %v8472, %v8706
  %v8724 = vld [vmem:[#allocation2 + $0x110] sm:$0xff]
  %v8725 = vld [vmem:[#allocation2 + $0x118] sm:$0xff]
  %v8726 = vld [vmem:[%s6371] sm:$0xff]
  %v8727 = vld [vmem:[%s6371 + $0x8] sm:$0xff]
  %v8728 = vld [vmem:[%s6371 + $0x10] sm:$0xff]
  %v8729 = vld [vmem:[%s6371 + $0x18] sm:$0xff]
  %v8730 = vld [vmem:[%s6371 + $0x20] sm:$0xff]
  %v8731 = vld [vmem:[%s6371 + $0x28] sm:$0xff]
  %v8732 = vld [vmem:[%s6371 + $0x30] sm:$0xff]
  %v8733 = vld [vmem:[%s6371 + $0x38] sm:$0xff]
  %v8734 = vld [vmem:[%s6371 + $0x40] sm:$0xff]
  %v8735 = vld [vmem:[%s6371 + $0x48] sm:$0xff]
  %v8736 = vld [vmem:[%s6371 + $0x50] sm:$0xff]
  %v8737 = vld [vmem:[%s6371 + $0x58] sm:$0xff]
  %v8738 = vld [vmem:[%s6371 + $0x60] sm:$0xff]
  %v8739 = vld [vmem:[%s6371 + $0x68] sm:$0xff]
  %v8740 = vld [vmem:[%s6371 + $0x70] sm:$0xff]
  %v8741 = vld [vmem:[%s6371 + $0x78] sm:$0xff]
  %v8742 = vld [vmem:[%s6371 + $0x80] sm:$0xff]
  %v8743 = vld [vmem:[%s6371 + $0x88] sm:$0xff]
  %v8744 = vld [vmem:[%s6371 + $0x90] sm:$0xff]
  %v8745 = vld [vmem:[%s6371 + $0x98] sm:$0xff]
  %v8746 = vld [vmem:[%s6371 + $0xa0] sm:$0xff]
  %v8747 = vld [vmem:[%s6371 + $0xa8] sm:$0xff]
  %v8748 = vld [vmem:[%s6371 + $0xb0] sm:$0xff]
  %v8749 = vld [vmem:[%s6371 + $0xb8] sm:$0xff]
  %v8750 = vld [vmem:[%s6371 + $0xc0] sm:$0xff]
  %v8751 = vld [vmem:[%s6371 + $0xc8] sm:$0xff]
  %v8752 = vld [vmem:[%s6371 + $0xd0] sm:$0xff]
  %v8753 = vld [vmem:[%s6371 + $0xd8] sm:$0xff]
  %v8754 = vld [vmem:[%s6371 + $0xe0] sm:$0xff]
  %v8755 = vld [vmem:[%s6371 + $0xe8] sm:$0xff]
  %v8756 = vld [vmem:[%s6371 + $0xf0] sm:$0xff]
  %v8757 = vld [vmem:[%s6371 + $0xf8] sm:$0xff]
  %v8758 = vld [vmem:[%s6371 + $0x100] sm:$0xff]
  %v8759 = vld [vmem:[%s6371 + $0x108] sm:$0xff]
  %v8760 = vld [vmem:[%s6371 + $0x110] sm:$0xff]
  %v8761 = vld [vmem:[%s6371 + $0x118] sm:$0xff]
  %v8762 = vld [vmem:[%s6371 + $0x120] sm:$0xff]
  %v8763 = vld [vmem:[%s6371 + $0x128] sm:$0xff]
  %v8764 = vld [vmem:[%s6371 + $0x130] sm:$0xff]
  %v8765 = vld [vmem:[%s6371 + $0x138] sm:$0xff]
  %v8766 = vld [vmem:[%s6371 + $0x140] sm:$0xff]
  %v8767 = vld [vmem:[%s6371 + $0x148] sm:$0xff]
  %v8768 = vld [vmem:[%s6371 + $0x150] sm:$0xff]
  %v8769 = vld [vmem:[%s6371 + $0x158] sm:$0xff]
  %v8770 = vld [vmem:[%s6371 + $0x160] sm:$0xff]
  %v8771 = vld [vmem:[%s6371 + $0x168] sm:$0xff]
  %v8772 = vld [vmem:[%s6371 + $0x170] sm:$0xff]
  %v8773 = vld [vmem:[%s6371 + $0x178] sm:$0xff]
  %v8774 = vld [vmem:[%s6371 + $0x180] sm:$0xff]
  %v8775 = vld [vmem:[%s6371 + $0x188] sm:$0xff]
  %v8776 = vld [vmem:[%s6371 + $0x190] sm:$0xff]
  %v8777 = vld [vmem:[%s6371 + $0x198] sm:$0xff]
  %v8778 = vld [vmem:[%s6371 + $0x1a0] sm:$0xff]
  %v8779 = vld [vmem:[%s6371 + $0x1a8] sm:$0xff]
  %v8780 = vld [vmem:[%s6371 + $0x1b0] sm:$0xff]
  %v8781 = vld [vmem:[%s6371 + $0x1b8] sm:$0xff]
  %v8782 = vld [vmem:[%s6371 + $0x1c0] sm:$0xff]
  %v8783 = vld [vmem:[%s6371 + $0x1c8] sm:$0xff]
  %v8784 = vld [vmem:[%s6371 + $0x1d0] sm:$0xff]
  %v8785 = vld [vmem:[%s6371 + $0x1d8] sm:$0xff]
  %v8786 = vld [vmem:[%s6371 + $0x1e0] sm:$0xff]
  %v8787 = vld [vmem:[%s6371 + $0x1e8] sm:$0xff]
  %v8788 = vld [vmem:[%s6371 + $0x1f0] sm:$0xff]
  %v8789 = vld [vmem:[%s6371 + $0x1f8] sm:$0xff]
  %8790 = vmatprep.subr.mxu0 %v8757
  %8791 = vmatpush1.msra.mxu0 %v8756
  %8792 = vmatprep.subr.mxu0 %v8755
  %8793 = vmatpush1.msra.mxu0 %v8754
  %8794 = vmatprep.subr.mxu0 %v8753
  %8795 = vmatpush1.msra.mxu0 %v8752
  %8796 = vmatprep.subr.mxu0 %v8751
  %8797 = vmatpush1.msra.mxu0 %v8750
  %8798 = vmatprep.subr.mxu0 %v8749
  %8799 = vmatpush1.msra.mxu0 %v8748
  %8800 = vmatprep.subr.mxu0 %v8747
  %8801 = vmatpush1.msra.mxu0 %v8746
  %8802 = vmatprep.subr.mxu0 %v8745
  %8803 = vmatpush1.msra.mxu0 %v8744
  %8804 = vmatprep.subr.mxu0 %v8743
  %8805 = vmatpush1.msra.mxu0 %v8742
  %8806 = vmatprep.subr.mxu0 %v8741
  %8807 = vmatpush1.msra.mxu0 %v8740
  %8808 = vmatprep.subr.mxu0 %v8739
  %8809 = vmatpush1.msra.mxu0 %v8738
  %8810 = vmatprep.subr.mxu0 %v8737
  %8811 = vmatpush1.msra.mxu0 %v8736
  %8812 = vmatprep.subr.mxu0 %v8735
  %8813 = vmatpush1.msra.mxu0 %v8734
  %8814 = vmatprep.subr.mxu0 %v8733
  %8815 = vmatpush1.msra.mxu0 %v8732
  %8816 = vmatprep.subr.mxu0 %v8731
  %8817 = vmatpush1.msra.mxu0 %v8730
  %8818 = vmatprep.subr.mxu0 %v8729
  %8819 = vmatpush1.msra.mxu0 %v8728
  %8820 = vmatprep.subr.mxu0 %v8727
  %8821 = vmatpush1.msra.mxu0 %v8726
  %8822 = vmatprep.subr.mxu0 %v8789
  %8823 = vmatpush2.msra.mxu0 %v8788
  %8824 = vmatprep.subr.mxu0 %v8787
  %8825 = vmatpush2.msra.mxu0 %v8786
  %8826 = vmatprep.subr.mxu0 %v8785
  %8827 = vmatpush2.msra.mxu0 %v8784
  %8828 = vmatprep.subr.mxu0 %v8783
  %8829 = vmatpush2.msra.mxu0 %v8782
  %8830 = vmatprep.subr.mxu0 %v8781
  %8831 = vmatpush2.msra.mxu0 %v8780
  %8832 = vmatprep.subr.mxu0 %v8779
  %8833 = vmatpush2.msra.mxu0 %v8778
  %8834 = vmatprep.subr.mxu0 %v8777
  %8835 = vmatpush2.msra.mxu0 %v8776
  %8836 = vmatprep.subr.mxu0 %v8775
  %8837 = vmatpush2.msra.mxu0 %v8774
  %8838 = vmatprep.subr.mxu0 %v8773
  %8839 = vmatpush2.msra.mxu0 %v8772
  %8840 = vmatprep.subr.mxu0 %v8771
  %8841 = vmatpush2.msra.mxu0 %v8770
  %8842 = vmatprep.subr.mxu0 %v8769
  %8843 = vmatpush2.msra.mxu0 %v8768
  %8844 = vmatprep.subr.mxu0 %v8767
  %8845 = vmatpush2.msra.mxu0 %v8766
  %8846 = vmatprep.subr.mxu0 %v8765
  %8847 = vmatpush2.msra.mxu0 %v8764
  %8848 = vmatprep.subr.mxu0 %v8763
  %8849 = vmatpush2.msra.mxu0 %v8762
  %8850 = vmatprep.subr.mxu0 %v8761
  %8851 = vmatpush2.msra.mxu0 %v8760
  %8852 = vmatprep.subr.mxu0 %v8759
  %8853 = vmatpush2.msra.mxu0 %v8758
  %8854 = vmatprep.mubr.f32.mxu0 %v8197
  %8855 = vmatmul.mubr.f32.gmra.mxu0 %v8196
  %v8856 = vpop.f32.mrf.mxu0
  %v8857 = vadd.f32 0.0, %v8856
  %v8858 = vpop.f32.mrf.mxu0
  %v8859 = vadd.f32 0.0, %v8858
  %8860 = vmatprep.mubr.f32.mxu0 %v8199
  %8861 = vmatmul.mubr.f32.gmra.mxu0 %v8198
  %v8862 = vpop.f32.mrf.mxu0
  %v8863 = vadd.f32 0.0, %v8862
  %v8864 = vpop.f32.mrf.mxu0
  %v8865 = vadd.f32 0.0, %v8864
  %8866 = vmatprep.mubr.f32.mxu0 %v8201
  %8867 = vmatmul.mubr.f32.gmra.mxu0 %v8200
  %v8868 = vpop.f32.mrf.mxu0
  %v8869 = vadd.f32 0.0, %v8868
  %v8870 = vpop.f32.mrf.mxu0
  %v8871 = vadd.f32 0.0, %v8870
  %8872 = vmatprep.mubr.f32.mxu0 %v8203
  %8873 = vmatmul.mubr.f32.gmra.mxu0 %v8202
  %v8874 = vpop.f32.mrf.mxu0
  %v8875 = vadd.f32 0.0, %v8874
  %v8876 = vpop.f32.mrf.mxu0
  %v8877 = vadd.f32 0.0, %v8876
  %8878 = vmatprep.mubr.f32.mxu0 %v8205
  %8879 = vmatmul.mubr.f32.gmra.mxu0 %v8204
  %v8880 = vpop.f32.mrf.mxu0
  %v8881 = vadd.f32 0.0, %v8880
  %v8882 = vpop.f32.mrf.mxu0
  %v8883 = vadd.f32 0.0, %v8882
  %8884 = vmatprep.mubr.f32.mxu0 %v8207
  %8885 = vmatmul.mubr.f32.gmra.mxu0 %v8206
  %v8886 = vpop.f32.mrf.mxu0
  %v8887 = vadd.f32 0.0, %v8886
  %v8888 = vpop.f32.mrf.mxu0
  %v8889 = vadd.f32 0.0, %v8888
  %8890 = vmatprep.mubr.f32.mxu0 %v8209
  %8891 = vmatmul.mubr.f32.gmra.mxu0 %v8208
  %v8892 = vpop.f32.mrf.mxu0
  %v8893 = vadd.f32 0.0, %v8892
  %v8894 = vpop.f32.mrf.mxu0
  %v8895 = vadd.f32 0.0, %v8894
  %8896 = vmatprep.mubr.f32.mxu0 %v8725
  %8897 = vmatmul.mubr.f32.gmra.mxu0 %v8724
  %v8898 = vpop.f32.mrf.mxu0
  %v8899 = vadd.f32 0.0, %v8898
  %v8900 = vpop.f32.mrf.mxu0
  %v8901 = vadd.f32 0.0, %v8900
  %8902 = vdwg.mxu0
  %v8903 = vadd.f32 %v8708, %v8857
  %v8904 = vadd.f32 %v8709, %v8859
  %v8905 = vadd.f32 %v8710, %v8863
  %v8906 = vadd.f32 %v8711, %v8865
  %v8907 = vadd.f32 %v8712, %v8869
  %v8908 = vadd.f32 %v8713, %v8871
  %v8909 = vadd.f32 %v8714, %v8875
  %v8910 = vadd.f32 %v8715, %v8877
  %v8911 = vadd.f32 %v8716, %v8881
  %v8912 = vadd.f32 %v8717, %v8883
  %v8913 = vadd.f32 %v8718, %v8887
  %v8914 = vadd.f32 %v8719, %v8889
  %v8915 = vadd.f32 %v8720, %v8893
  %v8916 = vadd.f32 %v8721, %v8895
  %v8917 = vadd.f32 %v8722, %v8899
  %v8918 = vadd.f32 %v8723, %v8901
  %v8919 = vld [vmem:[#allocation2 + $0xa0] sm:$0xfe]
  %v8920 = vld [vmem:[#allocation2 + $0xa8] sm:$0xfe]
  %v8921 = vld [vmem:[#allocation2 + $0xb0] sm:$0xff]
  %v8922 = vld [vmem:[#allocation2 + $0xb8] sm:$0xff]
  %v8923 = vld [vmem:[#allocation2 + $0xc0] sm:$0xff]
  %v8924 = vld [vmem:[#allocation2 + $0xc8] sm:$0xff]
  %v8925 = vld [vmem:[#allocation2 + $0xd0] sm:$0xff]
  %v8926 = vld [vmem:[#allocation2 + $0xd8] sm:$0xff]
  %v8927 = vld [vmem:[#allocation2 + $0xe0] sm:$0xff]
  %v8928 = vld [vmem:[#allocation2 + $0xe8] sm:$0xff]
  %v8929 = vld [vmem:[#allocation2 + $0xf0] sm:$0xff]
  %v8930 = vld [vmem:[#allocation2 + $0xf8] sm:$0xff]
  %v8931 = vld [vmem:[#allocation2 + $0x100] sm:$0xff]
  %v8932 = vld [vmem:[#allocation2 + $0x108] sm:$0xff]
  %v8933 = vld [vmem:[#allocation2 + $0x110] sm:$0xff]
  %v8934 = vld [vmem:[#allocation2 + $0x118] sm:$0xff]
  %v8935 = vld [vmem:[#allocation2 + $0x120] sm:$0x1]
  %v8936 = vld [vmem:[#allocation2 + $0x128] sm:$0x1]
  %v8937 = vld [vmem:[%s6583] sm:$0xff]
  %v8938 = vld [vmem:[%s6583 + $0x8] sm:$0xff]
  %v8939 = vld [vmem:[%s6583 + $0x10] sm:$0xff]
  %v8940 = vld [vmem:[%s6583 + $0x18] sm:$0xff]
  %v8941 = vld [vmem:[%s6583 + $0x20] sm:$0xff]
  %v8942 = vld [vmem:[%s6583 + $0x28] sm:$0xff]
  %v8943 = vld [vmem:[%s6583 + $0x30] sm:$0xff]
  %v8944 = vld [vmem:[%s6583 + $0x38] sm:$0xff]
  %v8945 = vld [vmem:[%s6583 + $0x40] sm:$0xff]
  %v8946 = vld [vmem:[%s6583 + $0x48] sm:$0xff]
  %v8947 = vld [vmem:[%s6583 + $0x50] sm:$0xff]
  %v8948 = vld [vmem:[%s6583 + $0x58] sm:$0xff]
  %v8949 = vld [vmem:[%s6583 + $0x60] sm:$0xff]
  %v8950 = vld [vmem:[%s6583 + $0x68] sm:$0xff]
  %v8951 = vld [vmem:[%s6583 + $0x70] sm:$0xff]
  %v8952 = vld [vmem:[%s6583 + $0x78] sm:$0xff]
  %v8953 = vld [vmem:[%s6583 + $0x80] sm:$0xff]
  %v8954 = vld [vmem:[%s6583 + $0x88] sm:$0xff]
  %v8955 = vld [vmem:[%s6583 + $0x90] sm:$0xff]
  %v8956 = vld [vmem:[%s6583 + $0x98] sm:$0xff]
  %v8957 = vld [vmem:[%s6583 + $0xa0] sm:$0xff]
  %v8958 = vld [vmem:[%s6583 + $0xa8] sm:$0xff]
  %v8959 = vld [vmem:[%s6583 + $0xb0] sm:$0xff]
  %v8960 = vld [vmem:[%s6583 + $0xb8] sm:$0xff]
  %v8961 = vld [vmem:[%s6583 + $0xc0] sm:$0xff]
  %v8962 = vld [vmem:[%s6583 + $0xc8] sm:$0xff]
  %v8963 = vld [vmem:[%s6583 + $0xd0] sm:$0xff]
  %v8964 = vld [vmem:[%s6583 + $0xd8] sm:$0xff]
  %v8965 = vld [vmem:[%s6583 + $0xe0] sm:$0xff]
  %v8966 = vld [vmem:[%s6583 + $0xe8] sm:$0xff]
  %v8967 = vld [vmem:[%s6583 + $0xf0] sm:$0xff]
  %v8968 = vld [vmem:[%s6583 + $0xf8] sm:$0xff]
  %v8969 = vld [vmem:[%s6583 + $0x100] sm:$0xff]
  %v8970 = vld [vmem:[%s6583 + $0x108] sm:$0xff]
  %v8971 = vld [vmem:[%s6583 + $0x110] sm:$0xff]
  %v8972 = vld [vmem:[%s6583 + $0x118] sm:$0xff]
  %v8973 = vld [vmem:[%s6583 + $0x120] sm:$0xff]
  %v8974 = vld [vmem:[%s6583 + $0x128] sm:$0xff]
  %v8975 = vld [vmem:[%s6583 + $0x130] sm:$0xff]
  %v8976 = vld [vmem:[%s6583 + $0x138] sm:$0xff]
  %v8977 = vld [vmem:[%s6583 + $0x140] sm:$0xff]
  %v8978 = vld [vmem:[%s6583 + $0x148] sm:$0xff]
  %v8979 = vld [vmem:[%s6583 + $0x150] sm:$0xff]
  %v8980 = vld [vmem:[%s6583 + $0x158] sm:$0xff]
  %v8981 = vld [vmem:[%s6583 + $0x160] sm:$0xff]
  %v8982 = vld [vmem:[%s6583 + $0x168] sm:$0xff]
  %v8983 = vld [vmem:[%s6583 + $0x170] sm:$0xff]
  %v8984 = vld [vmem:[%s6583 + $0x178] sm:$0xff]
  %v8985 = vld [vmem:[%s6583 + $0x180] sm:$0xff]
  %v8986 = vld [vmem:[%s6583 + $0x188] sm:$0xff]
  %v8987 = vld [vmem:[%s6583 + $0x190] sm:$0xff]
  %v8988 = vld [vmem:[%s6583 + $0x198] sm:$0xff]
  %v8989 = vld [vmem:[%s6583 + $0x1a0] sm:$0xff]
  %v8990 = vld [vmem:[%s6583 + $0x1a8] sm:$0xff]
  %v8991 = vld [vmem:[%s6583 + $0x1b0] sm:$0xff]
  %v8992 = vld [vmem:[%s6583 + $0x1b8] sm:$0xff]
  %v8993 = vld [vmem:[%s6583 + $0x1c0] sm:$0xff]
  %v8994 = vld [vmem:[%s6583 + $0x1c8] sm:$0xff]
  %v8995 = vld [vmem:[%s6583 + $0x1d0] sm:$0xff]
  %v8996 = vld [vmem:[%s6583 + $0x1d8] sm:$0xff]
  %v8997 = vld [vmem:[%s6583 + $0x1e0] sm:$0xff]
  %v8998 = vld [vmem:[%s6583 + $0x1e8] sm:$0xff]
  %v8999 = vld [vmem:[%s6583 + $0x1f0] sm:$0xff]
  %v9000 = vld [vmem:[%s6583 + $0x1f8] sm:$0xff]
  %v9019 = vrot.slane %v8919, 1
  %v9020 = vrot.slane %v8921, 1
  %v9021 = vsel %vm595, %v9019, %v9020
  %v9022 = vrot.slane %v8920, 1
  %v9023 = vrot.slane %v8922, 1
  %v9024 = vsel %vm595, %v9022, %v9023
  %v9025 = vrot.slane %v8923, 1
  %v9026 = vsel %vm595, %v9020, %v9025
  %v9027 = vrot.slane %v8924, 1
  %v9028 = vsel %vm595, %v9023, %v9027
  %v9029 = vrot.slane %v8925, 1
  %v9030 = vsel %vm595, %v9025, %v9029
  %v9031 = vrot.slane %v8926, 1
  %v9032 = vsel %vm595, %v9027, %v9031
  %v9033 = vrot.slane %v8927, 1
  %v9034 = vsel %vm595, %v9029, %v9033
  %v9035 = vrot.slane %v8928, 1
  %v9036 = vsel %vm595, %v9031, %v9035
  %v9037 = vrot.slane %v8929, 1
  %v9038 = vsel %vm595, %v9033, %v9037
  %v9039 = vrot.slane %v8930, 1
  %v9040 = vsel %vm595, %v9035, %v9039
  %v9041 = vrot.slane %v8931, 1
  %v9042 = vsel %vm595, %v9037, %v9041
  %v9043 = vrot.slane %v8932, 1
  %v9044 = vsel %vm595, %v9039, %v9043
  %v9045 = vrot.slane %v8933, 1
  %v9046 = vsel %vm595, %v9041, %v9045
  %v9047 = vrot.slane %v8934, 1
  %v9048 = vsel %vm595, %v9043, %v9047
  %v9049 = vrot.slane %v8935, 1
  %v9050 = vsel %vm595, %v9045, %v9049
  %v9051 = vrot.slane %v8936, 1
  %v9052 = vsel %vm595, %v9047, %v9051
  %9069 = vmatprep.subr.mxu0 %v8968
  %9070 = vmatpush1.msra.mxu0 %v8967
  %9071 = vmatprep.subr.mxu0 %v8966
  %9072 = vmatpush1.msra.mxu0 %v8965
  %9073 = vmatprep.subr.mxu0 %v8964
  %9074 = vmatpush1.msra.mxu0 %v8963
  %9075 = vmatprep.subr.mxu0 %v8962
  %9076 = vmatpush1.msra.mxu0 %v8961
  %9077 = vmatprep.subr.mxu0 %v8960
  %9078 = vmatpush1.msra.mxu0 %v8959
  %9079 = vmatprep.subr.mxu0 %v8958
  %9080 = vmatpush1.msra.mxu0 %v8957
  %9081 = vmatprep.subr.mxu0 %v8956
  %9082 = vmatpush1.msra.mxu0 %v8955
  %9083 = vmatprep.subr.mxu0 %v8954
  %9084 = vmatpush1.msra.mxu0 %v8953
  %9085 = vmatprep.subr.mxu0 %v8952
  %9086 = vmatpush1.msra.mxu0 %v8951
  %9087 = vmatprep.subr.mxu0 %v8950
  %9088 = vmatpush1.msra.mxu0 %v8949
  %9089 = vmatprep.subr.mxu0 %v8948
  %9090 = vmatpush1.msra.mxu0 %v8947
  %9091 = vmatprep.subr.mxu0 %v8946
  %9092 = vmatpush1.msra.mxu0 %v8945
  %9093 = vmatprep.subr.mxu0 %v8944
  %9094 = vmatpush1.msra.mxu0 %v8943
  %9095 = vmatprep.subr.mxu0 %v8942
  %9096 = vmatpush1.msra.mxu0 %v8941
  %9097 = vmatprep.subr.mxu0 %v8940
  %9098 = vmatpush1.msra.mxu0 %v8939
  %9099 = vmatprep.subr.mxu0 %v8938
  %9100 = vmatpush1.msra.mxu0 %v8937
  %9101 = vmatprep.subr.mxu0 %v9000
  %9102 = vmatpush2.msra.mxu0 %v8999
  %9103 = vmatprep.subr.mxu0 %v8998
  %9104 = vmatpush2.msra.mxu0 %v8997
  %9105 = vmatprep.subr.mxu0 %v8996
  %9106 = vmatpush2.msra.mxu0 %v8995
  %9107 = vmatprep.subr.mxu0 %v8994
  %9108 = vmatpush2.msra.mxu0 %v8993
  %9109 = vmatprep.subr.mxu0 %v8992
  %9110 = vmatpush2.msra.mxu0 %v8991
  %9111 = vmatprep.subr.mxu0 %v8990
  %9112 = vmatpush2.msra.mxu0 %v8989
  %9113 = vmatprep.subr.mxu0 %v8988
  %9114 = vmatpush2.msra.mxu0 %v8987
  %9115 = vmatprep.subr.mxu0 %v8986
  %9116 = vmatpush2.msra.mxu0 %v8985
  %9117 = vmatprep.subr.mxu0 %v8984
  %9118 = vmatpush2.msra.mxu0 %v8983
  %9119 = vmatprep.subr.mxu0 %v8982
  %9120 = vmatpush2.msra.mxu0 %v8981
  %9121 = vmatprep.subr.mxu0 %v8980
  %9122 = vmatpush2.msra.mxu0 %v8979
  %9123 = vmatprep.subr.mxu0 %v8978
  %9124 = vmatpush2.msra.mxu0 %v8977
  %9125 = vmatprep.subr.mxu0 %v8976
  %9126 = vmatpush2.msra.mxu0 %v8975
  %9127 = vmatprep.subr.mxu0 %v8974
  %9128 = vmatpush2.msra.mxu0 %v8973
  %9129 = vmatprep.subr.mxu0 %v8972
  %9130 = vmatpush2.msra.mxu0 %v8971
  %9131 = vmatprep.subr.mxu0 %v8970
  %9132 = vmatpush2.msra.mxu0 %v8969
  %9133 = vmatprep.mubr.f32.mxu0 %v9024
  %9134 = vmatmul.mubr.f32.gmra.mxu0 %v9021
  %v9135 = vpop.f32.mrf.mxu0
  %v9136 = vadd.f32 0.0, %v9135
  %v9137 = vpop.f32.mrf.mxu0
  %v9138 = vadd.f32 0.0, %v9137
  %9139 = vmatprep.mubr.f32.mxu0 %v9028
  %9140 = vmatmul.mubr.f32.gmra.mxu0 %v9026
  %v9141 = vpop.f32.mrf.mxu0
  %v9142 = vadd.f32 0.0, %v9141
  %v9143 = vpop.f32.mrf.mxu0
  %v9144 = vadd.f32 0.0, %v9143
  %9145 = vmatprep.mubr.f32.mxu0 %v9032
  %9146 = vmatmul.mubr.f32.gmra.mxu0 %v9030
  %v9147 = vpop.f32.mrf.mxu0
  %v9148 = vadd.f32 0.0, %v9147
  %v9149 = vpop.f32.mrf.mxu0
  %v9150 = vadd.f32 0.0, %v9149
  %9151 = vmatprep.mubr.f32.mxu0 %v9036
  %9152 = vmatmul.mubr.f32.gmra.mxu0 %v9034
  %v9153 = vpop.f32.mrf.mxu0
  %v9154 = vadd.f32 0.0, %v9153
  %v9155 = vpop.f32.mrf.mxu0
  %v9156 = vadd.f32 0.0, %v9155
  %9157 = vmatprep.mubr.f32.mxu0 %v9040
  %9158 = vmatmul.mubr.f32.gmra.mxu0 %v9038
  %v9159 = vpop.f32.mrf.mxu0
  %v9160 = vadd.f32 0.0, %v9159
  %v9161 = vpop.f32.mrf.mxu0
  %v9162 = vadd.f32 0.0, %v9161
  %9163 = vmatprep.mubr.f32.mxu0 %v9044
  %9164 = vmatmul.mubr.f32.gmra.mxu0 %v9042
  %v9165 = vpop.f32.mrf.mxu0
  %v9166 = vadd.f32 0.0, %v9165
  %v9167 = vpop.f32.mrf.mxu0
  %v9168 = vadd.f32 0.0, %v9167
  %9169 = vmatprep.mubr.f32.mxu0 %v9048
  %9170 = vmatmul.mubr.f32.gmra.mxu0 %v9046
  %v9171 = vpop.f32.mrf.mxu0
  %v9172 = vadd.f32 0.0, %v9171
  %v9173 = vpop.f32.mrf.mxu0
  %v9174 = vadd.f32 0.0, %v9173
  %9175 = vmatprep.mubr.f32.mxu0 %v9052
  %9176 = vmatmul.mubr.f32.gmra.mxu0 %v9050
  %v9177 = vpop.f32.mrf.mxu0
  %v9178 = vadd.f32 0.0, %v9177
  %v9179 = vpop.f32.mrf.mxu0
  %v9180 = vadd.f32 0.0, %v9179
  %9181 = vdwg.mxu0
  %v9182 = vadd.f32 %v8903, %v9136
  %v9183 = vadd.f32 %v8904, %v9138
  %v9184 = vadd.f32 %v8905, %v9142
  %v9185 = vadd.f32 %v8906, %v9144
  %v9186 = vadd.f32 %v8907, %v9148
  %v9187 = vadd.f32 %v8908, %v9150
  %v9188 = vadd.f32 %v8909, %v9154
  %v9189 = vadd.f32 %v8910, %v9156
  %v9190 = vadd.f32 %v8911, %v9160
  %v9191 = vadd.f32 %v8912, %v9162
  %v9192 = vadd.f32 %v8913, %v9166
  %v9193 = vadd.f32 %v8914, %v9168
  %v9194 = vadd.f32 %v8915, %v9172
  %v9195 = vadd.f32 %v8916, %v9174
  %v9196 = vadd.f32 %v8917, %v9178
  %v9197 = vadd.f32 %v8918, %v9180
  %v9198 = vld [vmem:[#allocation2 + $0xa0] sm:$0x80]
  %v9199 = vld [vmem:[#allocation2 + $0xa8] sm:$0x80]
  %v9200 = vld [vmem:[#allocation2 + $0x120] sm:$0x7f]
  %v9201 = vld [vmem:[#allocation2 + $0x128] sm:$0x7f]
  %v9202 = vld [vmem:[%s6849] sm:$0xff]
  %v9203 = vld [vmem:[%s6849 + $0x8] sm:$0xff]
  %v9204 = vld [vmem:[%s6849 + $0x10] sm:$0xff]
  %v9205 = vld [vmem:[%s6849 + $0x18] sm:$0xff]
  %v9206 = vld [vmem:[%s6849 + $0x20] sm:$0xff]
  %v9207 = vld [vmem:[%s6849 + $0x28] sm:$0xff]
  %v9208 = vld [vmem:[%s6849 + $0x30] sm:$0xff]
  %v9209 = vld [vmem:[%s6849 + $0x38] sm:$0xff]
  %v9210 = vld [vmem:[%s6849 + $0x40] sm:$0xff]
  %v9211 = vld [vmem:[%s6849 + $0x48] sm:$0xff]
  %v9212 = vld [vmem:[%s6849 + $0x50] sm:$0xff]
  %v9213 = vld [vmem:[%s6849 + $0x58] sm:$0xff]
  %v9214 = vld [vmem:[%s6849 + $0x60] sm:$0xff]
  %v9215 = vld [vmem:[%s6849 + $0x68] sm:$0xff]
  %v9216 = vld [vmem:[%s6849 + $0x70] sm:$0xff]
  %v9217 = vld [vmem:[%s6849 + $0x78] sm:$0xff]
  %v9218 = vld [vmem:[%s6849 + $0x80] sm:$0xff]
  %v9219 = vld [vmem:[%s6849 + $0x88] sm:$0xff]
  %v9220 = vld [vmem:[%s6849 + $0x90] sm:$0xff]
  %v9221 = vld [vmem:[%s6849 + $0x98] sm:$0xff]
  %v9222 = vld [vmem:[%s6849 + $0xa0] sm:$0xff]
  %v9223 = vld [vmem:[%s6849 + $0xa8] sm:$0xff]
  %v9224 = vld [vmem:[%s6849 + $0xb0] sm:$0xff]
  %v9225 = vld [vmem:[%s6849 + $0xb8] sm:$0xff]
  %v9226 = vld [vmem:[%s6849 + $0xc0] sm:$0xff]
  %v9227 = vld [vmem:[%s6849 + $0xc8] sm:$0xff]
  %v9228 = vld [vmem:[%s6849 + $0xd0] sm:$0xff]
  %v9229 = vld [vmem:[%s6849 + $0xd8] sm:$0xff]
  %v9230 = vld [vmem:[%s6849 + $0xe0] sm:$0xff]
  %v9231 = vld [vmem:[%s6849 + $0xe8] sm:$0xff]
  %v9232 = vld [vmem:[%s6849 + $0xf0] sm:$0xff]
  %v9233 = vld [vmem:[%s6849 + $0xf8] sm:$0xff]
  %v9234 = vld [vmem:[%s6849 + $0x100] sm:$0xff]
  %v9235 = vld [vmem:[%s6849 + $0x108] sm:$0xff]
  %v9236 = vld [vmem:[%s6849 + $0x110] sm:$0xff]
  %v9237 = vld [vmem:[%s6849 + $0x118] sm:$0xff]
  %v9238 = vld [vmem:[%s6849 + $0x120] sm:$0xff]
  %v9239 = vld [vmem:[%s6849 + $0x128] sm:$0xff]
  %v9240 = vld [vmem:[%s6849 + $0x130] sm:$0xff]
  %v9241 = vld [vmem:[%s6849 + $0x138] sm:$0xff]
  %v9242 = vld [vmem:[%s6849 + $0x140] sm:$0xff]
  %v9243 = vld [vmem:[%s6849 + $0x148] sm:$0xff]
  %v9244 = vld [vmem:[%s6849 + $0x150] sm:$0xff]
  %v9245 = vld [vmem:[%s6849 + $0x158] sm:$0xff]
  %v9246 = vld [vmem:[%s6849 + $0x160] sm:$0xff]
  %v9247 = vld [vmem:[%s6849 + $0x168] sm:$0xff]
  %v9248 = vld [vmem:[%s6849 + $0x170] sm:$0xff]
  %v9249 = vld [vmem:[%s6849 + $0x178] sm:$0xff]
  %v9250 = vld [vmem:[%s6849 + $0x180] sm:$0xff]
  %v9251 = vld [vmem:[%s6849 + $0x188] sm:$0xff]
  %v9252 = vld [vmem:[%s6849 + $0x190] sm:$0xff]
  %v9253 = vld [vmem:[%s6849 + $0x198] sm:$0xff]
  %v9254 = vld [vmem:[%s6849 + $0x1a0] sm:$0xff]
  %v9255 = vld [vmem:[%s6849 + $0x1a8] sm:$0xff]
  %v9256 = vld [vmem:[%s6849 + $0x1b0] sm:$0xff]
  %v9257 = vld [vmem:[%s6849 + $0x1b8] sm:$0xff]
  %v9258 = vld [vmem:[%s6849 + $0x1c0] sm:$0xff]
  %v9259 = vld [vmem:[%s6849 + $0x1c8] sm:$0xff]
  %v9260 = vld [vmem:[%s6849 + $0x1d0] sm:$0xff]
  %v9261 = vld [vmem:[%s6849 + $0x1d8] sm:$0xff]
  %v9262 = vld [vmem:[%s6849 + $0x1e0] sm:$0xff]
  %v9263 = vld [vmem:[%s6849 + $0x1e8] sm:$0xff]
  %v9264 = vld [vmem:[%s6849 + $0x1f0] sm:$0xff]
  %v9265 = vld [vmem:[%s6849 + $0x1f8] sm:$0xff]
  %v9270 = vrot.slane %v9198, 7
  %v9271 = vrot.slane %v8921, 7
  %v9272 = vsel %vm330, %v9270, %v9271
  %v9273 = vrot.slane %v9199, 7
  %v9274 = vrot.slane %v8922, 7
  %v9275 = vsel %vm330, %v9273, %v9274
  %v9276 = vrot.slane %v8923, 7
  %v9277 = vsel %vm330, %v9271, %v9276
  %v9278 = vrot.slane %v8924, 7
  %v9279 = vsel %vm330, %v9274, %v9278
  %v9280 = vrot.slane %v8925, 7
  %v9281 = vsel %vm330, %v9276, %v9280
  %v9282 = vrot.slane %v8926, 7
  %v9283 = vsel %vm330, %v9278, %v9282
  %v9284 = vrot.slane %v8927, 7
  %v9285 = vsel %vm330, %v9280, %v9284
  %v9286 = vrot.slane %v8928, 7
  %v9287 = vsel %vm330, %v9282, %v9286
  %v9288 = vrot.slane %v8929, 7
  %v9289 = vsel %vm330, %v9284, %v9288
  %v9290 = vrot.slane %v8930, 7
  %v9291 = vsel %vm330, %v9286, %v9290
  %v9292 = vrot.slane %v8931, 7
  %v9293 = vsel %vm330, %v9288, %v9292
  %v9294 = vrot.slane %v8932, 7
  %v9295 = vsel %vm330, %v9290, %v9294
  %v9296 = vrot.slane %v8933, 7
  %v9297 = vsel %vm330, %v9292, %v9296
  %v9298 = vrot.slane %v8934, 7
  %v9299 = vsel %vm330, %v9294, %v9298
  %v9300 = vrot.slane %v9200, 7
  %v9301 = vsel %vm330, %v9296, %v9300
  %v9302 = vrot.slane %v9201, 7
  %v9303 = vsel %vm330, %v9298, %v9302
  %9320 = vmatprep.subr.mxu0 %v9233
  %9321 = vmatpush1.msra.mxu0 %v9232
  %9322 = vmatprep.subr.mxu0 %v9231
  %9323 = vmatpush1.msra.mxu0 %v9230
  %9324 = vmatprep.subr.mxu0 %v9229
  %9325 = vmatpush1.msra.mxu0 %v9228
  %9326 = vmatprep.subr.mxu0 %v9227
  %9327 = vmatpush1.msra.mxu0 %v9226
  %9328 = vmatprep.subr.mxu0 %v9225
  %9329 = vmatpush1.msra.mxu0 %v9224
  %9330 = vmatprep.subr.mxu0 %v9223
  %9331 = vmatpush1.msra.mxu0 %v9222
  %9332 = vmatprep.subr.mxu0 %v9221
  %9333 = vmatpush1.msra.mxu0 %v9220
  %9334 = vmatprep.subr.mxu0 %v9219
  %9335 = vmatpush1.msra.mxu0 %v9218
  %9336 = vmatprep.subr.mxu0 %v9217
  %9337 = vmatpush1.msra.mxu0 %v9216
  %9338 = vmatprep.subr.mxu0 %v9215
  %9339 = vmatpush1.msra.mxu0 %v9214
  %9340 = vmatprep.subr.mxu0 %v9213
  %9341 = vmatpush1.msra.mxu0 %v9212
  %9342 = vmatprep.subr.mxu0 %v9211
  %9343 = vmatpush1.msra.mxu0 %v9210
  %9344 = vmatprep.subr.mxu0 %v9209
  %9345 = vmatpush1.msra.mxu0 %v9208
  %9346 = vmatprep.subr.mxu0 %v9207
  %9347 = vmatpush1.msra.mxu0 %v9206
  %9348 = vmatprep.subr.mxu0 %v9205
  %9349 = vmatpush1.msra.mxu0 %v9204
  %9350 = vmatprep.subr.mxu0 %v9203
  %9351 = vmatpush1.msra.mxu0 %v9202
  %9352 = vmatprep.subr.mxu0 %v9265
  %9353 = vmatpush2.msra.mxu0 %v9264
  %9354 = vmatprep.subr.mxu0 %v9263
  %9355 = vmatpush2.msra.mxu0 %v9262
  %9356 = vmatprep.subr.mxu0 %v9261
  %9357 = vmatpush2.msra.mxu0 %v9260
  %9358 = vmatprep.subr.mxu0 %v9259
  %9359 = vmatpush2.msra.mxu0 %v9258
  %9360 = vmatprep.subr.mxu0 %v9257
  %9361 = vmatpush2.msra.mxu0 %v9256
  %9362 = vmatprep.subr.mxu0 %v9255
  %9363 = vmatpush2.msra.mxu0 %v9254
  %9364 = vmatprep.subr.mxu0 %v9253
  %9365 = vmatpush2.msra.mxu0 %v9252
  %9366 = vmatprep.subr.mxu0 %v9251
  %9367 = vmatpush2.msra.mxu0 %v9250
  %9368 = vmatprep.subr.mxu0 %v9249
  %9369 = vmatpush2.msra.mxu0 %v9248
  %9370 = vmatprep.subr.mxu0 %v9247
  %9371 = vmatpush2.msra.mxu0 %v9246
  %9372 = vmatprep.subr.mxu0 %v9245
  %9373 = vmatpush2.msra.mxu0 %v9244
  %9374 = vmatprep.subr.mxu0 %v9243
  %9375 = vmatpush2.msra.mxu0 %v9242
  %9376 = vmatprep.subr.mxu0 %v9241
  %9377 = vmatpush2.msra.mxu0 %v9240
  %9378 = vmatprep.subr.mxu0 %v9239
  %9379 = vmatpush2.msra.mxu0 %v9238
  %9380 = vmatprep.subr.mxu0 %v9237
  %9381 = vmatpush2.msra.mxu0 %v9236
  %9382 = vmatprep.subr.mxu0 %v9235
  %9383 = vmatpush2.msra.mxu0 %v9234
  %9384 = vmatprep.mubr.f32.mxu0 %v9275
  %9385 = vmatmul.mubr.f32.gmra.mxu0 %v9272
  %v9386 = vpop.f32.mrf.mxu0
  %v9387 = vadd.f32 0.0, %v9386
  %v9388 = vpop.f32.mrf.mxu0
  %v9389 = vadd.f32 0.0, %v9388
  %9390 = vmatprep.mubr.f32.mxu0 %v9279
  %9391 = vmatmul.mubr.f32.gmra.mxu0 %v9277
  %v9392 = vpop.f32.mrf.mxu0
  %v9393 = vadd.f32 0.0, %v9392
  %v9394 = vpop.f32.mrf.mxu0
  %v9395 = vadd.f32 0.0, %v9394
  %9396 = vmatprep.mubr.f32.mxu0 %v9283
  %9397 = vmatmul.mubr.f32.gmra.mxu0 %v9281
  %v9398 = vpop.f32.mrf.mxu0
  %v9399 = vadd.f32 0.0, %v9398
  %v9400 = vpop.f32.mrf.mxu0
  %v9401 = vadd.f32 0.0, %v9400
  %9402 = vmatprep.mubr.f32.mxu0 %v9287
  %9403 = vmatmul.mubr.f32.gmra.mxu0 %v9285
  %v9404 = vpop.f32.mrf.mxu0
  %v9405 = vadd.f32 0.0, %v9404
  %v9406 = vpop.f32.mrf.mxu0
  %v9407 = vadd.f32 0.0, %v9406
  %9408 = vmatprep.mubr.f32.mxu0 %v9291
  %9409 = vmatmul.mubr.f32.gmra.mxu0 %v9289
  %v9410 = vpop.f32.mrf.mxu0
  %v9411 = vadd.f32 0.0, %v9410
  %v9412 = vpop.f32.mrf.mxu0
  %v9413 = vadd.f32 0.0, %v9412
  %9414 = vmatprep.mubr.f32.mxu0 %v9295
  %9415 = vmatmul.mubr.f32.gmra.mxu0 %v9293
  %v9416 = vpop.f32.mrf.mxu0
  %v9417 = vadd.f32 0.0, %v9416
  %v9418 = vpop.f32.mrf.mxu0
  %v9419 = vadd.f32 0.0, %v9418
  %9420 = vmatprep.mubr.f32.mxu0 %v9299
  %9421 = vmatmul.mubr.f32.gmra.mxu0 %v9297
  %v9422 = vpop.f32.mrf.mxu0
  %v9423 = vadd.f32 0.0, %v9422
  %v9424 = vpop.f32.mrf.mxu0
  %v9425 = vadd.f32 0.0, %v9424
  %9426 = vmatprep.mubr.f32.mxu0 %v9303
  %9427 = vmatmul.mubr.f32.gmra.mxu0 %v9301
  %v9428 = vpop.f32.mrf.mxu0
  %v9429 = vadd.f32 0.0, %v9428
  %v9430 = vpop.f32.mrf.mxu0
  %v9431 = vadd.f32 0.0, %v9430
  %9432 = vdwg.mxu0
  %v9433 = vadd.f32 %v9182, %v9387
  %v9434 = vadd.f32 %v9183, %v9389
  %v9435 = vadd.f32 %v9184, %v9393
  %v9436 = vadd.f32 %v9185, %v9395
  %v9437 = vadd.f32 %v9186, %v9399
  %v9438 = vadd.f32 %v9187, %v9401
  %v9439 = vadd.f32 %v9188, %v9405
  %v9440 = vadd.f32 %v9189, %v9407
  %v9441 = vadd.f32 %v9190, %v9411
  %v9442 = vadd.f32 %v9191, %v9413
  %v9443 = vadd.f32 %v9192, %v9417
  %v9444 = vadd.f32 %v9193, %v9419
  %v9445 = vadd.f32 %v9194, %v9423
  %v9446 = vadd.f32 %v9195, %v9425
  %v9447 = vadd.f32 %v9196, %v9429
  %v9448 = vadd.f32 %v9197, %v9431
  %v9449 = vld [vmem:[#allocation2 + $0x120] sm:$0xff]
  %v9450 = vld [vmem:[#allocation2 + $0x128] sm:$0xff]
  %v9451 = vld [vmem:[%s7099] sm:$0xff]
  %v9452 = vld [vmem:[%s7099 + $0x8] sm:$0xff]
  %v9453 = vld [vmem:[%s7099 + $0x10] sm:$0xff]
  %v9454 = vld [vmem:[%s7099 + $0x18] sm:$0xff]
  %v9455 = vld [vmem:[%s7099 + $0x20] sm:$0xff]
  %v9456 = vld [vmem:[%s7099 + $0x28] sm:$0xff]
  %v9457 = vld [vmem:[%s7099 + $0x30] sm:$0xff]
  %v9458 = vld [vmem:[%s7099 + $0x38] sm:$0xff]
  %v9459 = vld [vmem:[%s7099 + $0x40] sm:$0xff]
  %v9460 = vld [vmem:[%s7099 + $0x48] sm:$0xff]
  %v9461 = vld [vmem:[%s7099 + $0x50] sm:$0xff]
  %v9462 = vld [vmem:[%s7099 + $0x58] sm:$0xff]
  %v9463 = vld [vmem:[%s7099 + $0x60] sm:$0xff]
  %v9464 = vld [vmem:[%s7099 + $0x68] sm:$0xff]
  %v9465 = vld [vmem:[%s7099 + $0x70] sm:$0xff]
  %v9466 = vld [vmem:[%s7099 + $0x78] sm:$0xff]
  %v9467 = vld [vmem:[%s7099 + $0x80] sm:$0xff]
  %v9468 = vld [vmem:[%s7099 + $0x88] sm:$0xff]
  %v9469 = vld [vmem:[%s7099 + $0x90] sm:$0xff]
  %v9470 = vld [vmem:[%s7099 + $0x98] sm:$0xff]
  %v9471 = vld [vmem:[%s7099 + $0xa0] sm:$0xff]
  %v9472 = vld [vmem:[%s7099 + $0xa8] sm:$0xff]
  %v9473 = vld [vmem:[%s7099 + $0xb0] sm:$0xff]
  %v9474 = vld [vmem:[%s7099 + $0xb8] sm:$0xff]
  %v9475 = vld [vmem:[%s7099 + $0xc0] sm:$0xff]
  %v9476 = vld [vmem:[%s7099 + $0xc8] sm:$0xff]
  %v9477 = vld [vmem:[%s7099 + $0xd0] sm:$0xff]
  %v9478 = vld [vmem:[%s7099 + $0xd8] sm:$0xff]
  %v9479 = vld [vmem:[%s7099 + $0xe0] sm:$0xff]
  %v9480 = vld [vmem:[%s7099 + $0xe8] sm:$0xff]
  %v9481 = vld [vmem:[%s7099 + $0xf0] sm:$0xff]
  %v9482 = vld [vmem:[%s7099 + $0xf8] sm:$0xff]
  %v9483 = vld [vmem:[%s7099 + $0x100] sm:$0xff]
  %v9484 = vld [vmem:[%s7099 + $0x108] sm:$0xff]
  %v9485 = vld [vmem:[%s7099 + $0x110] sm:$0xff]
  %v9486 = vld [vmem:[%s7099 + $0x118] sm:$0xff]
  %v9487 = vld [vmem:[%s7099 + $0x120] sm:$0xff]
  %v9488 = vld [vmem:[%s7099 + $0x128] sm:$0xff]
  %v9489 = vld [vmem:[%s7099 + $0x130] sm:$0xff]
  %v9490 = vld [vmem:[%s7099 + $0x138] sm:$0xff]
  %v9491 = vld [vmem:[%s7099 + $0x140] sm:$0xff]
  %v9492 = vld [vmem:[%s7099 + $0x148] sm:$0xff]
  %v9493 = vld [vmem:[%s7099 + $0x150] sm:$0xff]
  %v9494 = vld [vmem:[%s7099 + $0x158] sm:$0xff]
  %v9495 = vld [vmem:[%s7099 + $0x160] sm:$0xff]
  %v9496 = vld [vmem:[%s7099 + $0x168] sm:$0xff]
  %v9497 = vld [vmem:[%s7099 + $0x170] sm:$0xff]
  %v9498 = vld [vmem:[%s7099 + $0x178] sm:$0xff]
  %v9499 = vld [vmem:[%s7099 + $0x180] sm:$0xff]
  %v9500 = vld [vmem:[%s7099 + $0x188] sm:$0xff]
  %v9501 = vld [vmem:[%s7099 + $0x190] sm:$0xff]
  %v9502 = vld [vmem:[%s7099 + $0x198] sm:$0xff]
  %v9503 = vld [vmem:[%s7099 + $0x1a0] sm:$0xff]
  %v9504 = vld [vmem:[%s7099 + $0x1a8] sm:$0xff]
  %v9505 = vld [vmem:[%s7099 + $0x1b0] sm:$0xff]
  %v9506 = vld [vmem:[%s7099 + $0x1b8] sm:$0xff]
  %v9507 = vld [vmem:[%s7099 + $0x1c0] sm:$0xff]
  %v9508 = vld [vmem:[%s7099 + $0x1c8] sm:$0xff]
  %v9509 = vld [vmem:[%s7099 + $0x1d0] sm:$0xff]
  %v9510 = vld [vmem:[%s7099 + $0x1d8] sm:$0xff]
  %v9511 = vld [vmem:[%s7099 + $0x1e0] sm:$0xff]
  %v9512 = vld [vmem:[%s7099 + $0x1e8] sm:$0xff]
  %v9513 = vld [vmem:[%s7099 + $0x1f0] sm:$0xff]
  %v9514 = vld [vmem:[%s7099 + $0x1f8] sm:$0xff]
  %9515 = vmatprep.subr.mxu0 %v9482
  %9516 = vmatpush1.msra.mxu0 %v9481
  %9517 = vmatprep.subr.mxu0 %v9480
  %9518 = vmatpush1.msra.mxu0 %v9479
  %9519 = vmatprep.subr.mxu0 %v9478
  %9520 = vmatpush1.msra.mxu0 %v9477
  %9521 = vmatprep.subr.mxu0 %v9476
  %9522 = vmatpush1.msra.mxu0 %v9475
  %9523 = vmatprep.subr.mxu0 %v9474
  %9524 = vmatpush1.msra.mxu0 %v9473
  %9525 = vmatprep.subr.mxu0 %v9472
  %9526 = vmatpush1.msra.mxu0 %v9471
  %9527 = vmatprep.subr.mxu0 %v9470
  %9528 = vmatpush1.msra.mxu0 %v9469
  %9529 = vmatprep.subr.mxu0 %v9468
  %9530 = vmatpush1.msra.mxu0 %v9467
  %9531 = vmatprep.subr.mxu0 %v9466
  %9532 = vmatpush1.msra.mxu0 %v9465
  %9533 = vmatprep.subr.mxu0 %v9464
  %9534 = vmatpush1.msra.mxu0 %v9463
  %9535 = vmatprep.subr.mxu0 %v9462
  %9536 = vmatpush1.msra.mxu0 %v9461
  %9537 = vmatprep.subr.mxu0 %v9460
  %9538 = vmatpush1.msra.mxu0 %v9459
  %9539 = vmatprep.subr.mxu0 %v9458
  %9540 = vmatpush1.msra.mxu0 %v9457
  %9541 = vmatprep.subr.mxu0 %v9456
  %9542 = vmatpush1.msra.mxu0 %v9455
  %9543 = vmatprep.subr.mxu0 %v9454
  %9544 = vmatpush1.msra.mxu0 %v9453
  %9545 = vmatprep.subr.mxu0 %v9452
  %9546 = vmatpush1.msra.mxu0 %v9451
  %9547 = vmatprep.subr.mxu0 %v9514
  %9548 = vmatpush2.msra.mxu0 %v9513
  %9549 = vmatprep.subr.mxu0 %v9512
  %9550 = vmatpush2.msra.mxu0 %v9511
  %9551 = vmatprep.subr.mxu0 %v9510
  %9552 = vmatpush2.msra.mxu0 %v9509
  %9553 = vmatprep.subr.mxu0 %v9508
  %9554 = vmatpush2.msra.mxu0 %v9507
  %9555 = vmatprep.subr.mxu0 %v9506
  %9556 = vmatpush2.msra.mxu0 %v9505
  %9557 = vmatprep.subr.mxu0 %v9504
  %9558 = vmatpush2.msra.mxu0 %v9503
  %9559 = vmatprep.subr.mxu0 %v9502
  %9560 = vmatpush2.msra.mxu0 %v9501
  %9561 = vmatprep.subr.mxu0 %v9500
  %9562 = vmatpush2.msra.mxu0 %v9499
  %9563 = vmatprep.subr.mxu0 %v9498
  %9564 = vmatpush2.msra.mxu0 %v9497
  %9565 = vmatprep.subr.mxu0 %v9496
  %9566 = vmatpush2.msra.mxu0 %v9495
  %9567 = vmatprep.subr.mxu0 %v9494
  %9568 = vmatpush2.msra.mxu0 %v9493
  %9569 = vmatprep.subr.mxu0 %v9492
  %9570 = vmatpush2.msra.mxu0 %v9491
  %9571 = vmatprep.subr.mxu0 %v9490
  %9572 = vmatpush2.msra.mxu0 %v9489
  %9573 = vmatprep.subr.mxu0 %v9488
  %9574 = vmatpush2.msra.mxu0 %v9487
  %9575 = vmatprep.subr.mxu0 %v9486
  %9576 = vmatpush2.msra.mxu0 %v9485
  %9577 = vmatprep.subr.mxu0 %v9484
  %9578 = vmatpush2.msra.mxu0 %v9483
  %9579 = vmatprep.mubr.f32.mxu0 %v8922
  %9580 = vmatmul.mubr.f32.gmra.mxu0 %v8921
  %v9581 = vpop.f32.mrf.mxu0
  %v9582 = vadd.f32 0.0, %v9581
  %v9583 = vpop.f32.mrf.mxu0
  %v9584 = vadd.f32 0.0, %v9583
  %9585 = vmatprep.mubr.f32.mxu0 %v8924
  %9586 = vmatmul.mubr.f32.gmra.mxu0 %v8923
  %v9587 = vpop.f32.mrf.mxu0
  %v9588 = vadd.f32 0.0, %v9587
  %v9589 = vpop.f32.mrf.mxu0
  %v9590 = vadd.f32 0.0, %v9589
  %9591 = vmatprep.mubr.f32.mxu0 %v8926
  %9592 = vmatmul.mubr.f32.gmra.mxu0 %v8925
  %v9593 = vpop.f32.mrf.mxu0
  %v9594 = vadd.f32 0.0, %v9593
  %v9595 = vpop.f32.mrf.mxu0
  %v9596 = vadd.f32 0.0, %v9595
  %9597 = vmatprep.mubr.f32.mxu0 %v8928
  %9598 = vmatmul.mubr.f32.gmra.mxu0 %v8927
  %v9599 = vpop.f32.mrf.mxu0
  %v9600 = vadd.f32 0.0, %v9599
  %v9601 = vpop.f32.mrf.mxu0
  %v9602 = vadd.f32 0.0, %v9601
  %9603 = vmatprep.mubr.f32.mxu0 %v8930
  %9604 = vmatmul.mubr.f32.gmra.mxu0 %v8929
  %v9605 = vpop.f32.mrf.mxu0
  %v9606 = vadd.f32 0.0, %v9605
  %v9607 = vpop.f32.mrf.mxu0
  %v9608 = vadd.f32 0.0, %v9607
  %9609 = vmatprep.mubr.f32.mxu0 %v8932
  %9610 = vmatmul.mubr.f32.gmra.mxu0 %v8931
  %v9611 = vpop.f32.mrf.mxu0
  %v9612 = vadd.f32 0.0, %v9611
  %v9613 = vpop.f32.mrf.mxu0
  %v9614 = vadd.f32 0.0, %v9613
  %9615 = vmatprep.mubr.f32.mxu0 %v8934
  %9616 = vmatmul.mubr.f32.gmra.mxu0 %v8933
  %v9617 = vpop.f32.mrf.mxu0
  %v9618 = vadd.f32 0.0, %v9617
  %v9619 = vpop.f32.mrf.mxu0
  %v9620 = vadd.f32 0.0, %v9619
  %9621 = vmatprep.mubr.f32.mxu0 %v9450
  %9622 = vmatmul.mubr.f32.gmra.mxu0 %v9449
  %v9623 = vpop.f32.mrf.mxu0
  %v9624 = vadd.f32 0.0, %v9623
  %v9625 = vpop.f32.mrf.mxu0
  %v9626 = vadd.f32 0.0, %v9625
  %9627 = vdwg.mxu0
  %v9628 = vadd.f32 %v9433, %v9582
  %v9629 = vadd.f32 %v9434, %v9584
  %v9630 = vadd.f32 %v9435, %v9588
  %v9631 = vadd.f32 %v9436, %v9590
  %v9632 = vadd.f32 %v9437, %v9594
  %v9633 = vadd.f32 %v9438, %v9596
  %v9634 = vadd.f32 %v9439, %v9600
  %v9635 = vadd.f32 %v9440, %v9602
  %v9636 = vadd.f32 %v9441, %v9606
  %v9637 = vadd.f32 %v9442, %v9608
  %v9638 = vadd.f32 %v9443, %v9612
  %v9639 = vadd.f32 %v9444, %v9614
  %v9640 = vadd.f32 %v9445, %v9618
  %v9641 = vadd.f32 %v9446, %v9620
  %v9642 = vadd.f32 %v9447, %v9624
  %v9643 = vadd.f32 %v9448, %v9626
  %v9644 = vld [vmem:[#allocation2 + $0xb0] sm:$0xfe]
  %v9645 = vld [vmem:[#allocation2 + $0xb8] sm:$0xfe]
  %v9646 = vld [vmem:[#allocation2 + $0xc0] sm:$0xff]
  %v9647 = vld [vmem:[#allocation2 + $0xc8] sm:$0xff]
  %v9648 = vld [vmem:[#allocation2 + $0xd0] sm:$0xff]
  %v9649 = vld [vmem:[#allocation2 + $0xd8] sm:$0xff]
  %v9650 = vld [vmem:[#allocation2 + $0xe0] sm:$0xff]
  %v9651 = vld [vmem:[#allocation2 + $0xe8] sm:$0xff]
  %v9652 = vld [vmem:[#allocation2 + $0xf0] sm:$0xff]
  %v9653 = vld [vmem:[#allocation2 + $0xf8] sm:$0xff]
  %v9654 = vld [vmem:[#allocation2 + $0x100] sm:$0xff]
  %v9655 = vld [vmem:[#allocation2 + $0x108] sm:$0xff]
  %v9656 = vld [vmem:[#allocation2 + $0x110] sm:$0xff]
  %v9657 = vld [vmem:[#allocation2 + $0x118] sm:$0xff]
  %v9658 = vld [vmem:[#allocation2 + $0x120] sm:$0xff]
  %v9659 = vld [vmem:[#allocation2 + $0x128] sm:$0xff]
  %v9660 = vld [vmem:[#allocation2 + $0x130] sm:$0x1]
  %v9661 = vld [vmem:[#allocation2 + $0x138] sm:$0x1]
  %v9662 = vld [vmem:[%s7311] sm:$0xff]
  %v9663 = vld [vmem:[%s7311 + $0x8] sm:$0xff]
  %v9664 = vld [vmem:[%s7311 + $0x10] sm:$0xff]
  %v9665 = vld [vmem:[%s7311 + $0x18] sm:$0xff]
  %v9666 = vld [vmem:[%s7311 + $0x20] sm:$0xff]
  %v9667 = vld [vmem:[%s7311 + $0x28] sm:$0xff]
  %v9668 = vld [vmem:[%s7311 + $0x30] sm:$0xff]
  %v9669 = vld [vmem:[%s7311 + $0x38] sm:$0xff]
  %v9670 = vld [vmem:[%s7311 + $0x40] sm:$0xff]
  %v9671 = vld [vmem:[%s7311 + $0x48] sm:$0xff]
  %v9672 = vld [vmem:[%s7311 + $0x50] sm:$0xff]
  %v9673 = vld [vmem:[%s7311 + $0x58] sm:$0xff]
  %v9674 = vld [vmem:[%s7311 + $0x60] sm:$0xff]
  %v9675 = vld [vmem:[%s7311 + $0x68] sm:$0xff]
  %v9676 = vld [vmem:[%s7311 + $0x70] sm:$0xff]
  %v9677 = vld [vmem:[%s7311 + $0x78] sm:$0xff]
  %v9678 = vld [vmem:[%s7311 + $0x80] sm:$0xff]
  %v9679 = vld [vmem:[%s7311 + $0x88] sm:$0xff]
  %v9680 = vld [vmem:[%s7311 + $0x90] sm:$0xff]
  %v9681 = vld [vmem:[%s7311 + $0x98] sm:$0xff]
  %v9682 = vld [vmem:[%s7311 + $0xa0] sm:$0xff]
  %v9683 = vld [vmem:[%s7311 + $0xa8] sm:$0xff]
  %v9684 = vld [vmem:[%s7311 + $0xb0] sm:$0xff]
  %v9685 = vld [vmem:[%s7311 + $0xb8] sm:$0xff]
  %v9686 = vld [vmem:[%s7311 + $0xc0] sm:$0xff]
  %v9687 = vld [vmem:[%s7311 + $0xc8] sm:$0xff]
  %v9688 = vld [vmem:[%s7311 + $0xd0] sm:$0xff]
  %v9689 = vld [vmem:[%s7311 + $0xd8] sm:$0xff]
  %v9690 = vld [vmem:[%s7311 + $0xe0] sm:$0xff]
  %v9691 = vld [vmem:[%s7311 + $0xe8] sm:$0xff]
  %v9692 = vld [vmem:[%s7311 + $0xf0] sm:$0xff]
  %v9693 = vld [vmem:[%s7311 + $0xf8] sm:$0xff]
  %v9694 = vld [vmem:[%s7311 + $0x100] sm:$0xff]
  %v9695 = vld [vmem:[%s7311 + $0x108] sm:$0xff]
  %v9696 = vld [vmem:[%s7311 + $0x110] sm:$0xff]
  %v9697 = vld [vmem:[%s7311 + $0x118] sm:$0xff]
  %v9698 = vld [vmem:[%s7311 + $0x120] sm:$0xff]
  %v9699 = vld [vmem:[%s7311 + $0x128] sm:$0xff]
  %v9700 = vld [vmem:[%s7311 + $0x130] sm:$0xff]
  %v9701 = vld [vmem:[%s7311 + $0x138] sm:$0xff]
  %v9702 = vld [vmem:[%s7311 + $0x140] sm:$0xff]
  %v9703 = vld [vmem:[%s7311 + $0x148] sm:$0xff]
  %v9704 = vld [vmem:[%s7311 + $0x150] sm:$0xff]
  %v9705 = vld [vmem:[%s7311 + $0x158] sm:$0xff]
  %v9706 = vld [vmem:[%s7311 + $0x160] sm:$0xff]
  %v9707 = vld [vmem:[%s7311 + $0x168] sm:$0xff]
  %v9708 = vld [vmem:[%s7311 + $0x170] sm:$0xff]
  %v9709 = vld [vmem:[%s7311 + $0x178] sm:$0xff]
  %v9710 = vld [vmem:[%s7311 + $0x180] sm:$0xff]
  %v9711 = vld [vmem:[%s7311 + $0x188] sm:$0xff]
  %v9712 = vld [vmem:[%s7311 + $0x190] sm:$0xff]
  %v9713 = vld [vmem:[%s7311 + $0x198] sm:$0xff]
  %v9714 = vld [vmem:[%s7311 + $0x1a0] sm:$0xff]
  %v9715 = vld [vmem:[%s7311 + $0x1a8] sm:$0xff]
  %v9716 = vld [vmem:[%s7311 + $0x1b0] sm:$0xff]
  %v9717 = vld [vmem:[%s7311 + $0x1b8] sm:$0xff]
  %v9718 = vld [vmem:[%s7311 + $0x1c0] sm:$0xff]
  %v9719 = vld [vmem:[%s7311 + $0x1c8] sm:$0xff]
  %v9720 = vld [vmem:[%s7311 + $0x1d0] sm:$0xff]
  %v9721 = vld [vmem:[%s7311 + $0x1d8] sm:$0xff]
  %v9722 = vld [vmem:[%s7311 + $0x1e0] sm:$0xff]
  %v9723 = vld [vmem:[%s7311 + $0x1e8] sm:$0xff]
  %v9724 = vld [vmem:[%s7311 + $0x1f0] sm:$0xff]
  %v9725 = vld [vmem:[%s7311 + $0x1f8] sm:$0xff]
  %v9744 = vrot.slane %v9644, 1
  %v9745 = vrot.slane %v9646, 1
  %v9746 = vsel %vm595, %v9744, %v9745
  %v9747 = vrot.slane %v9645, 1
  %v9748 = vrot.slane %v9647, 1
  %v9749 = vsel %vm595, %v9747, %v9748
  %v9750 = vrot.slane %v9648, 1
  %v9751 = vsel %vm595, %v9745, %v9750
  %v9752 = vrot.slane %v9649, 1
  %v9753 = vsel %vm595, %v9748, %v9752
  %v9754 = vrot.slane %v9650, 1
  %v9755 = vsel %vm595, %v9750, %v9754
  %v9756 = vrot.slane %v9651, 1
  %v9757 = vsel %vm595, %v9752, %v9756
  %v9758 = vrot.slane %v9652, 1
  %v9759 = vsel %vm595, %v9754, %v9758
  %v9760 = vrot.slane %v9653, 1
  %v9761 = vsel %vm595, %v9756, %v9760
  %v9762 = vrot.slane %v9654, 1
  %v9763 = vsel %vm595, %v9758, %v9762
  %v9764 = vrot.slane %v9655, 1
  %v9765 = vsel %vm595, %v9760, %v9764
  %v9766 = vrot.slane %v9656, 1
  %v9767 = vsel %vm595, %v9762, %v9766
  %v9768 = vrot.slane %v9657, 1
  %v9769 = vsel %vm595, %v9764, %v9768
  %v9770 = vrot.slane %v9658, 1
  %v9771 = vsel %vm595, %v9766, %v9770
  %v9772 = vrot.slane %v9659, 1
  %v9773 = vsel %vm595, %v9768, %v9772
  %v9774 = vrot.slane %v9660, 1
  %v9775 = vsel %vm595, %v9770, %v9774
  %v9776 = vrot.slane %v9661, 1
  %v9777 = vsel %vm595, %v9772, %v9776
  %9794 = vmatprep.subr.mxu0 %v9693
  %9795 = vmatpush1.msra.mxu0 %v9692
  %9796 = vmatprep.subr.mxu0 %v9691
  %9797 = vmatpush1.msra.mxu0 %v9690
  %9798 = vmatprep.subr.mxu0 %v9689
  %9799 = vmatpush1.msra.mxu0 %v9688
  %9800 = vmatprep.subr.mxu0 %v9687
  %9801 = vmatpush1.msra.mxu0 %v9686
  %9802 = vmatprep.subr.mxu0 %v9685
  %9803 = vmatpush1.msra.mxu0 %v9684
  %9804 = vmatprep.subr.mxu0 %v9683
  %9805 = vmatpush1.msra.mxu0 %v9682
  %9806 = vmatprep.subr.mxu0 %v9681
  %9807 = vmatpush1.msra.mxu0 %v9680
  %9808 = vmatprep.subr.mxu0 %v9679
  %9809 = vmatpush1.msra.mxu0 %v9678
  %9810 = vmatprep.subr.mxu0 %v9677
  %9811 = vmatpush1.msra.mxu0 %v9676
  %9812 = vmatprep.subr.mxu0 %v9675
  %9813 = vmatpush1.msra.mxu0 %v9674
  %9814 = vmatprep.subr.mxu0 %v9673
  %9815 = vmatpush1.msra.mxu0 %v9672
  %9816 = vmatprep.subr.mxu0 %v9671
  %9817 = vmatpush1.msra.mxu0 %v9670
  %9818 = vmatprep.subr.mxu0 %v9669
  %9819 = vmatpush1.msra.mxu0 %v9668
  %9820 = vmatprep.subr.mxu0 %v9667
  %9821 = vmatpush1.msra.mxu0 %v9666
  %9822 = vmatprep.subr.mxu0 %v9665
  %9823 = vmatpush1.msra.mxu0 %v9664
  %9824 = vmatprep.subr.mxu0 %v9663
  %9825 = vmatpush1.msra.mxu0 %v9662
  %9826 = vmatprep.subr.mxu0 %v9725
  %9827 = vmatpush2.msra.mxu0 %v9724
  %9828 = vmatprep.subr.mxu0 %v9723
  %9829 = vmatpush2.msra.mxu0 %v9722
  %9830 = vmatprep.subr.mxu0 %v9721
  %9831 = vmatpush2.msra.mxu0 %v9720
  %9832 = vmatprep.subr.mxu0 %v9719
  %9833 = vmatpush2.msra.mxu0 %v9718
  %9834 = vmatprep.subr.mxu0 %v9717
  %9835 = vmatpush2.msra.mxu0 %v9716
  %9836 = vmatprep.subr.mxu0 %v9715
  %9837 = vmatpush2.msra.mxu0 %v9714
  %9838 = vmatprep.subr.mxu0 %v9713
  %9839 = vmatpush2.msra.mxu0 %v9712
  %9840 = vmatprep.subr.mxu0 %v9711
  %9841 = vmatpush2.msra.mxu0 %v9710
  %9842 = vmatprep.subr.mxu0 %v9709
  %9843 = vmatpush2.msra.mxu0 %v9708
  %9844 = vmatprep.subr.mxu0 %v9707
  %9845 = vmatpush2.msra.mxu0 %v9706
  %9846 = vmatprep.subr.mxu0 %v9705
  %9847 = vmatpush2.msra.mxu0 %v9704
  %9848 = vmatprep.subr.mxu0 %v9703
  %9849 = vmatpush2.msra.mxu0 %v9702
  %9850 = vmatprep.subr.mxu0 %v9701
  %9851 = vmatpush2.msra.mxu0 %v9700
  %9852 = vmatprep.subr.mxu0 %v9699
  %9853 = vmatpush2.msra.mxu0 %v9698
  %9854 = vmatprep.subr.mxu0 %v9697
  %9855 = vmatpush2.msra.mxu0 %v9696
  %9856 = vmatprep.subr.mxu0 %v9695
  %9857 = vmatpush2.msra.mxu0 %v9694
  %9858 = vmatprep.mubr.f32.mxu0 %v9749
  %9859 = vmatmul.mubr.f32.gmra.mxu0 %v9746
  %v9860 = vpop.f32.mrf.mxu0
  %v9861 = vadd.f32 0.0, %v9860
  %v9862 = vpop.f32.mrf.mxu0
  %v9863 = vadd.f32 0.0, %v9862
  %9864 = vmatprep.mubr.f32.mxu0 %v9753
  %9865 = vmatmul.mubr.f32.gmra.mxu0 %v9751
  %v9866 = vpop.f32.mrf.mxu0
  %v9867 = vadd.f32 0.0, %v9866
  %v9868 = vpop.f32.mrf.mxu0
  %v9869 = vadd.f32 0.0, %v9868
  %9870 = vmatprep.mubr.f32.mxu0 %v9757
  %9871 = vmatmul.mubr.f32.gmra.mxu0 %v9755
  %v9872 = vpop.f32.mrf.mxu0
  %v9873 = vadd.f32 0.0, %v9872
  %v9874 = vpop.f32.mrf.mxu0
  %v9875 = vadd.f32 0.0, %v9874
  %9876 = vmatprep.mubr.f32.mxu0 %v9761
  %9877 = vmatmul.mubr.f32.gmra.mxu0 %v9759
  %v9878 = vpop.f32.mrf.mxu0
  %v9879 = vadd.f32 0.0, %v9878
  %v9880 = vpop.f32.mrf.mxu0
  %v9881 = vadd.f32 0.0, %v9880
  %9882 = vmatprep.mubr.f32.mxu0 %v9765
  %9883 = vmatmul.mubr.f32.gmra.mxu0 %v9763
  %v9884 = vpop.f32.mrf.mxu0
  %v9885 = vadd.f32 0.0, %v9884
  %v9886 = vpop.f32.mrf.mxu0
  %v9887 = vadd.f32 0.0, %v9886
  %9888 = vmatprep.mubr.f32.mxu0 %v9769
  %9889 = vmatmul.mubr.f32.gmra.mxu0 %v9767
  %v9890 = vpop.f32.mrf.mxu0
  %v9891 = vadd.f32 0.0, %v9890
  %v9892 = vpop.f32.mrf.mxu0
  %v9893 = vadd.f32 0.0, %v9892
  %9894 = vmatprep.mubr.f32.mxu0 %v9773
  %9895 = vmatmul.mubr.f32.gmra.mxu0 %v9771
  %v9896 = vpop.f32.mrf.mxu0
  %v9897 = vadd.f32 0.0, %v9896
  %v9898 = vpop.f32.mrf.mxu0
  %v9899 = vadd.f32 0.0, %v9898
  %9900 = vmatprep.mubr.f32.mxu0 %v9777
  %9901 = vmatmul.mubr.f32.gmra.mxu0 %v9775
  %v9902 = vpop.f32.mrf.mxu0
  %v9903 = vadd.f32 0.0, %v9902
  %v9904 = vpop.f32.mrf.mxu0
  %v9905 = vadd.f32 0.0, %v9904
  %9906 = vdwg.mxu0
  %v9907 = vadd.f32 %v9628, %v9861
  %v9908 = vadd.f32 %v9629, %v9863
  %v9909 = vadd.f32 %v9630, %v9867
  %v9910 = vadd.f32 %v9631, %v9869
  %v9911 = vadd.f32 %v9632, %v9873
  %v9912 = vadd.f32 %v9633, %v9875
  %v9913 = vadd.f32 %v9634, %v9879
  %v9914 = vadd.f32 %v9635, %v9881
  %v9915 = vadd.f32 %v9636, %v9885
  %v9916 = vadd.f32 %v9637, %v9887
  %v9917 = vadd.f32 %v9638, %v9891
  %v9918 = vadd.f32 %v9639, %v9893
  %v9919 = vadd.f32 %v9640, %v9897
  %v9920 = vadd.f32 %v9641, %v9899
  %v9921 = vadd.f32 %v9642, %v9903
  %v9922 = vadd.f32 %v9643, %v9905
  %v9923 = vadd.f32 %v9907, %v7577
  %v9924 = vadd.f32 %v9908, %v7581
  %v9925 = vadd.f32 %v9909, %v7577
  %v9926 = vadd.f32 %v9910, %v7581
  %v9927 = vadd.f32 %v9911, %v7577
  %v9928 = vadd.f32 %v9912, %v7581
  %v9929 = vadd.f32 %v9913, %v7577
  %v9930 = vadd.f32 %v9914, %v7581
  %v9931 = vadd.f32 %v9915, %v7577
  %v9932 = vadd.f32 %v9916, %v7581
  %v9933 = vadd.f32 %v9917, %v7577
  %v9934 = vadd.f32 %v9918, %v7581
  %v9935 = vadd.f32 %v9919, %v7577
  %v9936 = vadd.f32 %v9920, %v7581
  %v9937 = vadd.f32 %v9921, %v7577
  %v9938 = vadd.f32 %v9922, %v7581
  %v9939 = vld [vmem:[%s1 + $0x40] sm:$0xff]
  %v9940 = vld [vmem:[%s1 + $0x48] sm:$0xff]
  %v9941 = vld [vmem:[%s1 + $0x50] sm:$0xff]
  %v9942 = vld [vmem:[%s1 + $0x58] sm:$0xff]
  %v9943 = vld [vmem:[%s1 + $0x60] sm:$0xff]
  %v9944 = vld [vmem:[%s1 + $0x68] sm:$0xff]
  %v9945 = vld [vmem:[%s1 + $0x70] sm:$0xff]
  %v9946 = vld [vmem:[%s1 + $0x78] sm:$0xff]
  %9948 = vset.pattern.permute.xlu0 0
  %9949 = vperm.xlu0 %9948, %v9939
  %v9950 = vpop.permute.xlu0 %9949
  %9953 = vset.pattern.permute.xlu0 0
  %9954 = vperm.xlu0 %9953, %v9940
  %v9955 = vpop.permute.xlu0 %9954
  %9958 = vset.pattern.permute.xlu0 0
  %9959 = vperm.xlu0 %9958, %v9941
  %v9960 = vpop.permute.xlu0 %9959
  %9963 = vset.pattern.permute.xlu0 0
  %9964 = vperm.xlu0 %9963, %v9942
  %v9965 = vpop.permute.xlu0 %9964
  %9968 = vset.pattern.permute.xlu0 0
  %9969 = vperm.xlu0 %9968, %v9943
  %v9970 = vpop.permute.xlu0 %9969
  %9973 = vset.pattern.permute.xlu0 0
  %9974 = vperm.xlu0 %9973, %v9944
  %v9975 = vpop.permute.xlu0 %9974
  %9978 = vset.pattern.permute.xlu0 0
  %9979 = vperm.xlu0 %9978, %v9945
  %v9980 = vpop.permute.xlu0 %9979
  %9983 = vset.pattern.permute.xlu0 0
  %9984 = vperm.xlu0 %9983, %v9946
  %v9985 = vpop.permute.xlu0 %9984
  %v9987 = vmul.f32 %v9923, %v9950
  %v9988 = vmul.f32 %v9924, %v9950
  %v9989 = vmul.f32 %v9925, %v9955
  %v9990 = vmul.f32 %v9926, %v9955
  %v9991 = vmul.f32 %v9927, %v9960
  %v9992 = vmul.f32 %v9928, %v9960
  %v9993 = vmul.f32 %v9929, %v9965
  %v9994 = vmul.f32 %v9930, %v9965
  %v9995 = vmul.f32 %v9931, %v9970
  %v9996 = vmul.f32 %v9932, %v9970
  %v9997 = vmul.f32 %v9933, %v9975
  %v9998 = vmul.f32 %v9934, %v9975
  %v9999 = vmul.f32 %v9935, %v9980
  %v10000 = vmul.f32 %v9936, %v9980
  %v10001 = vmul.f32 %v9937, %v9985
  %v10002 = vmul.f32 %v9938, %v9985
  %v10003 = vadd.f32 %v9987, %v9989
  %v10004 = vadd.f32 %v10003, %v9991
  %v10005 = vadd.f32 %v10004, %v9993
  %v10006 = vadd.f32 %v10005, %v9995
  %v10007 = vadd.f32 %v10006, %v9997
  %v10008 = vadd.f32 %v10007, %v9999
  %v10009 = vadd.f32 %v10008, %v10001
  %v10010 = vrot.slane %v10009, 4
  %v10011 = vadd.f32 %v10009, %v10010
  %v10012 = vrot.slane %v10011, 2
  %v10013 = vadd.f32 %v10011, %v10012
  %v10014 = vrot.slane %v10013, 1
  %v10015 = vadd.f32 %v10013, %v10014
  %v10016 = vadd.f32 %v9988, %v9990
  %v10017 = vadd.f32 %v10016, %v9992
  %v10018 = vadd.f32 %v10017, %v9994
  %v10019 = vadd.f32 %v10018, %v9996
  %v10020 = vadd.f32 %v10019, %v9998
  %v10021 = vadd.f32 %v10020, %v10000
  %v10022 = vadd.f32 %v10021, %v10002
  %v10023 = vrot.slane %v10022, 4
  %v10024 = vadd.f32 %v10022, %v10023
  %v10025 = vrot.slane %v10024, 2
  %v10026 = vadd.f32 %v10024, %v10025
  %v10027 = vrot.slane %v10026, 1
  %v10028 = vadd.f32 %v10026, %v10027
  %v10029 = vadd.f32 %v7690, %v10015
  %v10030 = vadd.f32 %v7691, %v10028
  %v10031 = vmul.f32 %v9987, %v9987
  %v10032 = vmul.f32 %v9988, %v9988
  %v10033 = vmul.f32 %v9989, %v9989
  %v10034 = vmul.f32 %v9990, %v9990
  %v10035 = vmul.f32 %v9991, %v9991
  %v10036 = vmul.f32 %v9992, %v9992
  %v10037 = vmul.f32 %v9993, %v9993
  %v10038 = vmul.f32 %v9994, %v9994
  %v10039 = vmul.f32 %v9995, %v9995
  %v10040 = vmul.f32 %v9996, %v9996
  %v10041 = vmul.f32 %v9997, %v9997
  %v10042 = vmul.f32 %v9998, %v9998
  %v10043 = vmul.f32 %v9999, %v9999
  %v10044 = vmul.f32 %v10000, %v10000
  %v10045 = vmul.f32 %v10001, %v10001
  %v10046 = vmul.f32 %v10002, %v10002
  %v10047 = vadd.f32 %v10031, %v10033
  %v10048 = vadd.f32 %v10047, %v10035
  %v10049 = vadd.f32 %v10048, %v10037
  %v10050 = vadd.f32 %v10049, %v10039
  %v10051 = vadd.f32 %v10050, %v10041
  %v10052 = vadd.f32 %v10051, %v10043
  %v10053 = vadd.f32 %v10052, %v10045
  %v10054 = vrot.slane %v10053, 4
  %v10055 = vadd.f32 %v10053, %v10054
  %v10056 = vrot.slane %v10055, 2
  %v10057 = vadd.f32 %v10055, %v10056
  %v10058 = vrot.slane %v10057, 1
  %v10059 = vadd.f32 %v10057, %v10058
  %v10060 = vadd.f32 %v10032, %v10034
  %v10061 = vadd.f32 %v10060, %v10036
  %v10062 = vadd.f32 %v10061, %v10038
  %v10063 = vadd.f32 %v10062, %v10040
  %v10064 = vadd.f32 %v10063, %v10042
  %v10065 = vadd.f32 %v10064, %v10044
  %v10066 = vadd.f32 %v10065, %v10046
  %v10067 = vrot.slane %v10066, 4
  %v10068 = vadd.f32 %v10066, %v10067
  %v10069 = vrot.slane %v10068, 2
  %v10070 = vadd.f32 %v10068, %v10069
  %v10071 = vrot.slane %v10070, 1
  %v10072 = vadd.f32 %v10070, %v10071
  %v10073 = vadd.f32 %v7734, %v10059
  %v10074 = vadd.f32 %v7735, %v10072
  %10075 = vst [vmem:[%s12 + $0x80] sm:$0xff] %v9987
  %10076 = vst [vmem:[%s12 + $0x88] sm:$0xff] %v9988
  %10077 = vst [vmem:[%s12 + $0x90] sm:$0xff] %v9989
  %10078 = vst [vmem:[%s12 + $0x98] sm:$0xff] %v9990
  %10079 = vst [vmem:[%s12 + $0xa0] sm:$0xff] %v9991
  %10080 = vst [vmem:[%s12 + $0xa8] sm:$0xff] %v9992
  %10081 = vst [vmem:[%s12 + $0xb0] sm:$0xff] %v9993
  %10082 = vst [vmem:[%s12 + $0xb8] sm:$0xff] %v9994
  %10083 = vst [vmem:[%s12 + $0xc0] sm:$0xff] %v9995
  %10084 = vst [vmem:[%s12 + $0xc8] sm:$0xff] %v9996
  %10085 = vst [vmem:[%s12 + $0xd0] sm:$0xff] %v9997
  %10086 = vst [vmem:[%s12 + $0xd8] sm:$0xff] %v9998
  %10087 = vst [vmem:[%s12 + $0xe0] sm:$0xff] %v9999
  %10088 = vst [vmem:[%s12 + $0xe8] sm:$0xff] %v10000
  %10089 = vst [vmem:[%s12 + $0xf0] sm:$0xff] %v10001
  %10090 = vst [vmem:[%s12 + $0xf8] sm:$0xff] %v10002
  %v10091 = vld [vmem:[%s10] sm:$0xff]
  %v10092 = vld [vmem:[%s10 + $0x8] sm:$0xff]
  %v10093 = vld [vmem:[%s10 + $0x10] sm:$0xff]
  %v10094 = vld [vmem:[%s10 + $0x18] sm:$0xff]
  %v10095 = vld [vmem:[%s10 + $0x20] sm:$0xff]
  %v10096 = vld [vmem:[%s10 + $0x28] sm:$0xff]
  %v10097 = vld [vmem:[%s10 + $0x30] sm:$0xff]
  %v10098 = vld [vmem:[%s10 + $0x38] sm:$0xff]
  %v10099 = vld [vmem:[%s10 + $0x40] sm:$0xff]
  %v10100 = vld [vmem:[%s10 + $0x48] sm:$0xff]
  %v10101 = vld [vmem:[%s10 + $0x50] sm:$0xff]
  %v10102 = vld [vmem:[%s10 + $0x58] sm:$0xff]
  %v10103 = vld [vmem:[%s10 + $0x60] sm:$0xff]
  %v10104 = vld [vmem:[%s10 + $0x68] sm:$0xff]
  %v10105 = vld [vmem:[%s10 + $0x70] sm:$0xff]
  %v10106 = vld [vmem:[%s10 + $0x78] sm:$0xff]
  %v10107 = vld [vmem:[%s10 + $0x80] sm:$0xff]
  %v10108 = vld [vmem:[%s10 + $0x88] sm:$0xff]
  %v10109 = vld [vmem:[%s10 + $0x90] sm:$0xff]
  %v10110 = vld [vmem:[%s10 + $0x98] sm:$0xff]
  %v10111 = vld [vmem:[%s10 + $0xa0] sm:$0xff]
  %v10112 = vld [vmem:[%s10 + $0xa8] sm:$0xff]
  %v10113 = vld [vmem:[%s10 + $0xb0] sm:$0xff]
  %v10114 = vld [vmem:[%s10 + $0xb8] sm:$0xff]
  %v10115 = vld [vmem:[%s10 + $0xc0] sm:$0xff]
  %v10116 = vld [vmem:[%s10 + $0xc8] sm:$0xff]
  %v10117 = vld [vmem:[%s10 + $0xd0] sm:$0xff]
  %v10118 = vld [vmem:[%s10 + $0xd8] sm:$0xff]
  %v10119 = vld [vmem:[%s10 + $0xe0] sm:$0xff]
  %v10120 = vld [vmem:[%s10 + $0xe8] sm:$0xff]
  %v10121 = vld [vmem:[%s10 + $0xf0] sm:$0xff]
  %v10122 = vld [vmem:[%s10 + $0xf8] sm:$0xff]
  %10123 = vmatprep.subr.mxu0 0.0
  %10124 = vmatpush1.msra.mxu0 %v10106
  %10125 = vmatprep.subr.mxu0 0.0
  %10126 = vmatpush1.msra.mxu0 %v10105
  %10127 = vmatprep.subr.mxu0 0.0
  %10128 = vmatpush1.msra.mxu0 %v10104
  %10129 = vmatprep.subr.mxu0 0.0
  %10130 = vmatpush1.msra.mxu0 %v10103
  %10131 = vmatprep.subr.mxu0 0.0
  %10132 = vmatpush1.msra.mxu0 %v10102
  %10133 = vmatprep.subr.mxu0 0.0
  %10134 = vmatpush1.msra.mxu0 %v10101
  %10135 = vmatprep.subr.mxu0 0.0
  %10136 = vmatpush1.msra.mxu0 %v10100
  %10137 = vmatprep.subr.mxu0 0.0
  %10138 = vmatpush1.msra.mxu0 %v10099
  %10139 = vmatprep.subr.mxu0 0.0
  %10140 = vmatpush1.msra.mxu0 %v10098
  %10141 = vmatprep.subr.mxu0 0.0
  %10142 = vmatpush1.msra.mxu0 %v10097
  %10143 = vmatprep.subr.mxu0 0.0
  %10144 = vmatpush1.msra.mxu0 %v10096
  %10145 = vmatprep.subr.mxu0 0.0
  %10146 = vmatpush1.msra.mxu0 %v10095
  %10147 = vmatprep.subr.mxu0 0.0
  %10148 = vmatpush1.msra.mxu0 %v10094
  %10149 = vmatprep.subr.mxu0 0.0
  %10150 = vmatpush1.msra.mxu0 %v10093
  %10151 = vmatprep.subr.mxu0 0.0
  %10152 = vmatpush1.msra.mxu0 %v10092
  %10153 = vmatprep.subr.mxu0 0.0
  %10154 = vmatpush1.msra.mxu0 %v10091
  %10155 = vmatprep.subr.mxu0 0.0
  %10156 = vmatpush2.msra.mxu0 %v10122
  %10157 = vmatprep.subr.mxu0 0.0
  %10158 = vmatpush2.msra.mxu0 %v10121
  %10159 = vmatprep.subr.mxu0 0.0
  %10160 = vmatpush2.msra.mxu0 %v10120
  %10161 = vmatprep.subr.mxu0 0.0
  %10162 = vmatpush2.msra.mxu0 %v10119
  %10163 = vmatprep.subr.mxu0 0.0
  %10164 = vmatpush2.msra.mxu0 %v10118
  %10165 = vmatprep.subr.mxu0 0.0
  %10166 = vmatpush2.msra.mxu0 %v10117
  %10167 = vmatprep.subr.mxu0 0.0
  %10168 = vmatpush2.msra.mxu0 %v10116
  %10169 = vmatprep.subr.mxu0 0.0
  %10170 = vmatpush2.msra.mxu0 %v10115
  %10171 = vmatprep.subr.mxu0 0.0
  %10172 = vmatpush2.msra.mxu0 %v10114
  %10173 = vmatprep.subr.mxu0 0.0
  %10174 = vmatpush2.msra.mxu0 %v10113
  %10175 = vmatprep.subr.mxu0 0.0
  %10176 = vmatpush2.msra.mxu0 %v10112
  %10177 = vmatprep.subr.mxu0 0.0
  %10178 = vmatpush2.msra.mxu0 %v10111
  %10179 = vmatprep.subr.mxu0 0.0
  %10180 = vmatpush2.msra.mxu0 %v10110
  %10181 = vmatprep.subr.mxu0 0.0
  %10182 = vmatpush2.msra.mxu0 %v10109
  %10183 = vmatprep.subr.mxu0 0.0
  %10184 = vmatpush2.msra.mxu0 %v10108
  %10185 = vmatprep.subr.mxu0 0.0
  %10186 = vmatpush2.msra.mxu0 %v10107
  %10187 = vmatprep.mubr.f32.mxu0 %v10030
  %10188 = vmatmul.mubr.f32.gmra.mxu0 %v10029
  %v10189 = vpop.f32.mrf.mxu0
  %v10190 = vadd.f32 0.0, %v10189
  %v10191 = vpop.f32.mrf.mxu0
  %10192 = vdwg.mxu0
  %v10193 = vmul.f32 %v10190, 0.0023148148
  %10194 = vmatprep.subr.mxu0 0.0
  %10195 = vmatpush1.msra.mxu0 %v10106
  %10196 = vmatprep.subr.mxu0 0.0
  %10197 = vmatpush1.msra.mxu0 %v10105
  %10198 = vmatprep.subr.mxu0 0.0
  %10199 = vmatpush1.msra.mxu0 %v10104
  %10200 = vmatprep.subr.mxu0 0.0
  %10201 = vmatpush1.msra.mxu0 %v10103
  %10202 = vmatprep.subr.mxu0 0.0
  %10203 = vmatpush1.msra.mxu0 %v10102
  %10204 = vmatprep.subr.mxu0 0.0
  %10205 = vmatpush1.msra.mxu0 %v10101
  %10206 = vmatprep.subr.mxu0 0.0
  %10207 = vmatpush1.msra.mxu0 %v10100
  %10208 = vmatprep.subr.mxu0 0.0
  %10209 = vmatpush1.msra.mxu0 %v10099
  %10210 = vmatprep.subr.mxu0 0.0
  %10211 = vmatpush1.msra.mxu0 %v10098
  %10212 = vmatprep.subr.mxu0 0.0
  %10213 = vmatpush1.msra.mxu0 %v10097
  %10214 = vmatprep.subr.mxu0 0.0
  %10215 = vmatpush1.msra.mxu0 %v10096
  %10216 = vmatprep.subr.mxu0 0.0
  %10217 = vmatpush1.msra.mxu0 %v10095
  %10218 = vmatprep.subr.mxu0 0.0
  %10219 = vmatpush1.msra.mxu0 %v10094
  %10220 = vmatprep.subr.mxu0 0.0
  %10221 = vmatpush1.msra.mxu0 %v10093
  %10222 = vmatprep.subr.mxu0 0.0
  %10223 = vmatpush1.msra.mxu0 %v10092
  %10224 = vmatprep.subr.mxu0 0.0
  %10225 = vmatpush1.msra.mxu0 %v10091
  %10226 = vmatprep.subr.mxu0 0.0
  %10227 = vmatpush2.msra.mxu0 %v10122
  %10228 = vmatprep.subr.mxu0 0.0
  %10229 = vmatpush2.msra.mxu0 %v10121
  %10230 = vmatprep.subr.mxu0 0.0
  %10231 = vmatpush2.msra.mxu0 %v10120
  %10232 = vmatprep.subr.mxu0 0.0
  %10233 = vmatpush2.msra.mxu0 %v10119
  %10234 = vmatprep.subr.mxu0 0.0
  %10235 = vmatpush2.msra.mxu0 %v10118
  %10236 = vmatprep.subr.mxu0 0.0
  %10237 = vmatpush2.msra.mxu0 %v10117
  %10238 = vmatprep.subr.mxu0 0.0
  %10239 = vmatpush2.msra.mxu0 %v10116
  %10240 = vmatprep.subr.mxu0 0.0
  %10241 = vmatpush2.msra.mxu0 %v10115
  %10242 = vmatprep.subr.mxu0 0.0
  %10243 = vmatpush2.msra.mxu0 %v10114
  %10244 = vmatprep.subr.mxu0 0.0
  %10245 = vmatpush2.msra.mxu0 %v10113
  %10246 = vmatprep.subr.mxu0 0.0
  %10247 = vmatpush2.msra.mxu0 %v10112
  %10248 = vmatprep.subr.mxu0 0.0
  %10249 = vmatpush2.msra.mxu0 %v10111
  %10250 = vmatprep.subr.mxu0 0.0
  %10251 = vmatpush2.msra.mxu0 %v10110
  %10252 = vmatprep.subr.mxu0 0.0
  %10253 = vmatpush2.msra.mxu0 %v10109
  %10254 = vmatprep.subr.mxu0 0.0
  %10255 = vmatpush2.msra.mxu0 %v10108
  %10256 = vmatprep.subr.mxu0 0.0
  %10257 = vmatpush2.msra.mxu0 %v10107
  %10258 = vmatprep.mubr.f32.mxu0 %v10074
  %10259 = vmatmul.mubr.f32.gmra.mxu0 %v10073
  %v10260 = vpop.f32.mrf.mxu0
  %v10261 = vadd.f32 0.0, %v10260
  %v10262 = vpop.f32.mrf.mxu0
  %10263 = vdwg.mxu0
  %v10264 = vmul.f32 %v10261, 0.0023148148
  %v10265 = vmul.f32 %v10193, %v10193
  %v10266 = vsub.f32 %v10264, %v10265
  %v10267 = vld [vmem:[%s8] sm:$0x1]
  %v10268 = vadd.f32 %v10266, 1e-05
  %v10269 = vrsqrt.pop %v10268
  %v10270 = vmul.f32 %v10267, %v10269
  %v10271 = vld [vmem:[%s9] sm:$0x1]
  %v10272 = vmul.f32 %v10193, %v10270
  %v10273 = vsub.f32 %v10271, %v10272
  %v10274 = vld [vmem:[%s11] sm:$0xff]
  %v10275 = vld [vmem:[%s11 + $0x8] sm:$0xff]
  %v10276 = vld [vmem:[%s11 + $0x10] sm:$0xff]
  %v10277 = vld [vmem:[%s11 + $0x18] sm:$0xff]
  %v10278 = vld [vmem:[%s11 + $0x20] sm:$0xff]
  %v10279 = vld [vmem:[%s11 + $0x28] sm:$0xff]
  %v10280 = vld [vmem:[%s11 + $0x30] sm:$0xff]
  %v10281 = vld [vmem:[%s11 + $0x38] sm:$0xff]
  %v10283 = vsel %vm4940, %v10270, 0
  %10285 = vmatprep.subr.mxu0 0.0
  %10286 = vmatpush1.msra.mxu0 0.0
  %10287 = vmatprep.subr.mxu0 0.0
  %10288 = vmatpush1.msra.mxu0 0.0
  %10289 = vmatprep.subr.mxu0 0.0
  %10290 = vmatpush1.msra.mxu0 0.0
  %10291 = vmatprep.subr.mxu0 0.0
  %10292 = vmatpush1.msra.mxu0 0.0
  %10293 = vmatprep.subr.mxu0 0.0
  %10294 = vmatpush1.msra.mxu0 0.0
  %10295 = vmatprep.subr.mxu0 0.0
  %10296 = vmatpush1.msra.mxu0 0.0
  %10297 = vmatprep.subr.mxu0 0.0
  %10298 = vmatpush1.msra.mxu0 0.0
  %10299 = vmatprep.subr.mxu0 0.0
  %10300 = vmatpush1.msra.mxu0 0.0
  %10301 = vmatprep.subr.mxu0 0.0
  %10302 = vmatpush1.msra.mxu0 0.0
  %10303 = vmatprep.subr.mxu0 0.0
  %10304 = vmatpush1.msra.mxu0 0.0
  %10305 = vmatprep.subr.mxu0 0.0
  %10306 = vmatpush1.msra.mxu0 0.0
  %10307 = vmatprep.subr.mxu0 0.0
  %10308 = vmatpush1.msra.mxu0 0.0
  %10309 = vmatprep.subr.mxu0 %v10281
  %10310 = vmatpush1.msra.mxu0 %v10280
  %10311 = vmatprep.subr.mxu0 %v10279
  %10312 = vmatpush1.msra.mxu0 %v10278
  %10313 = vmatprep.subr.mxu0 %v10277
  %10314 = vmatpush1.msra.mxu0 %v10276
  %10315 = vmatprep.subr.mxu0 %v10275
  %10316 = vmatpush1.msra.mxu0 %v10274
  %10317 = vmatprep.subr.mxu0 0.0
  %10318 = vmatpush2.msra.mxu0 0.0
  %10319 = vmatprep.subr.mxu0 0.0
  %10320 = vmatpush2.msra.mxu0 0.0
  %10321 = vmatprep.subr.mxu0 0.0
  %10322 = vmatpush2.msra.mxu0 0.0
  %10323 = vmatprep.subr.mxu0 0.0
  %10324 = vmatpush2.msra.mxu0 0.0
  %10325 = vmatprep.subr.mxu0 0.0
  %10326 = vmatpush2.msra.mxu0 0.0
  %10327 = vmatprep.subr.mxu0 0.0
  %10328 = vmatpush2.msra.mxu0 0.0
  %10329 = vmatprep.subr.mxu0 0.0
  %10330 = vmatpush2.msra.mxu0 0.0
  %10331 = vmatprep.subr.mxu0 0.0
  %10332 = vmatpush2.msra.mxu0 0.0
  %10333 = vmatprep.subr.mxu0 0.0
  %10334 = vmatpush2.msra.mxu0 0.0
  %10335 = vmatprep.subr.mxu0 0.0
  %10336 = vmatpush2.msra.mxu0 0.0
  %10337 = vmatprep.subr.mxu0 0.0
  %10338 = vmatpush2.msra.mxu0 0.0
  %10339 = vmatprep.subr.mxu0 0.0
  %10340 = vmatpush2.msra.mxu0 0.0
  %10341 = vmatprep.subr.mxu0 0.0
  %10342 = vmatpush2.msra.mxu0 0.0
  %10343 = vmatprep.subr.mxu0 0.0
  %10344 = vmatpush2.msra.mxu0 0.0
  %10345 = vmatprep.subr.mxu0 0.0
  %10346 = vmatpush2.msra.mxu0 0.0
  %10347 = vmatprep.subr.mxu0 0.0
  %10348 = vmatpush2.msra.mxu0 0.0
  %10349 = vmatprep.mubr.f32.mxu0 0.0
  %10350 = vmatmul.mubr.f32.gmra.mxu0 %v10283
  %v10351 = vpop.f32.mrf.mxu0
  %v10352 = vadd.f32 0.0, %v10351
  %v10353 = vpop.f32.mrf.mxu0
  %v10354 = vadd.f32 0.0, %v10353
  %10355 = vdwg.mxu0
  %v10357 = vsel %vm4940, %v10273, 0
  %10359 = vmatprep.subr.mxu0 0.0
  %10360 = vmatpush1.msra.mxu0 0.0
  %10361 = vmatprep.subr.mxu0 0.0
  %10362 = vmatpush1.msra.mxu0 0.0
  %10363 = vmatprep.subr.mxu0 0.0
  %10364 = vmatpush1.msra.mxu0 0.0
  %10365 = vmatprep.subr.mxu0 0.0
  %10366 = vmatpush1.msra.mxu0 0.0
  %10367 = vmatprep.subr.mxu0 0.0
  %10368 = vmatpush1.msra.mxu0 0.0
  %10369 = vmatprep.subr.mxu0 0.0
  %10370 = vmatpush1.msra.mxu0 0.0
  %10371 = vmatprep.subr.mxu0 0.0
  %10372 = vmatpush1.msra.mxu0 0.0
  %10373 = vmatprep.subr.mxu0 0.0
  %10374 = vmatpush1.msra.mxu0 0.0
  %10375 = vmatprep.subr.mxu0 0.0
  %10376 = vmatpush1.msra.mxu0 0.0
  %10377 = vmatprep.subr.mxu0 0.0
  %10378 = vmatpush1.msra.mxu0 0.0
  %10379 = vmatprep.subr.mxu0 0.0
  %10380 = vmatpush1.msra.mxu0 0.0
  %10381 = vmatprep.subr.mxu0 0.0
  %10382 = vmatpush1.msra.mxu0 0.0
  %10383 = vmatprep.subr.mxu0 %v10281
  %10384 = vmatpush1.msra.mxu0 %v10280
  %10385 = vmatprep.subr.mxu0 %v10279
  %10386 = vmatpush1.msra.mxu0 %v10278
  %10387 = vmatprep.subr.mxu0 %v10277
  %10388 = vmatpush1.msra.mxu0 %v10276
  %10389 = vmatprep.subr.mxu0 %v10275
  %10390 = vmatpush1.msra.mxu0 %v10274
  %10391 = vmatprep.subr.mxu0 0.0
  %10392 = vmatpush2.msra.mxu0 0.0
  %10393 = vmatprep.subr.mxu0 0.0
  %10394 = vmatpush2.msra.mxu0 0.0
  %10395 = vmatprep.subr.mxu0 0.0
  %10396 = vmatpush2.msra.mxu0 0.0
  %10397 = vmatprep.subr.mxu0 0.0
  %10398 = vmatpush2.msra.mxu0 0.0
  %10399 = vmatprep.subr.mxu0 0.0
  %10400 = vmatpush2.msra.mxu0 0.0
  %10401 = vmatprep.subr.mxu0 0.0
  %10402 = vmatpush2.msra.mxu0 0.0
  %10403 = vmatprep.subr.mxu0 0.0
  %10404 = vmatpush2.msra.mxu0 0.0
  %10405 = vmatprep.subr.mxu0 0.0
  %10406 = vmatpush2.msra.mxu0 0.0
  %10407 = vmatprep.subr.mxu0 0.0
  %10408 = vmatpush2.msra.mxu0 0.0
  %10409 = vmatprep.subr.mxu0 0.0
  %10410 = vmatpush2.msra.mxu0 0.0
  %10411 = vmatprep.subr.mxu0 0.0
  %10412 = vmatpush2.msra.mxu0 0.0
  %10413 = vmatprep.subr.mxu0 0.0
  %10414 = vmatpush2.msra.mxu0 0.0
  %10415 = vmatprep.subr.mxu0 0.0
  %10416 = vmatpush2.msra.mxu0 0.0
  %10417 = vmatprep.subr.mxu0 0.0
  %10418 = vmatpush2.msra.mxu0 0.0
  %10419 = vmatprep.subr.mxu0 0.0
  %10420 = vmatpush2.msra.mxu0 0.0
  %10421 = vmatprep.subr.mxu0 0.0
  %10422 = vmatpush2.msra.mxu0 0.0
  %10423 = vmatprep.mubr.f32.mxu0 0.0
  %10424 = vmatmul.mubr.f32.gmra.mxu0 %v10357
  %v10425 = vpop.f32.mrf.mxu0
  %v10426 = vadd.f32 0.0, %v10425
  %v10427 = vpop.f32.mrf.mxu0
  %v10428 = vadd.f32 0.0, %v10427
  %10429 = vdwg.mxu0
  %v10430 = vld [vmem:[%s12] sm:$0xff]
  %v10431 = vld [vmem:[%s12 + $0x8] sm:$0xff]
  %v10432 = vld [vmem:[%s12 + $0x10] sm:$0xff]
  %v10433 = vld [vmem:[%s12 + $0x18] sm:$0xff]
  %v10434 = vld [vmem:[%s12 + $0x20] sm:$0xff]
  %v10435 = vld [vmem:[%s12 + $0x28] sm:$0xff]
  %v10436 = vld [vmem:[%s12 + $0x30] sm:$0xff]
  %v10437 = vld [vmem:[%s12 + $0x38] sm:$0xff]
  %v10438 = vld [vmem:[%s12 + $0x40] sm:$0xff]
  %v10439 = vld [vmem:[%s12 + $0x48] sm:$0xff]
  %v10440 = vld [vmem:[%s12 + $0x50] sm:$0xff]
  %v10441 = vld [vmem:[%s12 + $0x58] sm:$0xff]
  %v10442 = vld [vmem:[%s12 + $0x60] sm:$0xff]
  %v10443 = vld [vmem:[%s12 + $0x68] sm:$0xff]
  %v10444 = vld [vmem:[%s12 + $0x70] sm:$0xff]
  %v10445 = vld [vmem:[%s12 + $0x78] sm:$0xff]
  %v10446 = vld [vmem:[%s0 + $0x20] sm:$0xff]
  %v10447 = vld [vmem:[%s0 + $0x28] sm:$0xff]
  %v10448 = vld [vmem:[%s0 + $0x30] sm:$0xff]
  %v10449 = vld [vmem:[%s0 + $0x38] sm:$0xff]
  %v10450 = vld [vmem:[%s0 + $0x40] sm:$0xff]
  %v10451 = vld [vmem:[%s0 + $0x48] sm:$0xff]
  %v10452 = vld [vmem:[%s0 + $0x50] sm:$0xff]
  %v10453 = vld [vmem:[%s0 + $0x58] sm:$0xff]
  %v10454 = vld [vmem:[%s0 + $0x60] sm:$0xff]
  %v10455 = vld [vmem:[%s0 + $0x68] sm:$0xff]
  %v10456 = vld [vmem:[%s0 + $0x70] sm:$0xff]
  %v10457 = vld [vmem:[%s0 + $0x78] sm:$0xff]
  %v10458 = vld [vmem:[%s0 + $0x80] sm:$0xff]
  %v10459 = vld [vmem:[%s0 + $0x88] sm:$0xff]
  %v10460 = vld [vmem:[%s0 + $0x90] sm:$0xff]
  %v10461 = vld [vmem:[%s0 + $0x98] sm:$0xff]
  %v10462 = vlaneseq
  %v10463 = vshrl.u32 %v10462, 7
  %v10464 = vsub.s32 0, %v10463
  %v10465 = vrot.slane %v10352, %v10464
  %v10466 = vlaneseq
  %v10467 = vshrl.u32 %v10466, 7
  %v10468 = vsub.s32 0, %v10467
  %v10469 = vrot.slane %v10354, %v10468
  %v10470 = vmul.f32 %v10430, %v10465
  %v10471 = vmul.f32 %v10431, %v10469
  %v10472 = vmul.f32 %v10432, %v10465
  %v10473 = vmul.f32 %v10433, %v10469
  %v10474 = vmul.f32 %v10434, %v10465
  %v10475 = vmul.f32 %v10435, %v10469
  %v10476 = vmul.f32 %v10436, %v10465
  %v10477 = vmul.f32 %v10437, %v10469
  %v10478 = vmul.f32 %v10438, %v10465
  %v10479 = vmul.f32 %v10439, %v10469
  %v10480 = vmul.f32 %v10440, %v10465
  %v10481 = vmul.f32 %v10441, %v10469
  %v10482 = vmul.f32 %v10442, %v10465
  %v10483 = vmul.f32 %v10443, %v10469
  %v10484 = vmul.f32 %v10444, %v10465
  %v10485 = vmul.f32 %v10445, %v10469
  %v10486 = vlaneseq
  %v10487 = vshrl.u32 %v10486, 7
  %v10488 = vsub.s32 0, %v10487
  %v10489 = vrot.slane %v10426, %v10488
  %v10490 = vlaneseq
  %v10491 = vshrl.u32 %v10490, 7
  %v10492 = vsub.s32 0, %v10491
  %v10493 = vrot.slane %v10428, %v10492
  %v10494 = vadd.f32 %v10470, %v10489
  %v10495 = vadd.f32 %v10471, %v10493
  %v10496 = vadd.f32 %v10472, %v10489
  %v10497 = vadd.f32 %v10473, %v10493
  %v10498 = vadd.f32 %v10474, %v10489
  %v10499 = vadd.f32 %v10475, %v10493
  %v10500 = vadd.f32 %v10476, %v10489
  %v10501 = vadd.f32 %v10477, %v10493
  %v10502 = vadd.f32 %v10478, %v10489
  %v10503 = vadd.f32 %v10479, %v10493
  %v10504 = vadd.f32 %v10480, %v10489
  %v10505 = vadd.f32 %v10481, %v10493
  %v10506 = vadd.f32 %v10482, %v10489
  %v10507 = vadd.f32 %v10483, %v10493
  %v10508 = vadd.f32 %v10484, %v10489
  %v10509 = vadd.f32 %v10485, %v10493
  %v10510 = vadd.f32 %v10446, %v10494
  %v10511 = vadd.f32 %v10447, %v10495
  %v10512 = vadd.f32 %v10448, %v10496
  %v10513 = vadd.f32 %v10449, %v10497
  %v10514 = vadd.f32 %v10450, %v10498
  %v10515 = vadd.f32 %v10451, %v10499
  %v10516 = vadd.f32 %v10452, %v10500
  %v10517 = vadd.f32 %v10453, %v10501
  %v10518 = vadd.f32 %v10454, %v10502
  %v10519 = vadd.f32 %v10455, %v10503
  %v10520 = vadd.f32 %v10456, %v10504
  %v10521 = vadd.f32 %v10457, %v10505
  %v10522 = vadd.f32 %v10458, %v10506
  %v10523 = vadd.f32 %v10459, %v10507
  %v10524 = vadd.f32 %v10460, %v10508
  %v10525 = vadd.f32 %v10461, %v10509
  %10526 = vst [vmem:[%s12] sm:$0xff] %v10510
  %10527 = vst [vmem:[%s12 + $0x8] sm:$0xff] %v10511
  %10528 = vst [vmem:[%s12 + $0x10] sm:$0xff] %v10512
  %10529 = vst [vmem:[%s12 + $0x18] sm:$0xff] %v10513
  %10530 = vst [vmem:[%s12 + $0x20] sm:$0xff] %v10514
  %10531 = vst [vmem:[%s12 + $0x28] sm:$0xff] %v10515
  %10532 = vst [vmem:[%s12 + $0x30] sm:$0xff] %v10516
  %10533 = vst [vmem:[%s12 + $0x38] sm:$0xff] %v10517
  %10534 = vst [vmem:[%s12 + $0x40] sm:$0xff] %v10518
  %10535 = vst [vmem:[%s12 + $0x48] sm:$0xff] %v10519
  %10536 = vst [vmem:[%s12 + $0x50] sm:$0xff] %v10520
  %10537 = vst [vmem:[%s12 + $0x58] sm:$0xff] %v10521
  %10538 = vst [vmem:[%s12 + $0x60] sm:$0xff] %v10522
  %10539 = vst [vmem:[%s12 + $0x68] sm:$0xff] %v10523
  %10540 = vst [vmem:[%s12 + $0x70] sm:$0xff] %v10524
  %10541 = vst [vmem:[%s12 + $0x78] sm:$0xff] %v10525
  %v10542 = vld [vmem:[%s12 + $0x80] sm:$0xff]
  %v10543 = vld [vmem:[%s12 + $0x88] sm:$0xff]
  %v10544 = vld [vmem:[%s12 + $0x90] sm:$0xff]
  %v10545 = vld [vmem:[%s12 + $0x98] sm:$0xff]
  %v10546 = vld [vmem:[%s12 + $0xa0] sm:$0xff]
  %v10547 = vld [vmem:[%s12 + $0xa8] sm:$0xff]
  %v10548 = vld [vmem:[%s12 + $0xb0] sm:$0xff]
  %v10549 = vld [vmem:[%s12 + $0xb8] sm:$0xff]
  %v10550 = vld [vmem:[%s12 + $0xc0] sm:$0xff]
  %v10551 = vld [vmem:[%s12 + $0xc8] sm:$0xff]
  %v10552 = vld [vmem:[%s12 + $0xd0] sm:$0xff]
  %v10553 = vld [vmem:[%s12 + $0xd8] sm:$0xff]
  %v10554 = vld [vmem:[%s12 + $0xe0] sm:$0xff]
  %v10555 = vld [vmem:[%s12 + $0xe8] sm:$0xff]
  %v10556 = vld [vmem:[%s12 + $0xf0] sm:$0xff]
  %v10557 = vld [vmem:[%s12 + $0xf8] sm:$0xff]
  %v10558 = vld [vmem:[%s0 + $0xa0] sm:$0xff]
  %v10559 = vld [vmem:[%s0 + $0xa8] sm:$0xff]
  %v10560 = vld [vmem:[%s0 + $0xb0] sm:$0xff]
  %v10561 = vld [vmem:[%s0 + $0xb8] sm:$0xff]
  %v10562 = vld [vmem:[%s0 + $0xc0] sm:$0xff]
  %v10563 = vld [vmem:[%s0 + $0xc8] sm:$0xff]
  %v10564 = vld [vmem:[%s0 + $0xd0] sm:$0xff]
  %v10565 = vld [vmem:[%s0 + $0xd8] sm:$0xff]
  %v10566 = vld [vmem:[%s0 + $0xe0] sm:$0xff]
  %v10567 = vld [vmem:[%s0 + $0xe8] sm:$0xff]
  %v10568 = vld [vmem:[%s0 + $0xf0] sm:$0xff]
  %v10569 = vld [vmem:[%s0 + $0xf8] sm:$0xff]
  %v10570 = vld [vmem:[%s0 + $0x100] sm:$0xff]
  %v10571 = vld [vmem:[%s0 + $0x108] sm:$0xff]
  %v10572 = vld [vmem:[%s0 + $0x110] sm:$0xff]
  %v10573 = vld [vmem:[%s0 + $0x118] sm:$0xff]
  %v10574 = vmul.f32 %v10542, %v10465
  %v10575 = vmul.f32 %v10543, %v10469
  %v10576 = vmul.f32 %v10544, %v10465
  %v10577 = vmul.f32 %v10545, %v10469
  %v10578 = vmul.f32 %v10546, %v10465
  %v10579 = vmul.f32 %v10547, %v10469
  %v10580 = vmul.f32 %v10548, %v10465
  %v10581 = vmul.f32 %v10549, %v10469
  %v10582 = vmul.f32 %v10550, %v10465
  %v10583 = vmul.f32 %v10551, %v10469
  %v10584 = vmul.f32 %v10552, %v10465
  %v10585 = vmul.f32 %v10553, %v10469
  %v10586 = vmul.f32 %v10554, %v10465
  %v10587 = vmul.f32 %v10555, %v10469
  %v10588 = vmul.f32 %v10556, %v10465
  %v10589 = vmul.f32 %v10557, %v10469
  %v10590 = vadd.f32 %v10574, %v10489
  %v10591 = vadd.f32 %v10575, %v10493
  %v10592 = vadd.f32 %v10576, %v10489
  %v10593 = vadd.f32 %v10577, %v10493
  %v10594 = vadd.f32 %v10578, %v10489
  %v10595 = vadd.f32 %v10579, %v10493
  %v10596 = vadd.f32 %v10580, %v10489
  %v10597 = vadd.f32 %v10581, %v10493
  %v10598 = vadd.f32 %v10582, %v10489
  %v10599 = vadd.f32 %v10583, %v10493
  %v10600 = vadd.f32 %v10584, %v10489
  %v10601 = vadd.f32 %v10585, %v10493
  %v10602 = vadd.f32 %v10586, %v10489
  %v10603 = vadd.f32 %v10587, %v10493
  %v10604 = vadd.f32 %v10588, %v10489
  %v10605 = vadd.f32 %v10589, %v10493
  %v10606 = vadd.f32 %v10558, %v10590
  %v10607 = vadd.f32 %v10559, %v10591
  %v10608 = vadd.f32 %v10560, %v10592
  %v10609 = vadd.f32 %v10561, %v10593
  %v10610 = vadd.f32 %v10562, %v10594
  %v10611 = vadd.f32 %v10563, %v10595
  %v10612 = vadd.f32 %v10564, %v10596
  %v10613 = vadd.f32 %v10565, %v10597
  %v10614 = vadd.f32 %v10566, %v10598
  %v10615 = vadd.f32 %v10567, %v10599
  %v10616 = vadd.f32 %v10568, %v10600
  %v10617 = vadd.f32 %v10569, %v10601
  %v10618 = vadd.f32 %v10570, %v10602
  %v10619 = vadd.f32 %v10571, %v10603
  %v10620 = vadd.f32 %v10572, %v10604
  %v10621 = vadd.f32 %v10573, %v10605
  %10622 = vst [vmem:[%s12 + $0x80] sm:$0xff] %v10606
  %10623 = vst [vmem:[%s12 + $0x88] sm:$0xff] %v10607
  %10624 = vst [vmem:[%s12 + $0x90] sm:$0xff] %v10608
  %10625 = vst [vmem:[%s12 + $0x98] sm:$0xff] %v10609
  %10626 = vst [vmem:[%s12 + $0xa0] sm:$0xff] %v10610
  %10627 = vst [vmem:[%s12 + $0xa8] sm:$0xff] %v10611
  %10628 = vst [vmem:[%s12 + $0xb0] sm:$0xff] %v10612
  %10629 = vst [vmem:[%s12 + $0xb8] sm:$0xff] %v10613
  %10630 = vst [vmem:[%s12 + $0xc0] sm:$0xff] %v10614
  %10631 = vst [vmem:[%s12 + $0xc8] sm:$0xff] %v10615
  %10632 = vst [vmem:[%s12 + $0xd0] sm:$0xff] %v10616
  %10633 = vst [vmem:[%s12 + $0xd8] sm:$0xff] %v10617
  %10634 = vst [vmem:[%s12 + $0xe0] sm:$0xff] %v10618
  %10635 = vst [vmem:[%s12 + $0xe8] sm:$0xff] %v10619
  %10636 = vst [vmem:[%s12 + $0xf0] sm:$0xff] %v10620
  %10637 = vst [vmem:[%s12 + $0xf8] sm:$0xff] %v10621
  // Predicated region
  $region50: #{resnet_block.1} parent=0 // pred_check
    _
  $region51: #{resnet_block.1} parent=0 // pred_check_branch
    %10639 = sbr.rel (0) target = $region53
  $region52: #{resnet_block.1} parent=0 // pred_region
    _
  $region53: #{resnet_block.1} parent=0 // pred_fallthru
    _
  // Predicated region
  $region54: #{resnet_block.1} parent=0 // pred_check
    _
  $region55: #{resnet_block.1} parent=0 // pred_check_branch
    %10641 = sbr.rel (0) target = $region57
  $region56: #{resnet_block.1} parent=0 // pred_region
    _
  $region57: #{resnet_block.1} parent=0 // pred_fallthru
    _

</llo_original>
